<compile_context>
chip_gen: v7x
topology: tpu7x:2x2x1
jax: 0.10.0
libtpu: 0.0.40
codegen_flags: <defaults>
</compile_context>

<pallas_src>
import functools

import jax
import jax.numpy as jnp
import numpy as np
from jax.experimental import pallas as pl
from jax.experimental.pallas import tpu as pltpu

OUTPUT_DIM = 7
BN_EPS = 1e-5

# Geometry pinned by the module: fc expects 120 = 8*3*5 features, which forces
# conv2 out 3x5 -> conv1 out 7x9 -> input spatial 14x18.
H_IN, W_IN = 14, 18
GRID = H_IN * W_IN          # 252 flattened spatial positions
C_IN = 3584
OC = 8                      # output channels of conv1 / conv2
TAPS = 9                    # 3x3 kernels
TAP_ROWS = TAPS * OC        # 72
H1O, W1O = 7, 9             # conv1 output (stride 2, pad 1)
H2O, W2O = 3, 5             # conv2 output (stride 2, pad (0, 1))
N_CHUNKS = 4                # channel chunks for the conv1 reduction pipeline


# ----------------------------------------------------------------------------
# Precomputed constants: boundary masks for both convs + the column selector
# that picks the 15 valid conv2 outputs off the shared 14x18 grid.
# ----------------------------------------------------------------------------
def _build_constants():
    mask1 = np.zeros((TAPS, GRID), np.float32)
    mask2 = np.zeros((TAPS, GRID), np.float32)
    for t in range(TAPS):
        i, j = divmod(t, 3)
        # conv1: destination grid position (2*oh, 2*ow); source pixel
        # (2*oh + i - 1, 2*ow + j - 1) must lie inside the 14x18 image.
        for oh in range(H1O):
            for ow in range(W1O):
                sh, sw = 2 * oh + i - 1, 2 * ow + j - 1
                if 0 <= sh < H_IN and 0 <= sw < W_IN:
                    mask1[t, (2 * oh) * W_IN + 2 * ow] = 1.0
        # conv2 (pad=(0,1)): destination grid index 72*oh2 + 4*ow2; source h1
        # position (2*oh2 + i, 2*ow2 + j - 1) must lie inside the 7x9 map.
        for oh2 in range(H2O):
            for ow2 in range(W2O):
                sh, sw = 2 * oh2 + i, 2 * ow2 + j - 1
                if 0 <= sh < H1O and 0 <= sw < W1O:
                    mask2[t, (4 * oh2) * W_IN + 4 * ow2] = 1.0
    sel = np.zeros((GRID, H2O * W2O), np.float32)
    for oh2 in range(H2O):
        for ow2 in range(W2O):
            sel[(4 * oh2) * W_IN + 4 * ow2, oh2 * W2O + ow2] = 1.0
    return jnp.asarray(mask1), jnp.asarray(mask2), jnp.asarray(sel)


def _shift_lanes(q, delta):
    """r[:, m] = q[:, m + delta]; zero-filled outside [0, cols).  delta static."""
    rows, cols = q.shape
    if delta == 0:
        return q
    if delta > 0:
        return jnp.concatenate(
            [q[:, delta:], jnp.zeros((rows, delta), q.dtype)], axis=1)
    return jnp.concatenate(
        [jnp.zeros((rows, -delta), q.dtype), q[:, :cols + delta]], axis=1)


# ----------------------------------------------------------------------------
# The fused whole-network kernel.
# Grid axis 0 = channel chunks of conv1's reduction (arbitrary / accumulating).
# ----------------------------------------------------------------------------
def _calanet_kernel(batch, x_ref, w1_ref, mask1_ref, mask2_ref, w2_ref,
                    bn1s_ref, bn1b_ref, bn2s_ref, bn2b_ref,
                    sel_ref, fc1w_ref, fc1b_ref, fc2w_ref, fc2b_ref,
                    out_ref, qacc_ref):
    k = pl.program_id(0)

    @pl.when(k == 0)
    def _():
        qacc_ref[...] = jnp.zeros_like(qacc_ref)

    # Stage 1: conv1 partial products for this channel chunk.  One matmul per
    # image computes all 9 taps x 8 output channels over the whole 14x18 grid.
    w1c = w1_ref[...]                                    # (72, ck)
    for b in range(batch):
        qacc_ref[b] = qacc_ref[b] + jnp.dot(
            w1c, x_ref[b], preferred_element_type=jnp.float32)

    # Stage 2 (last chunk only): tap combine + BN1/ReLU + conv2 + BN2/ReLU + fc.
    @pl.when(k == pl.num_programs(0) - 1)
    def _():
        m1 = mask1_ref[...]                              # (9, 252)
        m2 = mask2_ref[...]                              # (9, 252)
        w2 = w2_ref[...]                                 # (9, 8, 8)  [t, oc, ic]
        sel = sel_ref[...]                               # (252, 15)
        fc1w = fc1w_ref[...]                             # (8, 15, 100)
        s1, t1 = bn1s_ref[...], bn1b_ref[...]            # (8, 1)
        s2, t2 = bn2s_ref[...], bn2b_ref[...]            # (8, 1)
        fc2w = fc2w_ref[...]                             # (100, 7)

        for b in range(batch):
            q = qacc_ref[b]                              # (72, 252)

            # conv1: shift each tap's full-grid product onto the output grid
            # (stride-2 centers live at even grid positions) and mask padding.
            acc1 = jnp.zeros((OC, GRID), jnp.float32)
            for t in range(TAPS):
                i, j = divmod(t, 3)
                delta = (i - 1) * W_IN + (j - 1)
                qt = q[t * OC:(t + 1) * OC, :]
                acc1 = acc1 + _shift_lanes(qt, delta) * m1[t:t + 1, :]
            h1 = jnp.maximum(acc1 * s1 + t1, 0.0)        # (8, 252) BN1 + ReLU

            # conv2 on the same flattened grid (pad=(0,1) handled by mask2).
            acc2 = jnp.zeros((OC, GRID), jnp.float32)
            for t in range(TAPS):
                i, j = divmod(t, 3)
                delta = (2 * i) * W_IN + 2 * j - 2
                q2 = jnp.dot(w2[t], h1, preferred_element_type=jnp.float32)
                acc2 = acc2 + _shift_lanes(q2, delta) * m2[t:t + 1, :]
            h2 = jnp.maximum(acc2 * s2 + t2, 0.0)        # (8, 252) BN2 + ReLU

            # Compact the 15 valid conv2 outputs, then the two fc layers
            # (torch's (c, h, w) flatten order is folded into fc1's weights).
            h2c = jnp.dot(h2, sel, preferred_element_type=jnp.float32)  # (8,15)
            z1 = fc1b_ref[...]                           # (1, 100)
            for c in range(OC):
                z1 = z1 + jnp.dot(h2c[c:c + 1, :], fc1w[c],
                                  preferred_element_type=jnp.float32)
            z1 = jnp.maximum(z1, 0.0)
            y = jnp.dot(z1, fc2w, preferred_element_type=jnp.float32) \
                + fc2b_ref[...]                          # (1, 7)
            out_ref[pl.ds(b, 1), :] = y


def calanet_forward(kp, x):
    """x: (B, 3584, 14, 18) f32 -> (B, 7) f32.  Inference semantics."""
    B, C, H, W = x.shape
    assert (C, H, W) == (C_IN, H_IN, W_IN), (C, H, W)
    assert C % N_CHUNKS == 0
    ck = C // N_CHUNKS
    x2d = x.reshape(B, C, H * W)            # layout-preserving (free) reshape

    grid_spec = pltpu.PrefetchScalarGridSpec(
        num_scalar_prefetch=0,
        grid=(N_CHUNKS,),
        in_specs=[
            pl.BlockSpec((B, ck, GRID), lambda k: (0, k, 0)),        # x
            pl.BlockSpec((TAP_ROWS, ck), lambda k: (0, k)),          # w1
            pl.BlockSpec((TAPS, GRID), lambda k: (0, 0)),            # mask1
            pl.BlockSpec((TAPS, GRID), lambda k: (0, 0)),            # mask2
            pl.BlockSpec((TAPS, OC, OC), lambda k: (0, 0, 0)),       # w2
            pl.BlockSpec((OC, 1), lambda k: (0, 0)),                 # bn1 scale
            pl.BlockSpec((OC, 1), lambda k: (0, 0)),                 # bn1 shift
            pl.BlockSpec((OC, 1), lambda k: (0, 0)),                 # bn2 scale
            pl.BlockSpec((OC, 1), lambda k: (0, 0)),                 # bn2 shift
            pl.BlockSpec((GRID, H2O * W2O), lambda k: (0, 0)),       # sel
            pl.BlockSpec((OC, H2O * W2O, 100), lambda k: (0, 0, 0)),  # fc1 w
            pl.BlockSpec((1, 100), lambda k: (0, 0)),                # fc1 b
            pl.BlockSpec((100, OUTPUT_DIM), lambda k: (0, 0)),       # fc2 w
            pl.BlockSpec((1, OUTPUT_DIM), lambda k: (0, 0)),         # fc2 b
        ],
        out_specs=pl.BlockSpec((B, OUTPUT_DIM), lambda k: (0, 0)),
        scratch_shapes=[pltpu.VMEM((B, TAP_ROWS, GRID), jnp.float32)],
    )
    kernel = functools.partial(_calanet_kernel, B)
    return pl.pallas_call(
        kernel,
        out_shape=jax.ShapeDtypeStruct((B, OUTPUT_DIM), jnp.float32),
        grid_spec=grid_spec,
        compiler_params=pltpu.CompilerParams(
            dimension_semantics=("arbitrary",)),
    )(x2d, kp["w1"], kp["mask1"], kp["mask2"], kp["w2"],
      kp["bn1_scale"], kp["bn1_shift"], kp["bn2_scale"], kp["bn2_shift"],
      kp["sel"], kp["fc1_w"], kp["fc1_b"], kp["fc2_w"], kp["fc2_b"])


# ----------------------------------------------------------------------------
# One-time parameter preparation (hoisted out of the forward pass).
# ----------------------------------------------------------------------------
def prepare_params(p):
    mask1, mask2, sel = _build_constants()
    # conv1 weights, tap-major rows: w1[(i*3+j)*8 + o, c] = conv1_w[o, c, i, j]
    w1 = jnp.transpose(p["conv1_w"], (2, 3, 0, 1)).reshape(TAP_ROWS, C_IN)
    # conv2 weights per tap: w2[t, o, c] = conv2_w[o, c, i, j]
    w2 = jnp.transpose(p["conv2_w"], (2, 3, 0, 1)).reshape(TAPS, OC, OC)
    s1 = p["bn1_gamma"] / jnp.sqrt(p["bn1_var"] + BN_EPS)
    t1 = p["bn1_beta"] + (p["conv1_b"] - p["bn1_mean"]) * s1
    s2 = p["bn2_gamma"] / jnp.sqrt(p["bn2_var"] + BN_EPS)
    t2 = p["bn2_beta"] + (p["conv2_b"] - p["bn2_mean"]) * s2
    # fc1 weights grouped per conv2 channel: fc1w[c, p, n] = fc1_w[n, c*15 + p]
    fc1w = jnp.transpose(p["fc1_w"].reshape(100, OC, H2O * W2O), (1, 2, 0))
    return {
        "w1": w1.astype(jnp.float32),
        "w2": w2.astype(jnp.float32),
        "mask1": mask1, "mask2": mask2, "sel": sel,
        "bn1_scale": s1.reshape(OC, 1).astype(jnp.float32),
        "bn1_shift": t1.reshape(OC, 1).astype(jnp.float32),
        "bn2_scale": s2.reshape(OC, 1).astype(jnp.float32),
        "bn2_shift": t2.reshape(OC, 1).astype(jnp.float32),
        "fc1_w": fc1w.astype(jnp.float32),
        "fc1_b": p["fc1_b"].reshape(1, 100).astype(jnp.float32),
        "fc2_w": p["fc2_w"].T.astype(jnp.float32),
        "fc2_b": p["fc2_b"].reshape(1, OUTPUT_DIM).astype(jnp.float32),
    }


# ----------------------------------------------------------------------------
# Deterministic synthetic parameters (PyTorch-layout shapes).
# ----------------------------------------------------------------------------
def init_params(key):
    ks = jax.random.split(key, 16)
    nrm = lambda k, shape, s: jax.random.normal(k, shape, jnp.float32) * s
    return {
        "conv1_w": nrm(ks[0], (8, C_IN, 3, 3), 1.0 / np.sqrt(C_IN * 9)),
        "conv1_b": nrm(ks[1], (8,), 0.1),
        "bn1_gamma": 1.0 + nrm(ks[2], (8,), 0.1),
        "bn1_beta": nrm(ks[3], (8,), 0.1),
        "bn1_mean": nrm(ks[4], (8,), 0.1),
        "bn1_var": 1.0 + jnp.abs(nrm(ks[5], (8,), 0.1)),
        "conv2_w": nrm(ks[6], (8, 8, 3, 3), 1.0 / np.sqrt(8 * 9)),
        "conv2_b": nrm(ks[7], (8,), 0.1),
        "bn2_gamma": 1.0 + nrm(ks[8], (8,), 0.1),
        "bn2_beta": nrm(ks[9], (8,), 0.1),
        "bn2_mean": nrm(ks[10], (8,), 0.1),
        "bn2_var": 1.0 + jnp.abs(nrm(ks[11], (8,), 0.1)),
        "fc1_w": nrm(ks[12], (100, 120), 1.0 / np.sqrt(120)),
        "fc1_b": nrm(ks[13], (100,), 0.1),
        "fc2_w": nrm(ks[14], (OUTPUT_DIM, 100), 1.0 / np.sqrt(100)),
        "fc2_b": nrm(ks[15], (OUTPUT_DIM,), 0.1),
    }


# ----------------------------------------------------------------------------
# Pure-JAX reference (same eval semantics) for the numerical check.
# ----------------------------------------------------------------------------
def reference_forward(params, x):
    prec = jax.lax.Precision.HIGHEST

    def conv(h, w, b, stride, pad):
        y = jax.lax.conv_general_dilated(
            h, w, window_strides=(stride, stride), padding=pad,
            dimension_numbers=("NCHW", "OIHW", "NCHW"), precision=prec)
        return y + b[None, :, None, None]

    def bn(h, g, be, m, v):
        return ((h - m[None, :, None, None])
                / jnp.sqrt(v + BN_EPS)[None, :, None, None]
                * g[None, :, None, None] + be[None, :, None, None])

    h = jax.nn.relu(bn(conv(x, params["conv1_w"], params["conv1_b"], 2,
                            ((1, 1), (1, 1))),
                       params["bn1_gamma"], params["bn1_beta"],
                       params["bn1_mean"], params["bn1_var"]))
    h = jax.nn.relu(bn(conv(h, params["conv2_w"], params["conv2_b"], 2,
                            ((0, 0), (1, 1))),
                       params["bn2_gamma"], params["bn2_beta"],
                       params["bn2_mean"], params["bn2_var"]))
    f = h.reshape(h.shape[0], -1)
    f = jax.nn.relu(jnp.dot(f, params["fc1_w"].T, precision=prec)
                    + params["fc1_b"])
    return jnp.dot(f, params["fc2_w"].T, precision=prec) + params["fc2_b"]


if __name__ == "__main__":
    key = jax.random.PRNGKey(0)
    pkey, xkey = jax.random.split(key)
    raw_params = init_params(pkey)
    kparams = prepare_params(raw_params)

    # Input: channels fixed at 3584 by the module; spatial 14x18 is forced by
    # the fc layer (conv1 -> 7x9, conv2 -> 3x5, 8*3*5 = 120).
    x = jax.random.normal(xkey, (2, C_IN, H_IN, W_IN), jnp.float32)

    fwd = jax.jit(calanet_forward)
    out = jax.block_until_ready(fwd(kparams, x))
    assert out.shape == (2, OUTPUT_DIM), out.shape

    ref = jax.block_until_ready(reference_forward(raw_params, x))
    # Tightened vs. the previous 1e-1: with strict-f32 MXU matmuls this passes
    # at ~1e-3; 2e-2 leaves headroom for reduced-precision matmul modes while
    # still catching any real indexing/fold regression (those give O(1) diffs).
    np.testing.assert_allclose(np.asarray(out), np.asarray(ref),
                               atol=2e-2, rtol=2e-2)

    print("KERNEL_OK")
</pallas_src>

<mosaic_0001>
module attributes {stable_mosaic.version = 11 : i64} {
  func.func @_calanet_kernel(%arg0: i32, %arg1: memref<2x896x252xf32, #tpu.memory_space<vmem>>, %arg2: memref<72x896xf32, #tpu.memory_space<vmem>>, %arg3: memref<9x252xf32, #tpu.memory_space<vmem>>, %arg4: memref<9x252xf32, #tpu.memory_space<vmem>>, %arg5: memref<9x8x8xf32, #tpu.memory_space<vmem>>, %arg6: memref<8x1xf32, #tpu.memory_space<vmem>>, %arg7: memref<8x1xf32, #tpu.memory_space<vmem>>, %arg8: memref<8x1xf32, #tpu.memory_space<vmem>>, %arg9: memref<8x1xf32, #tpu.memory_space<vmem>>, %arg10: memref<252x15xf32, #tpu.memory_space<vmem>>, %arg11: memref<8x15x100xf32, #tpu.memory_space<vmem>>, %arg12: memref<1x100xf32, #tpu.memory_space<vmem>>, %arg13: memref<100x7xf32, #tpu.memory_space<vmem>>, %arg14: memref<1x7xf32, #tpu.memory_space<vmem>>, %arg15: memref<2x7xf32, #tpu.memory_space<vmem>>, %arg16: memref<2x72x252xf32, #tpu.memory_space<vmem>>) attributes {dimension_semantics = [#tpu.dimension_semantics<arbitrary>], iteration_bounds = array<i64: 4>, scalar_prefetch = 0 : i64, scratch_operands = 1 : i64, tpu.core_type = #tpu.core_type<tc>, window_params = [{transform_indices = @transform_0, window_bounds = array<i64: 2, 896, 252>}, {transform_indices = @transform_1, window_bounds = array<i64: 72, 896>}, {pipeline_mode = #tpu.pipeline_mode<synchronous>, transform_indices = @transform_2, window_bounds = array<i64: 9, 252>}, {pipeline_mode = #tpu.pipeline_mode<synchronous>, transform_indices = @transform_3, window_bounds = array<i64: 9, 252>}, {pipeline_mode = #tpu.pipeline_mode<synchronous>, transform_indices = @transform_4, window_bounds = array<i64: 9, 8, 8>}, {pipeline_mode = #tpu.pipeline_mode<synchronous>, transform_indices = @transform_5, window_bounds = array<i64: 8, 1>}, {pipeline_mode = #tpu.pipeline_mode<synchronous>, transform_indices = @transform_6, window_bounds = array<i64: 8, 1>}, {pipeline_mode = #tpu.pipeline_mode<synchronous>, transform_indices = @transform_7, window_bounds = array<i64: 8, 1>}, {pipeline_mode = #tpu.pipeline_mode<synchronous>, transform_indices = @transform_8, window_bounds = array<i64: 8, 1>}, {pipeline_mode = #tpu.pipeline_mode<synchronous>, transform_indices = @transform_9, window_bounds = array<i64: 252, 15>}, {pipeline_mode = #tpu.pipeline_mode<synchronous>, transform_indices = @transform_10, window_bounds = array<i64: 8, 15, 100>}, {pipeline_mode = #tpu.pipeline_mode<synchronous>, transform_indices = @transform_11, window_bounds = array<i64: 1, 100>}, {pipeline_mode = #tpu.pipeline_mode<synchronous>, transform_indices = @transform_12, window_bounds = array<i64: 100, 7>}, {pipeline_mode = #tpu.pipeline_mode<synchronous>, transform_indices = @transform_13, window_bounds = array<i64: 1, 7>}, {pipeline_mode = #tpu.pipeline_mode<synchronous>, transform_indices = @transform_14, window_bounds = array<i64: 2, 7>}]} {
    %c0_i32 = arith.constant 0 : i32
    %0 = arith.cmpi eq, %arg0, %c0_i32 : i32
    %1 = arith.extui %0 : i1 to i32
    %c0_i32_0 = arith.constant 0 : i32
    %2 = arith.cmpi ne, %1, %c0_i32_0 : i32
    scf.if %2 {
      %cst_21 = arith.constant 0.000000e+00 : f32
      %25 = vector.broadcast %cst_21 : f32 to vector<2x72x252xf32>
      %c0_22 = arith.constant 0 : index
      %c0_23 = arith.constant 0 : index
      %c0_24 = arith.constant 0 : index
      %26 = vector.load %arg16[%c0_22, %c0_23, %c0_24] : memref<2x72x252xf32, #tpu.memory_space<vmem>>, vector<2x72x252xf32>
      tpu.vector_store %arg16[%c0_22, %c0_23, %c0_24], %25 {strides = array<i32>} : memref<2x72x252xf32, #tpu.memory_space<vmem>>, vector<2x72x252xf32>,
    } else {
    }
    %c0 = arith.constant 0 : index
    %c0_1 = arith.constant 0 : index
    %3 = vector.load %arg2[%c0, %c0_1] : memref<72x896xf32, #tpu.memory_space<vmem>>, vector<72x896xf32>
    %c0_2 = arith.constant 0 : index
    %c0_3 = arith.constant 0 : index
    %c0_4 = arith.constant 0 : index
    %4 = vector.load %arg16[%c0_2, %c0_3, %c0_4] : memref<2x72x252xf32, #tpu.memory_space<vmem>>, vector<1x72x252xf32>
    %5 = vector.shape_cast %4 : vector<1x72x252xf32> to vector<72x252xf32>
    %c0_5 = arith.constant 0 : index
    %c0_6 = arith.constant 0 : index
    %c0_7 = arith.constant 0 : index
    %6 = vector.load %arg1[%c0_5, %c0_6, %c0_7] : memref<2x896x252xf32, #tpu.memory_space<vmem>>, vector<1x896x252xf32>
    %7 = vector.shape_cast %6 : vector<1x896x252xf32> to vector<896x252xf32>
    %cst = arith.constant dense<0.000000e+00> : vector<72x252xf32>
    %8 = tpu.matmul %3, %7, %cst {dimension_numbers = #tpu.dot_dimension_numbers<[1], [0], [0], [1], [0, 0, 1, 1], [], []>} : vector<72x896xf32>, vector<896x252xf32>, vector<72x252xf32> -> vector<72x252xf32>
    %9 = arith.addf %5, %8 : vector<72x252xf32>
    %c0_8 = arith.constant 0 : index
    %c0_9 = arith.constant 0 : index
    %c0_10 = arith.constant 0 : index
    %10 = vector.load %arg16[%c0_8, %c0_9, %c0_10] : memref<2x72x252xf32, #tpu.memory_space<vmem>>, vector<1x72x252xf32>
    %11 = vector.shape_cast %10 : vector<1x72x252xf32> to vector<72x252xf32>
    %12 = vector.shape_cast %9 : vector<72x252xf32> to vector<1x72x252xf32>
    tpu.vector_store %arg16[%c0_8, %c0_9, %c0_10], %12 {strides = array<i32>} : memref<2x72x252xf32, #tpu.memory_space<vmem>>, vector<1x72x252xf32>,
    %c1 = arith.constant 1 : index
    %c0_11 = arith.constant 0 : index
    %c0_12 = arith.constant 0 : index
    %13 = vector.load %arg16[%c1, %c0_11, %c0_12] : memref<2x72x252xf32, #tpu.memory_space<vmem>>, vector<1x72x252xf32>
    %14 = vector.shape_cast %13 : vector<1x72x252xf32> to vector<72x252xf32>
    %c1_13 = arith.constant 1 : index
    %c0_14 = arith.constant 0 : index
    %c0_15 = arith.constant 0 : index
    %15 = vector.load %arg1[%c1_13, %c0_14, %c0_15] : memref<2x896x252xf32, #tpu.memory_space<vmem>>, vector<1x896x252xf32>
    %16 = vector.shape_cast %15 : vector<1x896x252xf32> to vector<896x252xf32>
    %cst_16 = arith.constant dense<0.000000e+00> : vector<72x252xf32>
    %17 = tpu.matmul %3, %16, %cst_16 {dimension_numbers = #tpu.dot_dimension_numbers<[1], [0], [0], [1], [0, 0, 1, 1], [], []>} : vector<72x896xf32>, vector<896x252xf32>, vector<72x252xf32> -> vector<72x252xf32>
    %18 = arith.addf %14, %17 : vector<72x252xf32>
    %c1_17 = arith.constant 1 : index
    %c0_18 = arith.constant 0 : index
    %c0_19 = arith.constant 0 : index
    %19 = vector.load %arg16[%c1_17, %c0_18, %c0_19] : memref<2x72x252xf32, #tpu.memory_space<vmem>>, vector<1x72x252xf32>
    %20 = vector.shape_cast %19 : vector<1x72x252xf32> to vector<72x252xf32>
    %21 = vector.shape_cast %18 : vector<72x252xf32> to vector<1x72x252xf32>
    tpu.vector_store %arg16[%c1_17, %c0_18, %c0_19], %21 {strides = array<i32>} : memref<2x72x252xf32, #tpu.memory_space<vmem>>, vector<1x72x252xf32>,
    %c3_i32 = arith.constant 3 : i32
    %22 = arith.cmpi eq, %arg0, %c3_i32 : i32
    %23 = arith.extui %22 : i1 to i32
    %c0_i32_20 = arith.constant 0 : i32
    %24 = arith.cmpi ne, %23, %c0_i32_20 : i32
    scf.if %24 {
      %c0_21 = arith.constant 0 : index
      %c0_22 = arith.constant 0 : index
      %25 = vector.load %arg3[%c0_21, %c0_22] : memref<9x252xf32, #tpu.memory_space<vmem>>, vector<9x252xf32>
      %c0_23 = arith.constant 0 : index
      %c0_24 = arith.constant 0 : index
      %26 = vector.load %arg4[%c0_23, %c0_24] : memref<9x252xf32, #tpu.memory_space<vmem>>, vector<9x252xf32>
      %c0_25 = arith.constant 0 : index
      %c0_26 = arith.constant 0 : index
      %c0_27 = arith.constant 0 : index
      %27 = vector.load %arg5[%c0_25, %c0_26, %c0_27] : memref<9x8x8xf32, #tpu.memory_space<vmem>>, vector<9x8x8xf32>
      %c0_28 = arith.constant 0 : index
      %c0_29 = arith.constant 0 : index
      %28 = vector.load %arg10[%c0_28, %c0_29] : memref<252x15xf32, #tpu.memory_space<vmem>>, vector<252x15xf32>
      %c0_30 = arith.constant 0 : index
      %c0_31 = arith.constant 0 : index
      %c0_32 = arith.constant 0 : index
      %29 = vector.load %arg11[%c0_30, %c0_31, %c0_32] : memref<8x15x100xf32, #tpu.memory_space<vmem>>, vector<8x15x100xf32>
      %c0_33 = arith.constant 0 : index
      %c0_34 = arith.constant 0 : index
      %30 = vector.load %arg6[%c0_33, %c0_34] : memref<8x1xf32, #tpu.memory_space<vmem>>, vector<8x1xf32>
      %c0_35 = arith.constant 0 : index
      %c0_36 = arith.constant 0 : index
      %31 = vector.load %arg7[%c0_35, %c0_36] : memref<8x1xf32, #tpu.memory_space<vmem>>, vector<8x1xf32>
      %c0_37 = arith.constant 0 : index
      %c0_38 = arith.constant 0 : index
      %32 = vector.load %arg8[%c0_37, %c0_38] : memref<8x1xf32, #tpu.memory_space<vmem>>, vector<8x1xf32>
      %c0_39 = arith.constant 0 : index
      %c0_40 = arith.constant 0 : index
      %33 = vector.load %arg9[%c0_39, %c0_40] : memref<8x1xf32, #tpu.memory_space<vmem>>, vector<8x1xf32>
      %c0_41 = arith.constant 0 : index
      %c0_42 = arith.constant 0 : index
      %34 = vector.load %arg13[%c0_41, %c0_42] : memref<100x7xf32, #tpu.memory_space<vmem>>, vector<100x7xf32>
      %c0_43 = arith.constant 0 : index
      %c0_44 = arith.constant 0 : index
      %c0_45 = arith.constant 0 : index
      %35 = vector.load %arg16[%c0_43, %c0_44, %c0_45] : memref<2x72x252xf32, #tpu.memory_space<vmem>>, vector<1x72x252xf32>
      %36 = vector.shape_cast %35 : vector<1x72x252xf32> to vector<72x252xf32>
      %cst_46 = arith.constant 0.000000e+00 : f32
      %37 = vector.broadcast %cst_46 : f32 to vector<8x252xf32>
      %38 = vector.extract_strided_slice %36 {offsets = [0, 0], sizes = [8, 252], strides = [1, 1]} : vector<72x252xf32> to vector<8x252xf32>
      %cst_47 = arith.constant 0.000000e+00 : f32
      %39 = vector.broadcast %cst_47 : f32 to vector<8x19xf32>
      %40 = vector.extract_strided_slice %38 {offsets = [0, 0], sizes = [8, 233], strides = [1, 1]} : vector<8x252xf32> to vector<8x233xf32>
      %41 = tpu.concatenate %39, %40 in 1 : vector<8x19xf32>, vector<8x233xf32> -> vector<8x252xf32>
      %42 = vector.extract_strided_slice %25 {offsets = [0, 0], sizes = [1, 252], strides = [1, 1]} : vector<9x252xf32> to vector<1x252xf32>
      %43 = vector.broadcast %42 : vector<1x252xf32> to vector<8x252xf32>
      %44 = arith.mulf %41, %43 : vector<8x252xf32>
      %45 = arith.addf %37, %44 : vector<8x252xf32>
      %46 = vector.extract_strided_slice %36 {offsets = [8, 0], sizes = [8, 252], strides = [1, 1]} : vector<72x252xf32> to vector<8x252xf32>
      %cst_48 = arith.constant 0.000000e+00 : f32
      %47 = vector.broadcast %cst_48 : f32 to vector<8x18xf32>
      %48 = vector.extract_strided_slice %46 {offsets = [0, 0], sizes = [8, 234], strides = [1, 1]} : vector<8x252xf32> to vector<8x234xf32>
      %49 = tpu.concatenate %47, %48 in 1 : vector<8x18xf32>, vector<8x234xf32> -> vector<8x252xf32>
      %50 = vector.extract_strided_slice %25 {offsets = [1, 0], sizes = [1, 252], strides = [1, 1]} : vector<9x252xf32> to vector<1x252xf32>
      %51 = vector.broadcast %50 : vector<1x252xf32> to vector<8x252xf32>
      %52 = arith.mulf %49, %51 : vector<8x252xf32>
      %53 = arith.addf %45, %52 : vector<8x252xf32>
      %54 = vector.extract_strided_slice %36 {offsets = [16, 0], sizes = [8, 252], strides = [1, 1]} : vector<72x252xf32> to vector<8x252xf32>
      %cst_49 = arith.constant 0.000000e+00 : f32
      %55 = vector.broadcast %cst_49 : f32 to vector<8x17xf32>
      %56 = vector.extract_strided_slice %54 {offsets = [0, 0], sizes = [8, 235], strides = [1, 1]} : vector<8x252xf32> to vector<8x235xf32>
      %57 = tpu.concatenate %55, %56 in 1 : vector<8x17xf32>, vector<8x235xf32> -> vector<8x252xf32>
      %58 = vector.extract_strided_slice %25 {offsets = [2, 0], sizes = [1, 252], strides = [1, 1]} : vector<9x252xf32> to vector<1x252xf32>
      %59 = vector.broadcast %58 : vector<1x252xf32> to vector<8x252xf32>
      %60 = arith.mulf %57, %59 : vector<8x252xf32>
      %61 = arith.addf %53, %60 : vector<8x252xf32>
      %62 = vector.extract_strided_slice %36 {offsets = [24, 0], sizes = [8, 252], strides = [1, 1]} : vector<72x252xf32> to vector<8x252xf32>
      %cst_50 = arith.constant 0.000000e+00 : f32
      %63 = vector.broadcast %cst_50 : f32 to vector<8x1xf32>
      %64 = vector.extract_strided_slice %62 {offsets = [0, 0], sizes = [8, 251], strides = [1, 1]} : vector<8x252xf32> to vector<8x251xf32>
      %65 = tpu.concatenate %63, %64 in 1 : vector<8x1xf32>, vector<8x251xf32> -> vector<8x252xf32>
      %66 = vector.extract_strided_slice %25 {offsets = [3, 0], sizes = [1, 252], strides = [1, 1]} : vector<9x252xf32> to vector<1x252xf32>
      %67 = vector.broadcast %66 : vector<1x252xf32> to vector<8x252xf32>
      %68 = arith.mulf %65, %67 : vector<8x252xf32>
      %69 = arith.addf %61, %68 : vector<8x252xf32>
      %70 = vector.extract_strided_slice %36 {offsets = [32, 0], sizes = [8, 252], strides = [1, 1]} : vector<72x252xf32> to vector<8x252xf32>
      %71 = vector.extract_strided_slice %25 {offsets = [4, 0], sizes = [1, 252], strides = [1, 1]} : vector<9x252xf32> to vector<1x252xf32>
      %72 = vector.broadcast %71 : vector<1x252xf32> to vector<8x252xf32>
      %73 = arith.mulf %70, %72 : vector<8x252xf32>
      %74 = arith.addf %69, %73 : vector<8x252xf32>
      %75 = vector.extract_strided_slice %36 {offsets = [40, 0], sizes = [8, 252], strides = [1, 1]} : vector<72x252xf32> to vector<8x252xf32>
      %76 = vector.extract_strided_slice %75 {offsets = [0, 1], sizes = [8, 251], strides = [1, 1]} : vector<8x252xf32> to vector<8x251xf32>
      %cst_51 = arith.constant 0.000000e+00 : f32
      %77 = vector.broadcast %cst_51 : f32 to vector<8x1xf32>
      %78 = tpu.concatenate %76, %77 in 1 : vector<8x251xf32>, vector<8x1xf32> -> vector<8x252xf32>
      %79 = vector.extract_strided_slice %25 {offsets = [5, 0], sizes = [1, 252], strides = [1, 1]} : vector<9x252xf32> to vector<1x252xf32>
      %80 = vector.broadcast %79 : vector<1x252xf32> to vector<8x252xf32>
      %81 = arith.mulf %78, %80 : vector<8x252xf32>
      %82 = arith.addf %74, %81 : vector<8x252xf32>
      %83 = vector.extract_strided_slice %36 {offsets = [48, 0], sizes = [8, 252], strides = [1, 1]} : vector<72x252xf32> to vector<8x252xf32>
      %84 = vector.extract_strided_slice %83 {offsets = [0, 17], sizes = [8, 235], strides = [1, 1]} : vector<8x252xf32> to vector<8x235xf32>
      %cst_52 = arith.constant 0.000000e+00 : f32
      %85 = vector.broadcast %cst_52 : f32 to vector<8x17xf32>
      %86 = tpu.concatenate %84, %85 in 1 : vector<8x235xf32>, vector<8x17xf32> -> vector<8x252xf32>
      %87 = vector.extract_strided_slice %25 {offsets = [6, 0], sizes = [1, 252], strides = [1, 1]} : vector<9x252xf32> to vector<1x252xf32>
      %88 = vector.broadcast %87 : vector<1x252xf32> to vector<8x252xf32>
      %89 = arith.mulf %86, %88 : vector<8x252xf32>
      %90 = arith.addf %82, %89 : vector<8x252xf32>
      %91 = vector.extract_strided_slice %36 {offsets = [56, 0], sizes = [8, 252], strides = [1, 1]} : vector<72x252xf32> to vector<8x252xf32>
      %92 = vector.extract_strided_slice %91 {offsets = [0, 18], sizes = [8, 234], strides = [1, 1]} : vector<8x252xf32> to vector<8x234xf32>
      %cst_53 = arith.constant 0.000000e+00 : f32
      %93 = vector.broadcast %cst_53 : f32 to vector<8x18xf32>
      %94 = tpu.concatenate %92, %93 in 1 : vector<8x234xf32>, vector<8x18xf32> -> vector<8x252xf32>
      %95 = vector.extract_strided_slice %25 {offsets = [7, 0], sizes = [1, 252], strides = [1, 1]} : vector<9x252xf32> to vector<1x252xf32>
      %96 = vector.broadcast %95 : vector<1x252xf32> to vector<8x252xf32>
      %97 = arith.mulf %94, %96 : vector<8x252xf32>
      %98 = arith.addf %90, %97 : vector<8x252xf32>
      %99 = vector.extract_strided_slice %36 {offsets = [64, 0], sizes = [8, 252], strides = [1, 1]} : vector<72x252xf32> to vector<8x252xf32>
      %100 = vector.extract_strided_slice %99 {offsets = [0, 19], sizes = [8, 233], strides = [1, 1]} : vector<8x252xf32> to vector<8x233xf32>
      %cst_54 = arith.constant 0.000000e+00 : f32
      %101 = vector.broadcast %cst_54 : f32 to vector<8x19xf32>
      %102 = tpu.concatenate %100, %101 in 1 : vector<8x233xf32>, vector<8x19xf32> -> vector<8x252xf32>
      %103 = vector.extract_strided_slice %25 {offsets = [8, 0], sizes = [1, 252], strides = [1, 1]} : vector<9x252xf32> to vector<1x252xf32>
      %104 = vector.broadcast %103 : vector<1x252xf32> to vector<8x252xf32>
      %105 = arith.mulf %102, %104 : vector<8x252xf32>
      %106 = arith.addf %98, %105 : vector<8x252xf32>
      %107 = vector.broadcast %30 : vector<8x1xf32> to vector<8x252xf32>
      %108 = arith.mulf %106, %107 : vector<8x252xf32>
      %109 = vector.broadcast %31 : vector<8x1xf32> to vector<8x252xf32>
      %110 = arith.addf %108, %109 : vector<8x252xf32>
      %cst_55 = arith.constant 0.000000e+00 : f32
      %111 = vector.broadcast %cst_55 : f32 to vector<8x252xf32>
      %112 = arith.maximumf %110, %111 : vector<8x252xf32>
      %cst_56 = arith.constant 0.000000e+00 : f32
      %113 = vector.broadcast %cst_56 : f32 to vector<8x252xf32>
      %114 = vector.extract_strided_slice %27 {offsets = [0, 0, 0], sizes = [1, 8, 8], strides = [1, 1, 1]} : vector<9x8x8xf32> to vector<1x8x8xf32>
      %115 = vector.shape_cast %114 : vector<1x8x8xf32> to vector<8x8xf32>
      %cst_57 = arith.constant dense<0.000000e+00> : vector<8x252xf32>
      %116 = tpu.matmul %115, %112, %cst_57 {dimension_numbers = #tpu.dot_dimension_numbers<[1], [0], [0], [1], [0, 0, 1, 1], [], []>} : vector<8x8xf32>, vector<8x252xf32>, vector<8x252xf32> -> vector<8x252xf32>
      %cst_58 = arith.constant 0.000000e+00 : f32
      %117 = vector.broadcast %cst_58 : f32 to vector<8x2xf32>
      %118 = vector.extract_strided_slice %116 {offsets = [0, 0], sizes = [8, 250], strides = [1, 1]} : vector<8x252xf32> to vector<8x250xf32>
      %119 = tpu.concatenate %117, %118 in 1 : vector<8x2xf32>, vector<8x250xf32> -> vector<8x252xf32>
      %120 = vector.extract_strided_slice %26 {offsets = [0, 0], sizes = [1, 252], strides = [1, 1]} : vector<9x252xf32> to vector<1x252xf32>
      %121 = vector.broadcast %120 : vector<1x252xf32> to vector<8x252xf32>
      %122 = arith.mulf %119, %121 : vector<8x252xf32>
      %123 = arith.addf %113, %122 : vector<8x252xf32>
      %124 = vector.extract_strided_slice %27 {offsets = [1, 0, 0], sizes = [1, 8, 8], strides = [1, 1, 1]} : vector<9x8x8xf32> to vector<1x8x8xf32>
      %125 = vector.shape_cast %124 : vector<1x8x8xf32> to vector<8x8xf32>
      %cst_59 = arith.constant dense<0.000000e+00> : vector<8x252xf32>
      %126 = tpu.matmul %125, %112, %cst_59 {dimension_numbers = #tpu.dot_dimension_numbers<[1], [0], [0], [1], [0, 0, 1, 1], [], []>} : vector<8x8xf32>, vector<8x252xf32>, vector<8x252xf32> -> vector<8x252xf32>
      %127 = vector.extract_strided_slice %26 {offsets = [1, 0], sizes = [1, 252], strides = [1, 1]} : vector<9x252xf32> to vector<1x252xf32>
      %128 = vector.broadcast %127 : vector<1x252xf32> to vector<8x252xf32>
      %129 = arith.mulf %126, %128 : vector<8x252xf32>
      %130 = arith.addf %123, %129 : vector<8x252xf32>
      %131 = vector.extract_strided_slice %27 {offsets = [2, 0, 0], sizes = [1, 8, 8], strides = [1, 1, 1]} : vector<9x8x8xf32> to vector<1x8x8xf32>
      %132 = vector.shape_cast %131 : vector<1x8x8xf32> to vector<8x8xf32>
      %cst_60 = arith.constant dense<0.000000e+00> : vector<8x252xf32>
      %133 = tpu.matmul %132, %112, %cst_60 {dimension_numbers = #tpu.dot_dimension_numbers<[1], [0], [0], [1], [0, 0, 1, 1], [], []>} : vector<8x8xf32>, vector<8x252xf32>, vector<8x252xf32> -> vector<8x252xf32>
      %134 = vector.extract_strided_slice %133 {offsets = [0, 2], sizes = [8, 250], strides = [1, 1]} : vector<8x252xf32> to vector<8x250xf32>
      %cst_61 = arith.constant 0.000000e+00 : f32
      %135 = vector.broadcast %cst_61 : f32 to vector<8x2xf32>
      %136 = tpu.concatenate %134, %135 in 1 : vector<8x250xf32>, vector<8x2xf32> -> vector<8x252xf32>
      %137 = vector.extract_strided_slice %26 {offsets = [2, 0], sizes = [1, 252], strides = [1, 1]} : vector<9x252xf32> to vector<1x252xf32>
      %138 = vector.broadcast %137 : vector<1x252xf32> to vector<8x252xf32>
      %139 = arith.mulf %136, %138 : vector<8x252xf32>
      %140 = arith.addf %130, %139 : vector<8x252xf32>
      %141 = vector.extract_strided_slice %27 {offsets = [3, 0, 0], sizes = [1, 8, 8], strides = [1, 1, 1]} : vector<9x8x8xf32> to vector<1x8x8xf32>
      %142 = vector.shape_cast %141 : vector<1x8x8xf32> to vector<8x8xf32>
      %cst_62 = arith.constant dense<0.000000e+00> : vector<8x252xf32>
      %143 = tpu.matmul %142, %112, %cst_62 {dimension_numbers = #tpu.dot_dimension_numbers<[1], [0], [0], [1], [0, 0, 1, 1], [], []>} : vector<8x8xf32>, vector<8x252xf32>, vector<8x252xf32> -> vector<8x252xf32>
      %144 = vector.extract_strided_slice %143 {offsets = [0, 34], sizes = [8, 218], strides = [1, 1]} : vector<8x252xf32> to vector<8x218xf32>
      %cst_63 = arith.constant 0.000000e+00 : f32
      %145 = vector.broadcast %cst_63 : f32 to vector<8x34xf32>
      %146 = tpu.concatenate %144, %145 in 1 : vector<8x218xf32>, vector<8x34xf32> -> vector<8x252xf32>
      %147 = vector.extract_strided_slice %26 {offsets = [3, 0], sizes = [1, 252], strides = [1, 1]} : vector<9x252xf32> to vector<1x252xf32>
      %148 = vector.broadcast %147 : vector<1x252xf32> to vector<8x252xf32>
      %149 = arith.mulf %146, %148 : vector<8x252xf32>
      %150 = arith.addf %140, %149 : vector<8x252xf32>
      %151 = vector.extract_strided_slice %27 {offsets = [4, 0, 0], sizes = [1, 8, 8], strides = [1, 1, 1]} : vector<9x8x8xf32> to vector<1x8x8xf32>
      %152 = vector.shape_cast %151 : vector<1x8x8xf32> to vector<8x8xf32>
      %cst_64 = arith.constant dense<0.000000e+00> : vector<8x252xf32>
      %153 = tpu.matmul %152, %112, %cst_64 {dimension_numbers = #tpu.dot_dimension_numbers<[1], [0], [0], [1], [0, 0, 1, 1], [], []>} : vector<8x8xf32>, vector<8x252xf32>, vector<8x252xf32> -> vector<8x252xf32>
      %154 = vector.extract_strided_slice %153 {offsets = [0, 36], sizes = [8, 216], strides = [1, 1]} : vector<8x252xf32> to vector<8x216xf32>
      %cst_65 = arith.constant 0.000000e+00 : f32
      %155 = vector.broadcast %cst_65 : f32 to vector<8x36xf32>
      %156 = tpu.concatenate %154, %155 in 1 : vector<8x216xf32>, vector<8x36xf32> -> vector<8x252xf32>
      %157 = vector.extract_strided_slice %26 {offsets = [4, 0], sizes = [1, 252], strides = [1, 1]} : vector<9x252xf32> to vector<1x252xf32>
      %158 = vector.broadcast %157 : vector<1x252xf32> to vector<8x252xf32>
      %159 = arith.mulf %156, %158 : vector<8x252xf32>
      %160 = arith.addf %150, %159 : vector<8x252xf32>
      %161 = vector.extract_strided_slice %27 {offsets = [5, 0, 0], sizes = [1, 8, 8], strides = [1, 1, 1]} : vector<9x8x8xf32> to vector<1x8x8xf32>
      %162 = vector.shape_cast %161 : vector<1x8x8xf32> to vector<8x8xf32>
      %cst_66 = arith.constant dense<0.000000e+00> : vector<8x252xf32>
      %163 = tpu.matmul %162, %112, %cst_66 {dimension_numbers = #tpu.dot_dimension_numbers<[1], [0], [0], [1], [0, 0, 1, 1], [], []>} : vector<8x8xf32>, vector<8x252xf32>, vector<8x252xf32> -> vector<8x252xf32>
      %164 = vector.extract_strided_slice %163 {offsets = [0, 38], sizes = [8, 214], strides = [1, 1]} : vector<8x252xf32> to vector<8x214xf32>
      %cst_67 = arith.constant 0.000000e+00 : f32
      %165 = vector.broadcast %cst_67 : f32 to vector<8x38xf32>
      %166 = tpu.concatenate %164, %165 in 1 : vector<8x214xf32>, vector<8x38xf32> -> vector<8x252xf32>
      %167 = vector.extract_strided_slice %26 {offsets = [5, 0], sizes = [1, 252], strides = [1, 1]} : vector<9x252xf32> to vector<1x252xf32>
      %168 = vector.broadcast %167 : vector<1x252xf32> to vector<8x252xf32>
      %169 = arith.mulf %166, %168 : vector<8x252xf32>
      %170 = arith.addf %160, %169 : vector<8x252xf32>
      %171 = vector.extract_strided_slice %27 {offsets = [6, 0, 0], sizes = [1, 8, 8], strides = [1, 1, 1]} : vector<9x8x8xf32> to vector<1x8x8xf32>
      %172 = vector.shape_cast %171 : vector<1x8x8xf32> to vector<8x8xf32>
      %cst_68 = arith.constant dense<0.000000e+00> : vector<8x252xf32>
      %173 = tpu.matmul %172, %112, %cst_68 {dimension_numbers = #tpu.dot_dimension_numbers<[1], [0], [0], [1], [0, 0, 1, 1], [], []>} : vector<8x8xf32>, vector<8x252xf32>, vector<8x252xf32> -> vector<8x252xf32>
      %174 = vector.extract_strided_slice %173 {offsets = [0, 70], sizes = [8, 182], strides = [1, 1]} : vector<8x252xf32> to vector<8x182xf32>
      %cst_69 = arith.constant 0.000000e+00 : f32
      %175 = vector.broadcast %cst_69 : f32 to vector<8x70xf32>
      %176 = tpu.concatenate %174, %175 in 1 : vector<8x182xf32>, vector<8x70xf32> -> vector<8x252xf32>
      %177 = vector.extract_strided_slice %26 {offsets = [6, 0], sizes = [1, 252], strides = [1, 1]} : vector<9x252xf32> to vector<1x252xf32>
      %178 = vector.broadcast %177 : vector<1x252xf32> to vector<8x252xf32>
      %179 = arith.mulf %176, %178 : vector<8x252xf32>
      %180 = arith.addf %170, %179 : vector<8x252xf32>
      %181 = vector.extract_strided_slice %27 {offsets = [7, 0, 0], sizes = [1, 8, 8], strides = [1, 1, 1]} : vector<9x8x8xf32> to vector<1x8x8xf32>
      %182 = vector.shape_cast %181 : vector<1x8x8xf32> to vector<8x8xf32>
      %cst_70 = arith.constant dense<0.000000e+00> : vector<8x252xf32>
      %183 = tpu.matmul %182, %112, %cst_70 {dimension_numbers = #tpu.dot_dimension_numbers<[1], [0], [0], [1], [0, 0, 1, 1], [], []>} : vector<8x8xf32>, vector<8x252xf32>, vector<8x252xf32> -> vector<8x252xf32>
      %184 = vector.extract_strided_slice %183 {offsets = [0, 72], sizes = [8, 180], strides = [1, 1]} : vector<8x252xf32> to vector<8x180xf32>
      %cst_71 = arith.constant 0.000000e+00 : f32
      %185 = vector.broadcast %cst_71 : f32 to vector<8x72xf32>
      %186 = tpu.concatenate %184, %185 in 1 : vector<8x180xf32>, vector<8x72xf32> -> vector<8x252xf32>
      %187 = vector.extract_strided_slice %26 {offsets = [7, 0], sizes = [1, 252], strides = [1, 1]} : vector<9x252xf32> to vector<1x252xf32>
      %188 = vector.broadcast %187 : vector<1x252xf32> to vector<8x252xf32>
      %189 = arith.mulf %186, %188 : vector<8x252xf32>
      %190 = arith.addf %180, %189 : vector<8x252xf32>
      %191 = vector.extract_strided_slice %27 {offsets = [8, 0, 0], sizes = [1, 8, 8], strides = [1, 1, 1]} : vector<9x8x8xf32> to vector<1x8x8xf32>
      %192 = vector.shape_cast %191 : vector<1x8x8xf32> to vector<8x8xf32>
      %cst_72 = arith.constant dense<0.000000e+00> : vector<8x252xf32>
      %193 = tpu.matmul %192, %112, %cst_72 {dimension_numbers = #tpu.dot_dimension_numbers<[1], [0], [0], [1], [0, 0, 1, 1], [], []>} : vector<8x8xf32>, vector<8x252xf32>, vector<8x252xf32> -> vector<8x252xf32>
      %194 = vector.extract_strided_slice %193 {offsets = [0, 74], sizes = [8, 178], strides = [1, 1]} : vector<8x252xf32> to vector<8x178xf32>
      %cst_73 = arith.constant 0.000000e+00 : f32
      %195 = vector.broadcast %cst_73 : f32 to vector<8x74xf32>
      %196 = tpu.concatenate %194, %195 in 1 : vector<8x178xf32>, vector<8x74xf32> -> vector<8x252xf32>
      %197 = vector.extract_strided_slice %26 {offsets = [8, 0], sizes = [1, 252], strides = [1, 1]} : vector<9x252xf32> to vector<1x252xf32>
      %198 = vector.broadcast %197 : vector<1x252xf32> to vector<8x252xf32>
      %199 = arith.mulf %196, %198 : vector<8x252xf32>
      %200 = arith.addf %190, %199 : vector<8x252xf32>
      %201 = vector.broadcast %32 : vector<8x1xf32> to vector<8x252xf32>
      %202 = arith.mulf %200, %201 : vector<8x252xf32>
      %203 = vector.broadcast %33 : vector<8x1xf32> to vector<8x252xf32>
      %204 = arith.addf %202, %203 : vector<8x252xf32>
      %cst_74 = arith.constant 0.000000e+00 : f32
      %205 = vector.broadcast %cst_74 : f32 to vector<8x252xf32>
      %206 = arith.maximumf %204, %205 : vector<8x252xf32>
      %cst_75 = arith.constant dense<0.000000e+00> : vector<8x15xf32>
      %207 = tpu.matmul %206, %28, %cst_75 {dimension_numbers = #tpu.dot_dimension_numbers<[1], [0], [0], [1], [0, 0, 1, 1], [], []>} : vector<8x252xf32>, vector<252x15xf32>, vector<8x15xf32> -> vector<8x15xf32>
      %c0_76 = arith.constant 0 : index
      %c0_77 = arith.constant 0 : index
      %208 = vector.load %arg12[%c0_76, %c0_77] : memref<1x100xf32, #tpu.memory_space<vmem>>, vector<1x100xf32>
      %209 = vector.extract_strided_slice %207 {offsets = [0, 0], sizes = [1, 15], strides = [1, 1]} : vector<8x15xf32> to vector<1x15xf32>
      %210 = vector.extract_strided_slice %29 {offsets = [0, 0, 0], sizes = [1, 15, 100], strides = [1, 1, 1]} : vector<8x15x100xf32> to vector<1x15x100xf32>
      %211 = vector.shape_cast %210 : vector<1x15x100xf32> to vector<15x100xf32>
      %cst_78 = arith.constant dense<0.000000e+00> : vector<1x100xf32>
      %212 = tpu.matmul %209, %211, %cst_78 {dimension_numbers = #tpu.dot_dimension_numbers<[1], [0], [0], [1], [0, 0, 1, 1], [], []>} : vector<1x15xf32>, vector<15x100xf32>, vector<1x100xf32> -> vector<1x100xf32>
      %213 = arith.addf %208, %212 : vector<1x100xf32>
      %214 = vector.extract_strided_slice %207 {offsets = [1, 0], sizes = [1, 15], strides = [1, 1]} : vector<8x15xf32> to vector<1x15xf32>
      %215 = vector.extract_strided_slice %29 {offsets = [1, 0, 0], sizes = [1, 15, 100], strides = [1, 1, 1]} : vector<8x15x100xf32> to vector<1x15x100xf32>
      %216 = vector.shape_cast %215 : vector<1x15x100xf32> to vector<15x100xf32>
      %cst_79 = arith.constant dense<0.000000e+00> : vector<1x100xf32>
      %217 = tpu.matmul %214, %216, %cst_79 {dimension_numbers = #tpu.dot_dimension_numbers<[1], [0], [0], [1], [0, 0, 1, 1], [], []>} : vector<1x15xf32>, vector<15x100xf32>, vector<1x100xf32> -> vector<1x100xf32>
      %218 = arith.addf %213, %217 : vector<1x100xf32>
      %219 = vector.extract_strided_slice %207 {offsets = [2, 0], sizes = [1, 15], strides = [1, 1]} : vector<8x15xf32> to vector<1x15xf32>
      %220 = vector.extract_strided_slice %29 {offsets = [2, 0, 0], sizes = [1, 15, 100], strides = [1, 1, 1]} : vector<8x15x100xf32> to vector<1x15x100xf32>
      %221 = vector.shape_cast %220 : vector<1x15x100xf32> to vector<15x100xf32>
      %cst_80 = arith.constant dense<0.000000e+00> : vector<1x100xf32>
      %222 = tpu.matmul %219, %221, %cst_80 {dimension_numbers = #tpu.dot_dimension_numbers<[1], [0], [0], [1], [0, 0, 1, 1], [], []>} : vector<1x15xf32>, vector<15x100xf32>, vector<1x100xf32> -> vector<1x100xf32>
      %223 = arith.addf %218, %222 : vector<1x100xf32>
      %224 = vector.extract_strided_slice %207 {offsets = [3, 0], sizes = [1, 15], strides = [1, 1]} : vector<8x15xf32> to vector<1x15xf32>
      %225 = vector.extract_strided_slice %29 {offsets = [3, 0, 0], sizes = [1, 15, 100], strides = [1, 1, 1]} : vector<8x15x100xf32> to vector<1x15x100xf32>
      %226 = vector.shape_cast %225 : vector<1x15x100xf32> to vector<15x100xf32>
      %cst_81 = arith.constant dense<0.000000e+00> : vector<1x100xf32>
      %227 = tpu.matmul %224, %226, %cst_81 {dimension_numbers = #tpu.dot_dimension_numbers<[1], [0], [0], [1], [0, 0, 1, 1], [], []>} : vector<1x15xf32>, vector<15x100xf32>, vector<1x100xf32> -> vector<1x100xf32>
      %228 = arith.addf %223, %227 : vector<1x100xf32>
      %229 = vector.extract_strided_slice %207 {offsets = [4, 0], sizes = [1, 15], strides = [1, 1]} : vector<8x15xf32> to vector<1x15xf32>
      %230 = vector.extract_strided_slice %29 {offsets = [4, 0, 0], sizes = [1, 15, 100], strides = [1, 1, 1]} : vector<8x15x100xf32> to vector<1x15x100xf32>
      %231 = vector.shape_cast %230 : vector<1x15x100xf32> to vector<15x100xf32>
      %cst_82 = arith.constant dense<0.000000e+00> : vector<1x100xf32>
      %232 = tpu.matmul %229, %231, %cst_82 {dimension_numbers = #tpu.dot_dimension_numbers<[1], [0], [0], [1], [0, 0, 1, 1], [], []>} : vector<1x15xf32>, vector<15x100xf32>, vector<1x100xf32> -> vector<1x100xf32>
      %233 = arith.addf %228, %232 : vector<1x100xf32>
      %234 = vector.extract_strided_slice %207 {offsets = [5, 0], sizes = [1, 15], strides = [1, 1]} : vector<8x15xf32> to vector<1x15xf32>
      %235 = vector.extract_strided_slice %29 {offsets = [5, 0, 0], sizes = [1, 15, 100], strides = [1, 1, 1]} : vector<8x15x100xf32> to vector<1x15x100xf32>
      %236 = vector.shape_cast %235 : vector<1x15x100xf32> to vector<15x100xf32>
      %cst_83 = arith.constant dense<0.000000e+00> : vector<1x100xf32>
      %237 = tpu.matmul %234, %236, %cst_83 {dimension_numbers = #tpu.dot_dimension_numbers<[1], [0], [0], [1], [0, 0, 1, 1], [], []>} : vector<1x15xf32>, vector<15x100xf32>, vector<1x100xf32> -> vector<1x100xf32>
      %238 = arith.addf %233, %237 : vector<1x100xf32>
      %239 = vector.extract_strided_slice %207 {offsets = [6, 0], sizes = [1, 15], strides = [1, 1]} : vector<8x15xf32> to vector<1x15xf32>
      %240 = vector.extract_strided_slice %29 {offsets = [6, 0, 0], sizes = [1, 15, 100], strides = [1, 1, 1]} : vector<8x15x100xf32> to vector<1x15x100xf32>
      %241 = vector.shape_cast %240 : vector<1x15x100xf32> to vector<15x100xf32>
      %cst_84 = arith.constant dense<0.000000e+00> : vector<1x100xf32>
      %242 = tpu.matmul %239, %241, %cst_84 {dimension_numbers = #tpu.dot_dimension_numbers<[1], [0], [0], [1], [0, 0, 1, 1], [], []>} : vector<1x15xf32>, vector<15x100xf32>, vector<1x100xf32> -> vector<1x100xf32>
      %243 = arith.addf %238, %242 : vector<1x100xf32>
      %244 = vector.extract_strided_slice %207 {offsets = [7, 0], sizes = [1, 15], strides = [1, 1]} : vector<8x15xf32> to vector<1x15xf32>
      %245 = vector.extract_strided_slice %29 {offsets = [7, 0, 0], sizes = [1, 15, 100], strides = [1, 1, 1]} : vector<8x15x100xf32> to vector<1x15x100xf32>
      %246 = vector.shape_cast %245 : vector<1x15x100xf32> to vector<15x100xf32>
      %cst_85 = arith.constant dense<0.000000e+00> : vector<1x100xf32>
      %247 = tpu.matmul %244, %246, %cst_85 {dimension_numbers = #tpu.dot_dimension_numbers<[1], [0], [0], [1], [0, 0, 1, 1], [], []>} : vector<1x15xf32>, vector<15x100xf32>, vector<1x100xf32> -> vector<1x100xf32>
      %248 = arith.addf %243, %247 : vector<1x100xf32>
      %cst_86 = arith.constant 0.000000e+00 : f32
      %249 = vector.broadcast %cst_86 : f32 to vector<1x100xf32>
      %250 = arith.maximumf %248, %249 : vector<1x100xf32>
      %cst_87 = arith.constant dense<0.000000e+00> : vector<1x7xf32>
      %251 = tpu.matmul %250, %34, %cst_87 {dimension_numbers = #tpu.dot_dimension_numbers<[1], [0], [0], [1], [0, 0, 1, 1], [], []>} : vector<1x100xf32>, vector<100x7xf32>, vector<1x7xf32> -> vector<1x7xf32>
      %c0_88 = arith.constant 0 : index
      %c0_89 = arith.constant 0 : index
      %252 = vector.load %arg14[%c0_88, %c0_89] : memref<1x7xf32, #tpu.memory_space<vmem>>, vector<1x7xf32>
      %253 = arith.addf %251, %252 : vector<1x7xf32>
      %c0_90 = arith.constant 0 : index
      %c0_91 = arith.constant 0 : index
      %254 = vector.load %arg15[%c0_90, %c0_91] : memref<2x7xf32, #tpu.memory_space<vmem>>, vector<1x7xf32>
      tpu.vector_store %arg15[%c0_90, %c0_91], %253 {strides = array<i32>} : memref<2x7xf32, #tpu.memory_space<vmem>>, vector<1x7xf32>,
      %c1_92 = arith.constant 1 : index
      %c0_93 = arith.constant 0 : index
      %c0_94 = arith.constant 0 : index
      %255 = vector.load %arg16[%c1_92, %c0_93, %c0_94] : memref<2x72x252xf32, #tpu.memory_space<vmem>>, vector<1x72x252xf32>
      %256 = vector.shape_cast %255 : vector<1x72x252xf32> to vector<72x252xf32>
      %cst_95 = arith.constant 0.000000e+00 : f32
      %257 = vector.broadcast %cst_95 : f32 to vector<8x252xf32>
      %258 = vector.extract_strided_slice %256 {offsets = [0, 0], sizes = [8, 252], strides = [1, 1]} : vector<72x252xf32> to vector<8x252xf32>
      %cst_96 = arith.constant 0.000000e+00 : f32
      %259 = vector.broadcast %cst_96 : f32 to vector<8x19xf32>
      %260 = vector.extract_strided_slice %258 {offsets = [0, 0], sizes = [8, 233], strides = [1, 1]} : vector<8x252xf32> to vector<8x233xf32>
      %261 = tpu.concatenate %259, %260 in 1 : vector<8x19xf32>, vector<8x233xf32> -> vector<8x252xf32>
      %262 = vector.extract_strided_slice %25 {offsets = [0, 0], sizes = [1, 252], strides = [1, 1]} : vector<9x252xf32> to vector<1x252xf32>
      %263 = vector.broadcast %262 : vector<1x252xf32> to vector<8x252xf32>
      %264 = arith.mulf %261, %263 : vector<8x252xf32>
      %265 = arith.addf %257, %264 : vector<8x252xf32>
      %266 = vector.extract_strided_slice %256 {offsets = [8, 0], sizes = [8, 252], strides = [1, 1]} : vector<72x252xf32> to vector<8x252xf32>
      %cst_97 = arith.constant 0.000000e+00 : f32
      %267 = vector.broadcast %cst_97 : f32 to vector<8x18xf32>
      %268 = vector.extract_strided_slice %266 {offsets = [0, 0], sizes = [8, 234], strides = [1, 1]} : vector<8x252xf32> to vector<8x234xf32>
      %269 = tpu.concatenate %267, %268 in 1 : vector<8x18xf32>, vector<8x234xf32> -> vector<8x252xf32>
      %270 = vector.extract_strided_slice %25 {offsets = [1, 0], sizes = [1, 252], strides = [1, 1]} : vector<9x252xf32> to vector<1x252xf32>
      %271 = vector.broadcast %270 : vector<1x252xf32> to vector<8x252xf32>
      %272 = arith.mulf %269, %271 : vector<8x252xf32>
      %273 = arith.addf %265, %272 : vector<8x252xf32>
      %274 = vector.extract_strided_slice %256 {offsets = [16, 0], sizes = [8, 252], strides = [1, 1]} : vector<72x252xf32> to vector<8x252xf32>
      %cst_98 = arith.constant 0.000000e+00 : f32
      %275 = vector.broadcast %cst_98 : f32 to vector<8x17xf32>
      %276 = vector.extract_strided_slice %274 {offsets = [0, 0], sizes = [8, 235], strides = [1, 1]} : vector<8x252xf32> to vector<8x235xf32>
      %277 = tpu.concatenate %275, %276 in 1 : vector<8x17xf32>, vector<8x235xf32> -> vector<8x252xf32>
      %278 = vector.extract_strided_slice %25 {offsets = [2, 0], sizes = [1, 252], strides = [1, 1]} : vector<9x252xf32> to vector<1x252xf32>
      %279 = vector.broadcast %278 : vector<1x252xf32> to vector<8x252xf32>
      %280 = arith.mulf %277, %279 : vector<8x252xf32>
      %281 = arith.addf %273, %280 : vector<8x252xf32>
      %282 = vector.extract_strided_slice %256 {offsets = [24, 0], sizes = [8, 252], strides = [1, 1]} : vector<72x252xf32> to vector<8x252xf32>
      %cst_99 = arith.constant 0.000000e+00 : f32
      %283 = vector.broadcast %cst_99 : f32 to vector<8x1xf32>
      %284 = vector.extract_strided_slice %282 {offsets = [0, 0], sizes = [8, 251], strides = [1, 1]} : vector<8x252xf32> to vector<8x251xf32>
      %285 = tpu.concatenate %283, %284 in 1 : vector<8x1xf32>, vector<8x251xf32> -> vector<8x252xf32>
      %286 = vector.extract_strided_slice %25 {offsets = [3, 0], sizes = [1, 252], strides = [1, 1]} : vector<9x252xf32> to vector<1x252xf32>
      %287 = vector.broadcast %286 : vector<1x252xf32> to vector<8x252xf32>
      %288 = arith.mulf %285, %287 : vector<8x252xf32>
      %289 = arith.addf %281, %288 : vector<8x252xf32>
      %290 = vector.extract_strided_slice %256 {offsets = [32, 0], sizes = [8, 252], strides = [1, 1]} : vector<72x252xf32> to vector<8x252xf32>
      %291 = vector.extract_strided_slice %25 {offsets = [4, 0], sizes = [1, 252], strides = [1, 1]} : vector<9x252xf32> to vector<1x252xf32>
      %292 = vector.broadcast %291 : vector<1x252xf32> to vector<8x252xf32>
      %293 = arith.mulf %290, %292 : vector<8x252xf32>
      %294 = arith.addf %289, %293 : vector<8x252xf32>
      %295 = vector.extract_strided_slice %256 {offsets = [40, 0], sizes = [8, 252], strides = [1, 1]} : vector<72x252xf32> to vector<8x252xf32>
      %296 = vector.extract_strided_slice %295 {offsets = [0, 1], sizes = [8, 251], strides = [1, 1]} : vector<8x252xf32> to vector<8x251xf32>
      %cst_100 = arith.constant 0.000000e+00 : f32
      %297 = vector.broadcast %cst_100 : f32 to vector<8x1xf32>
      %298 = tpu.concatenate %296, %297 in 1 : vector<8x251xf32>, vector<8x1xf32> -> vector<8x252xf32>
      %299 = vector.extract_strided_slice %25 {offsets = [5, 0], sizes = [1, 252], strides = [1, 1]} : vector<9x252xf32> to vector<1x252xf32>
      %300 = vector.broadcast %299 : vector<1x252xf32> to vector<8x252xf32>
      %301 = arith.mulf %298, %300 : vector<8x252xf32>
      %302 = arith.addf %294, %301 : vector<8x252xf32>
      %303 = vector.extract_strided_slice %256 {offsets = [48, 0], sizes = [8, 252], strides = [1, 1]} : vector<72x252xf32> to vector<8x252xf32>
      %304 = vector.extract_strided_slice %303 {offsets = [0, 17], sizes = [8, 235], strides = [1, 1]} : vector<8x252xf32> to vector<8x235xf32>
      %cst_101 = arith.constant 0.000000e+00 : f32
      %305 = vector.broadcast %cst_101 : f32 to vector<8x17xf32>
      %306 = tpu.concatenate %304, %305 in 1 : vector<8x235xf32>, vector<8x17xf32> -> vector<8x252xf32>
      %307 = vector.extract_strided_slice %25 {offsets = [6, 0], sizes = [1, 252], strides = [1, 1]} : vector<9x252xf32> to vector<1x252xf32>
      %308 = vector.broadcast %307 : vector<1x252xf32> to vector<8x252xf32>
      %309 = arith.mulf %306, %308 : vector<8x252xf32>
      %310 = arith.addf %302, %309 : vector<8x252xf32>
      %311 = vector.extract_strided_slice %256 {offsets = [56, 0], sizes = [8, 252], strides = [1, 1]} : vector<72x252xf32> to vector<8x252xf32>
      %312 = vector.extract_strided_slice %311 {offsets = [0, 18], sizes = [8, 234], strides = [1, 1]} : vector<8x252xf32> to vector<8x234xf32>
      %cst_102 = arith.constant 0.000000e+00 : f32
      %313 = vector.broadcast %cst_102 : f32 to vector<8x18xf32>
      %314 = tpu.concatenate %312, %313 in 1 : vector<8x234xf32>, vector<8x18xf32> -> vector<8x252xf32>
      %315 = vector.extract_strided_slice %25 {offsets = [7, 0], sizes = [1, 252], strides = [1, 1]} : vector<9x252xf32> to vector<1x252xf32>
      %316 = vector.broadcast %315 : vector<1x252xf32> to vector<8x252xf32>
      %317 = arith.mulf %314, %316 : vector<8x252xf32>
      %318 = arith.addf %310, %317 : vector<8x252xf32>
      %319 = vector.extract_strided_slice %256 {offsets = [64, 0], sizes = [8, 252], strides = [1, 1]} : vector<72x252xf32> to vector<8x252xf32>
      %320 = vector.extract_strided_slice %319 {offsets = [0, 19], sizes = [8, 233], strides = [1, 1]} : vector<8x252xf32> to vector<8x233xf32>
      %cst_103 = arith.constant 0.000000e+00 : f32
      %321 = vector.broadcast %cst_103 : f32 to vector<8x19xf32>
      %322 = tpu.concatenate %320, %321 in 1 : vector<8x233xf32>, vector<8x19xf32> -> vector<8x252xf32>
      %323 = vector.extract_strided_slice %25 {offsets = [8, 0], sizes = [1, 252], strides = [1, 1]} : vector<9x252xf32> to vector<1x252xf32>
      %324 = vector.broadcast %323 : vector<1x252xf32> to vector<8x252xf32>
      %325 = arith.mulf %322, %324 : vector<8x252xf32>
      %326 = arith.addf %318, %325 : vector<8x252xf32>
      %327 = vector.broadcast %30 : vector<8x1xf32> to vector<8x252xf32>
      %328 = arith.mulf %326, %327 : vector<8x252xf32>
      %329 = vector.broadcast %31 : vector<8x1xf32> to vector<8x252xf32>
      %330 = arith.addf %328, %329 : vector<8x252xf32>
      %cst_104 = arith.constant 0.000000e+00 : f32
      %331 = vector.broadcast %cst_104 : f32 to vector<8x252xf32>
      %332 = arith.maximumf %330, %331 : vector<8x252xf32>
      %cst_105 = arith.constant 0.000000e+00 : f32
      %333 = vector.broadcast %cst_105 : f32 to vector<8x252xf32>
      %334 = vector.extract_strided_slice %27 {offsets = [0, 0, 0], sizes = [1, 8, 8], strides = [1, 1, 1]} : vector<9x8x8xf32> to vector<1x8x8xf32>
      %335 = vector.shape_cast %334 : vector<1x8x8xf32> to vector<8x8xf32>
      %cst_106 = arith.constant dense<0.000000e+00> : vector<8x252xf32>
      %336 = tpu.matmul %335, %332, %cst_106 {dimension_numbers = #tpu.dot_dimension_numbers<[1], [0], [0], [1], [0, 0, 1, 1], [], []>} : vector<8x8xf32>, vector<8x252xf32>, vector<8x252xf32> -> vector<8x252xf32>
      %cst_107 = arith.constant 0.000000e+00 : f32
      %337 = vector.broadcast %cst_107 : f32 to vector<8x2xf32>
      %338 = vector.extract_strided_slice %336 {offsets = [0, 0], sizes = [8, 250], strides = [1, 1]} : vector<8x252xf32> to vector<8x250xf32>
      %339 = tpu.concatenate %337, %338 in 1 : vector<8x2xf32>, vector<8x250xf32> -> vector<8x252xf32>
      %340 = vector.extract_strided_slice %26 {offsets = [0, 0], sizes = [1, 252], strides = [1, 1]} : vector<9x252xf32> to vector<1x252xf32>
      %341 = vector.broadcast %340 : vector<1x252xf32> to vector<8x252xf32>
      %342 = arith.mulf %339, %341 : vector<8x252xf32>
      %343 = arith.addf %333, %342 : vector<8x252xf32>
      %344 = vector.extract_strided_slice %27 {offsets = [1, 0, 0], sizes = [1, 8, 8], strides = [1, 1, 1]} : vector<9x8x8xf32> to vector<1x8x8xf32>
      %345 = vector.shape_cast %344 : vector<1x8x8xf32> to vector<8x8xf32>
      %cst_108 = arith.constant dense<0.000000e+00> : vector<8x252xf32>
      %346 = tpu.matmul %345, %332, %cst_108 {dimension_numbers = #tpu.dot_dimension_numbers<[1], [0], [0], [1], [0, 0, 1, 1], [], []>} : vector<8x8xf32>, vector<8x252xf32>, vector<8x252xf32> -> vector<8x252xf32>
      %347 = vector.extract_strided_slice %26 {offsets = [1, 0], sizes = [1, 252], strides = [1, 1]} : vector<9x252xf32> to vector<1x252xf32>
      %348 = vector.broadcast %347 : vector<1x252xf32> to vector<8x252xf32>
      %349 = arith.mulf %346, %348 : vector<8x252xf32>
      %350 = arith.addf %343, %349 : vector<8x252xf32>
      %351 = vector.extract_strided_slice %27 {offsets = [2, 0, 0], sizes = [1, 8, 8], strides = [1, 1, 1]} : vector<9x8x8xf32> to vector<1x8x8xf32>
      %352 = vector.shape_cast %351 : vector<1x8x8xf32> to vector<8x8xf32>
      %cst_109 = arith.constant dense<0.000000e+00> : vector<8x252xf32>
      %353 = tpu.matmul %352, %332, %cst_109 {dimension_numbers = #tpu.dot_dimension_numbers<[1], [0], [0], [1], [0, 0, 1, 1], [], []>} : vector<8x8xf32>, vector<8x252xf32>, vector<8x252xf32> -> vector<8x252xf32>
      %354 = vector.extract_strided_slice %353 {offsets = [0, 2], sizes = [8, 250], strides = [1, 1]} : vector<8x252xf32> to vector<8x250xf32>
      %cst_110 = arith.constant 0.000000e+00 : f32
      %355 = vector.broadcast %cst_110 : f32 to vector<8x2xf32>
      %356 = tpu.concatenate %354, %355 in 1 : vector<8x250xf32>, vector<8x2xf32> -> vector<8x252xf32>
      %357 = vector.extract_strided_slice %26 {offsets = [2, 0], sizes = [1, 252], strides = [1, 1]} : vector<9x252xf32> to vector<1x252xf32>
      %358 = vector.broadcast %357 : vector<1x252xf32> to vector<8x252xf32>
      %359 = arith.mulf %356, %358 : vector<8x252xf32>
      %360 = arith.addf %350, %359 : vector<8x252xf32>
      %361 = vector.extract_strided_slice %27 {offsets = [3, 0, 0], sizes = [1, 8, 8], strides = [1, 1, 1]} : vector<9x8x8xf32> to vector<1x8x8xf32>
      %362 = vector.shape_cast %361 : vector<1x8x8xf32> to vector<8x8xf32>
      %cst_111 = arith.constant dense<0.000000e+00> : vector<8x252xf32>
      %363 = tpu.matmul %362, %332, %cst_111 {dimension_numbers = #tpu.dot_dimension_numbers<[1], [0], [0], [1], [0, 0, 1, 1], [], []>} : vector<8x8xf32>, vector<8x252xf32>, vector<8x252xf32> -> vector<8x252xf32>
      %364 = vector.extract_strided_slice %363 {offsets = [0, 34], sizes = [8, 218], strides = [1, 1]} : vector<8x252xf32> to vector<8x218xf32>
      %cst_112 = arith.constant 0.000000e+00 : f32
      %365 = vector.broadcast %cst_112 : f32 to vector<8x34xf32>
      %366 = tpu.concatenate %364, %365 in 1 : vector<8x218xf32>, vector<8x34xf32> -> vector<8x252xf32>
      %367 = vector.extract_strided_slice %26 {offsets = [3, 0], sizes = [1, 252], strides = [1, 1]} : vector<9x252xf32> to vector<1x252xf32>
      %368 = vector.broadcast %367 : vector<1x252xf32> to vector<8x252xf32>
      %369 = arith.mulf %366, %368 : vector<8x252xf32>
      %370 = arith.addf %360, %369 : vector<8x252xf32>
      %371 = vector.extract_strided_slice %27 {offsets = [4, 0, 0], sizes = [1, 8, 8], strides = [1, 1, 1]} : vector<9x8x8xf32> to vector<1x8x8xf32>
      %372 = vector.shape_cast %371 : vector<1x8x8xf32> to vector<8x8xf32>
      %cst_113 = arith.constant dense<0.000000e+00> : vector<8x252xf32>
      %373 = tpu.matmul %372, %332, %cst_113 {dimension_numbers = #tpu.dot_dimension_numbers<[1], [0], [0], [1], [0, 0, 1, 1], [], []>} : vector<8x8xf32>, vector<8x252xf32>, vector<8x252xf32> -> vector<8x252xf32>
      %374 = vector.extract_strided_slice %373 {offsets = [0, 36], sizes = [8, 216], strides = [1, 1]} : vector<8x252xf32> to vector<8x216xf32>
      %cst_114 = arith.constant 0.000000e+00 : f32
      %375 = vector.broadcast %cst_114 : f32 to vector<8x36xf32>
      %376 = tpu.concatenate %374, %375 in 1 : vector<8x216xf32>, vector<8x36xf32> -> vector<8x252xf32>
      %377 = vector.extract_strided_slice %26 {offsets = [4, 0], sizes = [1, 252], strides = [1, 1]} : vector<9x252xf32> to vector<1x252xf32>
      %378 = vector.broadcast %377 : vector<1x252xf32> to vector<8x252xf32>
      %379 = arith.mulf %376, %378 : vector<8x252xf32>
      %380 = arith.addf %370, %379 : vector<8x252xf32>
      %381 = vector.extract_strided_slice %27 {offsets = [5, 0, 0], sizes = [1, 8, 8], strides = [1, 1, 1]} : vector<9x8x8xf32> to vector<1x8x8xf32>
      %382 = vector.shape_cast %381 : vector<1x8x8xf32> to vector<8x8xf32>
      %cst_115 = arith.constant dense<0.000000e+00> : vector<8x252xf32>
      %383 = tpu.matmul %382, %332, %cst_115 {dimension_numbers = #tpu.dot_dimension_numbers<[1], [0], [0], [1], [0, 0, 1, 1], [], []>} : vector<8x8xf32>, vector<8x252xf32>, vector<8x252xf32> -> vector<8x252xf32>
      %384 = vector.extract_strided_slice %383 {offsets = [0, 38], sizes = [8, 214], strides = [1, 1]} : vector<8x252xf32> to vector<8x214xf32>
      %cst_116 = arith.constant 0.000000e+00 : f32
      %385 = vector.broadcast %cst_116 : f32 to vector<8x38xf32>
      %386 = tpu.concatenate %384, %385 in 1 : vector<8x214xf32>, vector<8x38xf32> -> vector<8x252xf32>
      %387 = vector.extract_strided_slice %26 {offsets = [5, 0], sizes = [1, 252], strides = [1, 1]} : vector<9x252xf32> to vector<1x252xf32>
      %388 = vector.broadcast %387 : vector<1x252xf32> to vector<8x252xf32>
      %389 = arith.mulf %386, %388 : vector<8x252xf32>
      %390 = arith.addf %380, %389 : vector<8x252xf32>
      %391 = vector.extract_strided_slice %27 {offsets = [6, 0, 0], sizes = [1, 8, 8], strides = [1, 1, 1]} : vector<9x8x8xf32> to vector<1x8x8xf32>
      %392 = vector.shape_cast %391 : vector<1x8x8xf32> to vector<8x8xf32>
      %cst_117 = arith.constant dense<0.000000e+00> : vector<8x252xf32>
      %393 = tpu.matmul %392, %332, %cst_117 {dimension_numbers = #tpu.dot_dimension_numbers<[1], [0], [0], [1], [0, 0, 1, 1], [], []>} : vector<8x8xf32>, vector<8x252xf32>, vector<8x252xf32> -> vector<8x252xf32>
      %394 = vector.extract_strided_slice %393 {offsets = [0, 70], sizes = [8, 182], strides = [1, 1]} : vector<8x252xf32> to vector<8x182xf32>
      %cst_118 = arith.constant 0.000000e+00 : f32
      %395 = vector.broadcast %cst_118 : f32 to vector<8x70xf32>
      %396 = tpu.concatenate %394, %395 in 1 : vector<8x182xf32>, vector<8x70xf32> -> vector<8x252xf32>
      %397 = vector.extract_strided_slice %26 {offsets = [6, 0], sizes = [1, 252], strides = [1, 1]} : vector<9x252xf32> to vector<1x252xf32>
      %398 = vector.broadcast %397 : vector<1x252xf32> to vector<8x252xf32>
      %399 = arith.mulf %396, %398 : vector<8x252xf32>
      %400 = arith.addf %390, %399 : vector<8x252xf32>
      %401 = vector.extract_strided_slice %27 {offsets = [7, 0, 0], sizes = [1, 8, 8], strides = [1, 1, 1]} : vector<9x8x8xf32> to vector<1x8x8xf32>
      %402 = vector.shape_cast %401 : vector<1x8x8xf32> to vector<8x8xf32>
      %cst_119 = arith.constant dense<0.000000e+00> : vector<8x252xf32>
      %403 = tpu.matmul %402, %332, %cst_119 {dimension_numbers = #tpu.dot_dimension_numbers<[1], [0], [0], [1], [0, 0, 1, 1], [], []>} : vector<8x8xf32>, vector<8x252xf32>, vector<8x252xf32> -> vector<8x252xf32>
      %404 = vector.extract_strided_slice %403 {offsets = [0, 72], sizes = [8, 180], strides = [1, 1]} : vector<8x252xf32> to vector<8x180xf32>
      %cst_120 = arith.constant 0.000000e+00 : f32
      %405 = vector.broadcast %cst_120 : f32 to vector<8x72xf32>
      %406 = tpu.concatenate %404, %405 in 1 : vector<8x180xf32>, vector<8x72xf32> -> vector<8x252xf32>
      %407 = vector.extract_strided_slice %26 {offsets = [7, 0], sizes = [1, 252], strides = [1, 1]} : vector<9x252xf32> to vector<1x252xf32>
      %408 = vector.broadcast %407 : vector<1x252xf32> to vector<8x252xf32>
      %409 = arith.mulf %406, %408 : vector<8x252xf32>
      %410 = arith.addf %400, %409 : vector<8x252xf32>
      %411 = vector.extract_strided_slice %27 {offsets = [8, 0, 0], sizes = [1, 8, 8], strides = [1, 1, 1]} : vector<9x8x8xf32> to vector<1x8x8xf32>
      %412 = vector.shape_cast %411 : vector<1x8x8xf32> to vector<8x8xf32>
      %cst_121 = arith.constant dense<0.000000e+00> : vector<8x252xf32>
      %413 = tpu.matmul %412, %332, %cst_121 {dimension_numbers = #tpu.dot_dimension_numbers<[1], [0], [0], [1], [0, 0, 1, 1], [], []>} : vector<8x8xf32>, vector<8x252xf32>, vector<8x252xf32> -> vector<8x252xf32>
      %414 = vector.extract_strided_slice %413 {offsets = [0, 74], sizes = [8, 178], strides = [1, 1]} : vector<8x252xf32> to vector<8x178xf32>
      %cst_122 = arith.constant 0.000000e+00 : f32
      %415 = vector.broadcast %cst_122 : f32 to vector<8x74xf32>
      %416 = tpu.concatenate %414, %415 in 1 : vector<8x178xf32>, vector<8x74xf32> -> vector<8x252xf32>
      %417 = vector.extract_strided_slice %26 {offsets = [8, 0], sizes = [1, 252], strides = [1, 1]} : vector<9x252xf32> to vector<1x252xf32>
      %418 = vector.broadcast %417 : vector<1x252xf32> to vector<8x252xf32>
      %419 = arith.mulf %416, %418 : vector<8x252xf32>
      %420 = arith.addf %410, %419 : vector<8x252xf32>
      %421 = vector.broadcast %32 : vector<8x1xf32> to vector<8x252xf32>
      %422 = arith.mulf %420, %421 : vector<8x252xf32>
      %423 = vector.broadcast %33 : vector<8x1xf32> to vector<8x252xf32>
      %424 = arith.addf %422, %423 : vector<8x252xf32>
      %cst_123 = arith.constant 0.000000e+00 : f32
      %425 = vector.broadcast %cst_123 : f32 to vector<8x252xf32>
      %426 = arith.maximumf %424, %425 : vector<8x252xf32>
      %cst_124 = arith.constant dense<0.000000e+00> : vector<8x15xf32>
      %427 = tpu.matmul %426, %28, %cst_124 {dimension_numbers = #tpu.dot_dimension_numbers<[1], [0], [0], [1], [0, 0, 1, 1], [], []>} : vector<8x252xf32>, vector<252x15xf32>, vector<8x15xf32> -> vector<8x15xf32>
      %c0_125 = arith.constant 0 : index
      %c0_126 = arith.constant 0 : index
      %428 = vector.load %arg12[%c0_125, %c0_126] : memref<1x100xf32, #tpu.memory_space<vmem>>, vector<1x100xf32>
      %429 = vector.extract_strided_slice %427 {offsets = [0, 0], sizes = [1, 15], strides = [1, 1]} : vector<8x15xf32> to vector<1x15xf32>
      %430 = vector.extract_strided_slice %29 {offsets = [0, 0, 0], sizes = [1, 15, 100], strides = [1, 1, 1]} : vector<8x15x100xf32> to vector<1x15x100xf32>
      %431 = vector.shape_cast %430 : vector<1x15x100xf32> to vector<15x100xf32>
      %cst_127 = arith.constant dense<0.000000e+00> : vector<1x100xf32>
      %432 = tpu.matmul %429, %431, %cst_127 {dimension_numbers = #tpu.dot_dimension_numbers<[1], [0], [0], [1], [0, 0, 1, 1], [], []>} : vector<1x15xf32>, vector<15x100xf32>, vector<1x100xf32> -> vector<1x100xf32>
      %433 = arith.addf %428, %432 : vector<1x100xf32>
      %434 = vector.extract_strided_slice %427 {offsets = [1, 0], sizes = [1, 15], strides = [1, 1]} : vector<8x15xf32> to vector<1x15xf32>
      %435 = vector.extract_strided_slice %29 {offsets = [1, 0, 0], sizes = [1, 15, 100], strides = [1, 1, 1]} : vector<8x15x100xf32> to vector<1x15x100xf32>
      %436 = vector.shape_cast %435 : vector<1x15x100xf32> to vector<15x100xf32>
      %cst_128 = arith.constant dense<0.000000e+00> : vector<1x100xf32>
      %437 = tpu.matmul %434, %436, %cst_128 {dimension_numbers = #tpu.dot_dimension_numbers<[1], [0], [0], [1], [0, 0, 1, 1], [], []>} : vector<1x15xf32>, vector<15x100xf32>, vector<1x100xf32> -> vector<1x100xf32>
      %438 = arith.addf %433, %437 : vector<1x100xf32>
      %439 = vector.extract_strided_slice %427 {offsets = [2, 0], sizes = [1, 15], strides = [1, 1]} : vector<8x15xf32> to vector<1x15xf32>
      %440 = vector.extract_strided_slice %29 {offsets = [2, 0, 0], sizes = [1, 15, 100], strides = [1, 1, 1]} : vector<8x15x100xf32> to vector<1x15x100xf32>
      %441 = vector.shape_cast %440 : vector<1x15x100xf32> to vector<15x100xf32>
      %cst_129 = arith.constant dense<0.000000e+00> : vector<1x100xf32>
      %442 = tpu.matmul %439, %441, %cst_129 {dimension_numbers = #tpu.dot_dimension_numbers<[1], [0], [0], [1], [0, 0, 1, 1], [], []>} : vector<1x15xf32>, vector<15x100xf32>, vector<1x100xf32> -> vector<1x100xf32>
      %443 = arith.addf %438, %442 : vector<1x100xf32>
      %444 = vector.extract_strided_slice %427 {offsets = [3, 0], sizes = [1, 15], strides = [1, 1]} : vector<8x15xf32> to vector<1x15xf32>
      %445 = vector.extract_strided_slice %29 {offsets = [3, 0, 0], sizes = [1, 15, 100], strides = [1, 1, 1]} : vector<8x15x100xf32> to vector<1x15x100xf32>
      %446 = vector.shape_cast %445 : vector<1x15x100xf32> to vector<15x100xf32>
      %cst_130 = arith.constant dense<0.000000e+00> : vector<1x100xf32>
      %447 = tpu.matmul %444, %446, %cst_130 {dimension_numbers = #tpu.dot_dimension_numbers<[1], [0], [0], [1], [0, 0, 1, 1], [], []>} : vector<1x15xf32>, vector<15x100xf32>, vector<1x100xf32> -> vector<1x100xf32>
      %448 = arith.addf %443, %447 : vector<1x100xf32>
      %449 = vector.extract_strided_slice %427 {offsets = [4, 0], sizes = [1, 15], strides = [1, 1]} : vector<8x15xf32> to vector<1x15xf32>
      %450 = vector.extract_strided_slice %29 {offsets = [4, 0, 0], sizes = [1, 15, 100], strides = [1, 1, 1]} : vector<8x15x100xf32> to vector<1x15x100xf32>
      %451 = vector.shape_cast %450 : vector<1x15x100xf32> to vector<15x100xf32>
      %cst_131 = arith.constant dense<0.000000e+00> : vector<1x100xf32>
      %452 = tpu.matmul %449, %451, %cst_131 {dimension_numbers = #tpu.dot_dimension_numbers<[1], [0], [0], [1], [0, 0, 1, 1], [], []>} : vector<1x15xf32>, vector<15x100xf32>, vector<1x100xf32> -> vector<1x100xf32>
      %453 = arith.addf %448, %452 : vector<1x100xf32>
      %454 = vector.extract_strided_slice %427 {offsets = [5, 0], sizes = [1, 15], strides = [1, 1]} : vector<8x15xf32> to vector<1x15xf32>
      %455 = vector.extract_strided_slice %29 {offsets = [5, 0, 0], sizes = [1, 15, 100], strides = [1, 1, 1]} : vector<8x15x100xf32> to vector<1x15x100xf32>
      %456 = vector.shape_cast %455 : vector<1x15x100xf32> to vector<15x100xf32>
      %cst_132 = arith.constant dense<0.000000e+00> : vector<1x100xf32>
      %457 = tpu.matmul %454, %456, %cst_132 {dimension_numbers = #tpu.dot_dimension_numbers<[1], [0], [0], [1], [0, 0, 1, 1], [], []>} : vector<1x15xf32>, vector<15x100xf32>, vector<1x100xf32> -> vector<1x100xf32>
      %458 = arith.addf %453, %457 : vector<1x100xf32>
      %459 = vector.extract_strided_slice %427 {offsets = [6, 0], sizes = [1, 15], strides = [1, 1]} : vector<8x15xf32> to vector<1x15xf32>
      %460 = vector.extract_strided_slice %29 {offsets = [6, 0, 0], sizes = [1, 15, 100], strides = [1, 1, 1]} : vector<8x15x100xf32> to vector<1x15x100xf32>
      %461 = vector.shape_cast %460 : vector<1x15x100xf32> to vector<15x100xf32>
      %cst_133 = arith.constant dense<0.000000e+00> : vector<1x100xf32>
      %462 = tpu.matmul %459, %461, %cst_133 {dimension_numbers = #tpu.dot_dimension_numbers<[1], [0], [0], [1], [0, 0, 1, 1], [], []>} : vector<1x15xf32>, vector<15x100xf32>, vector<1x100xf32> -> vector<1x100xf32>
      %463 = arith.addf %458, %462 : vector<1x100xf32>
      %464 = vector.extract_strided_slice %427 {offsets = [7, 0], sizes = [1, 15], strides = [1, 1]} : vector<8x15xf32> to vector<1x15xf32>
      %465 = vector.extract_strided_slice %29 {offsets = [7, 0, 0], sizes = [1, 15, 100], strides = [1, 1, 1]} : vector<8x15x100xf32> to vector<1x15x100xf32>
      %466 = vector.shape_cast %465 : vector<1x15x100xf32> to vector<15x100xf32>
      %cst_134 = arith.constant dense<0.000000e+00> : vector<1x100xf32>
      %467 = tpu.matmul %464, %466, %cst_134 {dimension_numbers = #tpu.dot_dimension_numbers<[1], [0], [0], [1], [0, 0, 1, 1], [], []>} : vector<1x15xf32>, vector<15x100xf32>, vector<1x100xf32> -> vector<1x100xf32>
      %468 = arith.addf %463, %467 : vector<1x100xf32>
      %cst_135 = arith.constant 0.000000e+00 : f32
      %469 = vector.broadcast %cst_135 : f32 to vector<1x100xf32>
      %470 = arith.maximumf %468, %469 : vector<1x100xf32>
      %cst_136 = arith.constant dense<0.000000e+00> : vector<1x7xf32>
      %471 = tpu.matmul %470, %34, %cst_136 {dimension_numbers = #tpu.dot_dimension_numbers<[1], [0], [0], [1], [0, 0, 1, 1], [], []>} : vector<1x100xf32>, vector<100x7xf32>, vector<1x7xf32> -> vector<1x7xf32>
      %c0_137 = arith.constant 0 : index
      %c0_138 = arith.constant 0 : index
      %472 = vector.load %arg14[%c0_137, %c0_138] : memref<1x7xf32, #tpu.memory_space<vmem>>, vector<1x7xf32>
      %473 = arith.addf %471, %472 : vector<1x7xf32>
      %c1_139 = arith.constant 1 : index
      %c0_140 = arith.constant 0 : index
      %474 = vector.load %arg15[%c1_139, %c0_140] : memref<2x7xf32, #tpu.memory_space<vmem>>, vector<1x7xf32>
      tpu.vector_store %arg15[%c1_139, %c0_140], %473 {strides = array<i32>} : memref<2x7xf32, #tpu.memory_space<vmem>>, vector<1x7xf32>,
    } else {
    }
    return
  }
  func.func @transform_0(%arg0: i32) -> (i32, i32, i32) {
    %c0_i32 = arith.constant 0 : i32
    %c0_i32_0 = arith.constant 0 : i32
    %c0_i32_1 = arith.constant 0 : i32
    return %c0_i32, %arg0, %c0_i32_0 : i32, i32, i32
  }
  func.func @transform_1(%arg0: i32) -> (i32, i32) {
    %c0_i32 = arith.constant 0 : i32
    %c0_i32_0 = arith.constant 0 : i32
    return %c0_i32, %arg0 : i32, i32
  }
  func.func @transform_2(%arg0: i32) -> (i32, i32) {
    %c0_i32 = arith.constant 0 : i32
    %c0_i32_0 = arith.constant 0 : i32
    %c0_i32_1 = arith.constant 0 : i32
    return %c0_i32, %c0_i32_0 : i32, i32
  }
  func.func @transform_3(%arg0: i32) -> (i32, i32) {
    %c0_i32 = arith.constant 0 : i32
    %c0_i32_0 = arith.constant 0 : i32
    %c0_i32_1 = arith.constant 0 : i32
    return %c0_i32, %c0_i32_0 : i32, i32
  }
  func.func @transform_4(%arg0: i32) -> (i32, i32, i32) {
    %c0_i32 = arith.constant 0 : i32
    %c0_i32_0 = arith.constant 0 : i32
    %c0_i32_1 = arith.constant 0 : i32
    %c0_i32_2 = arith.constant 0 : i32
    return %c0_i32, %c0_i32_0, %c0_i32_1 : i32, i32, i32
  }
  func.func @transform_5(%arg0: i32) -> (i32, i32) {
    %c0_i32 = arith.constant 0 : i32
    %c0_i32_0 = arith.constant 0 : i32
    %c0_i32_1 = arith.constant 0 : i32
    return %c0_i32, %c0_i32_0 : i32, i32
  }
  func.func @transform_6(%arg0: i32) -> (i32, i32) {
    %c0_i32 = arith.constant 0 : i32
    %c0_i32_0 = arith.constant 0 : i32
    %c0_i32_1 = arith.constant 0 : i32
    return %c0_i32, %c0_i32_0 : i32, i32
  }
  func.func @transform_7(%arg0: i32) -> (i32, i32) {
    %c0_i32 = arith.constant 0 : i32
    %c0_i32_0 = arith.constant 0 : i32
    %c0_i32_1 = arith.constant 0 : i32
    return %c0_i32, %c0_i32_0 : i32, i32
  }
  func.func @transform_8(%arg0: i32) -> (i32, i32) {
    %c0_i32 = arith.constant 0 : i32
    %c0_i32_0 = arith.constant 0 : i32
    %c0_i32_1 = arith.constant 0 : i32
    return %c0_i32, %c0_i32_0 : i32, i32
  }
  func.func @transform_9(%arg0: i32) -> (i32, i32) {
    %c0_i32 = arith.constant 0 : i32
    %c0_i32_0 = arith.constant 0 : i32
    %c0_i32_1 = arith.constant 0 : i32
    return %c0_i32, %c0_i32_0 : i32, i32
  }
  func.func @transform_10(%arg0: i32) -> (i32, i32, i32) {
    %c0_i32 = arith.constant 0 : i32
    %c0_i32_0 = arith.constant 0 : i32
    %c0_i32_1 = arith.constant 0 : i32
    %c0_i32_2 = arith.constant 0 : i32
    return %c0_i32, %c0_i32_0, %c0_i32_1 : i32, i32, i32
  }
  func.func @transform_11(%arg0: i32) -> (i32, i32) {
    %c0_i32 = arith.constant 0 : i32
    %c0_i32_0 = arith.constant 0 : i32
    %c0_i32_1 = arith.constant 0 : i32
    return %c0_i32, %c0_i32_0 : i32, i32
  }
  func.func @transform_12(%arg0: i32) -> (i32, i32) {
    %c0_i32 = arith.constant 0 : i32
    %c0_i32_0 = arith.constant 0 : i32
    %c0_i32_1 = arith.constant 0 : i32
    return %c0_i32, %c0_i32_0 : i32, i32
  }
  func.func @transform_13(%arg0: i32) -> (i32, i32) {
    %c0_i32 = arith.constant 0 : i32
    %c0_i32_0 = arith.constant 0 : i32
    %c0_i32_1 = arith.constant 0 : i32
    return %c0_i32, %c0_i32_0 : i32, i32
  }
  func.func @transform_14(%arg0: i32) -> (i32, i32) {
    %c0_i32 = arith.constant 0 : i32
    %c0_i32_0 = arith.constant 0 : i32
    %c0_i32_1 = arith.constant 0 : i32
    return %c0_i32, %c0_i32_0 : i32, i32
  }
}

</mosaic_0001>

<llo_original>
// kernel: calanet_forward.1
$region0: #{calanet_forward.1}
  #allocation0 [shape = 'u32[]', space=smem, size = 0x4, offset = 0x4, fixed_abs, tag = 'smem constant byte address 0x4 - core index']
  #allocation1 [shape = 'u32[144,128]{1,0:T(1,128)}', space=vmem, size = 0x12000, scoped, tag = 'internal scratch']
  #allocation2 [shape = 'f32[2,72,252]{2,1,0:T(8,128)}', space=vmem, size = 0x24000, scoped, tag = 'scratch operand']
  %s0 = inlined_call_operand.vmem [shape: f32[2,3584,252], index: 0, kind: input, shape index: {}]
  %s1 = inlined_call_operand.vmem [shape: f32[72,3584], index: 1, kind: input, shape index: {}]
  %s2 = inlined_call_operand.vmem [shape: f32[9,252], index: 2, kind: input, shape index: {}]
  %s3 = inlined_call_operand.vmem [shape: f32[9,252], index: 3, kind: input, shape index: {}]
  %s4 = inlined_call_operand.vmem [shape: f32[9,8,8], index: 4, kind: input, shape index: {}]
  %s5 = inlined_call_operand.vmem [shape: f32[8,1], index: 5, kind: input, shape index: {}]
  %s6 = inlined_call_operand.vmem [shape: f32[8,1], index: 6, kind: input, shape index: {}]
  %s7 = inlined_call_operand.vmem [shape: f32[8,1], index: 7, kind: input, shape index: {}]
  %s8 = inlined_call_operand.vmem [shape: f32[8,1], index: 8, kind: input, shape index: {}]
  %s9 = inlined_call_operand.vmem [shape: f32[252,15], index: 9, kind: input, shape index: {}]
  %s10 = inlined_call_operand.vmem [shape: f32[8,15,100], index: 10, kind: input, shape index: {}]
  %s11 = inlined_call_operand.vmem [shape: f32[1,100], index: 11, kind: input, shape index: {}]
  %s12 = inlined_call_operand.vmem [shape: f32[100,7], index: 12, kind: input, shape index: {}]
  %s13 = inlined_call_operand.vmem [shape: f32[1,7], index: 13, kind: input, shape index: {}]
  %s14 = inlined_call_operand.hbm [shape: f32[2,7], index: 14, kind: output, shape index: {}]
  %s15 = sld [smem:[#allocation0]]
  $region143: #{calanet_forward.1} parent=0
    _
  %s17 = ssub.s32 1, %s15
  %s18 = scalar_select 0, %s17, %s15
  $region1: #{calanet_forward.1} parent=0
    #allocation3 [shape = 'u8[3670016]{0}', space=vmem, size = 0x380000, scoped, tag = 'input window, operand 0']
    #allocation4 [shape = 'u8[516096]{0}', space=vmem, size = 0x7e000, scoped, tag = 'input window, operand 1']
    #allocation5 [shape = 'u8[1024]{0}', space=vmem, size = 0x400, scoped, tag = 'output window, operand 0, single buffered']
    #allocation6 [shape = 's32[2]{0}', space=sflag, size = 0x8, scoped, tag = 'scoped memory for calanet_forward.1']
    %19 = vsyncpa [#allocation6], 0
    loop: start=0, step=1, limit=6
    $region2: #{calanet_forward.1} parent=1 // loop_pre_header
      _
    $region3: #{calanet_forward.1} parent=1 // loop_header
      %s21 = sphi 0, %s25
      %p22 = scmp.ge.s32.totalorder %s21, 6
      %s31 = sphi 0, %s33
      %s34 = sphi 0, %s31
      %s35 = sphi 0, %s34
      %s51 = sphi 0, %s35
      %s57 = sphi 0, %s59
      %s60 = sphi 0, %s57
      %s61 = sphi 0, %s60
      %s77 = sphi 0, %s61
      %s81 = sphi 0, %s81
      %s83 = sphi 0, %s81
      %s84 = sphi 0, %s83
      %s98 = sphi 0, %s84
      %s102 = sphi 0, %s102
      %s104 = sphi 0, %s102
      %s105 = sphi 0, %s104
      %s119 = sphi 0, %s105
      %s123 = sphi 0, %s123
      %s125 = sphi 0, %s123
      %s126 = sphi 0, %s125
      %s140 = sphi 0, %s126
      %s144 = sphi 0, %s144
      %s146 = sphi 0, %s144
      %s147 = sphi 0, %s146
      %s161 = sphi 0, %s147
      %s165 = sphi 0, %s165
      %s167 = sphi 0, %s165
      %s168 = sphi 0, %s167
      %s182 = sphi 0, %s168
      %s186 = sphi 0, %s186
      %s188 = sphi 0, %s186
      %s189 = sphi 0, %s188
      %s203 = sphi 0, %s189
      %s207 = sphi 0, %s207
      %s209 = sphi 0, %s207
      %s210 = sphi 0, %s209
      %s224 = sphi 0, %s210
      %s228 = sphi 0, %s228
      %s230 = sphi 0, %s228
      %s231 = sphi 0, %s230
      %s245 = sphi 0, %s231
      %s249 = sphi 0, %s249
      %s251 = sphi 0, %s249
      %s252 = sphi 0, %s251
      %s266 = sphi 0, %s252
      %s270 = sphi 0, %s270
      %s272 = sphi 0, %s270
      %s273 = sphi 0, %s272
      %s287 = sphi 0, %s273
      %s291 = sphi 0, %s291
      %s293 = sphi 0, %s291
      %s294 = sphi 0, %s293
      %s308 = sphi 0, %s294
      %s312 = sphi 0, %s312
      %s314 = sphi 0, %s312
      %s315 = sphi 0, %s314
      %s329 = sphi 0, %s315
      %s333 = sphi 0, %s333
      %s335 = sphi 0, %s333
      %s336 = sphi 0, %s335
      %s350 = sphi 0, %s336
    $region4: #{calanet_forward.1} parent=1 // loop_header_branch
      %24 = sbr.rel (%p22) target = $region8
    $region5: #{calanet_forward.1} parent=1 // loop_body
      %s26 = ssub.s32 %s21, 1
      %s27 = ssub.s32 %s21, 2
      %s28 = sadd.s32 %s21, 1
      %s29 = ssub.s32 %s21, %s28
      %p30 = scmp.eq.s32.totalorder %s29, 0
      %s32 = sadd.s32 %s31, 1
      %s33 = scalar_select %p30, %s31, %s32
      %p36 = pneg %p30
      %p37 = scmp.eq.s32.totalorder %s21, 3
      %p38 = por %p36, %p37
      %p39 = scmp.ne.s32.totalorder %s31, %s34
      %p40 = scmp.eq.s32.totalorder %s21, 0
      %p41 = por %p39, %p40
      %p42 = scmp.ne.s32.totalorder %s31, %s34
      %p43 = scmp.eq.s32.totalorder %s26, 3
      %p44 = por %p42, %p43
      %p45 = scmp.ne.s32.totalorder %s34, %s35
      %p46 = scmp.eq.s32.totalorder %s26, 0
      %p47 = por %p45, %p46
      %p48 = scmp.ne.s32.totalorder %s34, %s35
      %p49 = scmp.eq.s32.totalorder %s27, 3
      %p50 = por %p48, %p49
      %p52 = scmp.ne.s32.totalorder %s35, %s51
      %p53 = scmp.eq.s32.totalorder %s27, 0
      %p54 = por %p52, %p53
      %s55 = ssub.s32 %s21, %s28
      %p56 = scmp.eq.s32.totalorder %s55, 0
      %s58 = sadd.s32 %s57, 1
      %s59 = scalar_select %p56, %s57, %s58
      %p62 = pneg %p56
      %p63 = scmp.eq.s32.totalorder %s21, 3
      %p64 = por %p62, %p63
      %p65 = scmp.ne.s32.totalorder %s57, %s60
      %p66 = scmp.eq.s32.totalorder %s21, 0
      %p67 = por %p65, %p66
      %p68 = scmp.ne.s32.totalorder %s57, %s60
      %p69 = scmp.eq.s32.totalorder %s26, 3
      %p70 = por %p68, %p69
      %p71 = scmp.ne.s32.totalorder %s60, %s61
      %p72 = scmp.eq.s32.totalorder %s26, 0
      %p73 = por %p71, %p72
      %p74 = scmp.ne.s32.totalorder %s60, %s61
      %p75 = scmp.eq.s32.totalorder %s27, 3
      %p76 = por %p74, %p75
      %p78 = scmp.ne.s32.totalorder %s61, %s77
      %p79 = scmp.eq.s32.totalorder %s27, 0
      %p80 = por %p78, %p79
      %s82 = sadd.s32 %s81, 1
      %p85 = scmp.eq.s32.totalorder %s21, 3
      %p86 = scmp.ne.s32.totalorder %s81, %s83
      %p87 = scmp.eq.s32.totalorder %s21, 0
      %p88 = por %p86, %p87
      %p89 = scmp.ne.s32.totalorder %s81, %s83
      %p90 = scmp.eq.s32.totalorder %s26, 3
      %p91 = por %p89, %p90
      %p92 = scmp.ne.s32.totalorder %s83, %s84
      %p93 = scmp.eq.s32.totalorder %s26, 0
      %p94 = por %p92, %p93
      %p95 = scmp.ne.s32.totalorder %s83, %s84
      %p96 = scmp.eq.s32.totalorder %s27, 3
      %p97 = por %p95, %p96
      %p99 = scmp.ne.s32.totalorder %s84, %s98
      %p100 = scmp.eq.s32.totalorder %s27, 0
      %p101 = por %p99, %p100
      %s103 = sadd.s32 %s102, 1
      %p106 = scmp.eq.s32.totalorder %s21, 3
      %p107 = scmp.ne.s32.totalorder %s102, %s104
      %p108 = scmp.eq.s32.totalorder %s21, 0
      %p109 = por %p107, %p108
      %p110 = scmp.ne.s32.totalorder %s102, %s104
      %p111 = scmp.eq.s32.totalorder %s26, 3
      %p112 = por %p110, %p111
      %p113 = scmp.ne.s32.totalorder %s104, %s105
      %p114 = scmp.eq.s32.totalorder %s26, 0
      %p115 = por %p113, %p114
      %p116 = scmp.ne.s32.totalorder %s104, %s105
      %p117 = scmp.eq.s32.totalorder %s27, 3
      %p118 = por %p116, %p117
      %p120 = scmp.ne.s32.totalorder %s105, %s119
      %p121 = scmp.eq.s32.totalorder %s27, 0
      %p122 = por %p120, %p121
      %s124 = sadd.s32 %s123, 1
      %p127 = scmp.eq.s32.totalorder %s21, 3
      %p128 = scmp.ne.s32.totalorder %s123, %s125
      %p129 = scmp.eq.s32.totalorder %s21, 0
      %p130 = por %p128, %p129
      %p131 = scmp.ne.s32.totalorder %s123, %s125
      %p132 = scmp.eq.s32.totalorder %s26, 3
      %p133 = por %p131, %p132
      %p134 = scmp.ne.s32.totalorder %s125, %s126
      %p135 = scmp.eq.s32.totalorder %s26, 0
      %p136 = por %p134, %p135
      %p137 = scmp.ne.s32.totalorder %s125, %s126
      %p138 = scmp.eq.s32.totalorder %s27, 3
      %p139 = por %p137, %p138
      %p141 = scmp.ne.s32.totalorder %s126, %s140
      %p142 = scmp.eq.s32.totalorder %s27, 0
      %p143 = por %p141, %p142
      %s145 = sadd.s32 %s144, 1
      %p148 = scmp.eq.s32.totalorder %s21, 3
      %p149 = scmp.ne.s32.totalorder %s144, %s146
      %p150 = scmp.eq.s32.totalorder %s21, 0
      %p151 = por %p149, %p150
      %p152 = scmp.ne.s32.totalorder %s144, %s146
      %p153 = scmp.eq.s32.totalorder %s26, 3
      %p154 = por %p152, %p153
      %p155 = scmp.ne.s32.totalorder %s146, %s147
      %p156 = scmp.eq.s32.totalorder %s26, 0
      %p157 = por %p155, %p156
      %p158 = scmp.ne.s32.totalorder %s146, %s147
      %p159 = scmp.eq.s32.totalorder %s27, 3
      %p160 = por %p158, %p159
      %p162 = scmp.ne.s32.totalorder %s147, %s161
      %p163 = scmp.eq.s32.totalorder %s27, 0
      %p164 = por %p162, %p163
      %s166 = sadd.s32 %s165, 1
      %p169 = scmp.eq.s32.totalorder %s21, 3
      %p170 = scmp.ne.s32.totalorder %s165, %s167
      %p171 = scmp.eq.s32.totalorder %s21, 0
      %p172 = por %p170, %p171
      %p173 = scmp.ne.s32.totalorder %s165, %s167
      %p174 = scmp.eq.s32.totalorder %s26, 3
      %p175 = por %p173, %p174
      %p176 = scmp.ne.s32.totalorder %s167, %s168
      %p177 = scmp.eq.s32.totalorder %s26, 0
      %p178 = por %p176, %p177
      %p179 = scmp.ne.s32.totalorder %s167, %s168
      %p180 = scmp.eq.s32.totalorder %s27, 3
      %p181 = por %p179, %p180
      %p183 = scmp.ne.s32.totalorder %s168, %s182
      %p184 = scmp.eq.s32.totalorder %s27, 0
      %p185 = por %p183, %p184
      %s187 = sadd.s32 %s186, 1
      %p190 = scmp.eq.s32.totalorder %s21, 3
      %p191 = scmp.ne.s32.totalorder %s186, %s188
      %p192 = scmp.eq.s32.totalorder %s21, 0
      %p193 = por %p191, %p192
      %p194 = scmp.ne.s32.totalorder %s186, %s188
      %p195 = scmp.eq.s32.totalorder %s26, 3
      %p196 = por %p194, %p195
      %p197 = scmp.ne.s32.totalorder %s188, %s189
      %p198 = scmp.eq.s32.totalorder %s26, 0
      %p199 = por %p197, %p198
      %p200 = scmp.ne.s32.totalorder %s188, %s189
      %p201 = scmp.eq.s32.totalorder %s27, 3
      %p202 = por %p200, %p201
      %p204 = scmp.ne.s32.totalorder %s189, %s203
      %p205 = scmp.eq.s32.totalorder %s27, 0
      %p206 = por %p204, %p205
      %s208 = sadd.s32 %s207, 1
      %p211 = scmp.eq.s32.totalorder %s21, 3
      %p212 = scmp.ne.s32.totalorder %s207, %s209
      %p213 = scmp.eq.s32.totalorder %s21, 0
      %p214 = por %p212, %p213
      %p215 = scmp.ne.s32.totalorder %s207, %s209
      %p216 = scmp.eq.s32.totalorder %s26, 3
      %p217 = por %p215, %p216
      %p218 = scmp.ne.s32.totalorder %s209, %s210
      %p219 = scmp.eq.s32.totalorder %s26, 0
      %p220 = por %p218, %p219
      %p221 = scmp.ne.s32.totalorder %s209, %s210
      %p222 = scmp.eq.s32.totalorder %s27, 3
      %p223 = por %p221, %p222
      %p225 = scmp.ne.s32.totalorder %s210, %s224
      %p226 = scmp.eq.s32.totalorder %s27, 0
      %p227 = por %p225, %p226
      %s229 = sadd.s32 %s228, 1
      %p232 = scmp.eq.s32.totalorder %s21, 3
      %p233 = scmp.ne.s32.totalorder %s228, %s230
      %p234 = scmp.eq.s32.totalorder %s21, 0
      %p235 = por %p233, %p234
      %p236 = scmp.ne.s32.totalorder %s228, %s230
      %p237 = scmp.eq.s32.totalorder %s26, 3
      %p238 = por %p236, %p237
      %p239 = scmp.ne.s32.totalorder %s230, %s231
      %p240 = scmp.eq.s32.totalorder %s26, 0
      %p241 = por %p239, %p240
      %p242 = scmp.ne.s32.totalorder %s230, %s231
      %p243 = scmp.eq.s32.totalorder %s27, 3
      %p244 = por %p242, %p243
      %p246 = scmp.ne.s32.totalorder %s231, %s245
      %p247 = scmp.eq.s32.totalorder %s27, 0
      %p248 = por %p246, %p247
      %s250 = sadd.s32 %s249, 1
      %p253 = scmp.eq.s32.totalorder %s21, 3
      %p254 = scmp.ne.s32.totalorder %s249, %s251
      %p255 = scmp.eq.s32.totalorder %s21, 0
      %p256 = por %p254, %p255
      %p257 = scmp.ne.s32.totalorder %s249, %s251
      %p258 = scmp.eq.s32.totalorder %s26, 3
      %p259 = por %p257, %p258
      %p260 = scmp.ne.s32.totalorder %s251, %s252
      %p261 = scmp.eq.s32.totalorder %s26, 0
      %p262 = por %p260, %p261
      %p263 = scmp.ne.s32.totalorder %s251, %s252
      %p264 = scmp.eq.s32.totalorder %s27, 3
      %p265 = por %p263, %p264
      %p267 = scmp.ne.s32.totalorder %s252, %s266
      %p268 = scmp.eq.s32.totalorder %s27, 0
      %p269 = por %p267, %p268
      %s271 = sadd.s32 %s270, 1
      %p274 = scmp.eq.s32.totalorder %s21, 3
      %p275 = scmp.ne.s32.totalorder %s270, %s272
      %p276 = scmp.eq.s32.totalorder %s21, 0
      %p277 = por %p275, %p276
      %p278 = scmp.ne.s32.totalorder %s270, %s272
      %p279 = scmp.eq.s32.totalorder %s26, 3
      %p280 = por %p278, %p279
      %p281 = scmp.ne.s32.totalorder %s272, %s273
      %p282 = scmp.eq.s32.totalorder %s26, 0
      %p283 = por %p281, %p282
      %p284 = scmp.ne.s32.totalorder %s272, %s273
      %p285 = scmp.eq.s32.totalorder %s27, 3
      %p286 = por %p284, %p285
      %p288 = scmp.ne.s32.totalorder %s273, %s287
      %p289 = scmp.eq.s32.totalorder %s27, 0
      %p290 = por %p288, %p289
      %s292 = sadd.s32 %s291, 1
      %p295 = scmp.eq.s32.totalorder %s21, 3
      %p296 = scmp.ne.s32.totalorder %s291, %s293
      %p297 = scmp.eq.s32.totalorder %s21, 0
      %p298 = por %p296, %p297
      %p299 = scmp.ne.s32.totalorder %s291, %s293
      %p300 = scmp.eq.s32.totalorder %s26, 3
      %p301 = por %p299, %p300
      %p302 = scmp.ne.s32.totalorder %s293, %s294
      %p303 = scmp.eq.s32.totalorder %s26, 0
      %p304 = por %p302, %p303
      %p305 = scmp.ne.s32.totalorder %s293, %s294
      %p306 = scmp.eq.s32.totalorder %s27, 3
      %p307 = por %p305, %p306
      %p309 = scmp.ne.s32.totalorder %s294, %s308
      %p310 = scmp.eq.s32.totalorder %s27, 0
      %p311 = por %p309, %p310
      %s313 = sadd.s32 %s312, 1
      %p316 = scmp.eq.s32.totalorder %s21, 3
      %p317 = scmp.ne.s32.totalorder %s312, %s314
      %p318 = scmp.eq.s32.totalorder %s21, 0
      %p319 = por %p317, %p318
      %p320 = scmp.ne.s32.totalorder %s312, %s314
      %p321 = scmp.eq.s32.totalorder %s26, 3
      %p322 = por %p320, %p321
      %p323 = scmp.ne.s32.totalorder %s314, %s315
      %p324 = scmp.eq.s32.totalorder %s26, 0
      %p325 = por %p323, %p324
      %p326 = scmp.ne.s32.totalorder %s314, %s315
      %p327 = scmp.eq.s32.totalorder %s27, 3
      %p328 = por %p326, %p327
      %p330 = scmp.ne.s32.totalorder %s315, %s329
      %p331 = scmp.eq.s32.totalorder %s27, 0
      %p332 = por %p330, %p331
      %s334 = sadd.s32 %s333, 1
      %p337 = scmp.eq.s32.totalorder %s21, 3
      %p338 = scmp.ne.s32.totalorder %s333, %s335
      %p339 = scmp.eq.s32.totalorder %s21, 0
      %p340 = por %p338, %p339
      %p341 = scmp.ne.s32.totalorder %s333, %s335
      %p342 = scmp.eq.s32.totalorder %s26, 3
      %p343 = por %p341, %p342
      %p344 = scmp.ne.s32.totalorder %s335, %s336
      %p345 = scmp.eq.s32.totalorder %s26, 0
      %p346 = por %p344, %p345
      %p347 = scmp.ne.s32.totalorder %s335, %s336
      %p348 = scmp.eq.s32.totalorder %s27, 3
      %p349 = por %p347, %p348
      %p351 = scmp.ne.s32.totalorder %s336, %s350
      %p352 = scmp.eq.s32.totalorder %s27, 0
      %p353 = por %p351, %p352
      %p354 = scmp.le.s32.totalorder 1, %s21
      %p355 = scmp.lt.s32.totalorder %s21, 5
      %p356 = pnand %p354, %p355
      %p357 = pneg %p356
      // Predicated region
      $region9: #{calanet_forward.1} parent=5 // pred_check
        _
      $region10: #{calanet_forward.1} parent=5 // pred_check_branch
        %359 = sbr.rel (%p356) target = $region12
      $region11: #{calanet_forward.1} parent=5 // pred_region
        %s360 = ssub.s32 %s21, 1
        // Predicated region
        $region13: #{calanet_forward.1} parent=11 // pred_check
          %p361 = pneg %p94
        $region14: #{calanet_forward.1} parent=11 // pred_check_branch
          %363 = sbr.rel (%p361) target = $region16
        $region15: #{calanet_forward.1} parent=11 // pred_region
          _
        $region16: #{calanet_forward.1} parent=11 // pred_fallthru
          _
        // Predicated region
        $region17: #{calanet_forward.1} parent=11 // pred_check
          %p364 = pneg %p115
        $region18: #{calanet_forward.1} parent=11 // pred_check_branch
          %366 = sbr.rel (%p364) target = $region20
        $region19: #{calanet_forward.1} parent=11 // pred_region
          _
        $region20: #{calanet_forward.1} parent=11 // pred_fallthru
          _
        // Predicated region
        $region21: #{calanet_forward.1} parent=11 // pred_check
          %p367 = pneg %p136
        $region22: #{calanet_forward.1} parent=11 // pred_check_branch
          %369 = sbr.rel (%p367) target = $region24
        $region23: #{calanet_forward.1} parent=11 // pred_region
          _
        $region24: #{calanet_forward.1} parent=11 // pred_fallthru
          _
        // Predicated region
        $region25: #{calanet_forward.1} parent=11 // pred_check
          %p370 = pneg %p157
        $region26: #{calanet_forward.1} parent=11 // pred_check_branch
          %372 = sbr.rel (%p370) target = $region28
        $region27: #{calanet_forward.1} parent=11 // pred_region
          _
        $region28: #{calanet_forward.1} parent=11 // pred_fallthru
          _
        // Predicated region
        $region29: #{calanet_forward.1} parent=11 // pred_check
          %p373 = pneg %p178
        $region30: #{calanet_forward.1} parent=11 // pred_check_branch
          %375 = sbr.rel (%p373) target = $region32
        $region31: #{calanet_forward.1} parent=11 // pred_region
          _
        $region32: #{calanet_forward.1} parent=11 // pred_fallthru
          _
        // Predicated region
        $region33: #{calanet_forward.1} parent=11 // pred_check
          %p376 = pneg %p199
        $region34: #{calanet_forward.1} parent=11 // pred_check_branch
          %378 = sbr.rel (%p376) target = $region36
        $region35: #{calanet_forward.1} parent=11 // pred_region
          _
        $region36: #{calanet_forward.1} parent=11 // pred_fallthru
          _
        // Predicated region
        $region37: #{calanet_forward.1} parent=11 // pred_check
          %p379 = pneg %p220
        $region38: #{calanet_forward.1} parent=11 // pred_check_branch
          %381 = sbr.rel (%p379) target = $region40
        $region39: #{calanet_forward.1} parent=11 // pred_region
          _
        $region40: #{calanet_forward.1} parent=11 // pred_fallthru
          _
        // Predicated region
        $region41: #{calanet_forward.1} parent=11 // pred_check
          %p382 = pneg %p241
        $region42: #{calanet_forward.1} parent=11 // pred_check_branch
          %384 = sbr.rel (%p382) target = $region44
        $region43: #{calanet_forward.1} parent=11 // pred_region
          _
        $region44: #{calanet_forward.1} parent=11 // pred_fallthru
          _
        // Predicated region
        $region45: #{calanet_forward.1} parent=11 // pred_check
          %p385 = pneg %p262
        $region46: #{calanet_forward.1} parent=11 // pred_check_branch
          %387 = sbr.rel (%p385) target = $region48
        $region47: #{calanet_forward.1} parent=11 // pred_region
          _
        $region48: #{calanet_forward.1} parent=11 // pred_fallthru
          _
        // Predicated region
        $region49: #{calanet_forward.1} parent=11 // pred_check
          %p388 = pneg %p283
        $region50: #{calanet_forward.1} parent=11 // pred_check_branch
          %390 = sbr.rel (%p388) target = $region52
        $region51: #{calanet_forward.1} parent=11 // pred_region
          _
        $region52: #{calanet_forward.1} parent=11 // pred_fallthru
          _
        // Predicated region
        $region53: #{calanet_forward.1} parent=11 // pred_check
          %p391 = pneg %p304
        $region54: #{calanet_forward.1} parent=11 // pred_check_branch
          %393 = sbr.rel (%p391) target = $region56
        $region55: #{calanet_forward.1} parent=11 // pred_region
          _
        $region56: #{calanet_forward.1} parent=11 // pred_fallthru
          _
        // Predicated region
        $region57: #{calanet_forward.1} parent=11 // pred_check
          %p394 = pneg %p325
        $region58: #{calanet_forward.1} parent=11 // pred_check_branch
          %396 = sbr.rel (%p394) target = $region60
        $region59: #{calanet_forward.1} parent=11 // pred_region
          _
        $region60: #{calanet_forward.1} parent=11 // pred_fallthru
          _
      $region12: #{calanet_forward.1} parent=5 // pred_fallthru
        _
      %p397 = scmp.lt.s32.totalorder %s21, 4
      // Predicated region
      $region61: #{calanet_forward.1} parent=5 // pred_check
        %p398 = pneg %p397
      $region62: #{calanet_forward.1} parent=5 // pred_check_branch
        %400 = sbr.rel (%p398) target = $region64
      $region63: #{calanet_forward.1} parent=5 // pred_region
        // Predicated region
        $region65: #{calanet_forward.1} parent=63 // pred_check
          %p401 = pneg %p41
        $region66: #{calanet_forward.1} parent=63 // pred_check_branch
          %403 = sbr.rel (%p401) target = $region68
        $region67: #{calanet_forward.1} parent=63 // pred_region
          %s404 = sand.u32 %s31, 1
          %s405 = sand.u32 %s31, 1
          %s406 = smul.addr %s405, 3584
          %s407 = scalar_lea.vmem [#allocation3], %s406
          %s408 = smul.u32 112, %s21
          %s409 = smul.addr %s408, 2
          %s410 = smul.addr %s409, 8
          %s411 = scalar_lea.vmem %s0, %s410
          // Predicated region
          $region69: #{calanet_forward.1} parent=67 // pred_check
            _
          $region70: #{calanet_forward.1} parent=67 // pred_check_branch
            %413 = sbr.rel (0) target = $region72
          $region71: #{calanet_forward.1} parent=67 // pred_region
            // Predicated region
            $region73: #{calanet_forward.1} parent=71 // pred_check
              _
            $region74: #{calanet_forward.1} parent=71 // pred_check_branch
              %415 = sbr.rel (0) target = $region76
            $region75: #{calanet_forward.1} parent=71 // pred_region
              loop: start=0, step=1, limit=1
              $region77: #{calanet_forward.1} parent=75 // loop_pre_header
                _
              $region78: #{calanet_forward.1} parent=75 // loop_header
                %s417 = sphi 0, %s421
                %p418 = scmp.ge.s32.totalorder %s417, 1
                %s422 = sphi %s411, %s411
                %s423 = sphi %s407, %s407
              $region79: #{calanet_forward.1} parent=75 // loop_header_branch
                %420 = sbr.rel (%p418) target = $region83
              $region80: #{calanet_forward.1} parent=75 // loop_body
                %v424 = vld [vmem:[%s422] sm:$0xff]
                %425 = vst [vmem:[%s423] sm:$0xff] %v424
                %v426 = vld [vmem:[%s422 + $0x8] sm:$0xff]
                %427 = vst [vmem:[%s423 + $0x8] sm:$0xff] %v426
                %v428 = vld [vmem:[%s422 + $0x10] sm:$0xff]
                %429 = vst [vmem:[%s423 + $0x10] sm:$0xff] %v428
                %v430 = vld [vmem:[%s422 + $0x18] sm:$0xff]
                %431 = vst [vmem:[%s423 + $0x18] sm:$0xff] %v430
                %v432 = vld [vmem:[%s422 + $0x20] sm:$0xff]
                %433 = vst [vmem:[%s423 + $0x20] sm:$0xff] %v432
                %v434 = vld [vmem:[%s422 + $0x28] sm:$0xff]
                %435 = vst [vmem:[%s423 + $0x28] sm:$0xff] %v434
                %v436 = vld [vmem:[%s422 + $0x30] sm:$0xff]
                %437 = vst [vmem:[%s423 + $0x30] sm:$0xff] %v436
                %v438 = vld [vmem:[%s422 + $0x38] sm:$0xff]
                %439 = vst [vmem:[%s423 + $0x38] sm:$0xff] %v438
                %v440 = vld [vmem:[%s422 + $0x40] sm:$0xff]
                %441 = vst [vmem:[%s423 + $0x40] sm:$0xff] %v440
                %v442 = vld [vmem:[%s422 + $0x48] sm:$0xff]
                %443 = vst [vmem:[%s423 + $0x48] sm:$0xff] %v442
                %v444 = vld [vmem:[%s422 + $0x50] sm:$0xff]
                %445 = vst [vmem:[%s423 + $0x50] sm:$0xff] %v444
                %v446 = vld [vmem:[%s422 + $0x58] sm:$0xff]
                %447 = vst [vmem:[%s423 + $0x58] sm:$0xff] %v446
                %v448 = vld [vmem:[%s422 + $0x60] sm:$0xff]
                %449 = vst [vmem:[%s423 + $0x60] sm:$0xff] %v448
                %v450 = vld [vmem:[%s422 + $0x68] sm:$0xff]
                %451 = vst [vmem:[%s423 + $0x68] sm:$0xff] %v450
                %v452 = vld [vmem:[%s422 + $0x70] sm:$0xff]
                %453 = vst [vmem:[%s423 + $0x70] sm:$0xff] %v452
                %v454 = vld [vmem:[%s422 + $0x78] sm:$0xff]
                %455 = vst [vmem:[%s423 + $0x78] sm:$0xff] %v454
                %v456 = vld [vmem:[%s422 + $0x80] sm:$0xff]
                %457 = vst [vmem:[%s423 + $0x80] sm:$0xff] %v456
                %v458 = vld [vmem:[%s422 + $0x88] sm:$0xff]
                %459 = vst [vmem:[%s423 + $0x88] sm:$0xff] %v458
                %v460 = vld [vmem:[%s422 + $0x90] sm:$0xff]
                %461 = vst [vmem:[%s423 + $0x90] sm:$0xff] %v460
                %v462 = vld [vmem:[%s422 + $0x98] sm:$0xff]
                %463 = vst [vmem:[%s423 + $0x98] sm:$0xff] %v462
                %v464 = vld [vmem:[%s422 + $0xa0] sm:$0xff]
                %465 = vst [vmem:[%s423 + $0xa0] sm:$0xff] %v464
                %v466 = vld [vmem:[%s422 + $0xa8] sm:$0xff]
                %467 = vst [vmem:[%s423 + $0xa8] sm:$0xff] %v466
                %v468 = vld [vmem:[%s422 + $0xb0] sm:$0xff]
                %469 = vst [vmem:[%s423 + $0xb0] sm:$0xff] %v468
                %v470 = vld [vmem:[%s422 + $0xb8] sm:$0xff]
                %471 = vst [vmem:[%s423 + $0xb8] sm:$0xff] %v470
                %v472 = vld [vmem:[%s422 + $0xc0] sm:$0xff]
                %473 = vst [vmem:[%s423 + $0xc0] sm:$0xff] %v472
                %v474 = vld [vmem:[%s422 + $0xc8] sm:$0xff]
                %475 = vst [vmem:[%s423 + $0xc8] sm:$0xff] %v474
                %v476 = vld [vmem:[%s422 + $0xd0] sm:$0xff]
                %477 = vst [vmem:[%s423 + $0xd0] sm:$0xff] %v476
                %v478 = vld [vmem:[%s422 + $0xd8] sm:$0xff]
                %479 = vst [vmem:[%s423 + $0xd8] sm:$0xff] %v478
                %v480 = vld [vmem:[%s422 + $0xe0] sm:$0xff]
                %481 = vst [vmem:[%s423 + $0xe0] sm:$0xff] %v480
                %v482 = vld [vmem:[%s422 + $0xe8] sm:$0xff]
                %483 = vst [vmem:[%s423 + $0xe8] sm:$0xff] %v482
                %v484 = vld [vmem:[%s422 + $0xf0] sm:$0xff]
                %485 = vst [vmem:[%s423 + $0xf0] sm:$0xff] %v484
                %v486 = vld [vmem:[%s422 + $0xf8] sm:$0xff]
                %487 = vst [vmem:[%s423 + $0xf8] sm:$0xff] %v486
                %v488 = vld [vmem:[%s422 + $0x100] sm:$0xff]
                %489 = vst [vmem:[%s423 + $0x100] sm:$0xff] %v488
                %v490 = vld [vmem:[%s422 + $0x108] sm:$0xff]
                %491 = vst [vmem:[%s423 + $0x108] sm:$0xff] %v490
                %v492 = vld [vmem:[%s422 + $0x110] sm:$0xff]
                %493 = vst [vmem:[%s423 + $0x110] sm:$0xff] %v492
                %v494 = vld [vmem:[%s422 + $0x118] sm:$0xff]
                %495 = vst [vmem:[%s423 + $0x118] sm:$0xff] %v494
                %v496 = vld [vmem:[%s422 + $0x120] sm:$0xff]
                %497 = vst [vmem:[%s423 + $0x120] sm:$0xff] %v496
                %v498 = vld [vmem:[%s422 + $0x128] sm:$0xff]
                %499 = vst [vmem:[%s423 + $0x128] sm:$0xff] %v498
                %v500 = vld [vmem:[%s422 + $0x130] sm:$0xff]
                %501 = vst [vmem:[%s423 + $0x130] sm:$0xff] %v500
                %v502 = vld [vmem:[%s422 + $0x138] sm:$0xff]
                %503 = vst [vmem:[%s423 + $0x138] sm:$0xff] %v502
                %v504 = vld [vmem:[%s422 + $0x140] sm:$0xff]
                %505 = vst [vmem:[%s423 + $0x140] sm:$0xff] %v504
                %v506 = vld [vmem:[%s422 + $0x148] sm:$0xff]
                %507 = vst [vmem:[%s423 + $0x148] sm:$0xff] %v506
                %v508 = vld [vmem:[%s422 + $0x150] sm:$0xff]
                %509 = vst [vmem:[%s423 + $0x150] sm:$0xff] %v508
                %v510 = vld [vmem:[%s422 + $0x158] sm:$0xff]
                %511 = vst [vmem:[%s423 + $0x158] sm:$0xff] %v510
                %v512 = vld [vmem:[%s422 + $0x160] sm:$0xff]
                %513 = vst [vmem:[%s423 + $0x160] sm:$0xff] %v512
                %v514 = vld [vmem:[%s422 + $0x168] sm:$0xff]
                %515 = vst [vmem:[%s423 + $0x168] sm:$0xff] %v514
                %v516 = vld [vmem:[%s422 + $0x170] sm:$0xff]
                %517 = vst [vmem:[%s423 + $0x170] sm:$0xff] %v516
                %v518 = vld [vmem:[%s422 + $0x178] sm:$0xff]
                %519 = vst [vmem:[%s423 + $0x178] sm:$0xff] %v518
                %v520 = vld [vmem:[%s422 + $0x180] sm:$0xff]
                %521 = vst [vmem:[%s423 + $0x180] sm:$0xff] %v520
                %v522 = vld [vmem:[%s422 + $0x188] sm:$0xff]
                %523 = vst [vmem:[%s423 + $0x188] sm:$0xff] %v522
                %v524 = vld [vmem:[%s422 + $0x190] sm:$0xff]
                %525 = vst [vmem:[%s423 + $0x190] sm:$0xff] %v524
                %v526 = vld [vmem:[%s422 + $0x198] sm:$0xff]
                %527 = vst [vmem:[%s423 + $0x198] sm:$0xff] %v526
                %v528 = vld [vmem:[%s422 + $0x1a0] sm:$0xff]
                %529 = vst [vmem:[%s423 + $0x1a0] sm:$0xff] %v528
                %v530 = vld [vmem:[%s422 + $0x1a8] sm:$0xff]
                %531 = vst [vmem:[%s423 + $0x1a8] sm:$0xff] %v530
                %v532 = vld [vmem:[%s422 + $0x1b0] sm:$0xff]
                %533 = vst [vmem:[%s423 + $0x1b0] sm:$0xff] %v532
                %v534 = vld [vmem:[%s422 + $0x1b8] sm:$0xff]
                %535 = vst [vmem:[%s423 + $0x1b8] sm:$0xff] %v534
                %v536 = vld [vmem:[%s422 + $0x1c0] sm:$0xff]
                %537 = vst [vmem:[%s423 + $0x1c0] sm:$0xff] %v536
                %v538 = vld [vmem:[%s422 + $0x1c8] sm:$0xff]
                %539 = vst [vmem:[%s423 + $0x1c8] sm:$0xff] %v538
                %v540 = vld [vmem:[%s422 + $0x1d0] sm:$0xff]
                %541 = vst [vmem:[%s423 + $0x1d0] sm:$0xff] %v540
                %v542 = vld [vmem:[%s422 + $0x1d8] sm:$0xff]
                %543 = vst [vmem:[%s423 + $0x1d8] sm:$0xff] %v542
                %v544 = vld [vmem:[%s422 + $0x1e0] sm:$0xff]
                %545 = vst [vmem:[%s423 + $0x1e0] sm:$0xff] %v544
                %v546 = vld [vmem:[%s422 + $0x1e8] sm:$0xff]
                %547 = vst [vmem:[%s423 + $0x1e8] sm:$0xff] %v546
                %v548 = vld [vmem:[%s422 + $0x1f0] sm:$0xff]
                %549 = vst [vmem:[%s423 + $0x1f0] sm:$0xff] %v548
                %v550 = vld [vmem:[%s422 + $0x1f8] sm:$0xff]
                %551 = vst [vmem:[%s423 + $0x1f8] sm:$0xff] %v550
                %v552 = vld [vmem:[%s422 + $0x200] sm:$0xff]
                %553 = vst [vmem:[%s423 + $0x200] sm:$0xff] %v552
                %v554 = vld [vmem:[%s422 + $0x208] sm:$0xff]
                %555 = vst [vmem:[%s423 + $0x208] sm:$0xff] %v554
                %v556 = vld [vmem:[%s422 + $0x210] sm:$0xff]
                %557 = vst [vmem:[%s423 + $0x210] sm:$0xff] %v556
                %v558 = vld [vmem:[%s422 + $0x218] sm:$0xff]
                %559 = vst [vmem:[%s423 + $0x218] sm:$0xff] %v558
                %v560 = vld [vmem:[%s422 + $0x220] sm:$0xff]
                %561 = vst [vmem:[%s423 + $0x220] sm:$0xff] %v560
                %v562 = vld [vmem:[%s422 + $0x228] sm:$0xff]
                %563 = vst [vmem:[%s423 + $0x228] sm:$0xff] %v562
                %v564 = vld [vmem:[%s422 + $0x230] sm:$0xff]
                %565 = vst [vmem:[%s423 + $0x230] sm:$0xff] %v564
                %v566 = vld [vmem:[%s422 + $0x238] sm:$0xff]
                %567 = vst [vmem:[%s423 + $0x238] sm:$0xff] %v566
                %v568 = vld [vmem:[%s422 + $0x240] sm:$0xff]
                %569 = vst [vmem:[%s423 + $0x240] sm:$0xff] %v568
                %v570 = vld [vmem:[%s422 + $0x248] sm:$0xff]
                %571 = vst [vmem:[%s423 + $0x248] sm:$0xff] %v570
                %v572 = vld [vmem:[%s422 + $0x250] sm:$0xff]
                %573 = vst [vmem:[%s423 + $0x250] sm:$0xff] %v572
                %v574 = vld [vmem:[%s422 + $0x258] sm:$0xff]
                %575 = vst [vmem:[%s423 + $0x258] sm:$0xff] %v574
                %v576 = vld [vmem:[%s422 + $0x260] sm:$0xff]
                %577 = vst [vmem:[%s423 + $0x260] sm:$0xff] %v576
                %v578 = vld [vmem:[%s422 + $0x268] sm:$0xff]
                %579 = vst [vmem:[%s423 + $0x268] sm:$0xff] %v578
                %v580 = vld [vmem:[%s422 + $0x270] sm:$0xff]
                %581 = vst [vmem:[%s423 + $0x270] sm:$0xff] %v580
                %v582 = vld [vmem:[%s422 + $0x278] sm:$0xff]
                %583 = vst [vmem:[%s423 + $0x278] sm:$0xff] %v582
                %v584 = vld [vmem:[%s422 + $0x280] sm:$0xff]
                %585 = vst [vmem:[%s423 + $0x280] sm:$0xff] %v584
                %v586 = vld [vmem:[%s422 + $0x288] sm:$0xff]
                %587 = vst [vmem:[%s423 + $0x288] sm:$0xff] %v586
                %v588 = vld [vmem:[%s422 + $0x290] sm:$0xff]
                %589 = vst [vmem:[%s423 + $0x290] sm:$0xff] %v588
                %v590 = vld [vmem:[%s422 + $0x298] sm:$0xff]
                %591 = vst [vmem:[%s423 + $0x298] sm:$0xff] %v590
                %v592 = vld [vmem:[%s422 + $0x2a0] sm:$0xff]
                %593 = vst [vmem:[%s423 + $0x2a0] sm:$0xff] %v592
                %v594 = vld [vmem:[%s422 + $0x2a8] sm:$0xff]
                %595 = vst [vmem:[%s423 + $0x2a8] sm:$0xff] %v594
                %v596 = vld [vmem:[%s422 + $0x2b0] sm:$0xff]
                %597 = vst [vmem:[%s423 + $0x2b0] sm:$0xff] %v596
                %v598 = vld [vmem:[%s422 + $0x2b8] sm:$0xff]
                %599 = vst [vmem:[%s423 + $0x2b8] sm:$0xff] %v598
                %v600 = vld [vmem:[%s422 + $0x2c0] sm:$0xff]
                %601 = vst [vmem:[%s423 + $0x2c0] sm:$0xff] %v600
                %v602 = vld [vmem:[%s422 + $0x2c8] sm:$0xff]
                %603 = vst [vmem:[%s423 + $0x2c8] sm:$0xff] %v602
                %v604 = vld [vmem:[%s422 + $0x2d0] sm:$0xff]
                %605 = vst [vmem:[%s423 + $0x2d0] sm:$0xff] %v604
                %v606 = vld [vmem:[%s422 + $0x2d8] sm:$0xff]
                %607 = vst [vmem:[%s423 + $0x2d8] sm:$0xff] %v606
                %v608 = vld [vmem:[%s422 + $0x2e0] sm:$0xff]
                %609 = vst [vmem:[%s423 + $0x2e0] sm:$0xff] %v608
                %v610 = vld [vmem:[%s422 + $0x2e8] sm:$0xff]
                %611 = vst [vmem:[%s423 + $0x2e8] sm:$0xff] %v610
                %v612 = vld [vmem:[%s422 + $0x2f0] sm:$0xff]
                %613 = vst [vmem:[%s423 + $0x2f0] sm:$0xff] %v612
                %v614 = vld [vmem:[%s422 + $0x2f8] sm:$0xff]
                %615 = vst [vmem:[%s423 + $0x2f8] sm:$0xff] %v614
                %v616 = vld [vmem:[%s422 + $0x300] sm:$0xff]
                %617 = vst [vmem:[%s423 + $0x300] sm:$0xff] %v616
                %v618 = vld [vmem:[%s422 + $0x308] sm:$0xff]
                %619 = vst [vmem:[%s423 + $0x308] sm:$0xff] %v618
                %v620 = vld [vmem:[%s422 + $0x310] sm:$0xff]
                %621 = vst [vmem:[%s423 + $0x310] sm:$0xff] %v620
                %v622 = vld [vmem:[%s422 + $0x318] sm:$0xff]
                %623 = vst [vmem:[%s423 + $0x318] sm:$0xff] %v622
                %v624 = vld [vmem:[%s422 + $0x320] sm:$0xff]
                %625 = vst [vmem:[%s423 + $0x320] sm:$0xff] %v624
                %v626 = vld [vmem:[%s422 + $0x328] sm:$0xff]
                %627 = vst [vmem:[%s423 + $0x328] sm:$0xff] %v626
                %v628 = vld [vmem:[%s422 + $0x330] sm:$0xff]
                %629 = vst [vmem:[%s423 + $0x330] sm:$0xff] %v628
                %v630 = vld [vmem:[%s422 + $0x338] sm:$0xff]
                %631 = vst [vmem:[%s423 + $0x338] sm:$0xff] %v630
                %v632 = vld [vmem:[%s422 + $0x340] sm:$0xff]
                %633 = vst [vmem:[%s423 + $0x340] sm:$0xff] %v632
                %v634 = vld [vmem:[%s422 + $0x348] sm:$0xff]
                %635 = vst [vmem:[%s423 + $0x348] sm:$0xff] %v634
                %v636 = vld [vmem:[%s422 + $0x350] sm:$0xff]
                %637 = vst [vmem:[%s423 + $0x350] sm:$0xff] %v636
                %v638 = vld [vmem:[%s422 + $0x358] sm:$0xff]
                %639 = vst [vmem:[%s423 + $0x358] sm:$0xff] %v638
                %v640 = vld [vmem:[%s422 + $0x360] sm:$0xff]
                %641 = vst [vmem:[%s423 + $0x360] sm:$0xff] %v640
                %v642 = vld [vmem:[%s422 + $0x368] sm:$0xff]
                %643 = vst [vmem:[%s423 + $0x368] sm:$0xff] %v642
                %v644 = vld [vmem:[%s422 + $0x370] sm:$0xff]
                %645 = vst [vmem:[%s423 + $0x370] sm:$0xff] %v644
                %v646 = vld [vmem:[%s422 + $0x378] sm:$0xff]
                %647 = vst [vmem:[%s423 + $0x378] sm:$0xff] %v646
                %v648 = vld [vmem:[%s422 + $0x380] sm:$0xff]
                %649 = vst [vmem:[%s423 + $0x380] sm:$0xff] %v648
                %v650 = vld [vmem:[%s422 + $0x388] sm:$0xff]
                %651 = vst [vmem:[%s423 + $0x388] sm:$0xff] %v650
                %v652 = vld [vmem:[%s422 + $0x390] sm:$0xff]
                %653 = vst [vmem:[%s423 + $0x390] sm:$0xff] %v652
                %v654 = vld [vmem:[%s422 + $0x398] sm:$0xff]
                %655 = vst [vmem:[%s423 + $0x398] sm:$0xff] %v654
                %v656 = vld [vmem:[%s422 + $0x3a0] sm:$0xff]
                %657 = vst [vmem:[%s423 + $0x3a0] sm:$0xff] %v656
                %v658 = vld [vmem:[%s422 + $0x3a8] sm:$0xff]
                %659 = vst [vmem:[%s423 + $0x3a8] sm:$0xff] %v658
                %v660 = vld [vmem:[%s422 + $0x3b0] sm:$0xff]
                %661 = vst [vmem:[%s423 + $0x3b0] sm:$0xff] %v660
                %v662 = vld [vmem:[%s422 + $0x3b8] sm:$0xff]
                %663 = vst [vmem:[%s423 + $0x3b8] sm:$0xff] %v662
                %v664 = vld [vmem:[%s422 + $0x3c0] sm:$0xff]
                %665 = vst [vmem:[%s423 + $0x3c0] sm:$0xff] %v664
                %v666 = vld [vmem:[%s422 + $0x3c8] sm:$0xff]
                %667 = vst [vmem:[%s423 + $0x3c8] sm:$0xff] %v666
                %v668 = vld [vmem:[%s422 + $0x3d0] sm:$0xff]
                %669 = vst [vmem:[%s423 + $0x3d0] sm:$0xff] %v668
                %v670 = vld [vmem:[%s422 + $0x3d8] sm:$0xff]
                %671 = vst [vmem:[%s423 + $0x3d8] sm:$0xff] %v670
                %v672 = vld [vmem:[%s422 + $0x3e0] sm:$0xff]
                %673 = vst [vmem:[%s423 + $0x3e0] sm:$0xff] %v672
                %v674 = vld [vmem:[%s422 + $0x3e8] sm:$0xff]
                %675 = vst [vmem:[%s423 + $0x3e8] sm:$0xff] %v674
                %v676 = vld [vmem:[%s422 + $0x3f0] sm:$0xff]
                %677 = vst [vmem:[%s423 + $0x3f0] sm:$0xff] %v676
                %v678 = vld [vmem:[%s422 + $0x3f8] sm:$0xff]
                %679 = vst [vmem:[%s423 + $0x3f8] sm:$0xff] %v678
                %v680 = vld [vmem:[%s422 + $0x400] sm:$0xff]
                %681 = vst [vmem:[%s423 + $0x400] sm:$0xff] %v680
                %v682 = vld [vmem:[%s422 + $0x408] sm:$0xff]
                %683 = vst [vmem:[%s423 + $0x408] sm:$0xff] %v682
                %v684 = vld [vmem:[%s422 + $0x410] sm:$0xff]
                %685 = vst [vmem:[%s423 + $0x410] sm:$0xff] %v684
                %v686 = vld [vmem:[%s422 + $0x418] sm:$0xff]
                %687 = vst [vmem:[%s423 + $0x418] sm:$0xff] %v686
                %v688 = vld [vmem:[%s422 + $0x420] sm:$0xff]
                %689 = vst [vmem:[%s423 + $0x420] sm:$0xff] %v688
                %v690 = vld [vmem:[%s422 + $0x428] sm:$0xff]
                %691 = vst [vmem:[%s423 + $0x428] sm:$0xff] %v690
                %v692 = vld [vmem:[%s422 + $0x430] sm:$0xff]
                %693 = vst [vmem:[%s423 + $0x430] sm:$0xff] %v692
                %v694 = vld [vmem:[%s422 + $0x438] sm:$0xff]
                %695 = vst [vmem:[%s423 + $0x438] sm:$0xff] %v694
                %v696 = vld [vmem:[%s422 + $0x440] sm:$0xff]
                %697 = vst [vmem:[%s423 + $0x440] sm:$0xff] %v696
                %v698 = vld [vmem:[%s422 + $0x448] sm:$0xff]
                %699 = vst [vmem:[%s423 + $0x448] sm:$0xff] %v698
                %v700 = vld [vmem:[%s422 + $0x450] sm:$0xff]
                %701 = vst [vmem:[%s423 + $0x450] sm:$0xff] %v700
                %v702 = vld [vmem:[%s422 + $0x458] sm:$0xff]
                %703 = vst [vmem:[%s423 + $0x458] sm:$0xff] %v702
                %v704 = vld [vmem:[%s422 + $0x460] sm:$0xff]
                %705 = vst [vmem:[%s423 + $0x460] sm:$0xff] %v704
                %v706 = vld [vmem:[%s422 + $0x468] sm:$0xff]
                %707 = vst [vmem:[%s423 + $0x468] sm:$0xff] %v706
                %v708 = vld [vmem:[%s422 + $0x470] sm:$0xff]
                %709 = vst [vmem:[%s423 + $0x470] sm:$0xff] %v708
                %v710 = vld [vmem:[%s422 + $0x478] sm:$0xff]
                %711 = vst [vmem:[%s423 + $0x478] sm:$0xff] %v710
                %v712 = vld [vmem:[%s422 + $0x480] sm:$0xff]
                %713 = vst [vmem:[%s423 + $0x480] sm:$0xff] %v712
                %v714 = vld [vmem:[%s422 + $0x488] sm:$0xff]
                %715 = vst [vmem:[%s423 + $0x488] sm:$0xff] %v714
                %v716 = vld [vmem:[%s422 + $0x490] sm:$0xff]
                %717 = vst [vmem:[%s423 + $0x490] sm:$0xff] %v716
                %v718 = vld [vmem:[%s422 + $0x498] sm:$0xff]
                %719 = vst [vmem:[%s423 + $0x498] sm:$0xff] %v718
                %v720 = vld [vmem:[%s422 + $0x4a0] sm:$0xff]
                %721 = vst [vmem:[%s423 + $0x4a0] sm:$0xff] %v720
                %v722 = vld [vmem:[%s422 + $0x4a8] sm:$0xff]
                %723 = vst [vmem:[%s423 + $0x4a8] sm:$0xff] %v722
                %v724 = vld [vmem:[%s422 + $0x4b0] sm:$0xff]
                %725 = vst [vmem:[%s423 + $0x4b0] sm:$0xff] %v724
                %v726 = vld [vmem:[%s422 + $0x4b8] sm:$0xff]
                %727 = vst [vmem:[%s423 + $0x4b8] sm:$0xff] %v726
                %v728 = vld [vmem:[%s422 + $0x4c0] sm:$0xff]
                %729 = vst [vmem:[%s423 + $0x4c0] sm:$0xff] %v728
                %v730 = vld [vmem:[%s422 + $0x4c8] sm:$0xff]
                %731 = vst [vmem:[%s423 + $0x4c8] sm:$0xff] %v730
                %v732 = vld [vmem:[%s422 + $0x4d0] sm:$0xff]
                %733 = vst [vmem:[%s423 + $0x4d0] sm:$0xff] %v732
                %v734 = vld [vmem:[%s422 + $0x4d8] sm:$0xff]
                %735 = vst [vmem:[%s423 + $0x4d8] sm:$0xff] %v734
                %v736 = vld [vmem:[%s422 + $0x4e0] sm:$0xff]
                %737 = vst [vmem:[%s423 + $0x4e0] sm:$0xff] %v736
                %v738 = vld [vmem:[%s422 + $0x4e8] sm:$0xff]
                %739 = vst [vmem:[%s423 + $0x4e8] sm:$0xff] %v738
                %v740 = vld [vmem:[%s422 + $0x4f0] sm:$0xff]
                %741 = vst [vmem:[%s423 + $0x4f0] sm:$0xff] %v740
                %v742 = vld [vmem:[%s422 + $0x4f8] sm:$0xff]
                %743 = vst [vmem:[%s423 + $0x4f8] sm:$0xff] %v742
                %v744 = vld [vmem:[%s422 + $0x500] sm:$0xff]
                %745 = vst [vmem:[%s423 + $0x500] sm:$0xff] %v744
                %v746 = vld [vmem:[%s422 + $0x508] sm:$0xff]
                %747 = vst [vmem:[%s423 + $0x508] sm:$0xff] %v746
                %v748 = vld [vmem:[%s422 + $0x510] sm:$0xff]
                %749 = vst [vmem:[%s423 + $0x510] sm:$0xff] %v748
                %v750 = vld [vmem:[%s422 + $0x518] sm:$0xff]
                %751 = vst [vmem:[%s423 + $0x518] sm:$0xff] %v750
                %v752 = vld [vmem:[%s422 + $0x520] sm:$0xff]
                %753 = vst [vmem:[%s423 + $0x520] sm:$0xff] %v752
                %v754 = vld [vmem:[%s422 + $0x528] sm:$0xff]
                %755 = vst [vmem:[%s423 + $0x528] sm:$0xff] %v754
                %v756 = vld [vmem:[%s422 + $0x530] sm:$0xff]
                %757 = vst [vmem:[%s423 + $0x530] sm:$0xff] %v756
                %v758 = vld [vmem:[%s422 + $0x538] sm:$0xff]
                %759 = vst [vmem:[%s423 + $0x538] sm:$0xff] %v758
                %v760 = vld [vmem:[%s422 + $0x540] sm:$0xff]
                %761 = vst [vmem:[%s423 + $0x540] sm:$0xff] %v760
                %v762 = vld [vmem:[%s422 + $0x548] sm:$0xff]
                %763 = vst [vmem:[%s423 + $0x548] sm:$0xff] %v762
                %v764 = vld [vmem:[%s422 + $0x550] sm:$0xff]
                %765 = vst [vmem:[%s423 + $0x550] sm:$0xff] %v764
                %v766 = vld [vmem:[%s422 + $0x558] sm:$0xff]
                %767 = vst [vmem:[%s423 + $0x558] sm:$0xff] %v766
                %v768 = vld [vmem:[%s422 + $0x560] sm:$0xff]
                %769 = vst [vmem:[%s423 + $0x560] sm:$0xff] %v768
                %v770 = vld [vmem:[%s422 + $0x568] sm:$0xff]
                %771 = vst [vmem:[%s423 + $0x568] sm:$0xff] %v770
                %v772 = vld [vmem:[%s422 + $0x570] sm:$0xff]
                %773 = vst [vmem:[%s423 + $0x570] sm:$0xff] %v772
                %v774 = vld [vmem:[%s422 + $0x578] sm:$0xff]
                %775 = vst [vmem:[%s423 + $0x578] sm:$0xff] %v774
                %v776 = vld [vmem:[%s422 + $0x580] sm:$0xff]
                %777 = vst [vmem:[%s423 + $0x580] sm:$0xff] %v776
                %v778 = vld [vmem:[%s422 + $0x588] sm:$0xff]
                %779 = vst [vmem:[%s423 + $0x588] sm:$0xff] %v778
                %v780 = vld [vmem:[%s422 + $0x590] sm:$0xff]
                %781 = vst [vmem:[%s423 + $0x590] sm:$0xff] %v780
                %v782 = vld [vmem:[%s422 + $0x598] sm:$0xff]
                %783 = vst [vmem:[%s423 + $0x598] sm:$0xff] %v782
                %v784 = vld [vmem:[%s422 + $0x5a0] sm:$0xff]
                %785 = vst [vmem:[%s423 + $0x5a0] sm:$0xff] %v784
                %v786 = vld [vmem:[%s422 + $0x5a8] sm:$0xff]
                %787 = vst [vmem:[%s423 + $0x5a8] sm:$0xff] %v786
                %v788 = vld [vmem:[%s422 + $0x5b0] sm:$0xff]
                %789 = vst [vmem:[%s423 + $0x5b0] sm:$0xff] %v788
                %v790 = vld [vmem:[%s422 + $0x5b8] sm:$0xff]
                %791 = vst [vmem:[%s423 + $0x5b8] sm:$0xff] %v790
                %v792 = vld [vmem:[%s422 + $0x5c0] sm:$0xff]
                %793 = vst [vmem:[%s423 + $0x5c0] sm:$0xff] %v792
                %v794 = vld [vmem:[%s422 + $0x5c8] sm:$0xff]
                %795 = vst [vmem:[%s423 + $0x5c8] sm:$0xff] %v794
                %v796 = vld [vmem:[%s422 + $0x5d0] sm:$0xff]
                %797 = vst [vmem:[%s423 + $0x5d0] sm:$0xff] %v796
                %v798 = vld [vmem:[%s422 + $0x5d8] sm:$0xff]
                %799 = vst [vmem:[%s423 + $0x5d8] sm:$0xff] %v798
                %v800 = vld [vmem:[%s422 + $0x5e0] sm:$0xff]
                %801 = vst [vmem:[%s423 + $0x5e0] sm:$0xff] %v800
                %v802 = vld [vmem:[%s422 + $0x5e8] sm:$0xff]
                %803 = vst [vmem:[%s423 + $0x5e8] sm:$0xff] %v802
                %v804 = vld [vmem:[%s422 + $0x5f0] sm:$0xff]
                %805 = vst [vmem:[%s423 + $0x5f0] sm:$0xff] %v804
                %v806 = vld [vmem:[%s422 + $0x5f8] sm:$0xff]
                %807 = vst [vmem:[%s423 + $0x5f8] sm:$0xff] %v806
                %v808 = vld [vmem:[%s422 + $0x600] sm:$0xff]
                %809 = vst [vmem:[%s423 + $0x600] sm:$0xff] %v808
                %v810 = vld [vmem:[%s422 + $0x608] sm:$0xff]
                %811 = vst [vmem:[%s423 + $0x608] sm:$0xff] %v810
                %v812 = vld [vmem:[%s422 + $0x610] sm:$0xff]
                %813 = vst [vmem:[%s423 + $0x610] sm:$0xff] %v812
                %v814 = vld [vmem:[%s422 + $0x618] sm:$0xff]
                %815 = vst [vmem:[%s423 + $0x618] sm:$0xff] %v814
                %v816 = vld [vmem:[%s422 + $0x620] sm:$0xff]
                %817 = vst [vmem:[%s423 + $0x620] sm:$0xff] %v816
                %v818 = vld [vmem:[%s422 + $0x628] sm:$0xff]
                %819 = vst [vmem:[%s423 + $0x628] sm:$0xff] %v818
                %v820 = vld [vmem:[%s422 + $0x630] sm:$0xff]
                %821 = vst [vmem:[%s423 + $0x630] sm:$0xff] %v820
                %v822 = vld [vmem:[%s422 + $0x638] sm:$0xff]
                %823 = vst [vmem:[%s423 + $0x638] sm:$0xff] %v822
                %v824 = vld [vmem:[%s422 + $0x640] sm:$0xff]
                %825 = vst [vmem:[%s423 + $0x640] sm:$0xff] %v824
                %v826 = vld [vmem:[%s422 + $0x648] sm:$0xff]
                %827 = vst [vmem:[%s423 + $0x648] sm:$0xff] %v826
                %v828 = vld [vmem:[%s422 + $0x650] sm:$0xff]
                %829 = vst [vmem:[%s423 + $0x650] sm:$0xff] %v828
                %v830 = vld [vmem:[%s422 + $0x658] sm:$0xff]
                %831 = vst [vmem:[%s423 + $0x658] sm:$0xff] %v830
                %v832 = vld [vmem:[%s422 + $0x660] sm:$0xff]
                %833 = vst [vmem:[%s423 + $0x660] sm:$0xff] %v832
                %v834 = vld [vmem:[%s422 + $0x668] sm:$0xff]
                %835 = vst [vmem:[%s423 + $0x668] sm:$0xff] %v834
                %v836 = vld [vmem:[%s422 + $0x670] sm:$0xff]
                %837 = vst [vmem:[%s423 + $0x670] sm:$0xff] %v836
                %v838 = vld [vmem:[%s422 + $0x678] sm:$0xff]
                %839 = vst [vmem:[%s423 + $0x678] sm:$0xff] %v838
                %v840 = vld [vmem:[%s422 + $0x680] sm:$0xff]
                %841 = vst [vmem:[%s423 + $0x680] sm:$0xff] %v840
                %v842 = vld [vmem:[%s422 + $0x688] sm:$0xff]
                %843 = vst [vmem:[%s423 + $0x688] sm:$0xff] %v842
                %v844 = vld [vmem:[%s422 + $0x690] sm:$0xff]
                %845 = vst [vmem:[%s423 + $0x690] sm:$0xff] %v844
                %v846 = vld [vmem:[%s422 + $0x698] sm:$0xff]
                %847 = vst [vmem:[%s423 + $0x698] sm:$0xff] %v846
                %v848 = vld [vmem:[%s422 + $0x6a0] sm:$0xff]
                %849 = vst [vmem:[%s423 + $0x6a0] sm:$0xff] %v848
                %v850 = vld [vmem:[%s422 + $0x6a8] sm:$0xff]
                %851 = vst [vmem:[%s423 + $0x6a8] sm:$0xff] %v850
                %v852 = vld [vmem:[%s422 + $0x6b0] sm:$0xff]
                %853 = vst [vmem:[%s423 + $0x6b0] sm:$0xff] %v852
                %v854 = vld [vmem:[%s422 + $0x6b8] sm:$0xff]
                %855 = vst [vmem:[%s423 + $0x6b8] sm:$0xff] %v854
                %v856 = vld [vmem:[%s422 + $0x6c0] sm:$0xff]
                %857 = vst [vmem:[%s423 + $0x6c0] sm:$0xff] %v856
                %v858 = vld [vmem:[%s422 + $0x6c8] sm:$0xff]
                %859 = vst [vmem:[%s423 + $0x6c8] sm:$0xff] %v858
                %v860 = vld [vmem:[%s422 + $0x6d0] sm:$0xff]
                %861 = vst [vmem:[%s423 + $0x6d0] sm:$0xff] %v860
                %v862 = vld [vmem:[%s422 + $0x6d8] sm:$0xff]
                %863 = vst [vmem:[%s423 + $0x6d8] sm:$0xff] %v862
                %v864 = vld [vmem:[%s422 + $0x6e0] sm:$0xff]
                %865 = vst [vmem:[%s423 + $0x6e0] sm:$0xff] %v864
                %v866 = vld [vmem:[%s422 + $0x6e8] sm:$0xff]
                %867 = vst [vmem:[%s423 + $0x6e8] sm:$0xff] %v866
                %v868 = vld [vmem:[%s422 + $0x6f0] sm:$0xff]
                %869 = vst [vmem:[%s423 + $0x6f0] sm:$0xff] %v868
                %v870 = vld [vmem:[%s422 + $0x6f8] sm:$0xff]
                %871 = vst [vmem:[%s423 + $0x6f8] sm:$0xff] %v870
                %v872 = vld [vmem:[%s422 + $0x1c00] sm:$0xff]
                %873 = vst [vmem:[%s423 + $0x700] sm:$0xff] %v872
                %v874 = vld [vmem:[%s422 + $0x1c08] sm:$0xff]
                %875 = vst [vmem:[%s423 + $0x708] sm:$0xff] %v874
                %v876 = vld [vmem:[%s422 + $0x1c10] sm:$0xff]
                %877 = vst [vmem:[%s423 + $0x710] sm:$0xff] %v876
                %v878 = vld [vmem:[%s422 + $0x1c18] sm:$0xff]
                %879 = vst [vmem:[%s423 + $0x718] sm:$0xff] %v878
                %v880 = vld [vmem:[%s422 + $0x1c20] sm:$0xff]
                %881 = vst [vmem:[%s423 + $0x720] sm:$0xff] %v880
                %v882 = vld [vmem:[%s422 + $0x1c28] sm:$0xff]
                %883 = vst [vmem:[%s423 + $0x728] sm:$0xff] %v882
                %v884 = vld [vmem:[%s422 + $0x1c30] sm:$0xff]
                %885 = vst [vmem:[%s423 + $0x730] sm:$0xff] %v884
                %v886 = vld [vmem:[%s422 + $0x1c38] sm:$0xff]
                %887 = vst [vmem:[%s423 + $0x738] sm:$0xff] %v886
                %v888 = vld [vmem:[%s422 + $0x1c40] sm:$0xff]
                %889 = vst [vmem:[%s423 + $0x740] sm:$0xff] %v888
                %v890 = vld [vmem:[%s422 + $0x1c48] sm:$0xff]
                %891 = vst [vmem:[%s423 + $0x748] sm:$0xff] %v890
                %v892 = vld [vmem:[%s422 + $0x1c50] sm:$0xff]
                %893 = vst [vmem:[%s423 + $0x750] sm:$0xff] %v892
                %v894 = vld [vmem:[%s422 + $0x1c58] sm:$0xff]
                %895 = vst [vmem:[%s423 + $0x758] sm:$0xff] %v894
                %v896 = vld [vmem:[%s422 + $0x1c60] sm:$0xff]
                %897 = vst [vmem:[%s423 + $0x760] sm:$0xff] %v896
                %v898 = vld [vmem:[%s422 + $0x1c68] sm:$0xff]
                %899 = vst [vmem:[%s423 + $0x768] sm:$0xff] %v898
                %v900 = vld [vmem:[%s422 + $0x1c70] sm:$0xff]
                %901 = vst [vmem:[%s423 + $0x770] sm:$0xff] %v900
                %v902 = vld [vmem:[%s422 + $0x1c78] sm:$0xff]
                %903 = vst [vmem:[%s423 + $0x778] sm:$0xff] %v902
                %v904 = vld [vmem:[%s422 + $0x1c80] sm:$0xff]
                %905 = vst [vmem:[%s423 + $0x780] sm:$0xff] %v904
                %v906 = vld [vmem:[%s422 + $0x1c88] sm:$0xff]
                %907 = vst [vmem:[%s423 + $0x788] sm:$0xff] %v906
                %v908 = vld [vmem:[%s422 + $0x1c90] sm:$0xff]
                %909 = vst [vmem:[%s423 + $0x790] sm:$0xff] %v908
                %v910 = vld [vmem:[%s422 + $0x1c98] sm:$0xff]
                %911 = vst [vmem:[%s423 + $0x798] sm:$0xff] %v910
                %v912 = vld [vmem:[%s422 + $0x1ca0] sm:$0xff]
                %913 = vst [vmem:[%s423 + $0x7a0] sm:$0xff] %v912
                %v914 = vld [vmem:[%s422 + $0x1ca8] sm:$0xff]
                %915 = vst [vmem:[%s423 + $0x7a8] sm:$0xff] %v914
                %v916 = vld [vmem:[%s422 + $0x1cb0] sm:$0xff]
                %917 = vst [vmem:[%s423 + $0x7b0] sm:$0xff] %v916
                %v918 = vld [vmem:[%s422 + $0x1cb8] sm:$0xff]
                %919 = vst [vmem:[%s423 + $0x7b8] sm:$0xff] %v918
                %v920 = vld [vmem:[%s422 + $0x1cc0] sm:$0xff]
                %921 = vst [vmem:[%s423 + $0x7c0] sm:$0xff] %v920
                %v922 = vld [vmem:[%s422 + $0x1cc8] sm:$0xff]
                %923 = vst [vmem:[%s423 + $0x7c8] sm:$0xff] %v922
                %v924 = vld [vmem:[%s422 + $0x1cd0] sm:$0xff]
                %925 = vst [vmem:[%s423 + $0x7d0] sm:$0xff] %v924
                %v926 = vld [vmem:[%s422 + $0x1cd8] sm:$0xff]
                %927 = vst [vmem:[%s423 + $0x7d8] sm:$0xff] %v926
                %v928 = vld [vmem:[%s422 + $0x1ce0] sm:$0xff]
                %929 = vst [vmem:[%s423 + $0x7e0] sm:$0xff] %v928
                %v930 = vld [vmem:[%s422 + $0x1ce8] sm:$0xff]
                %931 = vst [vmem:[%s423 + $0x7e8] sm:$0xff] %v930
                %v932 = vld [vmem:[%s422 + $0x1cf0] sm:$0xff]
                %933 = vst [vmem:[%s423 + $0x7f0] sm:$0xff] %v932
                %v934 = vld [vmem:[%s422 + $0x1cf8] sm:$0xff]
                %935 = vst [vmem:[%s423 + $0x7f8] sm:$0xff] %v934
                %v936 = vld [vmem:[%s422 + $0x1d00] sm:$0xff]
                %937 = vst [vmem:[%s423 + $0x800] sm:$0xff] %v936
                %v938 = vld [vmem:[%s422 + $0x1d08] sm:$0xff]
                %939 = vst [vmem:[%s423 + $0x808] sm:$0xff] %v938
                %v940 = vld [vmem:[%s422 + $0x1d10] sm:$0xff]
                %941 = vst [vmem:[%s423 + $0x810] sm:$0xff] %v940
                %v942 = vld [vmem:[%s422 + $0x1d18] sm:$0xff]
                %943 = vst [vmem:[%s423 + $0x818] sm:$0xff] %v942
                %v944 = vld [vmem:[%s422 + $0x1d20] sm:$0xff]
                %945 = vst [vmem:[%s423 + $0x820] sm:$0xff] %v944
                %v946 = vld [vmem:[%s422 + $0x1d28] sm:$0xff]
                %947 = vst [vmem:[%s423 + $0x828] sm:$0xff] %v946
                %v948 = vld [vmem:[%s422 + $0x1d30] sm:$0xff]
                %949 = vst [vmem:[%s423 + $0x830] sm:$0xff] %v948
                %v950 = vld [vmem:[%s422 + $0x1d38] sm:$0xff]
                %951 = vst [vmem:[%s423 + $0x838] sm:$0xff] %v950
                %v952 = vld [vmem:[%s422 + $0x1d40] sm:$0xff]
                %953 = vst [vmem:[%s423 + $0x840] sm:$0xff] %v952
                %v954 = vld [vmem:[%s422 + $0x1d48] sm:$0xff]
                %955 = vst [vmem:[%s423 + $0x848] sm:$0xff] %v954
                %v956 = vld [vmem:[%s422 + $0x1d50] sm:$0xff]
                %957 = vst [vmem:[%s423 + $0x850] sm:$0xff] %v956
                %v958 = vld [vmem:[%s422 + $0x1d58] sm:$0xff]
                %959 = vst [vmem:[%s423 + $0x858] sm:$0xff] %v958
                %v960 = vld [vmem:[%s422 + $0x1d60] sm:$0xff]
                %961 = vst [vmem:[%s423 + $0x860] sm:$0xff] %v960
                %v962 = vld [vmem:[%s422 + $0x1d68] sm:$0xff]
                %963 = vst [vmem:[%s423 + $0x868] sm:$0xff] %v962
                %v964 = vld [vmem:[%s422 + $0x1d70] sm:$0xff]
                %965 = vst [vmem:[%s423 + $0x870] sm:$0xff] %v964
                %v966 = vld [vmem:[%s422 + $0x1d78] sm:$0xff]
                %967 = vst [vmem:[%s423 + $0x878] sm:$0xff] %v966
                %v968 = vld [vmem:[%s422 + $0x1d80] sm:$0xff]
                %969 = vst [vmem:[%s423 + $0x880] sm:$0xff] %v968
                %v970 = vld [vmem:[%s422 + $0x1d88] sm:$0xff]
                %971 = vst [vmem:[%s423 + $0x888] sm:$0xff] %v970
                %v972 = vld [vmem:[%s422 + $0x1d90] sm:$0xff]
                %973 = vst [vmem:[%s423 + $0x890] sm:$0xff] %v972
                %v974 = vld [vmem:[%s422 + $0x1d98] sm:$0xff]
                %975 = vst [vmem:[%s423 + $0x898] sm:$0xff] %v974
                %v976 = vld [vmem:[%s422 + $0x1da0] sm:$0xff]
                %977 = vst [vmem:[%s423 + $0x8a0] sm:$0xff] %v976
                %v978 = vld [vmem:[%s422 + $0x1da8] sm:$0xff]
                %979 = vst [vmem:[%s423 + $0x8a8] sm:$0xff] %v978
                %v980 = vld [vmem:[%s422 + $0x1db0] sm:$0xff]
                %981 = vst [vmem:[%s423 + $0x8b0] sm:$0xff] %v980
                %v982 = vld [vmem:[%s422 + $0x1db8] sm:$0xff]
                %983 = vst [vmem:[%s423 + $0x8b8] sm:$0xff] %v982
                %v984 = vld [vmem:[%s422 + $0x1dc0] sm:$0xff]
                %985 = vst [vmem:[%s423 + $0x8c0] sm:$0xff] %v984
                %v986 = vld [vmem:[%s422 + $0x1dc8] sm:$0xff]
                %987 = vst [vmem:[%s423 + $0x8c8] sm:$0xff] %v986
                %v988 = vld [vmem:[%s422 + $0x1dd0] sm:$0xff]
                %989 = vst [vmem:[%s423 + $0x8d0] sm:$0xff] %v988
                %v990 = vld [vmem:[%s422 + $0x1dd8] sm:$0xff]
                %991 = vst [vmem:[%s423 + $0x8d8] sm:$0xff] %v990
                %v992 = vld [vmem:[%s422 + $0x1de0] sm:$0xff]
                %993 = vst [vmem:[%s423 + $0x8e0] sm:$0xff] %v992
                %v994 = vld [vmem:[%s422 + $0x1de8] sm:$0xff]
                %995 = vst [vmem:[%s423 + $0x8e8] sm:$0xff] %v994
                %v996 = vld [vmem:[%s422 + $0x1df0] sm:$0xff]
                %997 = vst [vmem:[%s423 + $0x8f0] sm:$0xff] %v996
                %v998 = vld [vmem:[%s422 + $0x1df8] sm:$0xff]
                %999 = vst [vmem:[%s423 + $0x8f8] sm:$0xff] %v998
                %v1000 = vld [vmem:[%s422 + $0x1e00] sm:$0xff]
                %1001 = vst [vmem:[%s423 + $0x900] sm:$0xff] %v1000
                %v1002 = vld [vmem:[%s422 + $0x1e08] sm:$0xff]
                %1003 = vst [vmem:[%s423 + $0x908] sm:$0xff] %v1002
                %v1004 = vld [vmem:[%s422 + $0x1e10] sm:$0xff]
                %1005 = vst [vmem:[%s423 + $0x910] sm:$0xff] %v1004
                %v1006 = vld [vmem:[%s422 + $0x1e18] sm:$0xff]
                %1007 = vst [vmem:[%s423 + $0x918] sm:$0xff] %v1006
                %v1008 = vld [vmem:[%s422 + $0x1e20] sm:$0xff]
                %1009 = vst [vmem:[%s423 + $0x920] sm:$0xff] %v1008
                %v1010 = vld [vmem:[%s422 + $0x1e28] sm:$0xff]
                %1011 = vst [vmem:[%s423 + $0x928] sm:$0xff] %v1010
                %v1012 = vld [vmem:[%s422 + $0x1e30] sm:$0xff]
                %1013 = vst [vmem:[%s423 + $0x930] sm:$0xff] %v1012
                %v1014 = vld [vmem:[%s422 + $0x1e38] sm:$0xff]
                %1015 = vst [vmem:[%s423 + $0x938] sm:$0xff] %v1014
                %v1016 = vld [vmem:[%s422 + $0x1e40] sm:$0xff]
                %1017 = vst [vmem:[%s423 + $0x940] sm:$0xff] %v1016
                %v1018 = vld [vmem:[%s422 + $0x1e48] sm:$0xff]
                %1019 = vst [vmem:[%s423 + $0x948] sm:$0xff] %v1018
                %v1020 = vld [vmem:[%s422 + $0x1e50] sm:$0xff]
                %1021 = vst [vmem:[%s423 + $0x950] sm:$0xff] %v1020
                %v1022 = vld [vmem:[%s422 + $0x1e58] sm:$0xff]
                %1023 = vst [vmem:[%s423 + $0x958] sm:$0xff] %v1022
                %v1024 = vld [vmem:[%s422 + $0x1e60] sm:$0xff]
                %1025 = vst [vmem:[%s423 + $0x960] sm:$0xff] %v1024
                %v1026 = vld [vmem:[%s422 + $0x1e68] sm:$0xff]
                %1027 = vst [vmem:[%s423 + $0x968] sm:$0xff] %v1026
                %v1028 = vld [vmem:[%s422 + $0x1e70] sm:$0xff]
                %1029 = vst [vmem:[%s423 + $0x970] sm:$0xff] %v1028
                %v1030 = vld [vmem:[%s422 + $0x1e78] sm:$0xff]
                %1031 = vst [vmem:[%s423 + $0x978] sm:$0xff] %v1030
                %v1032 = vld [vmem:[%s422 + $0x1e80] sm:$0xff]
                %1033 = vst [vmem:[%s423 + $0x980] sm:$0xff] %v1032
                %v1034 = vld [vmem:[%s422 + $0x1e88] sm:$0xff]
                %1035 = vst [vmem:[%s423 + $0x988] sm:$0xff] %v1034
                %v1036 = vld [vmem:[%s422 + $0x1e90] sm:$0xff]
                %1037 = vst [vmem:[%s423 + $0x990] sm:$0xff] %v1036
                %v1038 = vld [vmem:[%s422 + $0x1e98] sm:$0xff]
                %1039 = vst [vmem:[%s423 + $0x998] sm:$0xff] %v1038
                %v1040 = vld [vmem:[%s422 + $0x1ea0] sm:$0xff]
                %1041 = vst [vmem:[%s423 + $0x9a0] sm:$0xff] %v1040
                %v1042 = vld [vmem:[%s422 + $0x1ea8] sm:$0xff]
                %1043 = vst [vmem:[%s423 + $0x9a8] sm:$0xff] %v1042
                %v1044 = vld [vmem:[%s422 + $0x1eb0] sm:$0xff]
                %1045 = vst [vmem:[%s423 + $0x9b0] sm:$0xff] %v1044
                %v1046 = vld [vmem:[%s422 + $0x1eb8] sm:$0xff]
                %1047 = vst [vmem:[%s423 + $0x9b8] sm:$0xff] %v1046
                %v1048 = vld [vmem:[%s422 + $0x1ec0] sm:$0xff]
                %1049 = vst [vmem:[%s423 + $0x9c0] sm:$0xff] %v1048
                %v1050 = vld [vmem:[%s422 + $0x1ec8] sm:$0xff]
                %1051 = vst [vmem:[%s423 + $0x9c8] sm:$0xff] %v1050
                %v1052 = vld [vmem:[%s422 + $0x1ed0] sm:$0xff]
                %1053 = vst [vmem:[%s423 + $0x9d0] sm:$0xff] %v1052
                %v1054 = vld [vmem:[%s422 + $0x1ed8] sm:$0xff]
                %1055 = vst [vmem:[%s423 + $0x9d8] sm:$0xff] %v1054
                %v1056 = vld [vmem:[%s422 + $0x1ee0] sm:$0xff]
                %1057 = vst [vmem:[%s423 + $0x9e0] sm:$0xff] %v1056
                %v1058 = vld [vmem:[%s422 + $0x1ee8] sm:$0xff]
                %1059 = vst [vmem:[%s423 + $0x9e8] sm:$0xff] %v1058
                %v1060 = vld [vmem:[%s422 + $0x1ef0] sm:$0xff]
                %1061 = vst [vmem:[%s423 + $0x9f0] sm:$0xff] %v1060
                %v1062 = vld [vmem:[%s422 + $0x1ef8] sm:$0xff]
                %1063 = vst [vmem:[%s423 + $0x9f8] sm:$0xff] %v1062
                %v1064 = vld [vmem:[%s422 + $0x1f00] sm:$0xff]
                %1065 = vst [vmem:[%s423 + $0xa00] sm:$0xff] %v1064
                %v1066 = vld [vmem:[%s422 + $0x1f08] sm:$0xff]
                %1067 = vst [vmem:[%s423 + $0xa08] sm:$0xff] %v1066
                %v1068 = vld [vmem:[%s422 + $0x1f10] sm:$0xff]
                %1069 = vst [vmem:[%s423 + $0xa10] sm:$0xff] %v1068
                %v1070 = vld [vmem:[%s422 + $0x1f18] sm:$0xff]
                %1071 = vst [vmem:[%s423 + $0xa18] sm:$0xff] %v1070
                %v1072 = vld [vmem:[%s422 + $0x1f20] sm:$0xff]
                %1073 = vst [vmem:[%s423 + $0xa20] sm:$0xff] %v1072
                %v1074 = vld [vmem:[%s422 + $0x1f28] sm:$0xff]
                %1075 = vst [vmem:[%s423 + $0xa28] sm:$0xff] %v1074
                %v1076 = vld [vmem:[%s422 + $0x1f30] sm:$0xff]
                %1077 = vst [vmem:[%s423 + $0xa30] sm:$0xff] %v1076
                %v1078 = vld [vmem:[%s422 + $0x1f38] sm:$0xff]
                %1079 = vst [vmem:[%s423 + $0xa38] sm:$0xff] %v1078
                %v1080 = vld [vmem:[%s422 + $0x1f40] sm:$0xff]
                %1081 = vst [vmem:[%s423 + $0xa40] sm:$0xff] %v1080
                %v1082 = vld [vmem:[%s422 + $0x1f48] sm:$0xff]
                %1083 = vst [vmem:[%s423 + $0xa48] sm:$0xff] %v1082
                %v1084 = vld [vmem:[%s422 + $0x1f50] sm:$0xff]
                %1085 = vst [vmem:[%s423 + $0xa50] sm:$0xff] %v1084
                %v1086 = vld [vmem:[%s422 + $0x1f58] sm:$0xff]
                %1087 = vst [vmem:[%s423 + $0xa58] sm:$0xff] %v1086
                %v1088 = vld [vmem:[%s422 + $0x1f60] sm:$0xff]
                %1089 = vst [vmem:[%s423 + $0xa60] sm:$0xff] %v1088
                %v1090 = vld [vmem:[%s422 + $0x1f68] sm:$0xff]
                %1091 = vst [vmem:[%s423 + $0xa68] sm:$0xff] %v1090
                %v1092 = vld [vmem:[%s422 + $0x1f70] sm:$0xff]
                %1093 = vst [vmem:[%s423 + $0xa70] sm:$0xff] %v1092
                %v1094 = vld [vmem:[%s422 + $0x1f78] sm:$0xff]
                %1095 = vst [vmem:[%s423 + $0xa78] sm:$0xff] %v1094
                %v1096 = vld [vmem:[%s422 + $0x1f80] sm:$0xff]
                %1097 = vst [vmem:[%s423 + $0xa80] sm:$0xff] %v1096
                %v1098 = vld [vmem:[%s422 + $0x1f88] sm:$0xff]
                %1099 = vst [vmem:[%s423 + $0xa88] sm:$0xff] %v1098
                %v1100 = vld [vmem:[%s422 + $0x1f90] sm:$0xff]
                %1101 = vst [vmem:[%s423 + $0xa90] sm:$0xff] %v1100
                %v1102 = vld [vmem:[%s422 + $0x1f98] sm:$0xff]
                %1103 = vst [vmem:[%s423 + $0xa98] sm:$0xff] %v1102
                %v1104 = vld [vmem:[%s422 + $0x1fa0] sm:$0xff]
                %1105 = vst [vmem:[%s423 + $0xaa0] sm:$0xff] %v1104
                %v1106 = vld [vmem:[%s422 + $0x1fa8] sm:$0xff]
                %1107 = vst [vmem:[%s423 + $0xaa8] sm:$0xff] %v1106
                %v1108 = vld [vmem:[%s422 + $0x1fb0] sm:$0xff]
                %1109 = vst [vmem:[%s423 + $0xab0] sm:$0xff] %v1108
                %v1110 = vld [vmem:[%s422 + $0x1fb8] sm:$0xff]
                %1111 = vst [vmem:[%s423 + $0xab8] sm:$0xff] %v1110
                %v1112 = vld [vmem:[%s422 + $0x1fc0] sm:$0xff]
                %1113 = vst [vmem:[%s423 + $0xac0] sm:$0xff] %v1112
                %v1114 = vld [vmem:[%s422 + $0x1fc8] sm:$0xff]
                %1115 = vst [vmem:[%s423 + $0xac8] sm:$0xff] %v1114
                %v1116 = vld [vmem:[%s422 + $0x1fd0] sm:$0xff]
                %1117 = vst [vmem:[%s423 + $0xad0] sm:$0xff] %v1116
                %v1118 = vld [vmem:[%s422 + $0x1fd8] sm:$0xff]
                %1119 = vst [vmem:[%s423 + $0xad8] sm:$0xff] %v1118
                %v1120 = vld [vmem:[%s422 + $0x1fe0] sm:$0xff]
                %1121 = vst [vmem:[%s423 + $0xae0] sm:$0xff] %v1120
                %v1122 = vld [vmem:[%s422 + $0x1fe8] sm:$0xff]
                %1123 = vst [vmem:[%s423 + $0xae8] sm:$0xff] %v1122
                %v1124 = vld [vmem:[%s422 + $0x1ff0] sm:$0xff]
                %1125 = vst [vmem:[%s423 + $0xaf0] sm:$0xff] %v1124
                %v1126 = vld [vmem:[%s422 + $0x1ff8] sm:$0xff]
                %1127 = vst [vmem:[%s423 + $0xaf8] sm:$0xff] %v1126
                %v1128 = vld [vmem:[%s422 + $0x2000] sm:$0xff]
                %1129 = vst [vmem:[%s423 + $0xb00] sm:$0xff] %v1128
                %v1130 = vld [vmem:[%s422 + $0x2008] sm:$0xff]
                %1131 = vst [vmem:[%s423 + $0xb08] sm:$0xff] %v1130
                %v1132 = vld [vmem:[%s422 + $0x2010] sm:$0xff]
                %1133 = vst [vmem:[%s423 + $0xb10] sm:$0xff] %v1132
                %v1134 = vld [vmem:[%s422 + $0x2018] sm:$0xff]
                %1135 = vst [vmem:[%s423 + $0xb18] sm:$0xff] %v1134
                %v1136 = vld [vmem:[%s422 + $0x2020] sm:$0xff]
                %1137 = vst [vmem:[%s423 + $0xb20] sm:$0xff] %v1136
                %v1138 = vld [vmem:[%s422 + $0x2028] sm:$0xff]
                %1139 = vst [vmem:[%s423 + $0xb28] sm:$0xff] %v1138
                %v1140 = vld [vmem:[%s422 + $0x2030] sm:$0xff]
                %1141 = vst [vmem:[%s423 + $0xb30] sm:$0xff] %v1140
                %v1142 = vld [vmem:[%s422 + $0x2038] sm:$0xff]
                %1143 = vst [vmem:[%s423 + $0xb38] sm:$0xff] %v1142
                %v1144 = vld [vmem:[%s422 + $0x2040] sm:$0xff]
                %1145 = vst [vmem:[%s423 + $0xb40] sm:$0xff] %v1144
                %v1146 = vld [vmem:[%s422 + $0x2048] sm:$0xff]
                %1147 = vst [vmem:[%s423 + $0xb48] sm:$0xff] %v1146
                %v1148 = vld [vmem:[%s422 + $0x2050] sm:$0xff]
                %1149 = vst [vmem:[%s423 + $0xb50] sm:$0xff] %v1148
                %v1150 = vld [vmem:[%s422 + $0x2058] sm:$0xff]
                %1151 = vst [vmem:[%s423 + $0xb58] sm:$0xff] %v1150
                %v1152 = vld [vmem:[%s422 + $0x2060] sm:$0xff]
                %1153 = vst [vmem:[%s423 + $0xb60] sm:$0xff] %v1152
                %v1154 = vld [vmem:[%s422 + $0x2068] sm:$0xff]
                %1155 = vst [vmem:[%s423 + $0xb68] sm:$0xff] %v1154
                %v1156 = vld [vmem:[%s422 + $0x2070] sm:$0xff]
                %1157 = vst [vmem:[%s423 + $0xb70] sm:$0xff] %v1156
                %v1158 = vld [vmem:[%s422 + $0x2078] sm:$0xff]
                %1159 = vst [vmem:[%s423 + $0xb78] sm:$0xff] %v1158
                %v1160 = vld [vmem:[%s422 + $0x2080] sm:$0xff]
                %1161 = vst [vmem:[%s423 + $0xb80] sm:$0xff] %v1160
                %v1162 = vld [vmem:[%s422 + $0x2088] sm:$0xff]
                %1163 = vst [vmem:[%s423 + $0xb88] sm:$0xff] %v1162
                %v1164 = vld [vmem:[%s422 + $0x2090] sm:$0xff]
                %1165 = vst [vmem:[%s423 + $0xb90] sm:$0xff] %v1164
                %v1166 = vld [vmem:[%s422 + $0x2098] sm:$0xff]
                %1167 = vst [vmem:[%s423 + $0xb98] sm:$0xff] %v1166
                %v1168 = vld [vmem:[%s422 + $0x20a0] sm:$0xff]
                %1169 = vst [vmem:[%s423 + $0xba0] sm:$0xff] %v1168
                %v1170 = vld [vmem:[%s422 + $0x20a8] sm:$0xff]
                %1171 = vst [vmem:[%s423 + $0xba8] sm:$0xff] %v1170
                %v1172 = vld [vmem:[%s422 + $0x20b0] sm:$0xff]
                %1173 = vst [vmem:[%s423 + $0xbb0] sm:$0xff] %v1172
                %v1174 = vld [vmem:[%s422 + $0x20b8] sm:$0xff]
                %1175 = vst [vmem:[%s423 + $0xbb8] sm:$0xff] %v1174
                %v1176 = vld [vmem:[%s422 + $0x20c0] sm:$0xff]
                %1177 = vst [vmem:[%s423 + $0xbc0] sm:$0xff] %v1176
                %v1178 = vld [vmem:[%s422 + $0x20c8] sm:$0xff]
                %1179 = vst [vmem:[%s423 + $0xbc8] sm:$0xff] %v1178
                %v1180 = vld [vmem:[%s422 + $0x20d0] sm:$0xff]
                %1181 = vst [vmem:[%s423 + $0xbd0] sm:$0xff] %v1180
                %v1182 = vld [vmem:[%s422 + $0x20d8] sm:$0xff]
                %1183 = vst [vmem:[%s423 + $0xbd8] sm:$0xff] %v1182
                %v1184 = vld [vmem:[%s422 + $0x20e0] sm:$0xff]
                %1185 = vst [vmem:[%s423 + $0xbe0] sm:$0xff] %v1184
                %v1186 = vld [vmem:[%s422 + $0x20e8] sm:$0xff]
                %1187 = vst [vmem:[%s423 + $0xbe8] sm:$0xff] %v1186
                %v1188 = vld [vmem:[%s422 + $0x20f0] sm:$0xff]
                %1189 = vst [vmem:[%s423 + $0xbf0] sm:$0xff] %v1188
                %v1190 = vld [vmem:[%s422 + $0x20f8] sm:$0xff]
                %1191 = vst [vmem:[%s423 + $0xbf8] sm:$0xff] %v1190
                %v1192 = vld [vmem:[%s422 + $0x2100] sm:$0xff]
                %1193 = vst [vmem:[%s423 + $0xc00] sm:$0xff] %v1192
                %v1194 = vld [vmem:[%s422 + $0x2108] sm:$0xff]
                %1195 = vst [vmem:[%s423 + $0xc08] sm:$0xff] %v1194
                %v1196 = vld [vmem:[%s422 + $0x2110] sm:$0xff]
                %1197 = vst [vmem:[%s423 + $0xc10] sm:$0xff] %v1196
                %v1198 = vld [vmem:[%s422 + $0x2118] sm:$0xff]
                %1199 = vst [vmem:[%s423 + $0xc18] sm:$0xff] %v1198
                %v1200 = vld [vmem:[%s422 + $0x2120] sm:$0xff]
                %1201 = vst [vmem:[%s423 + $0xc20] sm:$0xff] %v1200
                %v1202 = vld [vmem:[%s422 + $0x2128] sm:$0xff]
                %1203 = vst [vmem:[%s423 + $0xc28] sm:$0xff] %v1202
                %v1204 = vld [vmem:[%s422 + $0x2130] sm:$0xff]
                %1205 = vst [vmem:[%s423 + $0xc30] sm:$0xff] %v1204
                %v1206 = vld [vmem:[%s422 + $0x2138] sm:$0xff]
                %1207 = vst [vmem:[%s423 + $0xc38] sm:$0xff] %v1206
                %v1208 = vld [vmem:[%s422 + $0x2140] sm:$0xff]
                %1209 = vst [vmem:[%s423 + $0xc40] sm:$0xff] %v1208
                %v1210 = vld [vmem:[%s422 + $0x2148] sm:$0xff]
                %1211 = vst [vmem:[%s423 + $0xc48] sm:$0xff] %v1210
                %v1212 = vld [vmem:[%s422 + $0x2150] sm:$0xff]
                %1213 = vst [vmem:[%s423 + $0xc50] sm:$0xff] %v1212
                %v1214 = vld [vmem:[%s422 + $0x2158] sm:$0xff]
                %1215 = vst [vmem:[%s423 + $0xc58] sm:$0xff] %v1214
                %v1216 = vld [vmem:[%s422 + $0x2160] sm:$0xff]
                %1217 = vst [vmem:[%s423 + $0xc60] sm:$0xff] %v1216
                %v1218 = vld [vmem:[%s422 + $0x2168] sm:$0xff]
                %1219 = vst [vmem:[%s423 + $0xc68] sm:$0xff] %v1218
                %v1220 = vld [vmem:[%s422 + $0x2170] sm:$0xff]
                %1221 = vst [vmem:[%s423 + $0xc70] sm:$0xff] %v1220
                %v1222 = vld [vmem:[%s422 + $0x2178] sm:$0xff]
                %1223 = vst [vmem:[%s423 + $0xc78] sm:$0xff] %v1222
                %v1224 = vld [vmem:[%s422 + $0x2180] sm:$0xff]
                %1225 = vst [vmem:[%s423 + $0xc80] sm:$0xff] %v1224
                %v1226 = vld [vmem:[%s422 + $0x2188] sm:$0xff]
                %1227 = vst [vmem:[%s423 + $0xc88] sm:$0xff] %v1226
                %v1228 = vld [vmem:[%s422 + $0x2190] sm:$0xff]
                %1229 = vst [vmem:[%s423 + $0xc90] sm:$0xff] %v1228
                %v1230 = vld [vmem:[%s422 + $0x2198] sm:$0xff]
                %1231 = vst [vmem:[%s423 + $0xc98] sm:$0xff] %v1230
                %v1232 = vld [vmem:[%s422 + $0x21a0] sm:$0xff]
                %1233 = vst [vmem:[%s423 + $0xca0] sm:$0xff] %v1232
                %v1234 = vld [vmem:[%s422 + $0x21a8] sm:$0xff]
                %1235 = vst [vmem:[%s423 + $0xca8] sm:$0xff] %v1234
                %v1236 = vld [vmem:[%s422 + $0x21b0] sm:$0xff]
                %1237 = vst [vmem:[%s423 + $0xcb0] sm:$0xff] %v1236
                %v1238 = vld [vmem:[%s422 + $0x21b8] sm:$0xff]
                %1239 = vst [vmem:[%s423 + $0xcb8] sm:$0xff] %v1238
                %v1240 = vld [vmem:[%s422 + $0x21c0] sm:$0xff]
                %1241 = vst [vmem:[%s423 + $0xcc0] sm:$0xff] %v1240
                %v1242 = vld [vmem:[%s422 + $0x21c8] sm:$0xff]
                %1243 = vst [vmem:[%s423 + $0xcc8] sm:$0xff] %v1242
                %v1244 = vld [vmem:[%s422 + $0x21d0] sm:$0xff]
                %1245 = vst [vmem:[%s423 + $0xcd0] sm:$0xff] %v1244
                %v1246 = vld [vmem:[%s422 + $0x21d8] sm:$0xff]
                %1247 = vst [vmem:[%s423 + $0xcd8] sm:$0xff] %v1246
                %v1248 = vld [vmem:[%s422 + $0x21e0] sm:$0xff]
                %1249 = vst [vmem:[%s423 + $0xce0] sm:$0xff] %v1248
                %v1250 = vld [vmem:[%s422 + $0x21e8] sm:$0xff]
                %1251 = vst [vmem:[%s423 + $0xce8] sm:$0xff] %v1250
                %v1252 = vld [vmem:[%s422 + $0x21f0] sm:$0xff]
                %1253 = vst [vmem:[%s423 + $0xcf0] sm:$0xff] %v1252
                %v1254 = vld [vmem:[%s422 + $0x21f8] sm:$0xff]
                %1255 = vst [vmem:[%s423 + $0xcf8] sm:$0xff] %v1254
                %v1256 = vld [vmem:[%s422 + $0x2200] sm:$0xff]
                %1257 = vst [vmem:[%s423 + $0xd00] sm:$0xff] %v1256
                %v1258 = vld [vmem:[%s422 + $0x2208] sm:$0xff]
                %1259 = vst [vmem:[%s423 + $0xd08] sm:$0xff] %v1258
                %v1260 = vld [vmem:[%s422 + $0x2210] sm:$0xff]
                %1261 = vst [vmem:[%s423 + $0xd10] sm:$0xff] %v1260
                %v1262 = vld [vmem:[%s422 + $0x2218] sm:$0xff]
                %1263 = vst [vmem:[%s423 + $0xd18] sm:$0xff] %v1262
                %v1264 = vld [vmem:[%s422 + $0x2220] sm:$0xff]
                %1265 = vst [vmem:[%s423 + $0xd20] sm:$0xff] %v1264
                %v1266 = vld [vmem:[%s422 + $0x2228] sm:$0xff]
                %1267 = vst [vmem:[%s423 + $0xd28] sm:$0xff] %v1266
                %v1268 = vld [vmem:[%s422 + $0x2230] sm:$0xff]
                %1269 = vst [vmem:[%s423 + $0xd30] sm:$0xff] %v1268
                %v1270 = vld [vmem:[%s422 + $0x2238] sm:$0xff]
                %1271 = vst [vmem:[%s423 + $0xd38] sm:$0xff] %v1270
                %v1272 = vld [vmem:[%s422 + $0x2240] sm:$0xff]
                %1273 = vst [vmem:[%s423 + $0xd40] sm:$0xff] %v1272
                %v1274 = vld [vmem:[%s422 + $0x2248] sm:$0xff]
                %1275 = vst [vmem:[%s423 + $0xd48] sm:$0xff] %v1274
                %v1276 = vld [vmem:[%s422 + $0x2250] sm:$0xff]
                %1277 = vst [vmem:[%s423 + $0xd50] sm:$0xff] %v1276
                %v1278 = vld [vmem:[%s422 + $0x2258] sm:$0xff]
                %1279 = vst [vmem:[%s423 + $0xd58] sm:$0xff] %v1278
                %v1280 = vld [vmem:[%s422 + $0x2260] sm:$0xff]
                %1281 = vst [vmem:[%s423 + $0xd60] sm:$0xff] %v1280
                %v1282 = vld [vmem:[%s422 + $0x2268] sm:$0xff]
                %1283 = vst [vmem:[%s423 + $0xd68] sm:$0xff] %v1282
                %v1284 = vld [vmem:[%s422 + $0x2270] sm:$0xff]
                %1285 = vst [vmem:[%s423 + $0xd70] sm:$0xff] %v1284
                %v1286 = vld [vmem:[%s422 + $0x2278] sm:$0xff]
                %1287 = vst [vmem:[%s423 + $0xd78] sm:$0xff] %v1286
                %v1288 = vld [vmem:[%s422 + $0x2280] sm:$0xff]
                %1289 = vst [vmem:[%s423 + $0xd80] sm:$0xff] %v1288
                %v1290 = vld [vmem:[%s422 + $0x2288] sm:$0xff]
                %1291 = vst [vmem:[%s423 + $0xd88] sm:$0xff] %v1290
                %v1292 = vld [vmem:[%s422 + $0x2290] sm:$0xff]
                %1293 = vst [vmem:[%s423 + $0xd90] sm:$0xff] %v1292
                %v1294 = vld [vmem:[%s422 + $0x2298] sm:$0xff]
                %1295 = vst [vmem:[%s423 + $0xd98] sm:$0xff] %v1294
                %v1296 = vld [vmem:[%s422 + $0x22a0] sm:$0xff]
                %1297 = vst [vmem:[%s423 + $0xda0] sm:$0xff] %v1296
                %v1298 = vld [vmem:[%s422 + $0x22a8] sm:$0xff]
                %1299 = vst [vmem:[%s423 + $0xda8] sm:$0xff] %v1298
                %v1300 = vld [vmem:[%s422 + $0x22b0] sm:$0xff]
                %1301 = vst [vmem:[%s423 + $0xdb0] sm:$0xff] %v1300
                %v1302 = vld [vmem:[%s422 + $0x22b8] sm:$0xff]
                %1303 = vst [vmem:[%s423 + $0xdb8] sm:$0xff] %v1302
                %v1304 = vld [vmem:[%s422 + $0x22c0] sm:$0xff]
                %1305 = vst [vmem:[%s423 + $0xdc0] sm:$0xff] %v1304
                %v1306 = vld [vmem:[%s422 + $0x22c8] sm:$0xff]
                %1307 = vst [vmem:[%s423 + $0xdc8] sm:$0xff] %v1306
                %v1308 = vld [vmem:[%s422 + $0x22d0] sm:$0xff]
                %1309 = vst [vmem:[%s423 + $0xdd0] sm:$0xff] %v1308
                %v1310 = vld [vmem:[%s422 + $0x22d8] sm:$0xff]
                %1311 = vst [vmem:[%s423 + $0xdd8] sm:$0xff] %v1310
                %v1312 = vld [vmem:[%s422 + $0x22e0] sm:$0xff]
                %1313 = vst [vmem:[%s423 + $0xde0] sm:$0xff] %v1312
                %v1314 = vld [vmem:[%s422 + $0x22e8] sm:$0xff]
                %1315 = vst [vmem:[%s423 + $0xde8] sm:$0xff] %v1314
                %v1316 = vld [vmem:[%s422 + $0x22f0] sm:$0xff]
                %1317 = vst [vmem:[%s423 + $0xdf0] sm:$0xff] %v1316
                %v1318 = vld [vmem:[%s422 + $0x22f8] sm:$0xff]
                %1319 = vst [vmem:[%s423 + $0xdf8] sm:$0xff] %v1318
              $region81: #{calanet_forward.1} parent=75 // loop_footer
                %s421 = sadd.s32 1, %s417
              $region82: #{calanet_forward.1} parent=75 // loop_footer_branch
                %416 = sbr.rel target = $region78
              $region83: #{calanet_forward.1} parent=75 // loop_exit
                _
            $region76: #{calanet_forward.1} parent=71 // pred_fallthru
              _
            // Predicated region
            $region84: #{calanet_forward.1} parent=71 // pred_check
              _
            $region85: #{calanet_forward.1} parent=71 // pred_check_branch
              %1321 = sbr.rel target = $region87
            $region86: #{calanet_forward.1} parent=71 // pred_region
              _
            $region87: #{calanet_forward.1} parent=71 // pred_fallthru
              _
          $region72: #{calanet_forward.1} parent=67 // pred_fallthru
            _
          %1322 = vnop
        $region68: #{calanet_forward.1} parent=63 // pred_fallthru
          _
        // Predicated region
        $region88: #{calanet_forward.1} parent=63 // pred_check
          %p1323 = pneg %p67
        $region89: #{calanet_forward.1} parent=63 // pred_check_branch
          %1325 = sbr.rel (%p1323) target = $region91
        $region90: #{calanet_forward.1} parent=63 // pred_region
          %s1326 = sand.u32 %s57, 1
          %s1327 = sand.u32 %s57, 1
          %s1328 = smul.addr %s1327, 504
          %s1329 = scalar_lea.vmem [#allocation4], %s1328
          %s1330 = smul.u32 7, %s21
          %s1331 = smul.addr %s1330, 8
          %s1332 = scalar_lea.vmem %s1, %s1331
          // Predicated region
          $region92: #{calanet_forward.1} parent=90 // pred_check
            _
          $region93: #{calanet_forward.1} parent=90 // pred_check_branch
            %1334 = sbr.rel (0) target = $region95
          $region94: #{calanet_forward.1} parent=90 // pred_region
            // Predicated region
            $region96: #{calanet_forward.1} parent=94 // pred_check
              _
            $region97: #{calanet_forward.1} parent=94 // pred_check_branch
              %1336 = sbr.rel (0) target = $region99
            $region98: #{calanet_forward.1} parent=94 // pred_region
              loop: start=0, step=1, limit=1
              $region100: #{calanet_forward.1} parent=98 // loop_pre_header
                _
              $region101: #{calanet_forward.1} parent=98 // loop_header
                %s1338 = sphi 0, %s1342
                %p1339 = scmp.ge.s32.totalorder %s1338, 1
                %s1343 = sphi %s1332, %s1332
                %s1344 = sphi %s1329, %s1329
              $region102: #{calanet_forward.1} parent=98 // loop_header_branch
                %1341 = sbr.rel (%p1339) target = $region106
              $region103: #{calanet_forward.1} parent=98 // loop_body
                %v1345 = vld [vmem:[%s1343] sm:$0xff]
                %1346 = vst [vmem:[%s1344] sm:$0xff] %v1345
                %v1347 = vld [vmem:[%s1343 + $0x8] sm:$0xff]
                %1348 = vst [vmem:[%s1344 + $0x8] sm:$0xff] %v1347
                %v1349 = vld [vmem:[%s1343 + $0x10] sm:$0xff]
                %1350 = vst [vmem:[%s1344 + $0x10] sm:$0xff] %v1349
                %v1351 = vld [vmem:[%s1343 + $0x18] sm:$0xff]
                %1352 = vst [vmem:[%s1344 + $0x18] sm:$0xff] %v1351
                %v1353 = vld [vmem:[%s1343 + $0x20] sm:$0xff]
                %1354 = vst [vmem:[%s1344 + $0x20] sm:$0xff] %v1353
                %v1355 = vld [vmem:[%s1343 + $0x28] sm:$0xff]
                %1356 = vst [vmem:[%s1344 + $0x28] sm:$0xff] %v1355
                %v1357 = vld [vmem:[%s1343 + $0x30] sm:$0xff]
                %1358 = vst [vmem:[%s1344 + $0x30] sm:$0xff] %v1357
                %v1359 = vld [vmem:[%s1343 + $0xe0] sm:$0xff]
                %1360 = vst [vmem:[%s1344 + $0x38] sm:$0xff] %v1359
                %v1361 = vld [vmem:[%s1343 + $0xe8] sm:$0xff]
                %1362 = vst [vmem:[%s1344 + $0x40] sm:$0xff] %v1361
                %v1363 = vld [vmem:[%s1343 + $0xf0] sm:$0xff]
                %1364 = vst [vmem:[%s1344 + $0x48] sm:$0xff] %v1363
                %v1365 = vld [vmem:[%s1343 + $0xf8] sm:$0xff]
                %1366 = vst [vmem:[%s1344 + $0x50] sm:$0xff] %v1365
                %v1367 = vld [vmem:[%s1343 + $0x100] sm:$0xff]
                %1368 = vst [vmem:[%s1344 + $0x58] sm:$0xff] %v1367
                %v1369 = vld [vmem:[%s1343 + $0x108] sm:$0xff]
                %1370 = vst [vmem:[%s1344 + $0x60] sm:$0xff] %v1369
                %v1371 = vld [vmem:[%s1343 + $0x110] sm:$0xff]
                %1372 = vst [vmem:[%s1344 + $0x68] sm:$0xff] %v1371
                %v1373 = vld [vmem:[%s1343 + $0x1c0] sm:$0xff]
                %1374 = vst [vmem:[%s1344 + $0x70] sm:$0xff] %v1373
                %v1375 = vld [vmem:[%s1343 + $0x1c8] sm:$0xff]
                %1376 = vst [vmem:[%s1344 + $0x78] sm:$0xff] %v1375
                %v1377 = vld [vmem:[%s1343 + $0x1d0] sm:$0xff]
                %1378 = vst [vmem:[%s1344 + $0x80] sm:$0xff] %v1377
                %v1379 = vld [vmem:[%s1343 + $0x1d8] sm:$0xff]
                %1380 = vst [vmem:[%s1344 + $0x88] sm:$0xff] %v1379
                %v1381 = vld [vmem:[%s1343 + $0x1e0] sm:$0xff]
                %1382 = vst [vmem:[%s1344 + $0x90] sm:$0xff] %v1381
                %v1383 = vld [vmem:[%s1343 + $0x1e8] sm:$0xff]
                %1384 = vst [vmem:[%s1344 + $0x98] sm:$0xff] %v1383
                %v1385 = vld [vmem:[%s1343 + $0x1f0] sm:$0xff]
                %1386 = vst [vmem:[%s1344 + $0xa0] sm:$0xff] %v1385
                %v1387 = vld [vmem:[%s1343 + $0x2a0] sm:$0xff]
                %1388 = vst [vmem:[%s1344 + $0xa8] sm:$0xff] %v1387
                %v1389 = vld [vmem:[%s1343 + $0x2a8] sm:$0xff]
                %1390 = vst [vmem:[%s1344 + $0xb0] sm:$0xff] %v1389
                %v1391 = vld [vmem:[%s1343 + $0x2b0] sm:$0xff]
                %1392 = vst [vmem:[%s1344 + $0xb8] sm:$0xff] %v1391
                %v1393 = vld [vmem:[%s1343 + $0x2b8] sm:$0xff]
                %1394 = vst [vmem:[%s1344 + $0xc0] sm:$0xff] %v1393
                %v1395 = vld [vmem:[%s1343 + $0x2c0] sm:$0xff]
                %1396 = vst [vmem:[%s1344 + $0xc8] sm:$0xff] %v1395
                %v1397 = vld [vmem:[%s1343 + $0x2c8] sm:$0xff]
                %1398 = vst [vmem:[%s1344 + $0xd0] sm:$0xff] %v1397
                %v1399 = vld [vmem:[%s1343 + $0x2d0] sm:$0xff]
                %1400 = vst [vmem:[%s1344 + $0xd8] sm:$0xff] %v1399
                %v1401 = vld [vmem:[%s1343 + $0x380] sm:$0xff]
                %1402 = vst [vmem:[%s1344 + $0xe0] sm:$0xff] %v1401
                %v1403 = vld [vmem:[%s1343 + $0x388] sm:$0xff]
                %1404 = vst [vmem:[%s1344 + $0xe8] sm:$0xff] %v1403
                %v1405 = vld [vmem:[%s1343 + $0x390] sm:$0xff]
                %1406 = vst [vmem:[%s1344 + $0xf0] sm:$0xff] %v1405
                %v1407 = vld [vmem:[%s1343 + $0x398] sm:$0xff]
                %1408 = vst [vmem:[%s1344 + $0xf8] sm:$0xff] %v1407
                %v1409 = vld [vmem:[%s1343 + $0x3a0] sm:$0xff]
                %1410 = vst [vmem:[%s1344 + $0x100] sm:$0xff] %v1409
                %v1411 = vld [vmem:[%s1343 + $0x3a8] sm:$0xff]
                %1412 = vst [vmem:[%s1344 + $0x108] sm:$0xff] %v1411
                %v1413 = vld [vmem:[%s1343 + $0x3b0] sm:$0xff]
                %1414 = vst [vmem:[%s1344 + $0x110] sm:$0xff] %v1413
                %v1415 = vld [vmem:[%s1343 + $0x460] sm:$0xff]
                %1416 = vst [vmem:[%s1344 + $0x118] sm:$0xff] %v1415
                %v1417 = vld [vmem:[%s1343 + $0x468] sm:$0xff]
                %1418 = vst [vmem:[%s1344 + $0x120] sm:$0xff] %v1417
                %v1419 = vld [vmem:[%s1343 + $0x470] sm:$0xff]
                %1420 = vst [vmem:[%s1344 + $0x128] sm:$0xff] %v1419
                %v1421 = vld [vmem:[%s1343 + $0x478] sm:$0xff]
                %1422 = vst [vmem:[%s1344 + $0x130] sm:$0xff] %v1421
                %v1423 = vld [vmem:[%s1343 + $0x480] sm:$0xff]
                %1424 = vst [vmem:[%s1344 + $0x138] sm:$0xff] %v1423
                %v1425 = vld [vmem:[%s1343 + $0x488] sm:$0xff]
                %1426 = vst [vmem:[%s1344 + $0x140] sm:$0xff] %v1425
                %v1427 = vld [vmem:[%s1343 + $0x490] sm:$0xff]
                %1428 = vst [vmem:[%s1344 + $0x148] sm:$0xff] %v1427
                %v1429 = vld [vmem:[%s1343 + $0x540] sm:$0xff]
                %1430 = vst [vmem:[%s1344 + $0x150] sm:$0xff] %v1429
                %v1431 = vld [vmem:[%s1343 + $0x548] sm:$0xff]
                %1432 = vst [vmem:[%s1344 + $0x158] sm:$0xff] %v1431
                %v1433 = vld [vmem:[%s1343 + $0x550] sm:$0xff]
                %1434 = vst [vmem:[%s1344 + $0x160] sm:$0xff] %v1433
                %v1435 = vld [vmem:[%s1343 + $0x558] sm:$0xff]
                %1436 = vst [vmem:[%s1344 + $0x168] sm:$0xff] %v1435
                %v1437 = vld [vmem:[%s1343 + $0x560] sm:$0xff]
                %1438 = vst [vmem:[%s1344 + $0x170] sm:$0xff] %v1437
                %v1439 = vld [vmem:[%s1343 + $0x568] sm:$0xff]
                %1440 = vst [vmem:[%s1344 + $0x178] sm:$0xff] %v1439
                %v1441 = vld [vmem:[%s1343 + $0x570] sm:$0xff]
                %1442 = vst [vmem:[%s1344 + $0x180] sm:$0xff] %v1441
                %v1443 = vld [vmem:[%s1343 + $0x620] sm:$0xff]
                %1444 = vst [vmem:[%s1344 + $0x188] sm:$0xff] %v1443
                %v1445 = vld [vmem:[%s1343 + $0x628] sm:$0xff]
                %1446 = vst [vmem:[%s1344 + $0x190] sm:$0xff] %v1445
                %v1447 = vld [vmem:[%s1343 + $0x630] sm:$0xff]
                %1448 = vst [vmem:[%s1344 + $0x198] sm:$0xff] %v1447
                %v1449 = vld [vmem:[%s1343 + $0x638] sm:$0xff]
                %1450 = vst [vmem:[%s1344 + $0x1a0] sm:$0xff] %v1449
                %v1451 = vld [vmem:[%s1343 + $0x640] sm:$0xff]
                %1452 = vst [vmem:[%s1344 + $0x1a8] sm:$0xff] %v1451
                %v1453 = vld [vmem:[%s1343 + $0x648] sm:$0xff]
                %1454 = vst [vmem:[%s1344 + $0x1b0] sm:$0xff] %v1453
                %v1455 = vld [vmem:[%s1343 + $0x650] sm:$0xff]
                %1456 = vst [vmem:[%s1344 + $0x1b8] sm:$0xff] %v1455
                %v1457 = vld [vmem:[%s1343 + $0x700] sm:$0xff]
                %1458 = vst [vmem:[%s1344 + $0x1c0] sm:$0xff] %v1457
                %v1459 = vld [vmem:[%s1343 + $0x708] sm:$0xff]
                %1460 = vst [vmem:[%s1344 + $0x1c8] sm:$0xff] %v1459
                %v1461 = vld [vmem:[%s1343 + $0x710] sm:$0xff]
                %1462 = vst [vmem:[%s1344 + $0x1d0] sm:$0xff] %v1461
                %v1463 = vld [vmem:[%s1343 + $0x718] sm:$0xff]
                %1464 = vst [vmem:[%s1344 + $0x1d8] sm:$0xff] %v1463
                %v1465 = vld [vmem:[%s1343 + $0x720] sm:$0xff]
                %1466 = vst [vmem:[%s1344 + $0x1e0] sm:$0xff] %v1465
                %v1467 = vld [vmem:[%s1343 + $0x728] sm:$0xff]
                %1468 = vst [vmem:[%s1344 + $0x1e8] sm:$0xff] %v1467
                %v1469 = vld [vmem:[%s1343 + $0x730] sm:$0xff]
                %1470 = vst [vmem:[%s1344 + $0x1f0] sm:$0xff] %v1469
              $region104: #{calanet_forward.1} parent=98 // loop_footer
                %s1342 = sadd.s32 1, %s1338
              $region105: #{calanet_forward.1} parent=98 // loop_footer_branch
                %1337 = sbr.rel target = $region101
              $region106: #{calanet_forward.1} parent=98 // loop_exit
                _
            $region99: #{calanet_forward.1} parent=94 // pred_fallthru
              _
            // Predicated region
            $region107: #{calanet_forward.1} parent=94 // pred_check
              _
            $region108: #{calanet_forward.1} parent=94 // pred_check_branch
              %1472 = sbr.rel target = $region110
            $region109: #{calanet_forward.1} parent=94 // pred_region
              _
            $region110: #{calanet_forward.1} parent=94 // pred_fallthru
              _
          $region95: #{calanet_forward.1} parent=90 // pred_fallthru
            _
          %1473 = vnop
        $region91: #{calanet_forward.1} parent=63 // pred_fallthru
          _
      $region64: #{calanet_forward.1} parent=5 // pred_fallthru
        _
      %p1474 = scmp.le.s32.totalorder 1, %s21
      %p1475 = scmp.lt.s32.totalorder %s21, 5
      %p1476 = pnand %p1474, %p1475
      %p1477 = pneg %p1476
      // Predicated region
      $region111: #{calanet_forward.1} parent=5 // pred_check
        _
      $region112: #{calanet_forward.1} parent=5 // pred_check_branch
        %1479 = sbr.rel (%p1476) target = $region114
      $region113: #{calanet_forward.1} parent=5 // pred_region
        %s1480 = ssub.s32 %s21, 1
        %s1481 = sand.u32 %s34, 1
        %s1482 = sand.u32 %s34, 1
        %s1483 = smul.addr %s1482, 3584
        %s1484 = scalar_lea.vmem [#allocation3], %s1483
        // Predicated region
        $region115: #{calanet_forward.1} parent=113 // pred_check
          %p1485 = pneg %p47
        $region116: #{calanet_forward.1} parent=113 // pred_check_branch
          %1487 = sbr.rel (%p1485) target = $region118
        $region117: #{calanet_forward.1} parent=113 // pred_region
          _
        $region118: #{calanet_forward.1} parent=113 // pred_fallthru
          _
        %s1488 = sand.u32 %s60, 1
        %s1489 = sand.u32 %s60, 1
        %s1490 = smul.addr %s1489, 504
        %s1491 = scalar_lea.vmem [#allocation4], %s1490
        // Predicated region
        $region119: #{calanet_forward.1} parent=113 // pred_check
          %p1492 = pneg %p73
        $region120: #{calanet_forward.1} parent=113 // pred_check_branch
          %1494 = sbr.rel (%p1492) target = $region122
        $region121: #{calanet_forward.1} parent=113 // pred_region
          _
        $region122: #{calanet_forward.1} parent=113 // pred_fallthru
          _
        %s1495 = sand.u32 %s34, 1
        %s1496 = sand.u32 %s34, 1
        %s1497 = smul.addr %s1496, 3584
        %s1498 = scalar_lea.vmem [#allocation3], %s1497
        %p1499 = pneg %p47
        %p1500 = pneg %p44
        %s1501 = sand.u32 %s60, 1
        %s1502 = sand.u32 %s60, 1
        %s1503 = smul.addr %s1502, 504
        %s1504 = scalar_lea.vmem [#allocation4], %s1503
        %p1505 = pneg %p73
        %p1506 = pneg %p70
        %p1507 = pneg %p94
        %p1508 = pneg %p91
        %p1509 = pneg %p115
        %p1510 = pneg %p112
        %p1511 = pneg %p136
        %p1512 = pneg %p133
        %p1513 = pneg %p157
        %p1514 = pneg %p154
        %p1515 = pneg %p178
        %p1516 = pneg %p175
        %p1517 = pneg %p199
        %p1518 = pneg %p196
        %p1519 = pneg %p220
        %p1520 = pneg %p217
        %p1521 = pneg %p241
        %p1522 = pneg %p238
        %p1523 = pneg %p262
        %p1524 = pneg %p259
        %p1525 = pneg %p283
        %p1526 = pneg %p280
        %p1527 = pneg %p304
        %p1528 = pneg %p301
        %p1529 = pneg %p325
        %p1530 = pneg %p322
        %p1531 = pneg %p346
        %p1532 = pneg %p343
        %s1533 = smul.u32 112, %s26
        %s1534 = smul.u32 7, %s26
        %p1535 = scmp.eq.s32.totalorder %s26, 0
        // Predicated region
        $region123: #{calanet_forward.1} parent=113 // pred_check
          %p1536 = pneg %p1535
        $region124: #{calanet_forward.1} parent=113 // pred_check_branch
          %1538 = sbr.rel (%p1536) target = $region126
        $region125: #{calanet_forward.1} parent=113 // pred_region
          %1539 = vst [vmem:[#allocation2] sm:$0xff] 0.0
          %vm1540 = vcmask 1014784
          %1541 = vst.msk [vmem:[#allocation2 + $0x8] sm:$0xff] %vm1540, 0.0
          %1542 = vst [vmem:[#allocation2 + $0x10] sm:$0xff] 0.0
          %1543 = vst.msk [vmem:[#allocation2 + $0x18] sm:$0xff] %vm1540, 0.0
          %1544 = vst [vmem:[#allocation2 + $0x20] sm:$0xff] 0.0
          %1545 = vst.msk [vmem:[#allocation2 + $0x28] sm:$0xff] %vm1540, 0.0
          %1546 = vst [vmem:[#allocation2 + $0x30] sm:$0xff] 0.0
          %1547 = vst.msk [vmem:[#allocation2 + $0x38] sm:$0xff] %vm1540, 0.0
          %1548 = vst [vmem:[#allocation2 + $0x40] sm:$0xff] 0.0
          %1549 = vst.msk [vmem:[#allocation2 + $0x48] sm:$0xff] %vm1540, 0.0
          %1550 = vst [vmem:[#allocation2 + $0x50] sm:$0xff] 0.0
          %1551 = vst.msk [vmem:[#allocation2 + $0x58] sm:$0xff] %vm1540, 0.0
          %1552 = vst [vmem:[#allocation2 + $0x60] sm:$0xff] 0.0
          %1553 = vst.msk [vmem:[#allocation2 + $0x68] sm:$0xff] %vm1540, 0.0
          %1554 = vst [vmem:[#allocation2 + $0x70] sm:$0xff] 0.0
          %1555 = vst.msk [vmem:[#allocation2 + $0x78] sm:$0xff] %vm1540, 0.0
          %1556 = vst [vmem:[#allocation2 + $0x80] sm:$0xff] 0.0
          %1557 = vst.msk [vmem:[#allocation2 + $0x88] sm:$0xff] %vm1540, 0.0
          %1558 = vst [vmem:[#allocation2 + $0x90] sm:$0xff] 0.0
          %1559 = vst.msk [vmem:[#allocation2 + $0x98] sm:$0xff] %vm1540, 0.0
          %1560 = vst [vmem:[#allocation2 + $0xa0] sm:$0xff] 0.0
          %1561 = vst.msk [vmem:[#allocation2 + $0xa8] sm:$0xff] %vm1540, 0.0
          %1562 = vst [vmem:[#allocation2 + $0xb0] sm:$0xff] 0.0
          %1563 = vst.msk [vmem:[#allocation2 + $0xb8] sm:$0xff] %vm1540, 0.0
          %1564 = vst [vmem:[#allocation2 + $0xc0] sm:$0xff] 0.0
          %1565 = vst.msk [vmem:[#allocation2 + $0xc8] sm:$0xff] %vm1540, 0.0
          %1566 = vst [vmem:[#allocation2 + $0xd0] sm:$0xff] 0.0
          %1567 = vst.msk [vmem:[#allocation2 + $0xd8] sm:$0xff] %vm1540, 0.0
          %1568 = vst [vmem:[#allocation2 + $0xe0] sm:$0xff] 0.0
          %1569 = vst.msk [vmem:[#allocation2 + $0xe8] sm:$0xff] %vm1540, 0.0
          %1570 = vst [vmem:[#allocation2 + $0xf0] sm:$0xff] 0.0
          %1571 = vst.msk [vmem:[#allocation2 + $0xf8] sm:$0xff] %vm1540, 0.0
          %1572 = vst [vmem:[#allocation2 + $0x100] sm:$0xff] 0.0
          %1573 = vst.msk [vmem:[#allocation2 + $0x108] sm:$0xff] %vm1540, 0.0
          %1574 = vst [vmem:[#allocation2 + $0x110] sm:$0xff] 0.0
          %1575 = vst.msk [vmem:[#allocation2 + $0x118] sm:$0xff] %vm1540, 0.0
        $region126: #{calanet_forward.1} parent=113 // pred_fallthru
          _
        %v1576 = vld [vmem:[%s1491] sm:$0xff]
        %v1577 = vld [vmem:[%s1491 + $0x8] sm:$0xff]
        %v1578 = vld [vmem:[%s1491 + $0x10] sm:$0xff]
        %v1579 = vld [vmem:[%s1491 + $0x18] sm:$0xff]
        %v1580 = vld [vmem:[%s1491 + $0x20] sm:$0xff]
        %v1581 = vld [vmem:[%s1491 + $0x28] sm:$0xff]
        %v1582 = vld [vmem:[%s1491 + $0x30] sm:$0xff]
        %v1583 = vld [vmem:[%s1491 + $0x38] sm:$0xff]
        %v1584 = vld [vmem:[%s1491 + $0x40] sm:$0xff]
        %v1585 = vld [vmem:[%s1491 + $0x48] sm:$0xff]
        %v1586 = vld [vmem:[%s1491 + $0x50] sm:$0xff]
        %v1587 = vld [vmem:[%s1491 + $0x58] sm:$0xff]
        %v1588 = vld [vmem:[%s1491 + $0x60] sm:$0xff]
        %v1589 = vld [vmem:[%s1491 + $0x68] sm:$0xff]
        %v1590 = vld [vmem:[%s1491 + $0x70] sm:$0xff]
        %v1591 = vld [vmem:[%s1491 + $0x78] sm:$0xff]
        %v1592 = vld [vmem:[%s1491 + $0x80] sm:$0xff]
        %v1593 = vld [vmem:[%s1491 + $0x88] sm:$0xff]
        %v1594 = vld [vmem:[%s1491 + $0x90] sm:$0xff]
        %v1595 = vld [vmem:[%s1491 + $0x98] sm:$0xff]
        %v1596 = vld [vmem:[%s1491 + $0xa0] sm:$0xff]
        %v1597 = vld [vmem:[%s1491 + $0xa8] sm:$0xff]
        %v1598 = vld [vmem:[%s1491 + $0xb0] sm:$0xff]
        %v1599 = vld [vmem:[%s1491 + $0xb8] sm:$0xff]
        %v1600 = vld [vmem:[%s1491 + $0xc0] sm:$0xff]
        %v1601 = vld [vmem:[%s1491 + $0xc8] sm:$0xff]
        %v1602 = vld [vmem:[%s1491 + $0xd0] sm:$0xff]
        %v1603 = vld [vmem:[%s1491 + $0xd8] sm:$0xff]
        %v1604 = vld [vmem:[%s1491 + $0xe0] sm:$0xff]
        %v1605 = vld [vmem:[%s1491 + $0xe8] sm:$0xff]
        %v1606 = vld [vmem:[%s1491 + $0xf0] sm:$0xff]
        %v1607 = vld [vmem:[%s1491 + $0xf8] sm:$0xff]
        %v1608 = vld [vmem:[%s1491 + $0x100] sm:$0xff]
        %v1609 = vld [vmem:[%s1491 + $0x108] sm:$0xff]
        %v1610 = vld [vmem:[%s1491 + $0x110] sm:$0xff]
        %v1611 = vld [vmem:[%s1491 + $0x118] sm:$0xff]
        %v1612 = vld [vmem:[%s1491 + $0x120] sm:$0xff]
        %v1613 = vld [vmem:[%s1491 + $0x128] sm:$0xff]
        %v1614 = vld [vmem:[%s1491 + $0x130] sm:$0xff]
        %v1615 = vld [vmem:[%s1491 + $0x138] sm:$0xff]
        %v1616 = vld [vmem:[%s1491 + $0x140] sm:$0xff]
        %v1617 = vld [vmem:[%s1491 + $0x148] sm:$0xff]
        %v1618 = vld [vmem:[%s1491 + $0x150] sm:$0xff]
        %v1619 = vld [vmem:[%s1491 + $0x158] sm:$0xff]
        %v1620 = vld [vmem:[%s1491 + $0x160] sm:$0xff]
        %v1621 = vld [vmem:[%s1491 + $0x168] sm:$0xff]
        %v1622 = vld [vmem:[%s1491 + $0x170] sm:$0xff]
        %v1623 = vld [vmem:[%s1491 + $0x178] sm:$0xff]
        %v1624 = vld [vmem:[%s1491 + $0x180] sm:$0xff]
        %v1625 = vld [vmem:[%s1491 + $0x188] sm:$0xff]
        %v1626 = vld [vmem:[%s1491 + $0x190] sm:$0xff]
        %v1627 = vld [vmem:[%s1491 + $0x198] sm:$0xff]
        %v1628 = vld [vmem:[%s1491 + $0x1a0] sm:$0xff]
        %v1629 = vld [vmem:[%s1491 + $0x1a8] sm:$0xff]
        %v1630 = vld [vmem:[%s1491 + $0x1b0] sm:$0xff]
        %v1631 = vld [vmem:[%s1491 + $0x1b8] sm:$0xff]
        %v1632 = vld [vmem:[%s1491 + $0x1c0] sm:$0xff]
        %v1633 = vld [vmem:[%s1491 + $0x1c8] sm:$0xff]
        %v1634 = vld [vmem:[%s1491 + $0x1d0] sm:$0xff]
        %v1635 = vld [vmem:[%s1491 + $0x1d8] sm:$0xff]
        %v1636 = vld [vmem:[%s1491 + $0x1e0] sm:$0xff]
        %v1637 = vld [vmem:[%s1491 + $0x1e8] sm:$0xff]
        %v1638 = vld [vmem:[%s1491 + $0x1f0] sm:$0xff]
        %v1639 = vld [vmem:[#allocation2] sm:$0xff]
        %v1640 = vld [vmem:[#allocation2 + $0x8] sm:$0xff]
        %v1641 = vld [vmem:[#allocation2 + $0x10] sm:$0xff]
        %v1642 = vld [vmem:[#allocation2 + $0x18] sm:$0xff]
        %v1643 = vld [vmem:[#allocation2 + $0x20] sm:$0xff]
        %v1644 = vld [vmem:[#allocation2 + $0x28] sm:$0xff]
        %v1645 = vld [vmem:[#allocation2 + $0x30] sm:$0xff]
        %v1646 = vld [vmem:[#allocation2 + $0x38] sm:$0xff]
        %v1647 = vld [vmem:[#allocation2 + $0x40] sm:$0xff]
        %v1648 = vld [vmem:[#allocation2 + $0x48] sm:$0xff]
        %v1649 = vld [vmem:[#allocation2 + $0x50] sm:$0xff]
        %v1650 = vld [vmem:[#allocation2 + $0x58] sm:$0xff]
        %v1651 = vld [vmem:[#allocation2 + $0x60] sm:$0xff]
        %v1652 = vld [vmem:[#allocation2 + $0x68] sm:$0xff]
        %v1653 = vld [vmem:[#allocation2 + $0x70] sm:$0xff]
        %v1654 = vld [vmem:[#allocation2 + $0x78] sm:$0xff]
        %v1655 = vld [vmem:[#allocation2 + $0x80] sm:$0xff]
        %v1656 = vld [vmem:[#allocation2 + $0x88] sm:$0xff]
        %v1657 = vld [vmem:[%s1484] sm:$0xff]
        %v1658 = vld [vmem:[%s1484 + $0x8] sm:$0xff]
        %v1659 = vld [vmem:[%s1484 + $0x10] sm:$0xff]
        %v1660 = vld [vmem:[%s1484 + $0x18] sm:$0xff]
        %v1661 = vld [vmem:[%s1484 + $0x20] sm:$0xff]
        %v1662 = vld [vmem:[%s1484 + $0x28] sm:$0xff]
        %v1663 = vld [vmem:[%s1484 + $0x30] sm:$0xff]
        %v1664 = vld [vmem:[%s1484 + $0x38] sm:$0xff]
        %v1665 = vld [vmem:[%s1484 + $0x40] sm:$0xff]
        %v1666 = vld [vmem:[%s1484 + $0x48] sm:$0xff]
        %v1667 = vld [vmem:[%s1484 + $0x50] sm:$0xff]
        %v1668 = vld [vmem:[%s1484 + $0x58] sm:$0xff]
        %v1669 = vld [vmem:[%s1484 + $0x60] sm:$0xff]
        %v1670 = vld [vmem:[%s1484 + $0x68] sm:$0xff]
        %v1671 = vld [vmem:[%s1484 + $0x70] sm:$0xff]
        %v1672 = vld [vmem:[%s1484 + $0x78] sm:$0xff]
        %v1673 = vld [vmem:[%s1484 + $0x80] sm:$0xff]
        %v1674 = vld [vmem:[%s1484 + $0x88] sm:$0xff]
        %v1675 = vld [vmem:[%s1484 + $0x90] sm:$0xff]
        %v1676 = vld [vmem:[%s1484 + $0x98] sm:$0xff]
        %v1677 = vld [vmem:[%s1484 + $0xa0] sm:$0xff]
        %v1678 = vld [vmem:[%s1484 + $0xa8] sm:$0xff]
        %v1679 = vld [vmem:[%s1484 + $0xb0] sm:$0xff]
        %v1680 = vld [vmem:[%s1484 + $0xb8] sm:$0xff]
        %v1681 = vld [vmem:[%s1484 + $0xc0] sm:$0xff]
        %v1682 = vld [vmem:[%s1484 + $0xc8] sm:$0xff]
        %v1683 = vld [vmem:[%s1484 + $0xd0] sm:$0xff]
        %v1684 = vld [vmem:[%s1484 + $0xd8] sm:$0xff]
        %v1685 = vld [vmem:[%s1484 + $0xe0] sm:$0xff]
        %v1686 = vld [vmem:[%s1484 + $0xe8] sm:$0xff]
        %v1687 = vld [vmem:[%s1484 + $0xf0] sm:$0xff]
        %v1688 = vld [vmem:[%s1484 + $0xf8] sm:$0xff]
        %v1689 = vld [vmem:[%s1484 + $0x100] sm:$0xff]
        %v1690 = vld [vmem:[%s1484 + $0x108] sm:$0xff]
        %v1691 = vld [vmem:[%s1484 + $0x110] sm:$0xff]
        %v1692 = vld [vmem:[%s1484 + $0x118] sm:$0xff]
        %v1693 = vld [vmem:[%s1484 + $0x120] sm:$0xff]
        %v1694 = vld [vmem:[%s1484 + $0x128] sm:$0xff]
        %v1695 = vld [vmem:[%s1484 + $0x130] sm:$0xff]
        %v1696 = vld [vmem:[%s1484 + $0x138] sm:$0xff]
        %v1697 = vld [vmem:[%s1484 + $0x140] sm:$0xff]
        %v1698 = vld [vmem:[%s1484 + $0x148] sm:$0xff]
        %v1699 = vld [vmem:[%s1484 + $0x150] sm:$0xff]
        %v1700 = vld [vmem:[%s1484 + $0x158] sm:$0xff]
        %v1701 = vld [vmem:[%s1484 + $0x160] sm:$0xff]
        %v1702 = vld [vmem:[%s1484 + $0x168] sm:$0xff]
        %v1703 = vld [vmem:[%s1484 + $0x170] sm:$0xff]
        %v1704 = vld [vmem:[%s1484 + $0x178] sm:$0xff]
        %v1705 = vld [vmem:[%s1484 + $0x180] sm:$0xff]
        %v1706 = vld [vmem:[%s1484 + $0x188] sm:$0xff]
        %v1707 = vld [vmem:[%s1484 + $0x190] sm:$0xff]
        %v1708 = vld [vmem:[%s1484 + $0x198] sm:$0xff]
        %v1709 = vld [vmem:[%s1484 + $0x1a0] sm:$0xff]
        %v1710 = vld [vmem:[%s1484 + $0x1a8] sm:$0xff]
        %v1711 = vld [vmem:[%s1484 + $0x1b0] sm:$0xff]
        %v1712 = vld [vmem:[%s1484 + $0x1b8] sm:$0xff]
        %v1713 = vld [vmem:[%s1484 + $0x1c0] sm:$0xff]
        %v1714 = vld [vmem:[%s1484 + $0x1c8] sm:$0xff]
        %v1715 = vld [vmem:[%s1484 + $0x1d0] sm:$0xff]
        %v1716 = vld [vmem:[%s1484 + $0x1d8] sm:$0xff]
        %v1717 = vld [vmem:[%s1484 + $0x1e0] sm:$0xff]
        %v1718 = vld [vmem:[%s1484 + $0x1e8] sm:$0xff]
        %v1719 = vld [vmem:[%s1484 + $0x1f0] sm:$0xff]
        %v1720 = vld [vmem:[%s1484 + $0x1f8] sm:$0xff]
        %v1721 = vld [vmem:[%s1484 + $0x200] sm:$0xff]
        %v1722 = vld [vmem:[%s1484 + $0x208] sm:$0xff]
        %v1723 = vld [vmem:[%s1484 + $0x210] sm:$0xff]
        %v1724 = vld [vmem:[%s1484 + $0x218] sm:$0xff]
        %v1725 = vld [vmem:[%s1484 + $0x220] sm:$0xff]
        %v1726 = vld [vmem:[%s1484 + $0x228] sm:$0xff]
        %v1727 = vld [vmem:[%s1484 + $0x230] sm:$0xff]
        %v1728 = vld [vmem:[%s1484 + $0x238] sm:$0xff]
        %v1729 = vld [vmem:[%s1484 + $0x240] sm:$0xff]
        %v1730 = vld [vmem:[%s1484 + $0x248] sm:$0xff]
        %v1731 = vld [vmem:[%s1484 + $0x250] sm:$0xff]
        %v1732 = vld [vmem:[%s1484 + $0x258] sm:$0xff]
        %v1733 = vld [vmem:[%s1484 + $0x260] sm:$0xff]
        %v1734 = vld [vmem:[%s1484 + $0x268] sm:$0xff]
        %v1735 = vld [vmem:[%s1484 + $0x270] sm:$0xff]
        %v1736 = vld [vmem:[%s1484 + $0x278] sm:$0xff]
        %v1737 = vld [vmem:[%s1484 + $0x280] sm:$0xff]
        %v1738 = vld [vmem:[%s1484 + $0x288] sm:$0xff]
        %v1739 = vld [vmem:[%s1484 + $0x290] sm:$0xff]
        %v1740 = vld [vmem:[%s1484 + $0x298] sm:$0xff]
        %v1741 = vld [vmem:[%s1484 + $0x2a0] sm:$0xff]
        %v1742 = vld [vmem:[%s1484 + $0x2a8] sm:$0xff]
        %v1743 = vld [vmem:[%s1484 + $0x2b0] sm:$0xff]
        %v1744 = vld [vmem:[%s1484 + $0x2b8] sm:$0xff]
        %v1745 = vld [vmem:[%s1484 + $0x2c0] sm:$0xff]
        %v1746 = vld [vmem:[%s1484 + $0x2c8] sm:$0xff]
        %v1747 = vld [vmem:[%s1484 + $0x2d0] sm:$0xff]
        %v1748 = vld [vmem:[%s1484 + $0x2d8] sm:$0xff]
        %v1749 = vld [vmem:[%s1484 + $0x2e0] sm:$0xff]
        %v1750 = vld [vmem:[%s1484 + $0x2e8] sm:$0xff]
        %v1751 = vld [vmem:[%s1484 + $0x2f0] sm:$0xff]
        %v1752 = vld [vmem:[%s1484 + $0x2f8] sm:$0xff]
        %v1753 = vld [vmem:[%s1484 + $0x300] sm:$0xff]
        %v1754 = vld [vmem:[%s1484 + $0x308] sm:$0xff]
        %v1755 = vld [vmem:[%s1484 + $0x310] sm:$0xff]
        %v1756 = vld [vmem:[%s1484 + $0x318] sm:$0xff]
        %v1757 = vld [vmem:[%s1484 + $0x320] sm:$0xff]
        %v1758 = vld [vmem:[%s1484 + $0x328] sm:$0xff]
        %v1759 = vld [vmem:[%s1484 + $0x330] sm:$0xff]
        %v1760 = vld [vmem:[%s1484 + $0x338] sm:$0xff]
        %v1761 = vld [vmem:[%s1484 + $0x340] sm:$0xff]
        %v1762 = vld [vmem:[%s1484 + $0x348] sm:$0xff]
        %v1763 = vld [vmem:[%s1484 + $0x350] sm:$0xff]
        %v1764 = vld [vmem:[%s1484 + $0x358] sm:$0xff]
        %v1765 = vld [vmem:[%s1484 + $0x360] sm:$0xff]
        %v1766 = vld [vmem:[%s1484 + $0x368] sm:$0xff]
        %v1767 = vld [vmem:[%s1484 + $0x370] sm:$0xff]
        %v1768 = vld [vmem:[%s1484 + $0x378] sm:$0xff]
        %v1769 = vld [vmem:[%s1484 + $0x380] sm:$0xff]
        %v1770 = vld [vmem:[%s1484 + $0x388] sm:$0xff]
        %v1771 = vld [vmem:[%s1484 + $0x390] sm:$0xff]
        %v1772 = vld [vmem:[%s1484 + $0x398] sm:$0xff]
        %v1773 = vld [vmem:[%s1484 + $0x3a0] sm:$0xff]
        %v1774 = vld [vmem:[%s1484 + $0x3a8] sm:$0xff]
        %v1775 = vld [vmem:[%s1484 + $0x3b0] sm:$0xff]
        %v1776 = vld [vmem:[%s1484 + $0x3b8] sm:$0xff]
        %v1777 = vld [vmem:[%s1484 + $0x3c0] sm:$0xff]
        %v1778 = vld [vmem:[%s1484 + $0x3c8] sm:$0xff]
        %v1779 = vld [vmem:[%s1484 + $0x3d0] sm:$0xff]
        %v1780 = vld [vmem:[%s1484 + $0x3d8] sm:$0xff]
        %v1781 = vld [vmem:[%s1484 + $0x3e0] sm:$0xff]
        %v1782 = vld [vmem:[%s1484 + $0x3e8] sm:$0xff]
        %v1783 = vld [vmem:[%s1484 + $0x3f0] sm:$0xff]
        %v1784 = vld [vmem:[%s1484 + $0x3f8] sm:$0xff]
        %v1785 = vld [vmem:[%s1484 + $0x400] sm:$0xff]
        %v1786 = vld [vmem:[%s1484 + $0x408] sm:$0xff]
        %v1787 = vld [vmem:[%s1484 + $0x410] sm:$0xff]
        %v1788 = vld [vmem:[%s1484 + $0x418] sm:$0xff]
        %v1789 = vld [vmem:[%s1484 + $0x420] sm:$0xff]
        %v1790 = vld [vmem:[%s1484 + $0x428] sm:$0xff]
        %v1791 = vld [vmem:[%s1484 + $0x430] sm:$0xff]
        %v1792 = vld [vmem:[%s1484 + $0x438] sm:$0xff]
        %v1793 = vld [vmem:[%s1484 + $0x440] sm:$0xff]
        %v1794 = vld [vmem:[%s1484 + $0x448] sm:$0xff]
        %v1795 = vld [vmem:[%s1484 + $0x450] sm:$0xff]
        %v1796 = vld [vmem:[%s1484 + $0x458] sm:$0xff]
        %v1797 = vld [vmem:[%s1484 + $0x460] sm:$0xff]
        %v1798 = vld [vmem:[%s1484 + $0x468] sm:$0xff]
        %v1799 = vld [vmem:[%s1484 + $0x470] sm:$0xff]
        %v1800 = vld [vmem:[%s1484 + $0x478] sm:$0xff]
        %v1801 = vld [vmem:[%s1484 + $0x480] sm:$0xff]
        %v1802 = vld [vmem:[%s1484 + $0x488] sm:$0xff]
        %v1803 = vld [vmem:[%s1484 + $0x490] sm:$0xff]
        %v1804 = vld [vmem:[%s1484 + $0x498] sm:$0xff]
        %v1805 = vld [vmem:[%s1484 + $0x4a0] sm:$0xff]
        %v1806 = vld [vmem:[%s1484 + $0x4a8] sm:$0xff]
        %v1807 = vld [vmem:[%s1484 + $0x4b0] sm:$0xff]
        %v1808 = vld [vmem:[%s1484 + $0x4b8] sm:$0xff]
        %v1809 = vld [vmem:[%s1484 + $0x4c0] sm:$0xff]
        %v1810 = vld [vmem:[%s1484 + $0x4c8] sm:$0xff]
        %v1811 = vld [vmem:[%s1484 + $0x4d0] sm:$0xff]
        %v1812 = vld [vmem:[%s1484 + $0x4d8] sm:$0xff]
        %v1813 = vld [vmem:[%s1484 + $0x4e0] sm:$0xff]
        %v1814 = vld [vmem:[%s1484 + $0x4e8] sm:$0xff]
        %v1815 = vld [vmem:[%s1484 + $0x4f0] sm:$0xff]
        %v1816 = vld [vmem:[%s1484 + $0x4f8] sm:$0xff]
        %v1817 = vld [vmem:[%s1484 + $0x500] sm:$0xff]
        %v1818 = vld [vmem:[%s1484 + $0x508] sm:$0xff]
        %v1819 = vld [vmem:[%s1484 + $0x510] sm:$0xff]
        %v1820 = vld [vmem:[%s1484 + $0x518] sm:$0xff]
        %v1821 = vld [vmem:[%s1484 + $0x520] sm:$0xff]
        %v1822 = vld [vmem:[%s1484 + $0x528] sm:$0xff]
        %v1823 = vld [vmem:[%s1484 + $0x530] sm:$0xff]
        %v1824 = vld [vmem:[%s1484 + $0x538] sm:$0xff]
        %v1825 = vld [vmem:[%s1484 + $0x540] sm:$0xff]
        %v1826 = vld [vmem:[%s1484 + $0x548] sm:$0xff]
        %v1827 = vld [vmem:[%s1484 + $0x550] sm:$0xff]
        %v1828 = vld [vmem:[%s1484 + $0x558] sm:$0xff]
        %v1829 = vld [vmem:[%s1484 + $0x560] sm:$0xff]
        %v1830 = vld [vmem:[%s1484 + $0x568] sm:$0xff]
        %v1831 = vld [vmem:[%s1484 + $0x570] sm:$0xff]
        %v1832 = vld [vmem:[%s1484 + $0x578] sm:$0xff]
        %v1833 = vld [vmem:[%s1484 + $0x580] sm:$0xff]
        %v1834 = vld [vmem:[%s1484 + $0x588] sm:$0xff]
        %v1835 = vld [vmem:[%s1484 + $0x590] sm:$0xff]
        %v1836 = vld [vmem:[%s1484 + $0x598] sm:$0xff]
        %v1837 = vld [vmem:[%s1484 + $0x5a0] sm:$0xff]
        %v1838 = vld [vmem:[%s1484 + $0x5a8] sm:$0xff]
        %v1839 = vld [vmem:[%s1484 + $0x5b0] sm:$0xff]
        %v1840 = vld [vmem:[%s1484 + $0x5b8] sm:$0xff]
        %v1841 = vld [vmem:[%s1484 + $0x5c0] sm:$0xff]
        %v1842 = vld [vmem:[%s1484 + $0x5c8] sm:$0xff]
        %v1843 = vld [vmem:[%s1484 + $0x5d0] sm:$0xff]
        %v1844 = vld [vmem:[%s1484 + $0x5d8] sm:$0xff]
        %v1845 = vld [vmem:[%s1484 + $0x5e0] sm:$0xff]
        %v1846 = vld [vmem:[%s1484 + $0x5e8] sm:$0xff]
        %v1847 = vld [vmem:[%s1484 + $0x5f0] sm:$0xff]
        %v1848 = vld [vmem:[%s1484 + $0x5f8] sm:$0xff]
        %v1849 = vld [vmem:[%s1484 + $0x600] sm:$0xff]
        %v1850 = vld [vmem:[%s1484 + $0x608] sm:$0xff]
        %v1851 = vld [vmem:[%s1484 + $0x610] sm:$0xff]
        %v1852 = vld [vmem:[%s1484 + $0x618] sm:$0xff]
        %v1853 = vld [vmem:[%s1484 + $0x620] sm:$0xff]
        %v1854 = vld [vmem:[%s1484 + $0x628] sm:$0xff]
        %v1855 = vld [vmem:[%s1484 + $0x630] sm:$0xff]
        %v1856 = vld [vmem:[%s1484 + $0x638] sm:$0xff]
        %v1857 = vld [vmem:[%s1484 + $0x640] sm:$0xff]
        %v1858 = vld [vmem:[%s1484 + $0x648] sm:$0xff]
        %v1859 = vld [vmem:[%s1484 + $0x650] sm:$0xff]
        %v1860 = vld [vmem:[%s1484 + $0x658] sm:$0xff]
        %v1861 = vld [vmem:[%s1484 + $0x660] sm:$0xff]
        %v1862 = vld [vmem:[%s1484 + $0x668] sm:$0xff]
        %v1863 = vld [vmem:[%s1484 + $0x670] sm:$0xff]
        %v1864 = vld [vmem:[%s1484 + $0x678] sm:$0xff]
        %v1865 = vld [vmem:[%s1484 + $0x680] sm:$0xff]
        %v1866 = vld [vmem:[%s1484 + $0x688] sm:$0xff]
        %v1867 = vld [vmem:[%s1484 + $0x690] sm:$0xff]
        %v1868 = vld [vmem:[%s1484 + $0x698] sm:$0xff]
        %v1869 = vld [vmem:[%s1484 + $0x6a0] sm:$0xff]
        %v1870 = vld [vmem:[%s1484 + $0x6a8] sm:$0xff]
        %v1871 = vld [vmem:[%s1484 + $0x6b0] sm:$0xff]
        %v1872 = vld [vmem:[%s1484 + $0x6b8] sm:$0xff]
        %v1873 = vld [vmem:[%s1484 + $0x6c0] sm:$0xff]
        %v1874 = vld [vmem:[%s1484 + $0x6c8] sm:$0xff]
        %v1875 = vld [vmem:[%s1484 + $0x6d0] sm:$0xff]
        %v1876 = vld [vmem:[%s1484 + $0x6d8] sm:$0xff]
        %v1877 = vld [vmem:[%s1484 + $0x6e0] sm:$0xff]
        %v1878 = vld [vmem:[%s1484 + $0x6e8] sm:$0xff]
        %v1879 = vld [vmem:[%s1484 + $0x6f0] sm:$0xff]
        %v1880 = vld [vmem:[%s1484 + $0x6f8] sm:$0xff]
        %1881 = vmatprep.subr.mxu0 %v1658
        %1882 = vmatpush1.msra.mxu0 %v1657
        %1883 = vmatprep.subr.mxu0 %v1660
        %1884 = vmatpush1.msra.mxu0 %v1659
        %1885 = vmatprep.subr.mxu0 %v1662
        %1886 = vmatpush1.msra.mxu0 %v1661
        %1887 = vmatprep.subr.mxu0 %v1664
        %1888 = vmatpush1.msra.mxu0 %v1663
        %1889 = vmatprep.subr.mxu0 %v1666
        %1890 = vmatpush1.msra.mxu0 %v1665
        %1891 = vmatprep.subr.mxu0 %v1668
        %1892 = vmatpush1.msra.mxu0 %v1667
        %1893 = vmatprep.subr.mxu0 %v1670
        %1894 = vmatpush1.msra.mxu0 %v1669
        %1895 = vmatprep.subr.mxu0 %v1672
        %1896 = vmatpush1.msra.mxu0 %v1671
        %1897 = vmatprep.subr.mxu0 %v1674
        %1898 = vmatpush1.msra.mxu0 %v1673
        %1899 = vmatprep.subr.mxu0 %v1676
        %1900 = vmatpush1.msra.mxu0 %v1675
        %1901 = vmatprep.subr.mxu0 %v1678
        %1902 = vmatpush1.msra.mxu0 %v1677
        %1903 = vmatprep.subr.mxu0 %v1680
        %1904 = vmatpush1.msra.mxu0 %v1679
        %1905 = vmatprep.subr.mxu0 %v1682
        %1906 = vmatpush1.msra.mxu0 %v1681
        %1907 = vmatprep.subr.mxu0 %v1684
        %1908 = vmatpush1.msra.mxu0 %v1683
        %1909 = vmatprep.subr.mxu0 %v1686
        %1910 = vmatpush1.msra.mxu0 %v1685
        %1911 = vmatprep.subr.mxu0 %v1688
        %1912 = vmatpush1.msra.mxu0 %v1687
        %1913 = vmatprep.subr.mxu0 %v1690
        %1914 = vmatpush1.msra.mxu0 %v1689
        %1915 = vmatprep.subr.mxu0 %v1692
        %1916 = vmatpush1.msra.mxu0 %v1691
        %1917 = vmatprep.subr.mxu0 %v1694
        %1918 = vmatpush1.msra.mxu0 %v1693
        %1919 = vmatprep.subr.mxu0 %v1696
        %1920 = vmatpush1.msra.mxu0 %v1695
        %1921 = vmatprep.subr.mxu0 %v1698
        %1922 = vmatpush1.msra.mxu0 %v1697
        %1923 = vmatprep.subr.mxu0 %v1700
        %1924 = vmatpush1.msra.mxu0 %v1699
        %1925 = vmatprep.subr.mxu0 %v1702
        %1926 = vmatpush1.msra.mxu0 %v1701
        %1927 = vmatprep.subr.mxu0 %v1704
        %1928 = vmatpush1.msra.mxu0 %v1703
        %1929 = vmatprep.subr.mxu0 %v1706
        %1930 = vmatpush1.msra.mxu0 %v1705
        %1931 = vmatprep.subr.mxu0 %v1708
        %1932 = vmatpush1.msra.mxu0 %v1707
        %1933 = vmatprep.subr.mxu0 %v1710
        %1934 = vmatpush1.msra.mxu0 %v1709
        %1935 = vmatprep.subr.mxu0 %v1712
        %1936 = vmatpush1.msra.mxu0 %v1711
        %1937 = vmatprep.subr.mxu0 %v1714
        %1938 = vmatpush1.msra.mxu0 %v1713
        %1939 = vmatprep.subr.mxu0 %v1716
        %1940 = vmatpush1.msra.mxu0 %v1715
        %1941 = vmatprep.subr.mxu0 %v1718
        %1942 = vmatpush1.msra.mxu0 %v1717
        %1943 = vmatprep.subr.mxu0 %v1720
        %1944 = vmatpush1.msra.mxu0 %v1719
        %1945 = vmatprep.mubr.f32.mxu0 %v1577
        %1946 = vmatmul.mubr.f32.gmra.mrb[0].mxu0 %v1576
        %v1947 = vpop.f32.mrb[0].mxu0
        %v1948 = vadd.f32 0.0, %v1947
        %v1949 = vpop.f32.mrb[0].mxu0
        %v1950 = vadd.f32 0.0, %v1949
        %1951 = vmatprep.mubr.f32.mxu0 %v1584
        %1952 = vmatmul.mubr.f32.gmra.mrb[0].mxu0 %v1583
        %v1953 = vpop.f32.mrb[0].mxu0
        %v1954 = vadd.f32 0.0, %v1953
        %v1955 = vpop.f32.mrb[0].mxu0
        %v1956 = vadd.f32 0.0, %v1955
        %1957 = vmatprep.mubr.f32.mxu0 %v1591
        %1958 = vmatmul.mubr.f32.gmra.mrb[0].mxu0 %v1590
        %v1959 = vpop.f32.mrb[0].mxu0
        %v1960 = vadd.f32 0.0, %v1959
        %v1961 = vpop.f32.mrb[0].mxu0
        %v1962 = vadd.f32 0.0, %v1961
        %1963 = vmatprep.mubr.f32.mxu0 %v1598
        %1964 = vmatmul.mubr.f32.gmra.mrb[0].mxu0 %v1597
        %v1965 = vpop.f32.mrb[0].mxu0
        %v1966 = vadd.f32 0.0, %v1965
        %v1967 = vpop.f32.mrb[0].mxu0
        %v1968 = vadd.f32 0.0, %v1967
        %1969 = vmatprep.mubr.f32.mxu0 %v1605
        %1970 = vmatmul.mubr.f32.gmra.mrb[0].mxu0 %v1604
        %v1971 = vpop.f32.mrb[0].mxu0
        %v1972 = vadd.f32 0.0, %v1971
        %v1973 = vpop.f32.mrb[0].mxu0
        %v1974 = vadd.f32 0.0, %v1973
        %1975 = vmatprep.mubr.f32.mxu0 %v1612
        %1976 = vmatmul.mubr.f32.gmra.mrb[0].mxu0 %v1611
        %v1977 = vpop.f32.mrb[0].mxu0
        %v1978 = vadd.f32 0.0, %v1977
        %v1979 = vpop.f32.mrb[0].mxu0
        %v1980 = vadd.f32 0.0, %v1979
        %1981 = vmatprep.mubr.f32.mxu0 %v1619
        %1982 = vmatmul.mubr.f32.gmra.mrb[0].mxu0 %v1618
        %v1983 = vpop.f32.mrb[0].mxu0
        %v1984 = vadd.f32 0.0, %v1983
        %v1985 = vpop.f32.mrb[0].mxu0
        %v1986 = vadd.f32 0.0, %v1985
        %1987 = vmatprep.mubr.f32.mxu0 %v1626
        %1988 = vmatmul.mubr.f32.gmra.mrb[0].mxu0 %v1625
        %v1989 = vpop.f32.mrb[0].mxu0
        %v1990 = vadd.f32 0.0, %v1989
        %v1991 = vpop.f32.mrb[0].mxu0
        %v1992 = vadd.f32 0.0, %v1991
        %1993 = vmatprep.mubr.f32.mxu0 %v1633
        %1994 = vmatmul.mubr.f32.gmra.mrb[0].mxu0 %v1632
        %v1995 = vpop.f32.mrb[0].mxu0
        %v1996 = vadd.f32 0.0, %v1995
        %v1997 = vpop.f32.mrb[0].mxu0
        %v1998 = vadd.f32 0.0, %v1997
        %1999 = vdwg.mxu0
        %2000 = vmatprep.subr.mxu0 %v1722
        %2001 = vmatpush1.msra.mxu0 %v1721
        %2002 = vmatprep.subr.mxu0 %v1724
        %2003 = vmatpush1.msra.mxu0 %v1723
        %2004 = vmatprep.subr.mxu0 %v1726
        %2005 = vmatpush1.msra.mxu0 %v1725
        %2006 = vmatprep.subr.mxu0 %v1728
        %2007 = vmatpush1.msra.mxu0 %v1727
        %2008 = vmatprep.subr.mxu0 %v1730
        %2009 = vmatpush1.msra.mxu0 %v1729
        %2010 = vmatprep.subr.mxu0 %v1732
        %2011 = vmatpush1.msra.mxu0 %v1731
        %2012 = vmatprep.subr.mxu0 %v1734
        %2013 = vmatpush1.msra.mxu0 %v1733
        %2014 = vmatprep.subr.mxu0 %v1736
        %2015 = vmatpush1.msra.mxu0 %v1735
        %2016 = vmatprep.subr.mxu0 %v1738
        %2017 = vmatpush1.msra.mxu0 %v1737
        %2018 = vmatprep.subr.mxu0 %v1740
        %2019 = vmatpush1.msra.mxu0 %v1739
        %2020 = vmatprep.subr.mxu0 %v1742
        %2021 = vmatpush1.msra.mxu0 %v1741
        %2022 = vmatprep.subr.mxu0 %v1744
        %2023 = vmatpush1.msra.mxu0 %v1743
        %2024 = vmatprep.subr.mxu0 %v1746
        %2025 = vmatpush1.msra.mxu0 %v1745
        %2026 = vmatprep.subr.mxu0 %v1748
        %2027 = vmatpush1.msra.mxu0 %v1747
        %2028 = vmatprep.subr.mxu0 %v1750
        %2029 = vmatpush1.msra.mxu0 %v1749
        %2030 = vmatprep.subr.mxu0 %v1752
        %2031 = vmatpush1.msra.mxu0 %v1751
        %2032 = vmatprep.subr.mxu0 %v1754
        %2033 = vmatpush1.msra.mxu0 %v1753
        %2034 = vmatprep.subr.mxu0 %v1756
        %2035 = vmatpush1.msra.mxu0 %v1755
        %2036 = vmatprep.subr.mxu0 %v1758
        %2037 = vmatpush1.msra.mxu0 %v1757
        %2038 = vmatprep.subr.mxu0 %v1760
        %2039 = vmatpush1.msra.mxu0 %v1759
        %2040 = vmatprep.subr.mxu0 %v1762
        %2041 = vmatpush1.msra.mxu0 %v1761
        %2042 = vmatprep.subr.mxu0 %v1764
        %2043 = vmatpush1.msra.mxu0 %v1763
        %2044 = vmatprep.subr.mxu0 %v1766
        %2045 = vmatpush1.msra.mxu0 %v1765
        %2046 = vmatprep.subr.mxu0 %v1768
        %2047 = vmatpush1.msra.mxu0 %v1767
        %2048 = vmatprep.subr.mxu0 %v1770
        %2049 = vmatpush1.msra.mxu0 %v1769
        %2050 = vmatprep.subr.mxu0 %v1772
        %2051 = vmatpush1.msra.mxu0 %v1771
        %2052 = vmatprep.subr.mxu0 %v1774
        %2053 = vmatpush1.msra.mxu0 %v1773
        %2054 = vmatprep.subr.mxu0 %v1776
        %2055 = vmatpush1.msra.mxu0 %v1775
        %2056 = vmatprep.subr.mxu0 %v1778
        %2057 = vmatpush1.msra.mxu0 %v1777
        %2058 = vmatprep.subr.mxu0 %v1780
        %2059 = vmatpush1.msra.mxu0 %v1779
        %2060 = vmatprep.subr.mxu0 %v1782
        %2061 = vmatpush1.msra.mxu0 %v1781
        %2062 = vmatprep.subr.mxu0 %v1784
        %2063 = vmatpush1.msra.mxu0 %v1783
        %2064 = vmatprep.mubr.f32.mxu0 %v1579
        %2065 = vmatmul.mubr.f32.gmra.mrb[0].mxu0 %v1578
        %v2066 = vpop.f32.mrb[0].mxu0
        %v2067 = vadd.f32 %v1948, %v2066
        %v2068 = vpop.f32.mrb[0].mxu0
        %v2069 = vadd.f32 %v1950, %v2068
        %2070 = vmatprep.mubr.f32.mxu0 %v1586
        %2071 = vmatmul.mubr.f32.gmra.mrb[0].mxu0 %v1585
        %v2072 = vpop.f32.mrb[0].mxu0
        %v2073 = vadd.f32 %v1954, %v2072
        %v2074 = vpop.f32.mrb[0].mxu0
        %v2075 = vadd.f32 %v1956, %v2074
        %2076 = vmatprep.mubr.f32.mxu0 %v1593
        %2077 = vmatmul.mubr.f32.gmra.mrb[0].mxu0 %v1592
        %v2078 = vpop.f32.mrb[0].mxu0
        %v2079 = vadd.f32 %v1960, %v2078
        %v2080 = vpop.f32.mrb[0].mxu0
        %v2081 = vadd.f32 %v1962, %v2080
        %2082 = vmatprep.mubr.f32.mxu0 %v1600
        %2083 = vmatmul.mubr.f32.gmra.mrb[0].mxu0 %v1599
        %v2084 = vpop.f32.mrb[0].mxu0
        %v2085 = vadd.f32 %v1966, %v2084
        %v2086 = vpop.f32.mrb[0].mxu0
        %v2087 = vadd.f32 %v1968, %v2086
        %2088 = vmatprep.mubr.f32.mxu0 %v1607
        %2089 = vmatmul.mubr.f32.gmra.mrb[0].mxu0 %v1606
        %v2090 = vpop.f32.mrb[0].mxu0
        %v2091 = vadd.f32 %v1972, %v2090
        %v2092 = vpop.f32.mrb[0].mxu0
        %v2093 = vadd.f32 %v1974, %v2092
        %2094 = vmatprep.mubr.f32.mxu0 %v1614
        %2095 = vmatmul.mubr.f32.gmra.mrb[0].mxu0 %v1613
        %v2096 = vpop.f32.mrb[0].mxu0
        %v2097 = vadd.f32 %v1978, %v2096
        %v2098 = vpop.f32.mrb[0].mxu0
        %v2099 = vadd.f32 %v1980, %v2098
        %2100 = vmatprep.mubr.f32.mxu0 %v1621
        %2101 = vmatmul.mubr.f32.gmra.mrb[0].mxu0 %v1620
        %v2102 = vpop.f32.mrb[0].mxu0
        %v2103 = vadd.f32 %v1984, %v2102
        %v2104 = vpop.f32.mrb[0].mxu0
        %v2105 = vadd.f32 %v1986, %v2104
        %2106 = vmatprep.mubr.f32.mxu0 %v1628
        %2107 = vmatmul.mubr.f32.gmra.mrb[0].mxu0 %v1627
        %v2108 = vpop.f32.mrb[0].mxu0
        %v2109 = vadd.f32 %v1990, %v2108
        %v2110 = vpop.f32.mrb[0].mxu0
        %v2111 = vadd.f32 %v1992, %v2110
        %2112 = vmatprep.mubr.f32.mxu0 %v1635
        %2113 = vmatmul.mubr.f32.gmra.mrb[0].mxu0 %v1634
        %v2114 = vpop.f32.mrb[0].mxu0
        %v2115 = vadd.f32 %v1996, %v2114
        %v2116 = vpop.f32.mrb[0].mxu0
        %v2117 = vadd.f32 %v1998, %v2116
        %2118 = vdwg.mxu0
        %2119 = vmatprep.subr.mxu0 %v1786
        %2120 = vmatpush1.msra.mxu0 %v1785
        %2121 = vmatprep.subr.mxu0 %v1788
        %2122 = vmatpush1.msra.mxu0 %v1787
        %2123 = vmatprep.subr.mxu0 %v1790
        %2124 = vmatpush1.msra.mxu0 %v1789
        %2125 = vmatprep.subr.mxu0 %v1792
        %2126 = vmatpush1.msra.mxu0 %v1791
        %2127 = vmatprep.subr.mxu0 %v1794
        %2128 = vmatpush1.msra.mxu0 %v1793
        %2129 = vmatprep.subr.mxu0 %v1796
        %2130 = vmatpush1.msra.mxu0 %v1795
        %2131 = vmatprep.subr.mxu0 %v1798
        %2132 = vmatpush1.msra.mxu0 %v1797
        %2133 = vmatprep.subr.mxu0 %v1800
        %2134 = vmatpush1.msra.mxu0 %v1799
        %2135 = vmatprep.subr.mxu0 %v1802
        %2136 = vmatpush1.msra.mxu0 %v1801
        %2137 = vmatprep.subr.mxu0 %v1804
        %2138 = vmatpush1.msra.mxu0 %v1803
        %2139 = vmatprep.subr.mxu0 %v1806
        %2140 = vmatpush1.msra.mxu0 %v1805
        %2141 = vmatprep.subr.mxu0 %v1808
        %2142 = vmatpush1.msra.mxu0 %v1807
        %2143 = vmatprep.subr.mxu0 %v1810
        %2144 = vmatpush1.msra.mxu0 %v1809
        %2145 = vmatprep.subr.mxu0 %v1812
        %2146 = vmatpush1.msra.mxu0 %v1811
        %2147 = vmatprep.subr.mxu0 %v1814
        %2148 = vmatpush1.msra.mxu0 %v1813
        %2149 = vmatprep.subr.mxu0 %v1816
        %2150 = vmatpush1.msra.mxu0 %v1815
        %2151 = vmatprep.subr.mxu0 %v1818
        %2152 = vmatpush1.msra.mxu0 %v1817
        %2153 = vmatprep.subr.mxu0 %v1820
        %2154 = vmatpush1.msra.mxu0 %v1819
        %2155 = vmatprep.subr.mxu0 %v1822
        %2156 = vmatpush1.msra.mxu0 %v1821
        %2157 = vmatprep.subr.mxu0 %v1824
        %2158 = vmatpush1.msra.mxu0 %v1823
        %2159 = vmatprep.subr.mxu0 %v1826
        %2160 = vmatpush1.msra.mxu0 %v1825
        %2161 = vmatprep.subr.mxu0 %v1828
        %2162 = vmatpush1.msra.mxu0 %v1827
        %2163 = vmatprep.subr.mxu0 %v1830
        %2164 = vmatpush1.msra.mxu0 %v1829
        %2165 = vmatprep.subr.mxu0 %v1832
        %2166 = vmatpush1.msra.mxu0 %v1831
        %2167 = vmatprep.subr.mxu0 %v1834
        %2168 = vmatpush1.msra.mxu0 %v1833
        %2169 = vmatprep.subr.mxu0 %v1836
        %2170 = vmatpush1.msra.mxu0 %v1835
        %2171 = vmatprep.subr.mxu0 %v1838
        %2172 = vmatpush1.msra.mxu0 %v1837
        %2173 = vmatprep.subr.mxu0 %v1840
        %2174 = vmatpush1.msra.mxu0 %v1839
        %2175 = vmatprep.subr.mxu0 %v1842
        %2176 = vmatpush1.msra.mxu0 %v1841
        %2177 = vmatprep.subr.mxu0 %v1844
        %2178 = vmatpush1.msra.mxu0 %v1843
        %2179 = vmatprep.subr.mxu0 %v1846
        %2180 = vmatpush1.msra.mxu0 %v1845
        %2181 = vmatprep.subr.mxu0 %v1848
        %2182 = vmatpush1.msra.mxu0 %v1847
        %2183 = vmatprep.mubr.f32.mxu0 %v1581
        %2184 = vmatmul.mubr.f32.gmra.mrb[0].mxu0 %v1580
        %v2185 = vpop.f32.mrb[0].mxu0
        %v2186 = vadd.f32 %v2067, %v2185
        %v2187 = vpop.f32.mrb[0].mxu0
        %v2188 = vadd.f32 %v2069, %v2187
        %2189 = vmatprep.mubr.f32.mxu0 %v1588
        %2190 = vmatmul.mubr.f32.gmra.mrb[0].mxu0 %v1587
        %v2191 = vpop.f32.mrb[0].mxu0
        %v2192 = vadd.f32 %v2073, %v2191
        %v2193 = vpop.f32.mrb[0].mxu0
        %v2194 = vadd.f32 %v2075, %v2193
        %2195 = vmatprep.mubr.f32.mxu0 %v1595
        %2196 = vmatmul.mubr.f32.gmra.mrb[0].mxu0 %v1594
        %v2197 = vpop.f32.mrb[0].mxu0
        %v2198 = vadd.f32 %v2079, %v2197
        %v2199 = vpop.f32.mrb[0].mxu0
        %v2200 = vadd.f32 %v2081, %v2199
        %2201 = vmatprep.mubr.f32.mxu0 %v1602
        %2202 = vmatmul.mubr.f32.gmra.mrb[0].mxu0 %v1601
        %v2203 = vpop.f32.mrb[0].mxu0
        %v2204 = vadd.f32 %v2085, %v2203
        %v2205 = vpop.f32.mrb[0].mxu0
        %v2206 = vadd.f32 %v2087, %v2205
        %2207 = vmatprep.mubr.f32.mxu0 %v1609
        %2208 = vmatmul.mubr.f32.gmra.mrb[0].mxu0 %v1608
        %v2209 = vpop.f32.mrb[0].mxu0
        %v2210 = vadd.f32 %v2091, %v2209
        %v2211 = vpop.f32.mrb[0].mxu0
        %v2212 = vadd.f32 %v2093, %v2211
        %2213 = vmatprep.mubr.f32.mxu0 %v1616
        %2214 = vmatmul.mubr.f32.gmra.mrb[0].mxu0 %v1615
        %v2215 = vpop.f32.mrb[0].mxu0
        %v2216 = vadd.f32 %v2097, %v2215
        %v2217 = vpop.f32.mrb[0].mxu0
        %v2218 = vadd.f32 %v2099, %v2217
        %2219 = vmatprep.mubr.f32.mxu0 %v1623
        %2220 = vmatmul.mubr.f32.gmra.mrb[0].mxu0 %v1622
        %v2221 = vpop.f32.mrb[0].mxu0
        %v2222 = vadd.f32 %v2103, %v2221
        %v2223 = vpop.f32.mrb[0].mxu0
        %v2224 = vadd.f32 %v2105, %v2223
        %2225 = vmatprep.mubr.f32.mxu0 %v1630
        %2226 = vmatmul.mubr.f32.gmra.mrb[0].mxu0 %v1629
        %v2227 = vpop.f32.mrb[0].mxu0
        %v2228 = vadd.f32 %v2109, %v2227
        %v2229 = vpop.f32.mrb[0].mxu0
        %v2230 = vadd.f32 %v2111, %v2229
        %2231 = vmatprep.mubr.f32.mxu0 %v1637
        %2232 = vmatmul.mubr.f32.gmra.mrb[0].mxu0 %v1636
        %v2233 = vpop.f32.mrb[0].mxu0
        %v2234 = vadd.f32 %v2115, %v2233
        %v2235 = vpop.f32.mrb[0].mxu0
        %v2236 = vadd.f32 %v2117, %v2235
        %2237 = vdwg.mxu0
        %2238 = vmatprep.subr.mxu0 %v1850
        %2239 = vmatpush1.msra.mxu0 %v1849
        %2240 = vmatprep.subr.mxu0 %v1852
        %2241 = vmatpush1.msra.mxu0 %v1851
        %2242 = vmatprep.subr.mxu0 %v1854
        %2243 = vmatpush1.msra.mxu0 %v1853
        %2244 = vmatprep.subr.mxu0 %v1856
        %2245 = vmatpush1.msra.mxu0 %v1855
        %2246 = vmatprep.subr.mxu0 %v1858
        %2247 = vmatpush1.msra.mxu0 %v1857
        %2248 = vmatprep.subr.mxu0 %v1860
        %2249 = vmatpush1.msra.mxu0 %v1859
        %2250 = vmatprep.subr.mxu0 %v1862
        %2251 = vmatpush1.msra.mxu0 %v1861
        %2252 = vmatprep.subr.mxu0 %v1864
        %2253 = vmatpush1.msra.mxu0 %v1863
        %2254 = vmatprep.subr.mxu0 %v1866
        %2255 = vmatpush1.msra.mxu0 %v1865
        %2256 = vmatprep.subr.mxu0 %v1868
        %2257 = vmatpush1.msra.mxu0 %v1867
        %2258 = vmatprep.subr.mxu0 %v1870
        %2259 = vmatpush1.msra.mxu0 %v1869
        %2260 = vmatprep.subr.mxu0 %v1872
        %2261 = vmatpush1.msra.mxu0 %v1871
        %2262 = vmatprep.subr.mxu0 %v1874
        %2263 = vmatpush1.msra.mxu0 %v1873
        %2264 = vmatprep.subr.mxu0 %v1876
        %2265 = vmatpush1.msra.mxu0 %v1875
        %2266 = vmatprep.subr.mxu0 %v1878
        %2267 = vmatpush1.msra.mxu0 %v1877
        %2268 = vmatprep.subr.mxu0 %v1880
        %2269 = vmatpush1.msra.mxu0 %v1879
        %2270 = vmatprep.subr.mxu0 0.0
        %2271 = vmatpush1.msra.mxu0 0.0
        %2272 = vmatprep.subr.mxu0 0.0
        %2273 = vmatpush1.msra.mxu0 0.0
        %2274 = vmatprep.subr.mxu0 0.0
        %2275 = vmatpush1.msra.mxu0 0.0
        %2276 = vmatprep.subr.mxu0 0.0
        %2277 = vmatpush1.msra.mxu0 0.0
        %2278 = vmatprep.subr.mxu0 0.0
        %2279 = vmatpush1.msra.mxu0 0.0
        %2280 = vmatprep.subr.mxu0 0.0
        %2281 = vmatpush1.msra.mxu0 0.0
        %2282 = vmatprep.subr.mxu0 0.0
        %2283 = vmatpush1.msra.mxu0 0.0
        %2284 = vmatprep.subr.mxu0 0.0
        %2285 = vmatpush1.msra.mxu0 0.0
        %2286 = vmatprep.subr.mxu0 0.0
        %2287 = vmatpush1.msra.mxu0 0.0
        %2288 = vmatprep.subr.mxu0 0.0
        %2289 = vmatpush1.msra.mxu0 0.0
        %2290 = vmatprep.subr.mxu0 0.0
        %2291 = vmatpush1.msra.mxu0 0.0
        %2292 = vmatprep.subr.mxu0 0.0
        %2293 = vmatpush1.msra.mxu0 0.0
        %2294 = vmatprep.subr.mxu0 0.0
        %2295 = vmatpush1.msra.mxu0 0.0
        %2296 = vmatprep.subr.mxu0 0.0
        %2297 = vmatpush1.msra.mxu0 0.0
        %2298 = vmatprep.subr.mxu0 0.0
        %2299 = vmatpush1.msra.mxu0 0.0
        %2300 = vmatprep.subr.mxu0 0.0
        %2301 = vmatpush1.msra.mxu0 0.0
        %2302 = vmatprep.mubr.f32.mxu0 0.0
        %2303 = vmatmul.mubr.f32.gmra.mrb[0].mxu0 %v1582
        %v2304 = vpop.f32.mrb[0].mxu0
        %v2305 = vadd.f32 %v2186, %v2304
        %v2306 = vpop.f32.mrb[0].mxu0
        %v2307 = vadd.f32 %v2188, %v2306
        %2308 = vmatprep.mubr.f32.mxu0 0.0
        %2309 = vmatmul.mubr.f32.gmra.mrb[0].mxu0 %v1589
        %v2310 = vpop.f32.mrb[0].mxu0
        %v2311 = vadd.f32 %v2192, %v2310
        %v2312 = vpop.f32.mrb[0].mxu0
        %v2313 = vadd.f32 %v2194, %v2312
        %2314 = vmatprep.mubr.f32.mxu0 0.0
        %2315 = vmatmul.mubr.f32.gmra.mrb[0].mxu0 %v1596
        %v2316 = vpop.f32.mrb[0].mxu0
        %v2317 = vadd.f32 %v2198, %v2316
        %v2318 = vpop.f32.mrb[0].mxu0
        %v2319 = vadd.f32 %v2200, %v2318
        %2320 = vmatprep.mubr.f32.mxu0 0.0
        %2321 = vmatmul.mubr.f32.gmra.mrb[0].mxu0 %v1603
        %v2322 = vpop.f32.mrb[0].mxu0
        %v2323 = vadd.f32 %v2204, %v2322
        %v2324 = vpop.f32.mrb[0].mxu0
        %v2325 = vadd.f32 %v2206, %v2324
        %2326 = vmatprep.mubr.f32.mxu0 0.0
        %2327 = vmatmul.mubr.f32.gmra.mrb[0].mxu0 %v1610
        %v2328 = vpop.f32.mrb[0].mxu0
        %v2329 = vadd.f32 %v2210, %v2328
        %v2330 = vpop.f32.mrb[0].mxu0
        %v2331 = vadd.f32 %v2212, %v2330
        %2332 = vmatprep.mubr.f32.mxu0 0.0
        %2333 = vmatmul.mubr.f32.gmra.mrb[0].mxu0 %v1617
        %v2334 = vpop.f32.mrb[0].mxu0
        %v2335 = vadd.f32 %v2216, %v2334
        %v2336 = vpop.f32.mrb[0].mxu0
        %v2337 = vadd.f32 %v2218, %v2336
        %2338 = vmatprep.mubr.f32.mxu0 0.0
        %2339 = vmatmul.mubr.f32.gmra.mrb[0].mxu0 %v1624
        %v2340 = vpop.f32.mrb[0].mxu0
        %v2341 = vadd.f32 %v2222, %v2340
        %v2342 = vpop.f32.mrb[0].mxu0
        %v2343 = vadd.f32 %v2224, %v2342
        %2344 = vmatprep.mubr.f32.mxu0 0.0
        %2345 = vmatmul.mubr.f32.gmra.mrb[0].mxu0 %v1631
        %v2346 = vpop.f32.mrb[0].mxu0
        %v2347 = vadd.f32 %v2228, %v2346
        %v2348 = vpop.f32.mrb[0].mxu0
        %v2349 = vadd.f32 %v2230, %v2348
        %2350 = vmatprep.mubr.f32.mxu0 0.0
        %2351 = vmatmul.mubr.f32.gmra.mrb[0].mxu0 %v1638
        %v2352 = vpop.f32.mrb[0].mxu0
        %v2353 = vadd.f32 %v2234, %v2352
        %v2354 = vpop.f32.mrb[0].mxu0
        %v2355 = vadd.f32 %v2236, %v2354
        %2356 = vdwg.mxu0
        %v2357 = vadd.f32 %v1639, %v2305
        %v2358 = vadd.f32 %v1640, %v2307
        %v2359 = vadd.f32 %v1641, %v2311
        %v2360 = vadd.f32 %v1642, %v2313
        %v2361 = vadd.f32 %v1643, %v2317
        %v2362 = vadd.f32 %v1644, %v2319
        %v2363 = vadd.f32 %v1645, %v2323
        %v2364 = vadd.f32 %v1646, %v2325
        %v2365 = vadd.f32 %v1647, %v2329
        %v2366 = vadd.f32 %v1648, %v2331
        %v2367 = vadd.f32 %v1649, %v2335
        %v2368 = vadd.f32 %v1650, %v2337
        %v2369 = vadd.f32 %v1651, %v2341
        %v2370 = vadd.f32 %v1652, %v2343
        %v2371 = vadd.f32 %v1653, %v2347
        %v2372 = vadd.f32 %v1654, %v2349
        %v2373 = vadd.f32 %v1655, %v2353
        %v2374 = vadd.f32 %v1656, %v2355
        %2375 = vst [vmem:[#allocation2] sm:$0xff] %v2357
        %vm2376 = vcmask 1014784
        %2377 = vst.msk [vmem:[#allocation2 + $0x8] sm:$0xff] %vm2376, %v2358
        %2378 = vst [vmem:[#allocation2 + $0x10] sm:$0xff] %v2359
        %2379 = vst.msk [vmem:[#allocation2 + $0x18] sm:$0xff] %vm2376, %v2360
        %2380 = vst [vmem:[#allocation2 + $0x20] sm:$0xff] %v2361
        %2381 = vst.msk [vmem:[#allocation2 + $0x28] sm:$0xff] %vm2376, %v2362
        %2382 = vst [vmem:[#allocation2 + $0x30] sm:$0xff] %v2363
        %2383 = vst.msk [vmem:[#allocation2 + $0x38] sm:$0xff] %vm2376, %v2364
        %2384 = vst [vmem:[#allocation2 + $0x40] sm:$0xff] %v2365
        %2385 = vst.msk [vmem:[#allocation2 + $0x48] sm:$0xff] %vm2376, %v2366
        %2386 = vst [vmem:[#allocation2 + $0x50] sm:$0xff] %v2367
        %2387 = vst.msk [vmem:[#allocation2 + $0x58] sm:$0xff] %vm2376, %v2368
        %2388 = vst [vmem:[#allocation2 + $0x60] sm:$0xff] %v2369
        %2389 = vst.msk [vmem:[#allocation2 + $0x68] sm:$0xff] %vm2376, %v2370
        %2390 = vst [vmem:[#allocation2 + $0x70] sm:$0xff] %v2371
        %2391 = vst.msk [vmem:[#allocation2 + $0x78] sm:$0xff] %vm2376, %v2372
        %2392 = vst [vmem:[#allocation2 + $0x80] sm:$0xff] %v2373
        %2393 = vst.msk [vmem:[#allocation2 + $0x88] sm:$0xff] %vm2376, %v2374
        %s2394 = scalar_lea.vmem [#allocation2], 144
        %v2395 = vld [vmem:[%s2394] sm:$0xff]
        %v2396 = vld [vmem:[%s2394 + $0x8] sm:$0xff]
        %v2397 = vld [vmem:[%s2394 + $0x10] sm:$0xff]
        %v2398 = vld [vmem:[%s2394 + $0x18] sm:$0xff]
        %v2399 = vld [vmem:[%s2394 + $0x20] sm:$0xff]
        %v2400 = vld [vmem:[%s2394 + $0x28] sm:$0xff]
        %v2401 = vld [vmem:[%s2394 + $0x30] sm:$0xff]
        %v2402 = vld [vmem:[%s2394 + $0x38] sm:$0xff]
        %v2403 = vld [vmem:[%s2394 + $0x40] sm:$0xff]
        %v2404 = vld [vmem:[%s2394 + $0x48] sm:$0xff]
        %v2405 = vld [vmem:[%s2394 + $0x50] sm:$0xff]
        %v2406 = vld [vmem:[%s2394 + $0x58] sm:$0xff]
        %v2407 = vld [vmem:[%s2394 + $0x60] sm:$0xff]
        %v2408 = vld [vmem:[%s2394 + $0x68] sm:$0xff]
        %v2409 = vld [vmem:[%s2394 + $0x70] sm:$0xff]
        %v2410 = vld [vmem:[%s2394 + $0x78] sm:$0xff]
        %v2411 = vld [vmem:[%s2394 + $0x80] sm:$0xff]
        %v2412 = vld [vmem:[%s2394 + $0x88] sm:$0xff]
        %s2413 = scalar_lea.vmem %s1484, 1792 [#allocation3]
        %v2414 = vld [vmem:[%s2413] sm:$0xff]
        %v2415 = vld [vmem:[%s2413 + $0x8] sm:$0xff]
        %v2416 = vld [vmem:[%s2413 + $0x10] sm:$0xff]
        %v2417 = vld [vmem:[%s2413 + $0x18] sm:$0xff]
        %v2418 = vld [vmem:[%s2413 + $0x20] sm:$0xff]
        %v2419 = vld [vmem:[%s2413 + $0x28] sm:$0xff]
        %v2420 = vld [vmem:[%s2413 + $0x30] sm:$0xff]
        %v2421 = vld [vmem:[%s2413 + $0x38] sm:$0xff]
        %v2422 = vld [vmem:[%s2413 + $0x40] sm:$0xff]
        %v2423 = vld [vmem:[%s2413 + $0x48] sm:$0xff]
        %v2424 = vld [vmem:[%s2413 + $0x50] sm:$0xff]
        %v2425 = vld [vmem:[%s2413 + $0x58] sm:$0xff]
        %v2426 = vld [vmem:[%s2413 + $0x60] sm:$0xff]
        %v2427 = vld [vmem:[%s2413 + $0x68] sm:$0xff]
        %v2428 = vld [vmem:[%s2413 + $0x70] sm:$0xff]
        %v2429 = vld [vmem:[%s2413 + $0x78] sm:$0xff]
        %v2430 = vld [vmem:[%s2413 + $0x80] sm:$0xff]
        %v2431 = vld [vmem:[%s2413 + $0x88] sm:$0xff]
        %v2432 = vld [vmem:[%s2413 + $0x90] sm:$0xff]
        %v2433 = vld [vmem:[%s2413 + $0x98] sm:$0xff]
        %v2434 = vld [vmem:[%s2413 + $0xa0] sm:$0xff]
        %v2435 = vld [vmem:[%s2413 + $0xa8] sm:$0xff]
        %v2436 = vld [vmem:[%s2413 + $0xb0] sm:$0xff]
        %v2437 = vld [vmem:[%s2413 + $0xb8] sm:$0xff]
        %v2438 = vld [vmem:[%s2413 + $0xc0] sm:$0xff]
        %v2439 = vld [vmem:[%s2413 + $0xc8] sm:$0xff]
        %v2440 = vld [vmem:[%s2413 + $0xd0] sm:$0xff]
        %v2441 = vld [vmem:[%s2413 + $0xd8] sm:$0xff]
        %v2442 = vld [vmem:[%s2413 + $0xe0] sm:$0xff]
        %v2443 = vld [vmem:[%s2413 + $0xe8] sm:$0xff]
        %v2444 = vld [vmem:[%s2413 + $0xf0] sm:$0xff]
        %v2445 = vld [vmem:[%s2413 + $0xf8] sm:$0xff]
        %v2446 = vld [vmem:[%s2413 + $0x100] sm:$0xff]
        %v2447 = vld [vmem:[%s2413 + $0x108] sm:$0xff]
        %v2448 = vld [vmem:[%s2413 + $0x110] sm:$0xff]
        %v2449 = vld [vmem:[%s2413 + $0x118] sm:$0xff]
        %v2450 = vld [vmem:[%s2413 + $0x120] sm:$0xff]
        %v2451 = vld [vmem:[%s2413 + $0x128] sm:$0xff]
        %v2452 = vld [vmem:[%s2413 + $0x130] sm:$0xff]
        %v2453 = vld [vmem:[%s2413 + $0x138] sm:$0xff]
        %v2454 = vld [vmem:[%s2413 + $0x140] sm:$0xff]
        %v2455 = vld [vmem:[%s2413 + $0x148] sm:$0xff]
        %v2456 = vld [vmem:[%s2413 + $0x150] sm:$0xff]
        %v2457 = vld [vmem:[%s2413 + $0x158] sm:$0xff]
        %v2458 = vld [vmem:[%s2413 + $0x160] sm:$0xff]
        %v2459 = vld [vmem:[%s2413 + $0x168] sm:$0xff]
        %v2460 = vld [vmem:[%s2413 + $0x170] sm:$0xff]
        %v2461 = vld [vmem:[%s2413 + $0x178] sm:$0xff]
        %v2462 = vld [vmem:[%s2413 + $0x180] sm:$0xff]
        %v2463 = vld [vmem:[%s2413 + $0x188] sm:$0xff]
        %v2464 = vld [vmem:[%s2413 + $0x190] sm:$0xff]
        %v2465 = vld [vmem:[%s2413 + $0x198] sm:$0xff]
        %v2466 = vld [vmem:[%s2413 + $0x1a0] sm:$0xff]
        %v2467 = vld [vmem:[%s2413 + $0x1a8] sm:$0xff]
        %v2468 = vld [vmem:[%s2413 + $0x1b0] sm:$0xff]
        %v2469 = vld [vmem:[%s2413 + $0x1b8] sm:$0xff]
        %v2470 = vld [vmem:[%s2413 + $0x1c0] sm:$0xff]
        %v2471 = vld [vmem:[%s2413 + $0x1c8] sm:$0xff]
        %v2472 = vld [vmem:[%s2413 + $0x1d0] sm:$0xff]
        %v2473 = vld [vmem:[%s2413 + $0x1d8] sm:$0xff]
        %v2474 = vld [vmem:[%s2413 + $0x1e0] sm:$0xff]
        %v2475 = vld [vmem:[%s2413 + $0x1e8] sm:$0xff]
        %v2476 = vld [vmem:[%s2413 + $0x1f0] sm:$0xff]
        %v2477 = vld [vmem:[%s2413 + $0x1f8] sm:$0xff]
        %v2478 = vld [vmem:[%s2413 + $0x200] sm:$0xff]
        %v2479 = vld [vmem:[%s2413 + $0x208] sm:$0xff]
        %v2480 = vld [vmem:[%s2413 + $0x210] sm:$0xff]
        %v2481 = vld [vmem:[%s2413 + $0x218] sm:$0xff]
        %v2482 = vld [vmem:[%s2413 + $0x220] sm:$0xff]
        %v2483 = vld [vmem:[%s2413 + $0x228] sm:$0xff]
        %v2484 = vld [vmem:[%s2413 + $0x230] sm:$0xff]
        %v2485 = vld [vmem:[%s2413 + $0x238] sm:$0xff]
        %v2486 = vld [vmem:[%s2413 + $0x240] sm:$0xff]
        %v2487 = vld [vmem:[%s2413 + $0x248] sm:$0xff]
        %v2488 = vld [vmem:[%s2413 + $0x250] sm:$0xff]
        %v2489 = vld [vmem:[%s2413 + $0x258] sm:$0xff]
        %v2490 = vld [vmem:[%s2413 + $0x260] sm:$0xff]
        %v2491 = vld [vmem:[%s2413 + $0x268] sm:$0xff]
        %v2492 = vld [vmem:[%s2413 + $0x270] sm:$0xff]
        %v2493 = vld [vmem:[%s2413 + $0x278] sm:$0xff]
        %v2494 = vld [vmem:[%s2413 + $0x280] sm:$0xff]
        %v2495 = vld [vmem:[%s2413 + $0x288] sm:$0xff]
        %v2496 = vld [vmem:[%s2413 + $0x290] sm:$0xff]
        %v2497 = vld [vmem:[%s2413 + $0x298] sm:$0xff]
        %v2498 = vld [vmem:[%s2413 + $0x2a0] sm:$0xff]
        %v2499 = vld [vmem:[%s2413 + $0x2a8] sm:$0xff]
        %v2500 = vld [vmem:[%s2413 + $0x2b0] sm:$0xff]
        %v2501 = vld [vmem:[%s2413 + $0x2b8] sm:$0xff]
        %v2502 = vld [vmem:[%s2413 + $0x2c0] sm:$0xff]
        %v2503 = vld [vmem:[%s2413 + $0x2c8] sm:$0xff]
        %v2504 = vld [vmem:[%s2413 + $0x2d0] sm:$0xff]
        %v2505 = vld [vmem:[%s2413 + $0x2d8] sm:$0xff]
        %v2506 = vld [vmem:[%s2413 + $0x2e0] sm:$0xff]
        %v2507 = vld [vmem:[%s2413 + $0x2e8] sm:$0xff]
        %v2508 = vld [vmem:[%s2413 + $0x2f0] sm:$0xff]
        %v2509 = vld [vmem:[%s2413 + $0x2f8] sm:$0xff]
        %v2510 = vld [vmem:[%s2413 + $0x300] sm:$0xff]
        %v2511 = vld [vmem:[%s2413 + $0x308] sm:$0xff]
        %v2512 = vld [vmem:[%s2413 + $0x310] sm:$0xff]
        %v2513 = vld [vmem:[%s2413 + $0x318] sm:$0xff]
        %v2514 = vld [vmem:[%s2413 + $0x320] sm:$0xff]
        %v2515 = vld [vmem:[%s2413 + $0x328] sm:$0xff]
        %v2516 = vld [vmem:[%s2413 + $0x330] sm:$0xff]
        %v2517 = vld [vmem:[%s2413 + $0x338] sm:$0xff]
        %v2518 = vld [vmem:[%s2413 + $0x340] sm:$0xff]
        %v2519 = vld [vmem:[%s2413 + $0x348] sm:$0xff]
        %v2520 = vld [vmem:[%s2413 + $0x350] sm:$0xff]
        %v2521 = vld [vmem:[%s2413 + $0x358] sm:$0xff]
        %v2522 = vld [vmem:[%s2413 + $0x360] sm:$0xff]
        %v2523 = vld [vmem:[%s2413 + $0x368] sm:$0xff]
        %v2524 = vld [vmem:[%s2413 + $0x370] sm:$0xff]
        %v2525 = vld [vmem:[%s2413 + $0x378] sm:$0xff]
        %v2526 = vld [vmem:[%s2413 + $0x380] sm:$0xff]
        %v2527 = vld [vmem:[%s2413 + $0x388] sm:$0xff]
        %v2528 = vld [vmem:[%s2413 + $0x390] sm:$0xff]
        %v2529 = vld [vmem:[%s2413 + $0x398] sm:$0xff]
        %v2530 = vld [vmem:[%s2413 + $0x3a0] sm:$0xff]
        %v2531 = vld [vmem:[%s2413 + $0x3a8] sm:$0xff]
        %v2532 = vld [vmem:[%s2413 + $0x3b0] sm:$0xff]
        %v2533 = vld [vmem:[%s2413 + $0x3b8] sm:$0xff]
        %v2534 = vld [vmem:[%s2413 + $0x3c0] sm:$0xff]
        %v2535 = vld [vmem:[%s2413 + $0x3c8] sm:$0xff]
        %v2536 = vld [vmem:[%s2413 + $0x3d0] sm:$0xff]
        %v2537 = vld [vmem:[%s2413 + $0x3d8] sm:$0xff]
        %v2538 = vld [vmem:[%s2413 + $0x3e0] sm:$0xff]
        %v2539 = vld [vmem:[%s2413 + $0x3e8] sm:$0xff]
        %v2540 = vld [vmem:[%s2413 + $0x3f0] sm:$0xff]
        %v2541 = vld [vmem:[%s2413 + $0x3f8] sm:$0xff]
        %v2542 = vld [vmem:[%s2413 + $0x400] sm:$0xff]
        %v2543 = vld [vmem:[%s2413 + $0x408] sm:$0xff]
        %v2544 = vld [vmem:[%s2413 + $0x410] sm:$0xff]
        %v2545 = vld [vmem:[%s2413 + $0x418] sm:$0xff]
        %v2546 = vld [vmem:[%s2413 + $0x420] sm:$0xff]
        %v2547 = vld [vmem:[%s2413 + $0x428] sm:$0xff]
        %v2548 = vld [vmem:[%s2413 + $0x430] sm:$0xff]
        %v2549 = vld [vmem:[%s2413 + $0x438] sm:$0xff]
        %v2550 = vld [vmem:[%s2413 + $0x440] sm:$0xff]
        %v2551 = vld [vmem:[%s2413 + $0x448] sm:$0xff]
        %v2552 = vld [vmem:[%s2413 + $0x450] sm:$0xff]
        %v2553 = vld [vmem:[%s2413 + $0x458] sm:$0xff]
        %v2554 = vld [vmem:[%s2413 + $0x460] sm:$0xff]
        %v2555 = vld [vmem:[%s2413 + $0x468] sm:$0xff]
        %v2556 = vld [vmem:[%s2413 + $0x470] sm:$0xff]
        %v2557 = vld [vmem:[%s2413 + $0x478] sm:$0xff]
        %v2558 = vld [vmem:[%s2413 + $0x480] sm:$0xff]
        %v2559 = vld [vmem:[%s2413 + $0x488] sm:$0xff]
        %v2560 = vld [vmem:[%s2413 + $0x490] sm:$0xff]
        %v2561 = vld [vmem:[%s2413 + $0x498] sm:$0xff]
        %v2562 = vld [vmem:[%s2413 + $0x4a0] sm:$0xff]
        %v2563 = vld [vmem:[%s2413 + $0x4a8] sm:$0xff]
        %v2564 = vld [vmem:[%s2413 + $0x4b0] sm:$0xff]
        %v2565 = vld [vmem:[%s2413 + $0x4b8] sm:$0xff]
        %v2566 = vld [vmem:[%s2413 + $0x4c0] sm:$0xff]
        %v2567 = vld [vmem:[%s2413 + $0x4c8] sm:$0xff]
        %v2568 = vld [vmem:[%s2413 + $0x4d0] sm:$0xff]
        %v2569 = vld [vmem:[%s2413 + $0x4d8] sm:$0xff]
        %v2570 = vld [vmem:[%s2413 + $0x4e0] sm:$0xff]
        %v2571 = vld [vmem:[%s2413 + $0x4e8] sm:$0xff]
        %v2572 = vld [vmem:[%s2413 + $0x4f0] sm:$0xff]
        %v2573 = vld [vmem:[%s2413 + $0x4f8] sm:$0xff]
        %v2574 = vld [vmem:[%s2413 + $0x500] sm:$0xff]
        %v2575 = vld [vmem:[%s2413 + $0x508] sm:$0xff]
        %v2576 = vld [vmem:[%s2413 + $0x510] sm:$0xff]
        %v2577 = vld [vmem:[%s2413 + $0x518] sm:$0xff]
        %v2578 = vld [vmem:[%s2413 + $0x520] sm:$0xff]
        %v2579 = vld [vmem:[%s2413 + $0x528] sm:$0xff]
        %v2580 = vld [vmem:[%s2413 + $0x530] sm:$0xff]
        %v2581 = vld [vmem:[%s2413 + $0x538] sm:$0xff]
        %v2582 = vld [vmem:[%s2413 + $0x540] sm:$0xff]
        %v2583 = vld [vmem:[%s2413 + $0x548] sm:$0xff]
        %v2584 = vld [vmem:[%s2413 + $0x550] sm:$0xff]
        %v2585 = vld [vmem:[%s2413 + $0x558] sm:$0xff]
        %v2586 = vld [vmem:[%s2413 + $0x560] sm:$0xff]
        %v2587 = vld [vmem:[%s2413 + $0x568] sm:$0xff]
        %v2588 = vld [vmem:[%s2413 + $0x570] sm:$0xff]
        %v2589 = vld [vmem:[%s2413 + $0x578] sm:$0xff]
        %v2590 = vld [vmem:[%s2413 + $0x580] sm:$0xff]
        %v2591 = vld [vmem:[%s2413 + $0x588] sm:$0xff]
        %v2592 = vld [vmem:[%s2413 + $0x590] sm:$0xff]
        %v2593 = vld [vmem:[%s2413 + $0x598] sm:$0xff]
        %v2594 = vld [vmem:[%s2413 + $0x5a0] sm:$0xff]
        %v2595 = vld [vmem:[%s2413 + $0x5a8] sm:$0xff]
        %v2596 = vld [vmem:[%s2413 + $0x5b0] sm:$0xff]
        %v2597 = vld [vmem:[%s2413 + $0x5b8] sm:$0xff]
        %v2598 = vld [vmem:[%s2413 + $0x5c0] sm:$0xff]
        %v2599 = vld [vmem:[%s2413 + $0x5c8] sm:$0xff]
        %v2600 = vld [vmem:[%s2413 + $0x5d0] sm:$0xff]
        %v2601 = vld [vmem:[%s2413 + $0x5d8] sm:$0xff]
        %v2602 = vld [vmem:[%s2413 + $0x5e0] sm:$0xff]
        %v2603 = vld [vmem:[%s2413 + $0x5e8] sm:$0xff]
        %v2604 = vld [vmem:[%s2413 + $0x5f0] sm:$0xff]
        %v2605 = vld [vmem:[%s2413 + $0x5f8] sm:$0xff]
        %v2606 = vld [vmem:[%s2413 + $0x600] sm:$0xff]
        %v2607 = vld [vmem:[%s2413 + $0x608] sm:$0xff]
        %v2608 = vld [vmem:[%s2413 + $0x610] sm:$0xff]
        %v2609 = vld [vmem:[%s2413 + $0x618] sm:$0xff]
        %v2610 = vld [vmem:[%s2413 + $0x620] sm:$0xff]
        %v2611 = vld [vmem:[%s2413 + $0x628] sm:$0xff]
        %v2612 = vld [vmem:[%s2413 + $0x630] sm:$0xff]
        %v2613 = vld [vmem:[%s2413 + $0x638] sm:$0xff]
        %v2614 = vld [vmem:[%s2413 + $0x640] sm:$0xff]
        %v2615 = vld [vmem:[%s2413 + $0x648] sm:$0xff]
        %v2616 = vld [vmem:[%s2413 + $0x650] sm:$0xff]
        %v2617 = vld [vmem:[%s2413 + $0x658] sm:$0xff]
        %v2618 = vld [vmem:[%s2413 + $0x660] sm:$0xff]
        %v2619 = vld [vmem:[%s2413 + $0x668] sm:$0xff]
        %v2620 = vld [vmem:[%s2413 + $0x670] sm:$0xff]
        %v2621 = vld [vmem:[%s2413 + $0x678] sm:$0xff]
        %v2622 = vld [vmem:[%s2413 + $0x680] sm:$0xff]
        %v2623 = vld [vmem:[%s2413 + $0x688] sm:$0xff]
        %v2624 = vld [vmem:[%s2413 + $0x690] sm:$0xff]
        %v2625 = vld [vmem:[%s2413 + $0x698] sm:$0xff]
        %v2626 = vld [vmem:[%s2413 + $0x6a0] sm:$0xff]
        %v2627 = vld [vmem:[%s2413 + $0x6a8] sm:$0xff]
        %v2628 = vld [vmem:[%s2413 + $0x6b0] sm:$0xff]
        %v2629 = vld [vmem:[%s2413 + $0x6b8] sm:$0xff]
        %v2630 = vld [vmem:[%s2413 + $0x6c0] sm:$0xff]
        %v2631 = vld [vmem:[%s2413 + $0x6c8] sm:$0xff]
        %v2632 = vld [vmem:[%s2413 + $0x6d0] sm:$0xff]
        %v2633 = vld [vmem:[%s2413 + $0x6d8] sm:$0xff]
        %v2634 = vld [vmem:[%s2413 + $0x6e0] sm:$0xff]
        %v2635 = vld [vmem:[%s2413 + $0x6e8] sm:$0xff]
        %v2636 = vld [vmem:[%s2413 + $0x6f0] sm:$0xff]
        %v2637 = vld [vmem:[%s2413 + $0x6f8] sm:$0xff]
        %2638 = vmatprep.subr.mxu0 %v2415
        %2639 = vmatpush1.msra.mxu0 %v2414
        %2640 = vmatprep.subr.mxu0 %v2417
        %2641 = vmatpush1.msra.mxu0 %v2416
        %2642 = vmatprep.subr.mxu0 %v2419
        %2643 = vmatpush1.msra.mxu0 %v2418
        %2644 = vmatprep.subr.mxu0 %v2421
        %2645 = vmatpush1.msra.mxu0 %v2420
        %2646 = vmatprep.subr.mxu0 %v2423
        %2647 = vmatpush1.msra.mxu0 %v2422
        %2648 = vmatprep.subr.mxu0 %v2425
        %2649 = vmatpush1.msra.mxu0 %v2424
        %2650 = vmatprep.subr.mxu0 %v2427
        %2651 = vmatpush1.msra.mxu0 %v2426
        %2652 = vmatprep.subr.mxu0 %v2429
        %2653 = vmatpush1.msra.mxu0 %v2428
        %2654 = vmatprep.subr.mxu0 %v2431
        %2655 = vmatpush1.msra.mxu0 %v2430
        %2656 = vmatprep.subr.mxu0 %v2433
        %2657 = vmatpush1.msra.mxu0 %v2432
        %2658 = vmatprep.subr.mxu0 %v2435
        %2659 = vmatpush1.msra.mxu0 %v2434
        %2660 = vmatprep.subr.mxu0 %v2437
        %2661 = vmatpush1.msra.mxu0 %v2436
        %2662 = vmatprep.subr.mxu0 %v2439
        %2663 = vmatpush1.msra.mxu0 %v2438
        %2664 = vmatprep.subr.mxu0 %v2441
        %2665 = vmatpush1.msra.mxu0 %v2440
        %2666 = vmatprep.subr.mxu0 %v2443
        %2667 = vmatpush1.msra.mxu0 %v2442
        %2668 = vmatprep.subr.mxu0 %v2445
        %2669 = vmatpush1.msra.mxu0 %v2444
        %2670 = vmatprep.subr.mxu0 %v2447
        %2671 = vmatpush1.msra.mxu0 %v2446
        %2672 = vmatprep.subr.mxu0 %v2449
        %2673 = vmatpush1.msra.mxu0 %v2448
        %2674 = vmatprep.subr.mxu0 %v2451
        %2675 = vmatpush1.msra.mxu0 %v2450
        %2676 = vmatprep.subr.mxu0 %v2453
        %2677 = vmatpush1.msra.mxu0 %v2452
        %2678 = vmatprep.subr.mxu0 %v2455
        %2679 = vmatpush1.msra.mxu0 %v2454
        %2680 = vmatprep.subr.mxu0 %v2457
        %2681 = vmatpush1.msra.mxu0 %v2456
        %2682 = vmatprep.subr.mxu0 %v2459
        %2683 = vmatpush1.msra.mxu0 %v2458
        %2684 = vmatprep.subr.mxu0 %v2461
        %2685 = vmatpush1.msra.mxu0 %v2460
        %2686 = vmatprep.subr.mxu0 %v2463
        %2687 = vmatpush1.msra.mxu0 %v2462
        %2688 = vmatprep.subr.mxu0 %v2465
        %2689 = vmatpush1.msra.mxu0 %v2464
        %2690 = vmatprep.subr.mxu0 %v2467
        %2691 = vmatpush1.msra.mxu0 %v2466
        %2692 = vmatprep.subr.mxu0 %v2469
        %2693 = vmatpush1.msra.mxu0 %v2468
        %2694 = vmatprep.subr.mxu0 %v2471
        %2695 = vmatpush1.msra.mxu0 %v2470
        %2696 = vmatprep.subr.mxu0 %v2473
        %2697 = vmatpush1.msra.mxu0 %v2472
        %2698 = vmatprep.subr.mxu0 %v2475
        %2699 = vmatpush1.msra.mxu0 %v2474
        %2700 = vmatprep.subr.mxu0 %v2477
        %2701 = vmatpush1.msra.mxu0 %v2476
        %2702 = vmatprep.mubr.f32.mxu0 %v1577
        %2703 = vmatmul.mubr.f32.gmra.mrb[0].mxu0 %v1576
        %v2704 = vpop.f32.mrb[0].mxu0
        %v2705 = vadd.f32 0.0, %v2704
        %v2706 = vpop.f32.mrb[0].mxu0
        %v2707 = vadd.f32 0.0, %v2706
        %2708 = vmatprep.mubr.f32.mxu0 %v1584
        %2709 = vmatmul.mubr.f32.gmra.mrb[0].mxu0 %v1583
        %v2710 = vpop.f32.mrb[0].mxu0
        %v2711 = vadd.f32 0.0, %v2710
        %v2712 = vpop.f32.mrb[0].mxu0
        %v2713 = vadd.f32 0.0, %v2712
        %2714 = vmatprep.mubr.f32.mxu0 %v1591
        %2715 = vmatmul.mubr.f32.gmra.mrb[0].mxu0 %v1590
        %v2716 = vpop.f32.mrb[0].mxu0
        %v2717 = vadd.f32 0.0, %v2716
        %v2718 = vpop.f32.mrb[0].mxu0
        %v2719 = vadd.f32 0.0, %v2718
        %2720 = vmatprep.mubr.f32.mxu0 %v1598
        %2721 = vmatmul.mubr.f32.gmra.mrb[0].mxu0 %v1597
        %v2722 = vpop.f32.mrb[0].mxu0
        %v2723 = vadd.f32 0.0, %v2722
        %v2724 = vpop.f32.mrb[0].mxu0
        %v2725 = vadd.f32 0.0, %v2724
        %2726 = vmatprep.mubr.f32.mxu0 %v1605
        %2727 = vmatmul.mubr.f32.gmra.mrb[0].mxu0 %v1604
        %v2728 = vpop.f32.mrb[0].mxu0
        %v2729 = vadd.f32 0.0, %v2728
        %v2730 = vpop.f32.mrb[0].mxu0
        %v2731 = vadd.f32 0.0, %v2730
        %2732 = vmatprep.mubr.f32.mxu0 %v1612
        %2733 = vmatmul.mubr.f32.gmra.mrb[0].mxu0 %v1611
        %v2734 = vpop.f32.mrb[0].mxu0
        %v2735 = vadd.f32 0.0, %v2734
        %v2736 = vpop.f32.mrb[0].mxu0
        %v2737 = vadd.f32 0.0, %v2736
        %2738 = vmatprep.mubr.f32.mxu0 %v1619
        %2739 = vmatmul.mubr.f32.gmra.mrb[0].mxu0 %v1618
        %v2740 = vpop.f32.mrb[0].mxu0
        %v2741 = vadd.f32 0.0, %v2740
        %v2742 = vpop.f32.mrb[0].mxu0
        %v2743 = vadd.f32 0.0, %v2742
        %2744 = vmatprep.mubr.f32.mxu0 %v1626
        %2745 = vmatmul.mubr.f32.gmra.mrb[0].mxu0 %v1625
        %v2746 = vpop.f32.mrb[0].mxu0
        %v2747 = vadd.f32 0.0, %v2746
        %v2748 = vpop.f32.mrb[0].mxu0
        %v2749 = vadd.f32 0.0, %v2748
        %2750 = vmatprep.mubr.f32.mxu0 %v1633
        %2751 = vmatmul.mubr.f32.gmra.mrb[0].mxu0 %v1632
        %v2752 = vpop.f32.mrb[0].mxu0
        %v2753 = vadd.f32 0.0, %v2752
        %v2754 = vpop.f32.mrb[0].mxu0
        %v2755 = vadd.f32 0.0, %v2754
        %2756 = vdwg.mxu0
        %2757 = vmatprep.subr.mxu0 %v2479
        %2758 = vmatpush1.msra.mxu0 %v2478
        %2759 = vmatprep.subr.mxu0 %v2481
        %2760 = vmatpush1.msra.mxu0 %v2480
        %2761 = vmatprep.subr.mxu0 %v2483
        %2762 = vmatpush1.msra.mxu0 %v2482
        %2763 = vmatprep.subr.mxu0 %v2485
        %2764 = vmatpush1.msra.mxu0 %v2484
        %2765 = vmatprep.subr.mxu0 %v2487
        %2766 = vmatpush1.msra.mxu0 %v2486
        %2767 = vmatprep.subr.mxu0 %v2489
        %2768 = vmatpush1.msra.mxu0 %v2488
        %2769 = vmatprep.subr.mxu0 %v2491
        %2770 = vmatpush1.msra.mxu0 %v2490
        %2771 = vmatprep.subr.mxu0 %v2493
        %2772 = vmatpush1.msra.mxu0 %v2492
        %2773 = vmatprep.subr.mxu0 %v2495
        %2774 = vmatpush1.msra.mxu0 %v2494
        %2775 = vmatprep.subr.mxu0 %v2497
        %2776 = vmatpush1.msra.mxu0 %v2496
        %2777 = vmatprep.subr.mxu0 %v2499
        %2778 = vmatpush1.msra.mxu0 %v2498
        %2779 = vmatprep.subr.mxu0 %v2501
        %2780 = vmatpush1.msra.mxu0 %v2500
        %2781 = vmatprep.subr.mxu0 %v2503
        %2782 = vmatpush1.msra.mxu0 %v2502
        %2783 = vmatprep.subr.mxu0 %v2505
        %2784 = vmatpush1.msra.mxu0 %v2504
        %2785 = vmatprep.subr.mxu0 %v2507
        %2786 = vmatpush1.msra.mxu0 %v2506
        %2787 = vmatprep.subr.mxu0 %v2509
        %2788 = vmatpush1.msra.mxu0 %v2508
        %2789 = vmatprep.subr.mxu0 %v2511
        %2790 = vmatpush1.msra.mxu0 %v2510
        %2791 = vmatprep.subr.mxu0 %v2513
        %2792 = vmatpush1.msra.mxu0 %v2512
        %2793 = vmatprep.subr.mxu0 %v2515
        %2794 = vmatpush1.msra.mxu0 %v2514
        %2795 = vmatprep.subr.mxu0 %v2517
        %2796 = vmatpush1.msra.mxu0 %v2516
        %2797 = vmatprep.subr.mxu0 %v2519
        %2798 = vmatpush1.msra.mxu0 %v2518
        %2799 = vmatprep.subr.mxu0 %v2521
        %2800 = vmatpush1.msra.mxu0 %v2520
        %2801 = vmatprep.subr.mxu0 %v2523
        %2802 = vmatpush1.msra.mxu0 %v2522
        %2803 = vmatprep.subr.mxu0 %v2525
        %2804 = vmatpush1.msra.mxu0 %v2524
        %2805 = vmatprep.subr.mxu0 %v2527
        %2806 = vmatpush1.msra.mxu0 %v2526
        %2807 = vmatprep.subr.mxu0 %v2529
        %2808 = vmatpush1.msra.mxu0 %v2528
        %2809 = vmatprep.subr.mxu0 %v2531
        %2810 = vmatpush1.msra.mxu0 %v2530
        %2811 = vmatprep.subr.mxu0 %v2533
        %2812 = vmatpush1.msra.mxu0 %v2532
        %2813 = vmatprep.subr.mxu0 %v2535
        %2814 = vmatpush1.msra.mxu0 %v2534
        %2815 = vmatprep.subr.mxu0 %v2537
        %2816 = vmatpush1.msra.mxu0 %v2536
        %2817 = vmatprep.subr.mxu0 %v2539
        %2818 = vmatpush1.msra.mxu0 %v2538
        %2819 = vmatprep.subr.mxu0 %v2541
        %2820 = vmatpush1.msra.mxu0 %v2540
        %2821 = vmatprep.mubr.f32.mxu0 %v1579
        %2822 = vmatmul.mubr.f32.gmra.mrb[0].mxu0 %v1578
        %v2823 = vpop.f32.mrb[0].mxu0
        %v2824 = vadd.f32 %v2705, %v2823
        %v2825 = vpop.f32.mrb[0].mxu0
        %v2826 = vadd.f32 %v2707, %v2825
        %2827 = vmatprep.mubr.f32.mxu0 %v1586
        %2828 = vmatmul.mubr.f32.gmra.mrb[0].mxu0 %v1585
        %v2829 = vpop.f32.mrb[0].mxu0
        %v2830 = vadd.f32 %v2711, %v2829
        %v2831 = vpop.f32.mrb[0].mxu0
        %v2832 = vadd.f32 %v2713, %v2831
        %2833 = vmatprep.mubr.f32.mxu0 %v1593
        %2834 = vmatmul.mubr.f32.gmra.mrb[0].mxu0 %v1592
        %v2835 = vpop.f32.mrb[0].mxu0
        %v2836 = vadd.f32 %v2717, %v2835
        %v2837 = vpop.f32.mrb[0].mxu0
        %v2838 = vadd.f32 %v2719, %v2837
        %2839 = vmatprep.mubr.f32.mxu0 %v1600
        %2840 = vmatmul.mubr.f32.gmra.mrb[0].mxu0 %v1599
        %v2841 = vpop.f32.mrb[0].mxu0
        %v2842 = vadd.f32 %v2723, %v2841
        %v2843 = vpop.f32.mrb[0].mxu0
        %v2844 = vadd.f32 %v2725, %v2843
        %2845 = vmatprep.mubr.f32.mxu0 %v1607
        %2846 = vmatmul.mubr.f32.gmra.mrb[0].mxu0 %v1606
        %v2847 = vpop.f32.mrb[0].mxu0
        %v2848 = vadd.f32 %v2729, %v2847
        %v2849 = vpop.f32.mrb[0].mxu0
        %v2850 = vadd.f32 %v2731, %v2849
        %2851 = vmatprep.mubr.f32.mxu0 %v1614
        %2852 = vmatmul.mubr.f32.gmra.mrb[0].mxu0 %v1613
        %v2853 = vpop.f32.mrb[0].mxu0
        %v2854 = vadd.f32 %v2735, %v2853
        %v2855 = vpop.f32.mrb[0].mxu0
        %v2856 = vadd.f32 %v2737, %v2855
        %2857 = vmatprep.mubr.f32.mxu0 %v1621
        %2858 = vmatmul.mubr.f32.gmra.mrb[0].mxu0 %v1620
        %v2859 = vpop.f32.mrb[0].mxu0
        %v2860 = vadd.f32 %v2741, %v2859
        %v2861 = vpop.f32.mrb[0].mxu0
        %v2862 = vadd.f32 %v2743, %v2861
        %2863 = vmatprep.mubr.f32.mxu0 %v1628
        %2864 = vmatmul.mubr.f32.gmra.mrb[0].mxu0 %v1627
        %v2865 = vpop.f32.mrb[0].mxu0
        %v2866 = vadd.f32 %v2747, %v2865
        %v2867 = vpop.f32.mrb[0].mxu0
        %v2868 = vadd.f32 %v2749, %v2867
        %2869 = vmatprep.mubr.f32.mxu0 %v1635
        %2870 = vmatmul.mubr.f32.gmra.mrb[0].mxu0 %v1634
        %v2871 = vpop.f32.mrb[0].mxu0
        %v2872 = vadd.f32 %v2753, %v2871
        %v2873 = vpop.f32.mrb[0].mxu0
        %v2874 = vadd.f32 %v2755, %v2873
        %2875 = vdwg.mxu0
        %2876 = vmatprep.subr.mxu0 %v2543
        %2877 = vmatpush1.msra.mxu0 %v2542
        %2878 = vmatprep.subr.mxu0 %v2545
        %2879 = vmatpush1.msra.mxu0 %v2544
        %2880 = vmatprep.subr.mxu0 %v2547
        %2881 = vmatpush1.msra.mxu0 %v2546
        %2882 = vmatprep.subr.mxu0 %v2549
        %2883 = vmatpush1.msra.mxu0 %v2548
        %2884 = vmatprep.subr.mxu0 %v2551
        %2885 = vmatpush1.msra.mxu0 %v2550
        %2886 = vmatprep.subr.mxu0 %v2553
        %2887 = vmatpush1.msra.mxu0 %v2552
        %2888 = vmatprep.subr.mxu0 %v2555
        %2889 = vmatpush1.msra.mxu0 %v2554
        %2890 = vmatprep.subr.mxu0 %v2557
        %2891 = vmatpush1.msra.mxu0 %v2556
        %2892 = vmatprep.subr.mxu0 %v2559
        %2893 = vmatpush1.msra.mxu0 %v2558
        %2894 = vmatprep.subr.mxu0 %v2561
        %2895 = vmatpush1.msra.mxu0 %v2560
        %2896 = vmatprep.subr.mxu0 %v2563
        %2897 = vmatpush1.msra.mxu0 %v2562
        %2898 = vmatprep.subr.mxu0 %v2565
        %2899 = vmatpush1.msra.mxu0 %v2564
        %2900 = vmatprep.subr.mxu0 %v2567
        %2901 = vmatpush1.msra.mxu0 %v2566
        %2902 = vmatprep.subr.mxu0 %v2569
        %2903 = vmatpush1.msra.mxu0 %v2568
        %2904 = vmatprep.subr.mxu0 %v2571
        %2905 = vmatpush1.msra.mxu0 %v2570
        %2906 = vmatprep.subr.mxu0 %v2573
        %2907 = vmatpush1.msra.mxu0 %v2572
        %2908 = vmatprep.subr.mxu0 %v2575
        %2909 = vmatpush1.msra.mxu0 %v2574
        %2910 = vmatprep.subr.mxu0 %v2577
        %2911 = vmatpush1.msra.mxu0 %v2576
        %2912 = vmatprep.subr.mxu0 %v2579
        %2913 = vmatpush1.msra.mxu0 %v2578
        %2914 = vmatprep.subr.mxu0 %v2581
        %2915 = vmatpush1.msra.mxu0 %v2580
        %2916 = vmatprep.subr.mxu0 %v2583
        %2917 = vmatpush1.msra.mxu0 %v2582
        %2918 = vmatprep.subr.mxu0 %v2585
        %2919 = vmatpush1.msra.mxu0 %v2584
        %2920 = vmatprep.subr.mxu0 %v2587
        %2921 = vmatpush1.msra.mxu0 %v2586
        %2922 = vmatprep.subr.mxu0 %v2589
        %2923 = vmatpush1.msra.mxu0 %v2588
        %2924 = vmatprep.subr.mxu0 %v2591
        %2925 = vmatpush1.msra.mxu0 %v2590
        %2926 = vmatprep.subr.mxu0 %v2593
        %2927 = vmatpush1.msra.mxu0 %v2592
        %2928 = vmatprep.subr.mxu0 %v2595
        %2929 = vmatpush1.msra.mxu0 %v2594
        %2930 = vmatprep.subr.mxu0 %v2597
        %2931 = vmatpush1.msra.mxu0 %v2596
        %2932 = vmatprep.subr.mxu0 %v2599
        %2933 = vmatpush1.msra.mxu0 %v2598
        %2934 = vmatprep.subr.mxu0 %v2601
        %2935 = vmatpush1.msra.mxu0 %v2600
        %2936 = vmatprep.subr.mxu0 %v2603
        %2937 = vmatpush1.msra.mxu0 %v2602
        %2938 = vmatprep.subr.mxu0 %v2605
        %2939 = vmatpush1.msra.mxu0 %v2604
        %2940 = vmatprep.mubr.f32.mxu0 %v1581
        %2941 = vmatmul.mubr.f32.gmra.mrb[0].mxu0 %v1580
        %v2942 = vpop.f32.mrb[0].mxu0
        %v2943 = vadd.f32 %v2824, %v2942
        %v2944 = vpop.f32.mrb[0].mxu0
        %v2945 = vadd.f32 %v2826, %v2944
        %2946 = vmatprep.mubr.f32.mxu0 %v1588
        %2947 = vmatmul.mubr.f32.gmra.mrb[0].mxu0 %v1587
        %v2948 = vpop.f32.mrb[0].mxu0
        %v2949 = vadd.f32 %v2830, %v2948
        %v2950 = vpop.f32.mrb[0].mxu0
        %v2951 = vadd.f32 %v2832, %v2950
        %2952 = vmatprep.mubr.f32.mxu0 %v1595
        %2953 = vmatmul.mubr.f32.gmra.mrb[0].mxu0 %v1594
        %v2954 = vpop.f32.mrb[0].mxu0
        %v2955 = vadd.f32 %v2836, %v2954
        %v2956 = vpop.f32.mrb[0].mxu0
        %v2957 = vadd.f32 %v2838, %v2956
        %2958 = vmatprep.mubr.f32.mxu0 %v1602
        %2959 = vmatmul.mubr.f32.gmra.mrb[0].mxu0 %v1601
        %v2960 = vpop.f32.mrb[0].mxu0
        %v2961 = vadd.f32 %v2842, %v2960
        %v2962 = vpop.f32.mrb[0].mxu0
        %v2963 = vadd.f32 %v2844, %v2962
        %2964 = vmatprep.mubr.f32.mxu0 %v1609
        %2965 = vmatmul.mubr.f32.gmra.mrb[0].mxu0 %v1608
        %v2966 = vpop.f32.mrb[0].mxu0
        %v2967 = vadd.f32 %v2848, %v2966
        %v2968 = vpop.f32.mrb[0].mxu0
        %v2969 = vadd.f32 %v2850, %v2968
        %2970 = vmatprep.mubr.f32.mxu0 %v1616
        %2971 = vmatmul.mubr.f32.gmra.mrb[0].mxu0 %v1615
        %v2972 = vpop.f32.mrb[0].mxu0
        %v2973 = vadd.f32 %v2854, %v2972
        %v2974 = vpop.f32.mrb[0].mxu0
        %v2975 = vadd.f32 %v2856, %v2974
        %2976 = vmatprep.mubr.f32.mxu0 %v1623
        %2977 = vmatmul.mubr.f32.gmra.mrb[0].mxu0 %v1622
        %v2978 = vpop.f32.mrb[0].mxu0
        %v2979 = vadd.f32 %v2860, %v2978
        %v2980 = vpop.f32.mrb[0].mxu0
        %v2981 = vadd.f32 %v2862, %v2980
        %2982 = vmatprep.mubr.f32.mxu0 %v1630
        %2983 = vmatmul.mubr.f32.gmra.mrb[0].mxu0 %v1629
        %v2984 = vpop.f32.mrb[0].mxu0
        %v2985 = vadd.f32 %v2866, %v2984
        %v2986 = vpop.f32.mrb[0].mxu0
        %v2987 = vadd.f32 %v2868, %v2986
        %2988 = vmatprep.mubr.f32.mxu0 %v1637
        %2989 = vmatmul.mubr.f32.gmra.mrb[0].mxu0 %v1636
        %v2990 = vpop.f32.mrb[0].mxu0
        %v2991 = vadd.f32 %v2872, %v2990
        %v2992 = vpop.f32.mrb[0].mxu0
        %v2993 = vadd.f32 %v2874, %v2992
        %2994 = vdwg.mxu0
        %2995 = vmatprep.subr.mxu0 %v2607
        %2996 = vmatpush1.msra.mxu0 %v2606
        %2997 = vmatprep.subr.mxu0 %v2609
        %2998 = vmatpush1.msra.mxu0 %v2608
        %2999 = vmatprep.subr.mxu0 %v2611
        %3000 = vmatpush1.msra.mxu0 %v2610
        %3001 = vmatprep.subr.mxu0 %v2613
        %3002 = vmatpush1.msra.mxu0 %v2612
        %3003 = vmatprep.subr.mxu0 %v2615
        %3004 = vmatpush1.msra.mxu0 %v2614
        %3005 = vmatprep.subr.mxu0 %v2617
        %3006 = vmatpush1.msra.mxu0 %v2616
        %3007 = vmatprep.subr.mxu0 %v2619
        %3008 = vmatpush1.msra.mxu0 %v2618
        %3009 = vmatprep.subr.mxu0 %v2621
        %3010 = vmatpush1.msra.mxu0 %v2620
        %3011 = vmatprep.subr.mxu0 %v2623
        %3012 = vmatpush1.msra.mxu0 %v2622
        %3013 = vmatprep.subr.mxu0 %v2625
        %3014 = vmatpush1.msra.mxu0 %v2624
        %3015 = vmatprep.subr.mxu0 %v2627
        %3016 = vmatpush1.msra.mxu0 %v2626
        %3017 = vmatprep.subr.mxu0 %v2629
        %3018 = vmatpush1.msra.mxu0 %v2628
        %3019 = vmatprep.subr.mxu0 %v2631
        %3020 = vmatpush1.msra.mxu0 %v2630
        %3021 = vmatprep.subr.mxu0 %v2633
        %3022 = vmatpush1.msra.mxu0 %v2632
        %3023 = vmatprep.subr.mxu0 %v2635
        %3024 = vmatpush1.msra.mxu0 %v2634
        %3025 = vmatprep.subr.mxu0 %v2637
        %3026 = vmatpush1.msra.mxu0 %v2636
        %3027 = vmatprep.subr.mxu0 0.0
        %3028 = vmatpush1.msra.mxu0 0.0
        %3029 = vmatprep.subr.mxu0 0.0
        %3030 = vmatpush1.msra.mxu0 0.0
        %3031 = vmatprep.subr.mxu0 0.0
        %3032 = vmatpush1.msra.mxu0 0.0
        %3033 = vmatprep.subr.mxu0 0.0
        %3034 = vmatpush1.msra.mxu0 0.0
        %3035 = vmatprep.subr.mxu0 0.0
        %3036 = vmatpush1.msra.mxu0 0.0
        %3037 = vmatprep.subr.mxu0 0.0
        %3038 = vmatpush1.msra.mxu0 0.0
        %3039 = vmatprep.subr.mxu0 0.0
        %3040 = vmatpush1.msra.mxu0 0.0
        %3041 = vmatprep.subr.mxu0 0.0
        %3042 = vmatpush1.msra.mxu0 0.0
        %3043 = vmatprep.subr.mxu0 0.0
        %3044 = vmatpush1.msra.mxu0 0.0
        %3045 = vmatprep.subr.mxu0 0.0
        %3046 = vmatpush1.msra.mxu0 0.0
        %3047 = vmatprep.subr.mxu0 0.0
        %3048 = vmatpush1.msra.mxu0 0.0
        %3049 = vmatprep.subr.mxu0 0.0
        %3050 = vmatpush1.msra.mxu0 0.0
        %3051 = vmatprep.subr.mxu0 0.0
        %3052 = vmatpush1.msra.mxu0 0.0
        %3053 = vmatprep.subr.mxu0 0.0
        %3054 = vmatpush1.msra.mxu0 0.0
        %3055 = vmatprep.subr.mxu0 0.0
        %3056 = vmatpush1.msra.mxu0 0.0
        %3057 = vmatprep.subr.mxu0 0.0
        %3058 = vmatpush1.msra.mxu0 0.0
        %3059 = vmatprep.mubr.f32.mxu0 0.0
        %3060 = vmatmul.mubr.f32.gmra.mrb[0].mxu0 %v1582
        %v3061 = vpop.f32.mrb[0].mxu0
        %v3062 = vadd.f32 %v2943, %v3061
        %v3063 = vpop.f32.mrb[0].mxu0
        %v3064 = vadd.f32 %v2945, %v3063
        %3065 = vmatprep.mubr.f32.mxu0 0.0
        %3066 = vmatmul.mubr.f32.gmra.mrb[0].mxu0 %v1589
        %v3067 = vpop.f32.mrb[0].mxu0
        %v3068 = vadd.f32 %v2949, %v3067
        %v3069 = vpop.f32.mrb[0].mxu0
        %v3070 = vadd.f32 %v2951, %v3069
        %3071 = vmatprep.mubr.f32.mxu0 0.0
        %3072 = vmatmul.mubr.f32.gmra.mrb[0].mxu0 %v1596
        %v3073 = vpop.f32.mrb[0].mxu0
        %v3074 = vadd.f32 %v2955, %v3073
        %v3075 = vpop.f32.mrb[0].mxu0
        %v3076 = vadd.f32 %v2957, %v3075
        %3077 = vmatprep.mubr.f32.mxu0 0.0
        %3078 = vmatmul.mubr.f32.gmra.mrb[0].mxu0 %v1603
        %v3079 = vpop.f32.mrb[0].mxu0
        %v3080 = vadd.f32 %v2961, %v3079
        %v3081 = vpop.f32.mrb[0].mxu0
        %v3082 = vadd.f32 %v2963, %v3081
        %3083 = vmatprep.mubr.f32.mxu0 0.0
        %3084 = vmatmul.mubr.f32.gmra.mrb[0].mxu0 %v1610
        %v3085 = vpop.f32.mrb[0].mxu0
        %v3086 = vadd.f32 %v2967, %v3085
        %v3087 = vpop.f32.mrb[0].mxu0
        %v3088 = vadd.f32 %v2969, %v3087
        %3089 = vmatprep.mubr.f32.mxu0 0.0
        %3090 = vmatmul.mubr.f32.gmra.mrb[0].mxu0 %v1617
        %v3091 = vpop.f32.mrb[0].mxu0
        %v3092 = vadd.f32 %v2973, %v3091
        %v3093 = vpop.f32.mrb[0].mxu0
        %v3094 = vadd.f32 %v2975, %v3093
        %3095 = vmatprep.mubr.f32.mxu0 0.0
        %3096 = vmatmul.mubr.f32.gmra.mrb[0].mxu0 %v1624
        %v3097 = vpop.f32.mrb[0].mxu0
        %v3098 = vadd.f32 %v2979, %v3097
        %v3099 = vpop.f32.mrb[0].mxu0
        %v3100 = vadd.f32 %v2981, %v3099
        %3101 = vmatprep.mubr.f32.mxu0 0.0
        %3102 = vmatmul.mubr.f32.gmra.mrb[0].mxu0 %v1631
        %v3103 = vpop.f32.mrb[0].mxu0
        %v3104 = vadd.f32 %v2985, %v3103
        %v3105 = vpop.f32.mrb[0].mxu0
        %v3106 = vadd.f32 %v2987, %v3105
        %3107 = vmatprep.mubr.f32.mxu0 0.0
        %3108 = vmatmul.mubr.f32.gmra.mrb[0].mxu0 %v1638
        %v3109 = vpop.f32.mrb[0].mxu0
        %v3110 = vadd.f32 %v2991, %v3109
        %v3111 = vpop.f32.mrb[0].mxu0
        %v3112 = vadd.f32 %v2993, %v3111
        %3113 = vdwg.mxu0
        %v3114 = vadd.f32 %v2395, %v3062
        %v3115 = vadd.f32 %v2396, %v3064
        %v3116 = vadd.f32 %v2397, %v3068
        %v3117 = vadd.f32 %v2398, %v3070
        %v3118 = vadd.f32 %v2399, %v3074
        %v3119 = vadd.f32 %v2400, %v3076
        %v3120 = vadd.f32 %v2401, %v3080
        %v3121 = vadd.f32 %v2402, %v3082
        %v3122 = vadd.f32 %v2403, %v3086
        %v3123 = vadd.f32 %v2404, %v3088
        %v3124 = vadd.f32 %v2405, %v3092
        %v3125 = vadd.f32 %v2406, %v3094
        %v3126 = vadd.f32 %v2407, %v3098
        %v3127 = vadd.f32 %v2408, %v3100
        %v3128 = vadd.f32 %v2409, %v3104
        %v3129 = vadd.f32 %v2410, %v3106
        %v3130 = vadd.f32 %v2411, %v3110
        %v3131 = vadd.f32 %v2412, %v3112
        %3132 = vst [vmem:[%s2394] sm:$0xff] %v3114
        %3133 = vst.msk [vmem:[%s2394 + $0x8] sm:$0xff] %vm2376, %v3115
        %3134 = vst [vmem:[%s2394 + $0x10] sm:$0xff] %v3116
        %3135 = vst.msk [vmem:[%s2394 + $0x18] sm:$0xff] %vm2376, %v3117
        %3136 = vst [vmem:[%s2394 + $0x20] sm:$0xff] %v3118
        %3137 = vst.msk [vmem:[%s2394 + $0x28] sm:$0xff] %vm2376, %v3119
        %3138 = vst [vmem:[%s2394 + $0x30] sm:$0xff] %v3120
        %3139 = vst.msk [vmem:[%s2394 + $0x38] sm:$0xff] %vm2376, %v3121
        %3140 = vst [vmem:[%s2394 + $0x40] sm:$0xff] %v3122
        %3141 = vst.msk [vmem:[%s2394 + $0x48] sm:$0xff] %vm2376, %v3123
        %3142 = vst [vmem:[%s2394 + $0x50] sm:$0xff] %v3124
        %3143 = vst.msk [vmem:[%s2394 + $0x58] sm:$0xff] %vm2376, %v3125
        %3144 = vst [vmem:[%s2394 + $0x60] sm:$0xff] %v3126
        %3145 = vst.msk [vmem:[%s2394 + $0x68] sm:$0xff] %vm2376, %v3127
        %3146 = vst [vmem:[%s2394 + $0x70] sm:$0xff] %v3128
        %3147 = vst.msk [vmem:[%s2394 + $0x78] sm:$0xff] %vm2376, %v3129
        %3148 = vst [vmem:[%s2394 + $0x80] sm:$0xff] %v3130
        %3149 = vst.msk [vmem:[%s2394 + $0x88] sm:$0xff] %vm2376, %v3131
        %p3150 = scmp.eq.s32.totalorder %s26, 3
        // Predicated region
        $region127: #{calanet_forward.1} parent=113 // pred_check
          %p3151 = pneg %p3150
        $region128: #{calanet_forward.1} parent=113 // pred_check_branch
          %3153 = sbr.rel (%p3151) target = $region130
        $region129: #{calanet_forward.1} parent=113 // pred_region
          %v3154 = vld [vmem:[%s2] sm:$0xff]
          %v3155 = vld [vmem:[%s2 + $0x8] sm:$0xff]
          %v3156 = vld [vmem:[%s2 + $0x10] sm:$0x1]
          %v3157 = vld [vmem:[%s2 + $0x18] sm:$0x1]
          %v3158 = vld [vmem:[%s3] sm:$0xff]
          %v3159 = vld [vmem:[%s3 + $0x8] sm:$0xff]
          %v3160 = vld [vmem:[%s3 + $0x10] sm:$0x1]
          %v3161 = vld [vmem:[%s3 + $0x18] sm:$0x1]
          %v3162 = vld [vmem:[%s4] sm:$0xff]
          %v3163 = vld [vmem:[%s4 + $0x8] sm:$0xff]
          %v3164 = vld [vmem:[%s4 + $0x10] sm:$0xff]
          %v3165 = vld [vmem:[%s4 + $0x18] sm:$0xff]
          %v3166 = vld [vmem:[%s4 + $0x20] sm:$0xff]
          %v3167 = vld [vmem:[%s4 + $0x28] sm:$0xff]
          %v3168 = vld [vmem:[%s4 + $0x30] sm:$0xff]
          %v3169 = vld [vmem:[%s4 + $0x38] sm:$0xff]
          %v3170 = vld [vmem:[%s4 + $0x40] sm:$0xff]
          %v3171 = vld [vmem:[%s9] sm:$0xff]
          %v3172 = vld [vmem:[%s9 + $0x8] sm:$0xff]
          %v3173 = vld [vmem:[%s9 + $0x10] sm:$0xff]
          %v3174 = vld [vmem:[%s9 + $0x18] sm:$0xff]
          %v3175 = vld [vmem:[%s9 + $0x20] sm:$0xff]
          %v3176 = vld [vmem:[%s9 + $0x28] sm:$0xff]
          %v3177 = vld [vmem:[%s9 + $0x30] sm:$0xff]
          %v3178 = vld [vmem:[%s9 + $0x38] sm:$0xff]
          %v3179 = vld [vmem:[%s9 + $0x40] sm:$0xff]
          %v3180 = vld [vmem:[%s9 + $0x48] sm:$0xff]
          %v3181 = vld [vmem:[%s9 + $0x50] sm:$0xff]
          %v3182 = vld [vmem:[%s9 + $0x58] sm:$0xff]
          %v3183 = vld [vmem:[%s9 + $0x60] sm:$0xff]
          %v3184 = vld [vmem:[%s9 + $0x68] sm:$0xff]
          %v3185 = vld [vmem:[%s9 + $0x70] sm:$0xff]
          %v3186 = vld [vmem:[%s9 + $0x78] sm:$0xff]
          %v3187 = vld [vmem:[%s9 + $0x80] sm:$0xff]
          %v3188 = vld [vmem:[%s9 + $0x88] sm:$0xff]
          %v3189 = vld [vmem:[%s9 + $0x90] sm:$0xff]
          %v3190 = vld [vmem:[%s9 + $0x98] sm:$0xff]
          %v3191 = vld [vmem:[%s9 + $0xa0] sm:$0xff]
          %v3192 = vld [vmem:[%s9 + $0xa8] sm:$0xff]
          %v3193 = vld [vmem:[%s9 + $0xb0] sm:$0xff]
          %v3194 = vld [vmem:[%s9 + $0xb8] sm:$0xff]
          %v3195 = vld [vmem:[%s9 + $0xc0] sm:$0xff]
          %v3196 = vld [vmem:[%s9 + $0xc8] sm:$0xff]
          %v3197 = vld [vmem:[%s9 + $0xd0] sm:$0xff]
          %v3198 = vld [vmem:[%s9 + $0xd8] sm:$0xff]
          %v3199 = vld [vmem:[%s9 + $0xe0] sm:$0xff]
          %v3200 = vld [vmem:[%s9 + $0xe8] sm:$0xff]
          %v3201 = vld [vmem:[%s9 + $0xf0] sm:$0xff]
          %v3202 = vld [vmem:[%s9 + $0xf8] sm:$0xf]
          %v3203 = vld [vmem:[%s10] sm:$0xff]
          %v3204 = vld [vmem:[%s10 + $0x8] sm:$0x7f]
          %v3205 = vld [vmem:[%s10 + $0x10] sm:$0xff]
          %v3206 = vld [vmem:[%s10 + $0x18] sm:$0x7f]
          %v3207 = vld [vmem:[%s10 + $0x20] sm:$0xff]
          %v3208 = vld [vmem:[%s10 + $0x28] sm:$0x7f]
          %v3209 = vld [vmem:[%s10 + $0x30] sm:$0xff]
          %v3210 = vld [vmem:[%s10 + $0x38] sm:$0x7f]
          %v3211 = vld [vmem:[%s10 + $0x40] sm:$0xff]
          %v3212 = vld [vmem:[%s10 + $0x48] sm:$0x7f]
          %v3213 = vld [vmem:[%s10 + $0x50] sm:$0xff]
          %v3214 = vld [vmem:[%s10 + $0x58] sm:$0x7f]
          %v3215 = vld [vmem:[%s10 + $0x60] sm:$0xff]
          %v3216 = vld [vmem:[%s10 + $0x68] sm:$0x7f]
          %v3217 = vld [vmem:[%s10 + $0x70] sm:$0xff]
          %v3218 = vld [vmem:[%s10 + $0x78] sm:$0x7f]
          %v3219 = vld [vmem:[%s5] sm:$0xff]
          %v3220 = vld [vmem:[%s6] sm:$0xff]
          %v3221 = vld [vmem:[%s7] sm:$0xff]
          %v3222 = vld [vmem:[%s8] sm:$0xff]
          %v3223 = vld [vmem:[%s12] sm:$0xff]
          %v3224 = vld [vmem:[%s12 + $0x8] sm:$0xff]
          %v3225 = vld [vmem:[%s12 + $0x10] sm:$0xff]
          %v3226 = vld [vmem:[%s12 + $0x18] sm:$0xff]
          %v3227 = vld [vmem:[%s12 + $0x20] sm:$0xff]
          %v3228 = vld [vmem:[%s12 + $0x28] sm:$0xff]
          %v3229 = vld [vmem:[%s12 + $0x30] sm:$0xff]
          %v3230 = vld [vmem:[%s12 + $0x38] sm:$0xff]
          %v3231 = vld [vmem:[%s12 + $0x40] sm:$0xff]
          %v3232 = vld [vmem:[%s12 + $0x48] sm:$0xff]
          %v3233 = vld [vmem:[%s12 + $0x50] sm:$0xff]
          %v3234 = vld [vmem:[%s12 + $0x58] sm:$0xff]
          %v3235 = vld [vmem:[%s12 + $0x60] sm:$0xf]
          %v3236 = vld [vmem:[#allocation2] sm:$0xff]
          %v3237 = vld [vmem:[#allocation2 + $0x8] sm:$0xff]
          %v3238 = vld [vmem:[#allocation2 + $0x10] sm:$0xff]
          %v3239 = vld [vmem:[#allocation2 + $0x18] sm:$0xff]
          %v3240 = vld [vmem:[#allocation2 + $0x20] sm:$0xff]
          %v3241 = vld [vmem:[#allocation2 + $0x28] sm:$0xff]
          %v3242 = vld [vmem:[#allocation2 + $0x30] sm:$0xff]
          %v3243 = vld [vmem:[#allocation2 + $0x38] sm:$0xff]
          %v3244 = vld [vmem:[#allocation2 + $0x40] sm:$0xff]
          %v3245 = vld [vmem:[#allocation2 + $0x48] sm:$0xff]
          %v3246 = vld [vmem:[#allocation2 + $0x50] sm:$0xff]
          %v3247 = vld [vmem:[#allocation2 + $0x58] sm:$0xff]
          %v3248 = vld [vmem:[#allocation2 + $0x60] sm:$0xff]
          %v3249 = vld [vmem:[#allocation2 + $0x68] sm:$0xff]
          %v3250 = vld [vmem:[#allocation2 + $0x70] sm:$0xff]
          %v3251 = vld [vmem:[#allocation2 + $0x78] sm:$0xff]
          %v3252 = vld [vmem:[#allocation2 + $0x80] sm:$0xff]
          %v3253 = vld [vmem:[#allocation2 + $0x88] sm:$0xff]
          %3256 = vrot.lane.b32.xlu0 %v3236, 19
          %v3257 = vpop.permute.xlu0 %3256
          %3258 = vrot.lane.b32.xlu0 %v3237, 19
          %v3259 = vpop.permute.xlu0 %3258
          %vm3260 = vcmask 154624
          %v3261 = vsel %vm3260, %v3257, %v3259
          %v3264 = vsel %vm3260, 0.0, %v3257
          %v3265 = vlaneseq
          %v3266 = vshrl.u32 %v3265, 7
          %v3267 = vsub.s32 0, %v3266
          %v3268 = vrot.slane %v3154, %v3267
          %v3269 = vlaneseq
          %v3270 = vshrl.u32 %v3269, 7
          %v3271 = vsub.s32 0, %v3270
          %v3272 = vrot.slane %v3155, %v3271
          %v3273 = vmul.f32 %v3264, %v3268
          %v3274 = vmul.f32 %v3261, %v3272
          %v3275 = vadd.f32 %v3273, 0.0
          %v3276 = vadd.f32 %v3274, 0.0
          %3279 = vrot.lane.b32.xlu0 %v3238, 18
          %v3280 = vpop.permute.xlu0 %3279
          %3281 = vrot.lane.b32.xlu0 %v3239, 18
          %v3282 = vpop.permute.xlu0 %3281
          %vm3283 = vcmask 146432
          %v3284 = vsel %vm3283, %v3280, %v3282
          %v3287 = vsel %vm3283, 0.0, %v3280
          %v3288 = vlaneseq
          %v3289 = vshrl.u32 %v3288, 7
          %v3290 = vsub.s32 1, %v3289
          %v3291 = vrot.slane %v3154, %v3290
          %v3292 = vlaneseq
          %v3293 = vshrl.u32 %v3292, 7
          %v3294 = vsub.s32 1, %v3293
          %v3295 = vrot.slane %v3155, %v3294
          %v3296 = vmul.f32 %v3287, %v3291
          %v3297 = vmul.f32 %v3284, %v3295
          %v3298 = vadd.f32 %v3275, %v3296
          %v3299 = vadd.f32 %v3276, %v3297
          %3302 = vrot.lane.b32.xlu0 %v3240, 17
          %v3303 = vpop.permute.xlu0 %3302
          %3304 = vrot.lane.b32.xlu0 %v3241, 17
          %v3305 = vpop.permute.xlu0 %3304
          %vm3306 = vcmask 138240
          %v3307 = vsel %vm3306, %v3303, %v3305
          %v3310 = vsel %vm3306, 0.0, %v3303
          %v3311 = vlaneseq
          %v3312 = vshrl.u32 %v3311, 7
          %v3313 = vsub.s32 2, %v3312
          %v3314 = vrot.slane %v3154, %v3313
          %v3315 = vlaneseq
          %v3316 = vshrl.u32 %v3315, 7
          %v3317 = vsub.s32 2, %v3316
          %v3318 = vrot.slane %v3155, %v3317
          %v3319 = vmul.f32 %v3310, %v3314
          %v3320 = vmul.f32 %v3307, %v3318
          %v3321 = vadd.f32 %v3298, %v3319
          %v3322 = vadd.f32 %v3299, %v3320
          %3325 = vrot.lane.b32.xlu0 %v3242, 1
          %v3326 = vpop.permute.xlu0 %3325
          %3327 = vrot.lane.b32.xlu0 %v3243, 1
          %v3328 = vpop.permute.xlu0 %3327
          %vm3329 = vcmask 7168
          %v3330 = vsel %vm3329, %v3326, %v3328
          %v3333 = vsel %vm3329, 0.0, %v3326
          %v3334 = vlaneseq
          %v3335 = vshrl.u32 %v3334, 7
          %v3336 = vsub.s32 3, %v3335
          %v3337 = vrot.slane %v3154, %v3336
          %v3338 = vlaneseq
          %v3339 = vshrl.u32 %v3338, 7
          %v3340 = vsub.s32 3, %v3339
          %v3341 = vrot.slane %v3155, %v3340
          %v3342 = vmul.f32 %v3333, %v3337
          %v3343 = vmul.f32 %v3330, %v3341
          %v3344 = vadd.f32 %v3321, %v3342
          %v3345 = vadd.f32 %v3322, %v3343
          %v3346 = vlaneseq
          %v3347 = vshrl.u32 %v3346, 7
          %v3348 = vsub.s32 4, %v3347
          %v3349 = vrot.slane %v3154, %v3348
          %v3350 = vlaneseq
          %v3351 = vshrl.u32 %v3350, 7
          %v3352 = vsub.s32 4, %v3351
          %v3353 = vrot.slane %v3155, %v3352
          %v3354 = vmul.f32 %v3244, %v3349
          %v3355 = vmul.f32 %v3245, %v3353
          %v3356 = vadd.f32 %v3344, %v3354
          %v3357 = vadd.f32 %v3345, %v3355
          %3360 = vrot.lane.b32.xlu0 %v3246, 127
          %v3361 = vpop.permute.xlu0 %3360
          %3362 = vrot.lane.b32.xlu0 %v3247, 127
          %v3363 = vpop.permute.xlu0 %3362
          %vm3364 = vcmask 1039360
          %v3365 = vsel %vm3364, %v3361, %v3363
          %vm3368 = vcmask 1006592
          %v3369 = vsel %vm3368, %v3363, 0.0
          %v3370 = vlaneseq
          %v3371 = vshrl.u32 %v3370, 7
          %v3372 = vsub.s32 5, %v3371
          %v3373 = vrot.slane %v3154, %v3372
          %v3374 = vlaneseq
          %v3375 = vshrl.u32 %v3374, 7
          %v3376 = vsub.s32 5, %v3375
          %v3377 = vrot.slane %v3155, %v3376
          %v3378 = vmul.f32 %v3365, %v3373
          %v3379 = vmul.f32 %v3369, %v3377
          %v3380 = vadd.f32 %v3356, %v3378
          %v3381 = vadd.f32 %v3357, %v3379
          %3384 = vrot.lane.b32.xlu0 %v3248, 111
          %v3385 = vpop.permute.xlu0 %3384
          %3386 = vrot.lane.b32.xlu0 %v3249, 111
          %v3387 = vpop.permute.xlu0 %3386
          %vm3388 = vcmask 908288
          %v3389 = vsel %vm3388, %v3385, %v3387
          %vm3392 = vcmask 875520
          %v3393 = vsel %vm3392, %v3387, 0.0
          %v3394 = vlaneseq
          %v3395 = vshrl.u32 %v3394, 7
          %v3396 = vsub.s32 6, %v3395
          %v3397 = vrot.slane %v3154, %v3396
          %v3398 = vlaneseq
          %v3399 = vshrl.u32 %v3398, 7
          %v3400 = vsub.s32 6, %v3399
          %v3401 = vrot.slane %v3155, %v3400
          %v3402 = vmul.f32 %v3389, %v3397
          %v3403 = vmul.f32 %v3393, %v3401
          %v3404 = vadd.f32 %v3380, %v3402
          %v3405 = vadd.f32 %v3381, %v3403
          %3408 = vrot.lane.b32.xlu0 %v3250, 110
          %v3409 = vpop.permute.xlu0 %3408
          %3410 = vrot.lane.b32.xlu0 %v3251, 110
          %v3411 = vpop.permute.xlu0 %3410
          %vm3412 = vcmask 900096
          %v3413 = vsel %vm3412, %v3409, %v3411
          %vm3416 = vcmask 867328
          %v3417 = vsel %vm3416, %v3411, 0.0
          %v3418 = vlaneseq
          %v3419 = vshrl.u32 %v3418, 7
          %v3420 = vsub.s32 7, %v3419
          %v3421 = vrot.slane %v3154, %v3420
          %v3422 = vlaneseq
          %v3423 = vshrl.u32 %v3422, 7
          %v3424 = vsub.s32 7, %v3423
          %v3425 = vrot.slane %v3155, %v3424
          %v3426 = vmul.f32 %v3413, %v3421
          %v3427 = vmul.f32 %v3417, %v3425
          %v3428 = vadd.f32 %v3404, %v3426
          %v3429 = vadd.f32 %v3405, %v3427
          %3432 = vrot.lane.b32.xlu0 %v3252, 109
          %v3433 = vpop.permute.xlu0 %3432
          %3434 = vrot.lane.b32.xlu0 %v3253, 109
          %v3435 = vpop.permute.xlu0 %3434
          %vm3436 = vcmask 891904
          %v3437 = vsel %vm3436, %v3433, %v3435
          %vm3440 = vcmask 859136
          %v3441 = vsel %vm3440, %v3435, 0.0
          %v3442 = vlaneseq
          %v3443 = vshrl.u32 %v3442, 7
          %v3444 = vsub.s32 0, %v3443
          %v3445 = vrot.slane %v3156, %v3444
          %v3446 = vlaneseq
          %v3447 = vshrl.u32 %v3446, 7
          %v3448 = vsub.s32 0, %v3447
          %v3449 = vrot.slane %v3157, %v3448
          %v3450 = vmul.f32 %v3437, %v3445
          %v3451 = vmul.f32 %v3441, %v3449
          %v3452 = vadd.f32 %v3428, %v3450
          %v3453 = vadd.f32 %v3429, %v3451
          %3455 = vset.pattern.permute.xlu0 0
          %3456 = vperm.xlu0 %3455, %v3219
          %v3457 = vpop.permute.xlu0 %3456
          %v3459 = vmul.f32 %v3452, %v3457
          %v3460 = vmul.f32 %v3453, %v3457
          %3462 = vset.pattern.permute.xlu0 0
          %3463 = vperm.xlu0 %3462, %v3220
          %v3464 = vpop.permute.xlu0 %3463
          %v3466 = vadd.f32 %v3459, %v3464
          %v3467 = vadd.f32 %v3460, %v3464
          %v3468 = vmax.f32 %v3466, 0.0
          %v3469 = vmax.f32 %v3467, 0.0
          %vm3470 = vcmask 64512
          %v3472 = vsel %vm3470, %v3162, 0
          %3474 = vmatprep.subr.mxu0 %v3469
          %3475 = vmatpush1.msra.mxu0 %v3468
          %3476 = vmatprep.subr.mxu0 0.0
          %3477 = vmatpush1.msra.mxu0 0.0
          %3478 = vmatprep.subr.mxu0 0.0
          %3479 = vmatpush1.msra.mxu0 0.0
          %3480 = vmatprep.subr.mxu0 0.0
          %3481 = vmatpush1.msra.mxu0 0.0
          %3482 = vmatprep.subr.mxu0 0.0
          %3483 = vmatpush1.msra.mxu0 0.0
          %3484 = vmatprep.subr.mxu0 0.0
          %3485 = vmatpush1.msra.mxu0 0.0
          %3486 = vmatprep.subr.mxu0 0.0
          %3487 = vmatpush1.msra.mxu0 0.0
          %3488 = vmatprep.subr.mxu0 0.0
          %3489 = vmatpush1.msra.mxu0 0.0
          %3490 = vmatprep.subr.mxu0 0.0
          %3491 = vmatpush1.msra.mxu0 0.0
          %3492 = vmatprep.subr.mxu0 0.0
          %3493 = vmatpush1.msra.mxu0 0.0
          %3494 = vmatprep.subr.mxu0 0.0
          %3495 = vmatpush1.msra.mxu0 0.0
          %3496 = vmatprep.subr.mxu0 0.0
          %3497 = vmatpush1.msra.mxu0 0.0
          %3498 = vmatprep.subr.mxu0 0.0
          %3499 = vmatpush1.msra.mxu0 0.0
          %3500 = vmatprep.subr.mxu0 0.0
          %3501 = vmatpush1.msra.mxu0 0.0
          %3502 = vmatprep.subr.mxu0 0.0
          %3503 = vmatpush1.msra.mxu0 0.0
          %3504 = vmatprep.subr.mxu0 0.0
          %3505 = vmatpush1.msra.mxu0 0.0
          %3506 = vmatprep.subr.mxu0 0.0
          %3507 = vmatpush1.msra.mxu0 0.0
          %3508 = vmatprep.subr.mxu0 0.0
          %3509 = vmatpush1.msra.mxu0 0.0
          %3510 = vmatprep.subr.mxu0 0.0
          %3511 = vmatpush1.msra.mxu0 0.0
          %3512 = vmatprep.subr.mxu0 0.0
          %3513 = vmatpush1.msra.mxu0 0.0
          %3514 = vmatprep.subr.mxu0 0.0
          %3515 = vmatpush1.msra.mxu0 0.0
          %3516 = vmatprep.subr.mxu0 0.0
          %3517 = vmatpush1.msra.mxu0 0.0
          %3518 = vmatprep.subr.mxu0 0.0
          %3519 = vmatpush1.msra.mxu0 0.0
          %3520 = vmatprep.subr.mxu0 0.0
          %3521 = vmatpush1.msra.mxu0 0.0
          %3522 = vmatprep.subr.mxu0 0.0
          %3523 = vmatpush1.msra.mxu0 0.0
          %3524 = vmatprep.subr.mxu0 0.0
          %3525 = vmatpush1.msra.mxu0 0.0
          %3526 = vmatprep.subr.mxu0 0.0
          %3527 = vmatpush1.msra.mxu0 0.0
          %3528 = vmatprep.subr.mxu0 0.0
          %3529 = vmatpush1.msra.mxu0 0.0
          %3530 = vmatprep.subr.mxu0 0.0
          %3531 = vmatpush1.msra.mxu0 0.0
          %3532 = vmatprep.subr.mxu0 0.0
          %3533 = vmatpush1.msra.mxu0 0.0
          %3534 = vmatprep.subr.mxu0 0.0
          %3535 = vmatpush1.msra.mxu0 0.0
          %3536 = vmatprep.subr.mxu0 0.0
          %3537 = vmatpush1.msra.mxu0 0.0
          %3538 = vmatprep.mubr.f32.mxu0 0.0
          %3539 = vmatmul.mubr.f32.gmra.mrb[0].mxu0 %v3472
          %v3540 = vpop.f32.mrb[0].mxu0
          %v3541 = vadd.f32 0.0, %v3540
          %v3542 = vpop.f32.mrb[0].mxu0
          %v3543 = vadd.f32 0.0, %v3542
          %3544 = vdwg.mxu0
          %3547 = vrot.lane.b32.xlu0 %v3541, 2
          %v3548 = vpop.permute.xlu0 %3547
          %3549 = vrot.lane.b32.xlu0 %v3543, 2
          %v3550 = vpop.permute.xlu0 %3549
          %vm3551 = vcmask 15360
          %v3552 = vsel %vm3551, %v3548, %v3550
          %v3555 = vsel %vm3551, 0.0, %v3548
          %v3556 = vlaneseq
          %v3557 = vshrl.u32 %v3556, 7
          %v3558 = vsub.s32 0, %v3557
          %v3559 = vrot.slane %v3158, %v3558
          %v3560 = vlaneseq
          %v3561 = vshrl.u32 %v3560, 7
          %v3562 = vsub.s32 0, %v3561
          %v3563 = vrot.slane %v3159, %v3562
          %v3564 = vmul.f32 %v3555, %v3559
          %v3565 = vmul.f32 %v3552, %v3563
          %v3566 = vadd.f32 %v3564, 0.0
          %v3567 = vadd.f32 %v3565, 0.0
          %v3569 = vsel %vm3470, %v3163, 0
          %3571 = vmatprep.subr.mxu0 %v3469
          %3572 = vmatpush1.msra.mxu0 %v3468
          %3573 = vmatprep.subr.mxu0 0.0
          %3574 = vmatpush1.msra.mxu0 0.0
          %3575 = vmatprep.subr.mxu0 0.0
          %3576 = vmatpush1.msra.mxu0 0.0
          %3577 = vmatprep.subr.mxu0 0.0
          %3578 = vmatpush1.msra.mxu0 0.0
          %3579 = vmatprep.subr.mxu0 0.0
          %3580 = vmatpush1.msra.mxu0 0.0
          %3581 = vmatprep.subr.mxu0 0.0
          %3582 = vmatpush1.msra.mxu0 0.0
          %3583 = vmatprep.subr.mxu0 0.0
          %3584 = vmatpush1.msra.mxu0 0.0
          %3585 = vmatprep.subr.mxu0 0.0
          %3586 = vmatpush1.msra.mxu0 0.0
          %3587 = vmatprep.subr.mxu0 0.0
          %3588 = vmatpush1.msra.mxu0 0.0
          %3589 = vmatprep.subr.mxu0 0.0
          %3590 = vmatpush1.msra.mxu0 0.0
          %3591 = vmatprep.subr.mxu0 0.0
          %3592 = vmatpush1.msra.mxu0 0.0
          %3593 = vmatprep.subr.mxu0 0.0
          %3594 = vmatpush1.msra.mxu0 0.0
          %3595 = vmatprep.subr.mxu0 0.0
          %3596 = vmatpush1.msra.mxu0 0.0
          %3597 = vmatprep.subr.mxu0 0.0
          %3598 = vmatpush1.msra.mxu0 0.0
          %3599 = vmatprep.subr.mxu0 0.0
          %3600 = vmatpush1.msra.mxu0 0.0
          %3601 = vmatprep.subr.mxu0 0.0
          %3602 = vmatpush1.msra.mxu0 0.0
          %3603 = vmatprep.subr.mxu0 0.0
          %3604 = vmatpush1.msra.mxu0 0.0
          %3605 = vmatprep.subr.mxu0 0.0
          %3606 = vmatpush1.msra.mxu0 0.0
          %3607 = vmatprep.subr.mxu0 0.0
          %3608 = vmatpush1.msra.mxu0 0.0
          %3609 = vmatprep.subr.mxu0 0.0
          %3610 = vmatpush1.msra.mxu0 0.0
          %3611 = vmatprep.subr.mxu0 0.0
          %3612 = vmatpush1.msra.mxu0 0.0
          %3613 = vmatprep.subr.mxu0 0.0
          %3614 = vmatpush1.msra.mxu0 0.0
          %3615 = vmatprep.subr.mxu0 0.0
          %3616 = vmatpush1.msra.mxu0 0.0
          %3617 = vmatprep.subr.mxu0 0.0
          %3618 = vmatpush1.msra.mxu0 0.0
          %3619 = vmatprep.subr.mxu0 0.0
          %3620 = vmatpush1.msra.mxu0 0.0
          %3621 = vmatprep.subr.mxu0 0.0
          %3622 = vmatpush1.msra.mxu0 0.0
          %3623 = vmatprep.subr.mxu0 0.0
          %3624 = vmatpush1.msra.mxu0 0.0
          %3625 = vmatprep.subr.mxu0 0.0
          %3626 = vmatpush1.msra.mxu0 0.0
          %3627 = vmatprep.subr.mxu0 0.0
          %3628 = vmatpush1.msra.mxu0 0.0
          %3629 = vmatprep.subr.mxu0 0.0
          %3630 = vmatpush1.msra.mxu0 0.0
          %3631 = vmatprep.subr.mxu0 0.0
          %3632 = vmatpush1.msra.mxu0 0.0
          %3633 = vmatprep.subr.mxu0 0.0
          %3634 = vmatpush1.msra.mxu0 0.0
          %3635 = vmatprep.mubr.f32.mxu0 0.0
          %3636 = vmatmul.mubr.f32.gmra.mrb[0].mxu0 %v3569
          %v3637 = vpop.f32.mrb[0].mxu0
          %v3638 = vadd.f32 0.0, %v3637
          %v3639 = vpop.f32.mrb[0].mxu0
          %v3640 = vadd.f32 0.0, %v3639
          %3641 = vdwg.mxu0
          %v3642 = vlaneseq
          %v3643 = vshrl.u32 %v3642, 7
          %v3644 = vsub.s32 1, %v3643
          %v3645 = vrot.slane %v3158, %v3644
          %v3646 = vlaneseq
          %v3647 = vshrl.u32 %v3646, 7
          %v3648 = vsub.s32 1, %v3647
          %v3649 = vrot.slane %v3159, %v3648
          %v3650 = vmul.f32 %v3638, %v3645
          %v3651 = vmul.f32 %v3640, %v3649
          %v3652 = vadd.f32 %v3566, %v3650
          %v3653 = vadd.f32 %v3567, %v3651
          %v3655 = vsel %vm3470, %v3164, 0
          %3657 = vmatprep.subr.mxu0 %v3469
          %3658 = vmatpush1.msra.mxu0 %v3468
          %3659 = vmatprep.subr.mxu0 0.0
          %3660 = vmatpush1.msra.mxu0 0.0
          %3661 = vmatprep.subr.mxu0 0.0
          %3662 = vmatpush1.msra.mxu0 0.0
          %3663 = vmatprep.subr.mxu0 0.0
          %3664 = vmatpush1.msra.mxu0 0.0
          %3665 = vmatprep.subr.mxu0 0.0
          %3666 = vmatpush1.msra.mxu0 0.0
          %3667 = vmatprep.subr.mxu0 0.0
          %3668 = vmatpush1.msra.mxu0 0.0
          %3669 = vmatprep.subr.mxu0 0.0
          %3670 = vmatpush1.msra.mxu0 0.0
          %3671 = vmatprep.subr.mxu0 0.0
          %3672 = vmatpush1.msra.mxu0 0.0
          %3673 = vmatprep.subr.mxu0 0.0
          %3674 = vmatpush1.msra.mxu0 0.0
          %3675 = vmatprep.subr.mxu0 0.0
          %3676 = vmatpush1.msra.mxu0 0.0
          %3677 = vmatprep.subr.mxu0 0.0
          %3678 = vmatpush1.msra.mxu0 0.0
          %3679 = vmatprep.subr.mxu0 0.0
          %3680 = vmatpush1.msra.mxu0 0.0
          %3681 = vmatprep.subr.mxu0 0.0
          %3682 = vmatpush1.msra.mxu0 0.0
          %3683 = vmatprep.subr.mxu0 0.0
          %3684 = vmatpush1.msra.mxu0 0.0
          %3685 = vmatprep.subr.mxu0 0.0
          %3686 = vmatpush1.msra.mxu0 0.0
          %3687 = vmatprep.subr.mxu0 0.0
          %3688 = vmatpush1.msra.mxu0 0.0
          %3689 = vmatprep.subr.mxu0 0.0
          %3690 = vmatpush1.msra.mxu0 0.0
          %3691 = vmatprep.subr.mxu0 0.0
          %3692 = vmatpush1.msra.mxu0 0.0
          %3693 = vmatprep.subr.mxu0 0.0
          %3694 = vmatpush1.msra.mxu0 0.0
          %3695 = vmatprep.subr.mxu0 0.0
          %3696 = vmatpush1.msra.mxu0 0.0
          %3697 = vmatprep.subr.mxu0 0.0
          %3698 = vmatpush1.msra.mxu0 0.0
          %3699 = vmatprep.subr.mxu0 0.0
          %3700 = vmatpush1.msra.mxu0 0.0
          %3701 = vmatprep.subr.mxu0 0.0
          %3702 = vmatpush1.msra.mxu0 0.0
          %3703 = vmatprep.subr.mxu0 0.0
          %3704 = vmatpush1.msra.mxu0 0.0
          %3705 = vmatprep.subr.mxu0 0.0
          %3706 = vmatpush1.msra.mxu0 0.0
          %3707 = vmatprep.subr.mxu0 0.0
          %3708 = vmatpush1.msra.mxu0 0.0
          %3709 = vmatprep.subr.mxu0 0.0
          %3710 = vmatpush1.msra.mxu0 0.0
          %3711 = vmatprep.subr.mxu0 0.0
          %3712 = vmatpush1.msra.mxu0 0.0
          %3713 = vmatprep.subr.mxu0 0.0
          %3714 = vmatpush1.msra.mxu0 0.0
          %3715 = vmatprep.subr.mxu0 0.0
          %3716 = vmatpush1.msra.mxu0 0.0
          %3717 = vmatprep.subr.mxu0 0.0
          %3718 = vmatpush1.msra.mxu0 0.0
          %3719 = vmatprep.subr.mxu0 0.0
          %3720 = vmatpush1.msra.mxu0 0.0
          %3721 = vmatprep.mubr.f32.mxu0 0.0
          %3722 = vmatmul.mubr.f32.gmra.mrb[0].mxu0 %v3655
          %v3723 = vpop.f32.mrb[0].mxu0
          %v3724 = vadd.f32 0.0, %v3723
          %v3725 = vpop.f32.mrb[0].mxu0
          %v3726 = vadd.f32 0.0, %v3725
          %3727 = vdwg.mxu0
          %3730 = vrot.lane.b32.xlu0 %v3724, 126
          %v3731 = vpop.permute.xlu0 %3730
          %3732 = vrot.lane.b32.xlu0 %v3726, 126
          %v3733 = vpop.permute.xlu0 %3732
          %vm3734 = vcmask 1031168
          %v3735 = vsel %vm3734, %v3731, %v3733
          %vm3738 = vcmask 998400
          %v3739 = vsel %vm3738, %v3733, 0.0
          %v3740 = vlaneseq
          %v3741 = vshrl.u32 %v3740, 7
          %v3742 = vsub.s32 2, %v3741
          %v3743 = vrot.slane %v3158, %v3742
          %v3744 = vlaneseq
          %v3745 = vshrl.u32 %v3744, 7
          %v3746 = vsub.s32 2, %v3745
          %v3747 = vrot.slane %v3159, %v3746
          %v3748 = vmul.f32 %v3735, %v3743
          %v3749 = vmul.f32 %v3739, %v3747
          %v3750 = vadd.f32 %v3652, %v3748
          %v3751 = vadd.f32 %v3653, %v3749
          %v3753 = vsel %vm3470, %v3165, 0
          %3755 = vmatprep.subr.mxu0 %v3469
          %3756 = vmatpush1.msra.mxu0 %v3468
          %3757 = vmatprep.subr.mxu0 0.0
          %3758 = vmatpush1.msra.mxu0 0.0
          %3759 = vmatprep.subr.mxu0 0.0
          %3760 = vmatpush1.msra.mxu0 0.0
          %3761 = vmatprep.subr.mxu0 0.0
          %3762 = vmatpush1.msra.mxu0 0.0
          %3763 = vmatprep.subr.mxu0 0.0
          %3764 = vmatpush1.msra.mxu0 0.0
          %3765 = vmatprep.subr.mxu0 0.0
          %3766 = vmatpush1.msra.mxu0 0.0
          %3767 = vmatprep.subr.mxu0 0.0
          %3768 = vmatpush1.msra.mxu0 0.0
          %3769 = vmatprep.subr.mxu0 0.0
          %3770 = vmatpush1.msra.mxu0 0.0
          %3771 = vmatprep.subr.mxu0 0.0
          %3772 = vmatpush1.msra.mxu0 0.0
          %3773 = vmatprep.subr.mxu0 0.0
          %3774 = vmatpush1.msra.mxu0 0.0
          %3775 = vmatprep.subr.mxu0 0.0
          %3776 = vmatpush1.msra.mxu0 0.0
          %3777 = vmatprep.subr.mxu0 0.0
          %3778 = vmatpush1.msra.mxu0 0.0
          %3779 = vmatprep.subr.mxu0 0.0
          %3780 = vmatpush1.msra.mxu0 0.0
          %3781 = vmatprep.subr.mxu0 0.0
          %3782 = vmatpush1.msra.mxu0 0.0
          %3783 = vmatprep.subr.mxu0 0.0
          %3784 = vmatpush1.msra.mxu0 0.0
          %3785 = vmatprep.subr.mxu0 0.0
          %3786 = vmatpush1.msra.mxu0 0.0
          %3787 = vmatprep.subr.mxu0 0.0
          %3788 = vmatpush1.msra.mxu0 0.0
          %3789 = vmatprep.subr.mxu0 0.0
          %3790 = vmatpush1.msra.mxu0 0.0
          %3791 = vmatprep.subr.mxu0 0.0
          %3792 = vmatpush1.msra.mxu0 0.0
          %3793 = vmatprep.subr.mxu0 0.0
          %3794 = vmatpush1.msra.mxu0 0.0
          %3795 = vmatprep.subr.mxu0 0.0
          %3796 = vmatpush1.msra.mxu0 0.0
          %3797 = vmatprep.subr.mxu0 0.0
          %3798 = vmatpush1.msra.mxu0 0.0
          %3799 = vmatprep.subr.mxu0 0.0
          %3800 = vmatpush1.msra.mxu0 0.0
          %3801 = vmatprep.subr.mxu0 0.0
          %3802 = vmatpush1.msra.mxu0 0.0
          %3803 = vmatprep.subr.mxu0 0.0
          %3804 = vmatpush1.msra.mxu0 0.0
          %3805 = vmatprep.subr.mxu0 0.0
          %3806 = vmatpush1.msra.mxu0 0.0
          %3807 = vmatprep.subr.mxu0 0.0
          %3808 = vmatpush1.msra.mxu0 0.0
          %3809 = vmatprep.subr.mxu0 0.0
          %3810 = vmatpush1.msra.mxu0 0.0
          %3811 = vmatprep.subr.mxu0 0.0
          %3812 = vmatpush1.msra.mxu0 0.0
          %3813 = vmatprep.subr.mxu0 0.0
          %3814 = vmatpush1.msra.mxu0 0.0
          %3815 = vmatprep.subr.mxu0 0.0
          %3816 = vmatpush1.msra.mxu0 0.0
          %3817 = vmatprep.subr.mxu0 0.0
          %3818 = vmatpush1.msra.mxu0 0.0
          %3819 = vmatprep.mubr.f32.mxu0 0.0
          %3820 = vmatmul.mubr.f32.gmra.mrb[0].mxu0 %v3753
          %v3821 = vpop.f32.mrb[0].mxu0
          %v3822 = vadd.f32 0.0, %v3821
          %v3823 = vpop.f32.mrb[0].mxu0
          %v3824 = vadd.f32 0.0, %v3823
          %3825 = vdwg.mxu0
          %3828 = vrot.lane.b32.xlu0 %v3822, 94
          %v3829 = vpop.permute.xlu0 %3828
          %3830 = vrot.lane.b32.xlu0 %v3824, 94
          %v3831 = vpop.permute.xlu0 %3830
          %vm3832 = vcmask 769024
          %v3833 = vsel %vm3832, %v3829, %v3831
          %vm3836 = vcmask 736256
          %v3837 = vsel %vm3836, %v3831, 0.0
          %v3838 = vlaneseq
          %v3839 = vshrl.u32 %v3838, 7
          %v3840 = vsub.s32 3, %v3839
          %v3841 = vrot.slane %v3158, %v3840
          %v3842 = vlaneseq
          %v3843 = vshrl.u32 %v3842, 7
          %v3844 = vsub.s32 3, %v3843
          %v3845 = vrot.slane %v3159, %v3844
          %v3846 = vmul.f32 %v3833, %v3841
          %v3847 = vmul.f32 %v3837, %v3845
          %v3848 = vadd.f32 %v3750, %v3846
          %v3849 = vadd.f32 %v3751, %v3847
          %v3851 = vsel %vm3470, %v3166, 0
          %3853 = vmatprep.subr.mxu0 %v3469
          %3854 = vmatpush1.msra.mxu0 %v3468
          %3855 = vmatprep.subr.mxu0 0.0
          %3856 = vmatpush1.msra.mxu0 0.0
          %3857 = vmatprep.subr.mxu0 0.0
          %3858 = vmatpush1.msra.mxu0 0.0
          %3859 = vmatprep.subr.mxu0 0.0
          %3860 = vmatpush1.msra.mxu0 0.0
          %3861 = vmatprep.subr.mxu0 0.0
          %3862 = vmatpush1.msra.mxu0 0.0
          %3863 = vmatprep.subr.mxu0 0.0
          %3864 = vmatpush1.msra.mxu0 0.0
          %3865 = vmatprep.subr.mxu0 0.0
          %3866 = vmatpush1.msra.mxu0 0.0
          %3867 = vmatprep.subr.mxu0 0.0
          %3868 = vmatpush1.msra.mxu0 0.0
          %3869 = vmatprep.subr.mxu0 0.0
          %3870 = vmatpush1.msra.mxu0 0.0
          %3871 = vmatprep.subr.mxu0 0.0
          %3872 = vmatpush1.msra.mxu0 0.0
          %3873 = vmatprep.subr.mxu0 0.0
          %3874 = vmatpush1.msra.mxu0 0.0
          %3875 = vmatprep.subr.mxu0 0.0
          %3876 = vmatpush1.msra.mxu0 0.0
          %3877 = vmatprep.subr.mxu0 0.0
          %3878 = vmatpush1.msra.mxu0 0.0
          %3879 = vmatprep.subr.mxu0 0.0
          %3880 = vmatpush1.msra.mxu0 0.0
          %3881 = vmatprep.subr.mxu0 0.0
          %3882 = vmatpush1.msra.mxu0 0.0
          %3883 = vmatprep.subr.mxu0 0.0
          %3884 = vmatpush1.msra.mxu0 0.0
          %3885 = vmatprep.subr.mxu0 0.0
          %3886 = vmatpush1.msra.mxu0 0.0
          %3887 = vmatprep.subr.mxu0 0.0
          %3888 = vmatpush1.msra.mxu0 0.0
          %3889 = vmatprep.subr.mxu0 0.0
          %3890 = vmatpush1.msra.mxu0 0.0
          %3891 = vmatprep.subr.mxu0 0.0
          %3892 = vmatpush1.msra.mxu0 0.0
          %3893 = vmatprep.subr.mxu0 0.0
          %3894 = vmatpush1.msra.mxu0 0.0
          %3895 = vmatprep.subr.mxu0 0.0
          %3896 = vmatpush1.msra.mxu0 0.0
          %3897 = vmatprep.subr.mxu0 0.0
          %3898 = vmatpush1.msra.mxu0 0.0
          %3899 = vmatprep.subr.mxu0 0.0
          %3900 = vmatpush1.msra.mxu0 0.0
          %3901 = vmatprep.subr.mxu0 0.0
          %3902 = vmatpush1.msra.mxu0 0.0
          %3903 = vmatprep.subr.mxu0 0.0
          %3904 = vmatpush1.msra.mxu0 0.0
          %3905 = vmatprep.subr.mxu0 0.0
          %3906 = vmatpush1.msra.mxu0 0.0
          %3907 = vmatprep.subr.mxu0 0.0
          %3908 = vmatpush1.msra.mxu0 0.0
          %3909 = vmatprep.subr.mxu0 0.0
          %3910 = vmatpush1.msra.mxu0 0.0
          %3911 = vmatprep.subr.mxu0 0.0
          %3912 = vmatpush1.msra.mxu0 0.0
          %3913 = vmatprep.subr.mxu0 0.0
          %3914 = vmatpush1.msra.mxu0 0.0
          %3915 = vmatprep.subr.mxu0 0.0
          %3916 = vmatpush1.msra.mxu0 0.0
          %3917 = vmatprep.mubr.f32.mxu0 0.0
          %3918 = vmatmul.mubr.f32.gmra.mrb[0].mxu0 %v3851
          %v3919 = vpop.f32.mrb[0].mxu0
          %v3920 = vadd.f32 0.0, %v3919
          %v3921 = vpop.f32.mrb[0].mxu0
          %v3922 = vadd.f32 0.0, %v3921
          %3923 = vdwg.mxu0
          %3926 = vrot.lane.b32.xlu0 %v3920, 92
          %v3927 = vpop.permute.xlu0 %3926
          %3928 = vrot.lane.b32.xlu0 %v3922, 92
          %v3929 = vpop.permute.xlu0 %3928
          %vm3930 = vcmask 752640
          %v3931 = vsel %vm3930, %v3927, %v3929
          %vm3934 = vcmask 719872
          %v3935 = vsel %vm3934, %v3929, 0.0
          %v3936 = vlaneseq
          %v3937 = vshrl.u32 %v3936, 7
          %v3938 = vsub.s32 4, %v3937
          %v3939 = vrot.slane %v3158, %v3938
          %v3940 = vlaneseq
          %v3941 = vshrl.u32 %v3940, 7
          %v3942 = vsub.s32 4, %v3941
          %v3943 = vrot.slane %v3159, %v3942
          %v3944 = vmul.f32 %v3931, %v3939
          %v3945 = vmul.f32 %v3935, %v3943
          %v3946 = vadd.f32 %v3848, %v3944
          %v3947 = vadd.f32 %v3849, %v3945
          %v3949 = vsel %vm3470, %v3167, 0
          %3951 = vmatprep.subr.mxu0 %v3469
          %3952 = vmatpush1.msra.mxu0 %v3468
          %3953 = vmatprep.subr.mxu0 0.0
          %3954 = vmatpush1.msra.mxu0 0.0
          %3955 = vmatprep.subr.mxu0 0.0
          %3956 = vmatpush1.msra.mxu0 0.0
          %3957 = vmatprep.subr.mxu0 0.0
          %3958 = vmatpush1.msra.mxu0 0.0
          %3959 = vmatprep.subr.mxu0 0.0
          %3960 = vmatpush1.msra.mxu0 0.0
          %3961 = vmatprep.subr.mxu0 0.0
          %3962 = vmatpush1.msra.mxu0 0.0
          %3963 = vmatprep.subr.mxu0 0.0
          %3964 = vmatpush1.msra.mxu0 0.0
          %3965 = vmatprep.subr.mxu0 0.0
          %3966 = vmatpush1.msra.mxu0 0.0
          %3967 = vmatprep.subr.mxu0 0.0
          %3968 = vmatpush1.msra.mxu0 0.0
          %3969 = vmatprep.subr.mxu0 0.0
          %3970 = vmatpush1.msra.mxu0 0.0
          %3971 = vmatprep.subr.mxu0 0.0
          %3972 = vmatpush1.msra.mxu0 0.0
          %3973 = vmatprep.subr.mxu0 0.0
          %3974 = vmatpush1.msra.mxu0 0.0
          %3975 = vmatprep.subr.mxu0 0.0
          %3976 = vmatpush1.msra.mxu0 0.0
          %3977 = vmatprep.subr.mxu0 0.0
          %3978 = vmatpush1.msra.mxu0 0.0
          %3979 = vmatprep.subr.mxu0 0.0
          %3980 = vmatpush1.msra.mxu0 0.0
          %3981 = vmatprep.subr.mxu0 0.0
          %3982 = vmatpush1.msra.mxu0 0.0
          %3983 = vmatprep.subr.mxu0 0.0
          %3984 = vmatpush1.msra.mxu0 0.0
          %3985 = vmatprep.subr.mxu0 0.0
          %3986 = vmatpush1.msra.mxu0 0.0
          %3987 = vmatprep.subr.mxu0 0.0
          %3988 = vmatpush1.msra.mxu0 0.0
          %3989 = vmatprep.subr.mxu0 0.0
          %3990 = vmatpush1.msra.mxu0 0.0
          %3991 = vmatprep.subr.mxu0 0.0
          %3992 = vmatpush1.msra.mxu0 0.0
          %3993 = vmatprep.subr.mxu0 0.0
          %3994 = vmatpush1.msra.mxu0 0.0
          %3995 = vmatprep.subr.mxu0 0.0
          %3996 = vmatpush1.msra.mxu0 0.0
          %3997 = vmatprep.subr.mxu0 0.0
          %3998 = vmatpush1.msra.mxu0 0.0
          %3999 = vmatprep.subr.mxu0 0.0
          %4000 = vmatpush1.msra.mxu0 0.0
          %4001 = vmatprep.subr.mxu0 0.0
          %4002 = vmatpush1.msra.mxu0 0.0
          %4003 = vmatprep.subr.mxu0 0.0
          %4004 = vmatpush1.msra.mxu0 0.0
          %4005 = vmatprep.subr.mxu0 0.0
          %4006 = vmatpush1.msra.mxu0 0.0
          %4007 = vmatprep.subr.mxu0 0.0
          %4008 = vmatpush1.msra.mxu0 0.0
          %4009 = vmatprep.subr.mxu0 0.0
          %4010 = vmatpush1.msra.mxu0 0.0
          %4011 = vmatprep.subr.mxu0 0.0
          %4012 = vmatpush1.msra.mxu0 0.0
          %4013 = vmatprep.subr.mxu0 0.0
          %4014 = vmatpush1.msra.mxu0 0.0
          %4015 = vmatprep.mubr.f32.mxu0 0.0
          %4016 = vmatmul.mubr.f32.gmra.mrb[0].mxu0 %v3949
          %v4017 = vpop.f32.mrb[0].mxu0
          %v4018 = vadd.f32 0.0, %v4017
          %v4019 = vpop.f32.mrb[0].mxu0
          %v4020 = vadd.f32 0.0, %v4019
          %4021 = vdwg.mxu0
          %4024 = vrot.lane.b32.xlu0 %v4018, 90
          %v4025 = vpop.permute.xlu0 %4024
          %4026 = vrot.lane.b32.xlu0 %v4020, 90
          %v4027 = vpop.permute.xlu0 %4026
          %v4028 = vsel %vm3836, %v4025, %v4027
          %vm4031 = vcmask 703488
          %v4032 = vsel %vm4031, %v4027, 0.0
          %v4033 = vlaneseq
          %v4034 = vshrl.u32 %v4033, 7
          %v4035 = vsub.s32 5, %v4034
          %v4036 = vrot.slane %v3158, %v4035
          %v4037 = vlaneseq
          %v4038 = vshrl.u32 %v4037, 7
          %v4039 = vsub.s32 5, %v4038
          %v4040 = vrot.slane %v3159, %v4039
          %v4041 = vmul.f32 %v4028, %v4036
          %v4042 = vmul.f32 %v4032, %v4040
          %v4043 = vadd.f32 %v3946, %v4041
          %v4044 = vadd.f32 %v3947, %v4042
          %v4046 = vsel %vm3470, %v3168, 0
          %4048 = vmatprep.subr.mxu0 %v3469
          %4049 = vmatpush1.msra.mxu0 %v3468
          %4050 = vmatprep.subr.mxu0 0.0
          %4051 = vmatpush1.msra.mxu0 0.0
          %4052 = vmatprep.subr.mxu0 0.0
          %4053 = vmatpush1.msra.mxu0 0.0
          %4054 = vmatprep.subr.mxu0 0.0
          %4055 = vmatpush1.msra.mxu0 0.0
          %4056 = vmatprep.subr.mxu0 0.0
          %4057 = vmatpush1.msra.mxu0 0.0
          %4058 = vmatprep.subr.mxu0 0.0
          %4059 = vmatpush1.msra.mxu0 0.0
          %4060 = vmatprep.subr.mxu0 0.0
          %4061 = vmatpush1.msra.mxu0 0.0
          %4062 = vmatprep.subr.mxu0 0.0
          %4063 = vmatpush1.msra.mxu0 0.0
          %4064 = vmatprep.subr.mxu0 0.0
          %4065 = vmatpush1.msra.mxu0 0.0
          %4066 = vmatprep.subr.mxu0 0.0
          %4067 = vmatpush1.msra.mxu0 0.0
          %4068 = vmatprep.subr.mxu0 0.0
          %4069 = vmatpush1.msra.mxu0 0.0
          %4070 = vmatprep.subr.mxu0 0.0
          %4071 = vmatpush1.msra.mxu0 0.0
          %4072 = vmatprep.subr.mxu0 0.0
          %4073 = vmatpush1.msra.mxu0 0.0
          %4074 = vmatprep.subr.mxu0 0.0
          %4075 = vmatpush1.msra.mxu0 0.0
          %4076 = vmatprep.subr.mxu0 0.0
          %4077 = vmatpush1.msra.mxu0 0.0
          %4078 = vmatprep.subr.mxu0 0.0
          %4079 = vmatpush1.msra.mxu0 0.0
          %4080 = vmatprep.subr.mxu0 0.0
          %4081 = vmatpush1.msra.mxu0 0.0
          %4082 = vmatprep.subr.mxu0 0.0
          %4083 = vmatpush1.msra.mxu0 0.0
          %4084 = vmatprep.subr.mxu0 0.0
          %4085 = vmatpush1.msra.mxu0 0.0
          %4086 = vmatprep.subr.mxu0 0.0
          %4087 = vmatpush1.msra.mxu0 0.0
          %4088 = vmatprep.subr.mxu0 0.0
          %4089 = vmatpush1.msra.mxu0 0.0
          %4090 = vmatprep.subr.mxu0 0.0
          %4091 = vmatpush1.msra.mxu0 0.0
          %4092 = vmatprep.subr.mxu0 0.0
          %4093 = vmatpush1.msra.mxu0 0.0
          %4094 = vmatprep.subr.mxu0 0.0
          %4095 = vmatpush1.msra.mxu0 0.0
          %4096 = vmatprep.subr.mxu0 0.0
          %4097 = vmatpush1.msra.mxu0 0.0
          %4098 = vmatprep.subr.mxu0 0.0
          %4099 = vmatpush1.msra.mxu0 0.0
          %4100 = vmatprep.subr.mxu0 0.0
          %4101 = vmatpush1.msra.mxu0 0.0
          %4102 = vmatprep.subr.mxu0 0.0
          %4103 = vmatpush1.msra.mxu0 0.0
          %4104 = vmatprep.subr.mxu0 0.0
          %4105 = vmatpush1.msra.mxu0 0.0
          %4106 = vmatprep.subr.mxu0 0.0
          %4107 = vmatpush1.msra.mxu0 0.0
          %4108 = vmatprep.subr.mxu0 0.0
          %4109 = vmatpush1.msra.mxu0 0.0
          %4110 = vmatprep.subr.mxu0 0.0
          %4111 = vmatpush1.msra.mxu0 0.0
          %4112 = vmatprep.mubr.f32.mxu0 0.0
          %4113 = vmatmul.mubr.f32.gmra.mrb[0].mxu0 %v4046
          %v4114 = vpop.f32.mrb[0].mxu0
          %v4115 = vadd.f32 0.0, %v4114
          %v4116 = vpop.f32.mrb[0].mxu0
          %v4117 = vadd.f32 0.0, %v4116
          %4118 = vdwg.mxu0
          %4121 = vrot.lane.b32.xlu0 %v4115, 58
          %v4122 = vpop.permute.xlu0 %4121
          %4123 = vrot.lane.b32.xlu0 %v4117, 58
          %v4124 = vpop.permute.xlu0 %4123
          %vm4125 = vcmask 474112
          %v4126 = vsel %vm4125, %v4122, %v4124
          %vm4129 = vcmask 441344
          %v4130 = vsel %vm4129, %v4124, 0.0
          %v4131 = vlaneseq
          %v4132 = vshrl.u32 %v4131, 7
          %v4133 = vsub.s32 6, %v4132
          %v4134 = vrot.slane %v3158, %v4133
          %v4135 = vlaneseq
          %v4136 = vshrl.u32 %v4135, 7
          %v4137 = vsub.s32 6, %v4136
          %v4138 = vrot.slane %v3159, %v4137
          %v4139 = vmul.f32 %v4126, %v4134
          %v4140 = vmul.f32 %v4130, %v4138
          %v4141 = vadd.f32 %v4043, %v4139
          %v4142 = vadd.f32 %v4044, %v4140
          %v4144 = vsel %vm3470, %v3169, 0
          %4146 = vmatprep.subr.mxu0 %v3469
          %4147 = vmatpush1.msra.mxu0 %v3468
          %4148 = vmatprep.subr.mxu0 0.0
          %4149 = vmatpush1.msra.mxu0 0.0
          %4150 = vmatprep.subr.mxu0 0.0
          %4151 = vmatpush1.msra.mxu0 0.0
          %4152 = vmatprep.subr.mxu0 0.0
          %4153 = vmatpush1.msra.mxu0 0.0
          %4154 = vmatprep.subr.mxu0 0.0
          %4155 = vmatpush1.msra.mxu0 0.0
          %4156 = vmatprep.subr.mxu0 0.0
          %4157 = vmatpush1.msra.mxu0 0.0
          %4158 = vmatprep.subr.mxu0 0.0
          %4159 = vmatpush1.msra.mxu0 0.0
          %4160 = vmatprep.subr.mxu0 0.0
          %4161 = vmatpush1.msra.mxu0 0.0
          %4162 = vmatprep.subr.mxu0 0.0
          %4163 = vmatpush1.msra.mxu0 0.0
          %4164 = vmatprep.subr.mxu0 0.0
          %4165 = vmatpush1.msra.mxu0 0.0
          %4166 = vmatprep.subr.mxu0 0.0
          %4167 = vmatpush1.msra.mxu0 0.0
          %4168 = vmatprep.subr.mxu0 0.0
          %4169 = vmatpush1.msra.mxu0 0.0
          %4170 = vmatprep.subr.mxu0 0.0
          %4171 = vmatpush1.msra.mxu0 0.0
          %4172 = vmatprep.subr.mxu0 0.0
          %4173 = vmatpush1.msra.mxu0 0.0
          %4174 = vmatprep.subr.mxu0 0.0
          %4175 = vmatpush1.msra.mxu0 0.0
          %4176 = vmatprep.subr.mxu0 0.0
          %4177 = vmatpush1.msra.mxu0 0.0
          %4178 = vmatprep.subr.mxu0 0.0
          %4179 = vmatpush1.msra.mxu0 0.0
          %4180 = vmatprep.subr.mxu0 0.0
          %4181 = vmatpush1.msra.mxu0 0.0
          %4182 = vmatprep.subr.mxu0 0.0
          %4183 = vmatpush1.msra.mxu0 0.0
          %4184 = vmatprep.subr.mxu0 0.0
          %4185 = vmatpush1.msra.mxu0 0.0
          %4186 = vmatprep.subr.mxu0 0.0
          %4187 = vmatpush1.msra.mxu0 0.0
          %4188 = vmatprep.subr.mxu0 0.0
          %4189 = vmatpush1.msra.mxu0 0.0
          %4190 = vmatprep.subr.mxu0 0.0
          %4191 = vmatpush1.msra.mxu0 0.0
          %4192 = vmatprep.subr.mxu0 0.0
          %4193 = vmatpush1.msra.mxu0 0.0
          %4194 = vmatprep.subr.mxu0 0.0
          %4195 = vmatpush1.msra.mxu0 0.0
          %4196 = vmatprep.subr.mxu0 0.0
          %4197 = vmatpush1.msra.mxu0 0.0
          %4198 = vmatprep.subr.mxu0 0.0
          %4199 = vmatpush1.msra.mxu0 0.0
          %4200 = vmatprep.subr.mxu0 0.0
          %4201 = vmatpush1.msra.mxu0 0.0
          %4202 = vmatprep.subr.mxu0 0.0
          %4203 = vmatpush1.msra.mxu0 0.0
          %4204 = vmatprep.subr.mxu0 0.0
          %4205 = vmatpush1.msra.mxu0 0.0
          %4206 = vmatprep.subr.mxu0 0.0
          %4207 = vmatpush1.msra.mxu0 0.0
          %4208 = vmatprep.subr.mxu0 0.0
          %4209 = vmatpush1.msra.mxu0 0.0
          %4210 = vmatprep.mubr.f32.mxu0 0.0
          %4211 = vmatmul.mubr.f32.gmra.mrb[0].mxu0 %v4144
          %v4212 = vpop.f32.mrb[0].mxu0
          %v4213 = vadd.f32 0.0, %v4212
          %v4214 = vpop.f32.mrb[0].mxu0
          %v4215 = vadd.f32 0.0, %v4214
          %4216 = vdwg.mxu0
          %4219 = vrot.lane.b32.xlu0 %v4213, 56
          %v4220 = vpop.permute.xlu0 %4219
          %4221 = vrot.lane.b32.xlu0 %v4215, 56
          %v4222 = vpop.permute.xlu0 %4221
          %vm4223 = vcmask 457728
          %v4224 = vsel %vm4223, %v4220, %v4222
          %vm4227 = vcmask 424960
          %v4228 = vsel %vm4227, %v4222, 0.0
          %v4229 = vlaneseq
          %v4230 = vshrl.u32 %v4229, 7
          %v4231 = vsub.s32 7, %v4230
          %v4232 = vrot.slane %v3158, %v4231
          %v4233 = vlaneseq
          %v4234 = vshrl.u32 %v4233, 7
          %v4235 = vsub.s32 7, %v4234
          %v4236 = vrot.slane %v3159, %v4235
          %v4237 = vmul.f32 %v4224, %v4232
          %v4238 = vmul.f32 %v4228, %v4236
          %v4239 = vadd.f32 %v4141, %v4237
          %v4240 = vadd.f32 %v4142, %v4238
          %v4242 = vsel %vm3470, %v3170, 0
          %4244 = vmatprep.subr.mxu0 %v3469
          %4245 = vmatpush1.msra.mxu0 %v3468
          %4246 = vmatprep.subr.mxu0 0.0
          %4247 = vmatpush1.msra.mxu0 0.0
          %4248 = vmatprep.subr.mxu0 0.0
          %4249 = vmatpush1.msra.mxu0 0.0
          %4250 = vmatprep.subr.mxu0 0.0
          %4251 = vmatpush1.msra.mxu0 0.0
          %4252 = vmatprep.subr.mxu0 0.0
          %4253 = vmatpush1.msra.mxu0 0.0
          %4254 = vmatprep.subr.mxu0 0.0
          %4255 = vmatpush1.msra.mxu0 0.0
          %4256 = vmatprep.subr.mxu0 0.0
          %4257 = vmatpush1.msra.mxu0 0.0
          %4258 = vmatprep.subr.mxu0 0.0
          %4259 = vmatpush1.msra.mxu0 0.0
          %4260 = vmatprep.subr.mxu0 0.0
          %4261 = vmatpush1.msra.mxu0 0.0
          %4262 = vmatprep.subr.mxu0 0.0
          %4263 = vmatpush1.msra.mxu0 0.0
          %4264 = vmatprep.subr.mxu0 0.0
          %4265 = vmatpush1.msra.mxu0 0.0
          %4266 = vmatprep.subr.mxu0 0.0
          %4267 = vmatpush1.msra.mxu0 0.0
          %4268 = vmatprep.subr.mxu0 0.0
          %4269 = vmatpush1.msra.mxu0 0.0
          %4270 = vmatprep.subr.mxu0 0.0
          %4271 = vmatpush1.msra.mxu0 0.0
          %4272 = vmatprep.subr.mxu0 0.0
          %4273 = vmatpush1.msra.mxu0 0.0
          %4274 = vmatprep.subr.mxu0 0.0
          %4275 = vmatpush1.msra.mxu0 0.0
          %4276 = vmatprep.subr.mxu0 0.0
          %4277 = vmatpush1.msra.mxu0 0.0
          %4278 = vmatprep.subr.mxu0 0.0
          %4279 = vmatpush1.msra.mxu0 0.0
          %4280 = vmatprep.subr.mxu0 0.0
          %4281 = vmatpush1.msra.mxu0 0.0
          %4282 = vmatprep.subr.mxu0 0.0
          %4283 = vmatpush1.msra.mxu0 0.0
          %4284 = vmatprep.subr.mxu0 0.0
          %4285 = vmatpush1.msra.mxu0 0.0
          %4286 = vmatprep.subr.mxu0 0.0
          %4287 = vmatpush1.msra.mxu0 0.0
          %4288 = vmatprep.subr.mxu0 0.0
          %4289 = vmatpush1.msra.mxu0 0.0
          %4290 = vmatprep.subr.mxu0 0.0
          %4291 = vmatpush1.msra.mxu0 0.0
          %4292 = vmatprep.subr.mxu0 0.0
          %4293 = vmatpush1.msra.mxu0 0.0
          %4294 = vmatprep.subr.mxu0 0.0
          %4295 = vmatpush1.msra.mxu0 0.0
          %4296 = vmatprep.subr.mxu0 0.0
          %4297 = vmatpush1.msra.mxu0 0.0
          %4298 = vmatprep.subr.mxu0 0.0
          %4299 = vmatpush1.msra.mxu0 0.0
          %4300 = vmatprep.subr.mxu0 0.0
          %4301 = vmatpush1.msra.mxu0 0.0
          %4302 = vmatprep.subr.mxu0 0.0
          %4303 = vmatpush1.msra.mxu0 0.0
          %4304 = vmatprep.subr.mxu0 0.0
          %4305 = vmatpush1.msra.mxu0 0.0
          %4306 = vmatprep.subr.mxu0 0.0
          %4307 = vmatpush1.msra.mxu0 0.0
          %4308 = vmatprep.mubr.f32.mxu0 0.0
          %4309 = vmatmul.mubr.f32.gmra.mrb[0].mxu0 %v4242
          %v4310 = vpop.f32.mrb[0].mxu0
          %v4311 = vadd.f32 0.0, %v4310
          %v4312 = vpop.f32.mrb[0].mxu0
          %v4313 = vadd.f32 0.0, %v4312
          %4314 = vdwg.mxu0
          %4317 = vrot.lane.b32.xlu0 %v4311, 54
          %v4318 = vpop.permute.xlu0 %4317
          %4319 = vrot.lane.b32.xlu0 %v4313, 54
          %v4320 = vpop.permute.xlu0 %4319
          %v4321 = vsel %vm4129, %v4318, %v4320
          %vm4324 = vcmask 408576
          %v4325 = vsel %vm4324, %v4320, 0.0
          %v4326 = vlaneseq
          %v4327 = vshrl.u32 %v4326, 7
          %v4328 = vsub.s32 0, %v4327
          %v4329 = vrot.slane %v3160, %v4328
          %v4330 = vlaneseq
          %v4331 = vshrl.u32 %v4330, 7
          %v4332 = vsub.s32 0, %v4331
          %v4333 = vrot.slane %v3161, %v4332
          %v4334 = vmul.f32 %v4321, %v4329
          %v4335 = vmul.f32 %v4325, %v4333
          %v4336 = vadd.f32 %v4239, %v4334
          %v4337 = vadd.f32 %v4240, %v4335
          %4339 = vset.pattern.permute.xlu0 0
          %4340 = vperm.xlu0 %4339, %v3221
          %v4341 = vpop.permute.xlu0 %4340
          %v4343 = vmul.f32 %v4336, %v4341
          %v4344 = vmul.f32 %v4337, %v4341
          %4346 = vset.pattern.permute.xlu0 0
          %4347 = vperm.xlu0 %4346, %v3222
          %v4348 = vpop.permute.xlu0 %4347
          %v4350 = vadd.f32 %v4343, %v4348
          %v4351 = vadd.f32 %v4344, %v4348
          %v4352 = vmax.f32 %v4350, 0.0
          %v4353 = vmax.f32 %v4351, 0.0
          %v4355 = vsel %vm2376, %v4353, 0
          %vm4357 = vcmask 1043456
          %v4359 = vsel %vm4357, %v3202, 0
          %4361 = vmatprep.subr.mxu0 0.0
          %4362 = vmatpush1.msra.mxu0 %v3171
          %4363 = vmatprep.subr.mxu0 0.0
          %4364 = vmatpush1.msra.mxu0 %v3172
          %4365 = vmatprep.subr.mxu0 0.0
          %4366 = vmatpush1.msra.mxu0 %v3173
          %4367 = vmatprep.subr.mxu0 0.0
          %4368 = vmatpush1.msra.mxu0 %v3174
          %4369 = vmatprep.subr.mxu0 0.0
          %4370 = vmatpush1.msra.mxu0 %v3175
          %4371 = vmatprep.subr.mxu0 0.0
          %4372 = vmatpush1.msra.mxu0 %v3176
          %4373 = vmatprep.subr.mxu0 0.0
          %4374 = vmatpush1.msra.mxu0 %v3177
          %4375 = vmatprep.subr.mxu0 0.0
          %4376 = vmatpush1.msra.mxu0 %v3178
          %4377 = vmatprep.subr.mxu0 0.0
          %4378 = vmatpush1.msra.mxu0 %v3179
          %4379 = vmatprep.subr.mxu0 0.0
          %4380 = vmatpush1.msra.mxu0 %v3180
          %4381 = vmatprep.subr.mxu0 0.0
          %4382 = vmatpush1.msra.mxu0 %v3181
          %4383 = vmatprep.subr.mxu0 0.0
          %4384 = vmatpush1.msra.mxu0 %v3182
          %4385 = vmatprep.subr.mxu0 0.0
          %4386 = vmatpush1.msra.mxu0 %v3183
          %4387 = vmatprep.subr.mxu0 0.0
          %4388 = vmatpush1.msra.mxu0 %v3184
          %4389 = vmatprep.subr.mxu0 0.0
          %4390 = vmatpush1.msra.mxu0 %v3185
          %4391 = vmatprep.subr.mxu0 0.0
          %4392 = vmatpush1.msra.mxu0 %v3186
          %4393 = vmatprep.subr.mxu0 0.0
          %4394 = vmatpush1.msra.mxu0 %v3187
          %4395 = vmatprep.subr.mxu0 0.0
          %4396 = vmatpush1.msra.mxu0 %v3188
          %4397 = vmatprep.subr.mxu0 0.0
          %4398 = vmatpush1.msra.mxu0 %v3189
          %4399 = vmatprep.subr.mxu0 0.0
          %4400 = vmatpush1.msra.mxu0 %v3190
          %4401 = vmatprep.subr.mxu0 0.0
          %4402 = vmatpush1.msra.mxu0 %v3191
          %4403 = vmatprep.subr.mxu0 0.0
          %4404 = vmatpush1.msra.mxu0 %v3192
          %4405 = vmatprep.subr.mxu0 0.0
          %4406 = vmatpush1.msra.mxu0 %v3193
          %4407 = vmatprep.subr.mxu0 0.0
          %4408 = vmatpush1.msra.mxu0 %v3194
          %4409 = vmatprep.subr.mxu0 0.0
          %4410 = vmatpush1.msra.mxu0 %v3195
          %4411 = vmatprep.subr.mxu0 0.0
          %4412 = vmatpush1.msra.mxu0 %v3196
          %4413 = vmatprep.subr.mxu0 0.0
          %4414 = vmatpush1.msra.mxu0 %v3197
          %4415 = vmatprep.subr.mxu0 0.0
          %4416 = vmatpush1.msra.mxu0 %v3198
          %4417 = vmatprep.subr.mxu0 0.0
          %4418 = vmatpush1.msra.mxu0 %v3199
          %4419 = vmatprep.subr.mxu0 0.0
          %4420 = vmatpush1.msra.mxu0 %v3200
          %4421 = vmatprep.subr.mxu0 0.0
          %4422 = vmatpush1.msra.mxu0 %v3201
          %4423 = vmatprep.subr.mxu0 0.0
          %4424 = vmatpush1.msra.mxu0 %v4359
          %4425 = vmatprep.mubr.f32.mxu0 %v4355
          %4426 = vmatmul.mubr.f32.gmra.mrb[0].mxu0 %v4352
          %v4427 = vpop.f32.mrb[0].mxu0
          %v4428 = vadd.f32 0.0, %v4427
          %v4429 = vpop.f32.mrb[0].mxu0
          %4430 = vdwg.mxu0
          %v4431 = vld [vmem:[%s11] sm:$0x1]
          %vm4432 = vcmask 121856
          %v4434 = vsel %vm4432, %v4428, 0
          %vm4436 = vcmask 1046528
          %v4438 = vsel %vm4436, %v3204, 0
          %4440 = vmatprep.subr.mxu0 0.0
          %4441 = vmatpush1.msra.mxu0 %v3203
          %4442 = vmatprep.subr.mxu0 0.0
          %4443 = vmatpush1.msra.mxu0 %v4438
          %4444 = vmatprep.subr.mxu0 0.0
          %4445 = vmatpush1.msra.mxu0 0.0
          %4446 = vmatprep.subr.mxu0 0.0
          %4447 = vmatpush1.msra.mxu0 0.0
          %4448 = vmatprep.subr.mxu0 0.0
          %4449 = vmatpush1.msra.mxu0 0.0
          %4450 = vmatprep.subr.mxu0 0.0
          %4451 = vmatpush1.msra.mxu0 0.0
          %4452 = vmatprep.subr.mxu0 0.0
          %4453 = vmatpush1.msra.mxu0 0.0
          %4454 = vmatprep.subr.mxu0 0.0
          %4455 = vmatpush1.msra.mxu0 0.0
          %4456 = vmatprep.subr.mxu0 0.0
          %4457 = vmatpush1.msra.mxu0 0.0
          %4458 = vmatprep.subr.mxu0 0.0
          %4459 = vmatpush1.msra.mxu0 0.0
          %4460 = vmatprep.subr.mxu0 0.0
          %4461 = vmatpush1.msra.mxu0 0.0
          %4462 = vmatprep.subr.mxu0 0.0
          %4463 = vmatpush1.msra.mxu0 0.0
          %4464 = vmatprep.subr.mxu0 0.0
          %4465 = vmatpush1.msra.mxu0 0.0
          %4466 = vmatprep.subr.mxu0 0.0
          %4467 = vmatpush1.msra.mxu0 0.0
          %4468 = vmatprep.subr.mxu0 0.0
          %4469 = vmatpush1.msra.mxu0 0.0
          %4470 = vmatprep.subr.mxu0 0.0
          %4471 = vmatpush1.msra.mxu0 0.0
          %4472 = vmatprep.subr.mxu0 0.0
          %4473 = vmatpush1.msra.mxu0 0.0
          %4474 = vmatprep.subr.mxu0 0.0
          %4475 = vmatpush1.msra.mxu0 0.0
          %4476 = vmatprep.subr.mxu0 0.0
          %4477 = vmatpush1.msra.mxu0 0.0
          %4478 = vmatprep.subr.mxu0 0.0
          %4479 = vmatpush1.msra.mxu0 0.0
          %4480 = vmatprep.subr.mxu0 0.0
          %4481 = vmatpush1.msra.mxu0 0.0
          %4482 = vmatprep.subr.mxu0 0.0
          %4483 = vmatpush1.msra.mxu0 0.0
          %4484 = vmatprep.subr.mxu0 0.0
          %4485 = vmatpush1.msra.mxu0 0.0
          %4486 = vmatprep.subr.mxu0 0.0
          %4487 = vmatpush1.msra.mxu0 0.0
          %4488 = vmatprep.subr.mxu0 0.0
          %4489 = vmatpush1.msra.mxu0 0.0
          %4490 = vmatprep.subr.mxu0 0.0
          %4491 = vmatpush1.msra.mxu0 0.0
          %4492 = vmatprep.subr.mxu0 0.0
          %4493 = vmatpush1.msra.mxu0 0.0
          %4494 = vmatprep.subr.mxu0 0.0
          %4495 = vmatpush1.msra.mxu0 0.0
          %4496 = vmatprep.subr.mxu0 0.0
          %4497 = vmatpush1.msra.mxu0 0.0
          %4498 = vmatprep.subr.mxu0 0.0
          %4499 = vmatpush1.msra.mxu0 0.0
          %4500 = vmatprep.subr.mxu0 0.0
          %4501 = vmatpush1.msra.mxu0 0.0
          %4502 = vmatprep.subr.mxu0 0.0
          %4503 = vmatpush1.msra.mxu0 0.0
          %4504 = vmatprep.mubr.f32.mxu0 0.0
          %4505 = vmatmul.mubr.f32.gmra.mrb[0].mxu0 %v4434
          %v4506 = vpop.f32.mrb[0].mxu0
          %v4507 = vadd.f32 0.0, %v4506
          %v4508 = vpop.f32.mrb[0].mxu0
          %4509 = vdwg.mxu0
          %v4510 = vadd.f32 %v4431, %v4507
          %v4511 = vrot.slane %v4428, 1
          %v4512 = vsel %vm4432, %v4511, 0
          %v4515 = vsel %vm4436, %v3206, 0
          %4517 = vmatprep.subr.mxu0 0.0
          %4518 = vmatpush1.msra.mxu0 %v3205
          %4519 = vmatprep.subr.mxu0 0.0
          %4520 = vmatpush1.msra.mxu0 %v4515
          %4521 = vmatprep.subr.mxu0 0.0
          %4522 = vmatpush1.msra.mxu0 0.0
          %4523 = vmatprep.subr.mxu0 0.0
          %4524 = vmatpush1.msra.mxu0 0.0
          %4525 = vmatprep.subr.mxu0 0.0
          %4526 = vmatpush1.msra.mxu0 0.0
          %4527 = vmatprep.subr.mxu0 0.0
          %4528 = vmatpush1.msra.mxu0 0.0
          %4529 = vmatprep.subr.mxu0 0.0
          %4530 = vmatpush1.msra.mxu0 0.0
          %4531 = vmatprep.subr.mxu0 0.0
          %4532 = vmatpush1.msra.mxu0 0.0
          %4533 = vmatprep.subr.mxu0 0.0
          %4534 = vmatpush1.msra.mxu0 0.0
          %4535 = vmatprep.subr.mxu0 0.0
          %4536 = vmatpush1.msra.mxu0 0.0
          %4537 = vmatprep.subr.mxu0 0.0
          %4538 = vmatpush1.msra.mxu0 0.0
          %4539 = vmatprep.subr.mxu0 0.0
          %4540 = vmatpush1.msra.mxu0 0.0
          %4541 = vmatprep.subr.mxu0 0.0
          %4542 = vmatpush1.msra.mxu0 0.0
          %4543 = vmatprep.subr.mxu0 0.0
          %4544 = vmatpush1.msra.mxu0 0.0
          %4545 = vmatprep.subr.mxu0 0.0
          %4546 = vmatpush1.msra.mxu0 0.0
          %4547 = vmatprep.subr.mxu0 0.0
          %4548 = vmatpush1.msra.mxu0 0.0
          %4549 = vmatprep.subr.mxu0 0.0
          %4550 = vmatpush1.msra.mxu0 0.0
          %4551 = vmatprep.subr.mxu0 0.0
          %4552 = vmatpush1.msra.mxu0 0.0
          %4553 = vmatprep.subr.mxu0 0.0
          %4554 = vmatpush1.msra.mxu0 0.0
          %4555 = vmatprep.subr.mxu0 0.0
          %4556 = vmatpush1.msra.mxu0 0.0
          %4557 = vmatprep.subr.mxu0 0.0
          %4558 = vmatpush1.msra.mxu0 0.0
          %4559 = vmatprep.subr.mxu0 0.0
          %4560 = vmatpush1.msra.mxu0 0.0
          %4561 = vmatprep.subr.mxu0 0.0
          %4562 = vmatpush1.msra.mxu0 0.0
          %4563 = vmatprep.subr.mxu0 0.0
          %4564 = vmatpush1.msra.mxu0 0.0
          %4565 = vmatprep.subr.mxu0 0.0
          %4566 = vmatpush1.msra.mxu0 0.0
          %4567 = vmatprep.subr.mxu0 0.0
          %4568 = vmatpush1.msra.mxu0 0.0
          %4569 = vmatprep.subr.mxu0 0.0
          %4570 = vmatpush1.msra.mxu0 0.0
          %4571 = vmatprep.subr.mxu0 0.0
          %4572 = vmatpush1.msra.mxu0 0.0
          %4573 = vmatprep.subr.mxu0 0.0
          %4574 = vmatpush1.msra.mxu0 0.0
          %4575 = vmatprep.subr.mxu0 0.0
          %4576 = vmatpush1.msra.mxu0 0.0
          %4577 = vmatprep.subr.mxu0 0.0
          %4578 = vmatpush1.msra.mxu0 0.0
          %4579 = vmatprep.subr.mxu0 0.0
          %4580 = vmatpush1.msra.mxu0 0.0
          %4581 = vmatprep.mubr.f32.mxu0 0.0
          %4582 = vmatmul.mubr.f32.gmra.mrb[0].mxu0 %v4512
          %v4583 = vpop.f32.mrb[0].mxu0
          %v4584 = vadd.f32 0.0, %v4583
          %v4585 = vpop.f32.mrb[0].mxu0
          %4586 = vdwg.mxu0
          %v4587 = vadd.f32 %v4510, %v4584
          %v4588 = vrot.slane %v4428, 2
          %v4589 = vsel %vm4432, %v4588, 0
          %v4592 = vsel %vm4436, %v3208, 0
          %4594 = vmatprep.subr.mxu0 0.0
          %4595 = vmatpush1.msra.mxu0 %v3207
          %4596 = vmatprep.subr.mxu0 0.0
          %4597 = vmatpush1.msra.mxu0 %v4592
          %4598 = vmatprep.subr.mxu0 0.0
          %4599 = vmatpush1.msra.mxu0 0.0
          %4600 = vmatprep.subr.mxu0 0.0
          %4601 = vmatpush1.msra.mxu0 0.0
          %4602 = vmatprep.subr.mxu0 0.0
          %4603 = vmatpush1.msra.mxu0 0.0
          %4604 = vmatprep.subr.mxu0 0.0
          %4605 = vmatpush1.msra.mxu0 0.0
          %4606 = vmatprep.subr.mxu0 0.0
          %4607 = vmatpush1.msra.mxu0 0.0
          %4608 = vmatprep.subr.mxu0 0.0
          %4609 = vmatpush1.msra.mxu0 0.0
          %4610 = vmatprep.subr.mxu0 0.0
          %4611 = vmatpush1.msra.mxu0 0.0
          %4612 = vmatprep.subr.mxu0 0.0
          %4613 = vmatpush1.msra.mxu0 0.0
          %4614 = vmatprep.subr.mxu0 0.0
          %4615 = vmatpush1.msra.mxu0 0.0
          %4616 = vmatprep.subr.mxu0 0.0
          %4617 = vmatpush1.msra.mxu0 0.0
          %4618 = vmatprep.subr.mxu0 0.0
          %4619 = vmatpush1.msra.mxu0 0.0
          %4620 = vmatprep.subr.mxu0 0.0
          %4621 = vmatpush1.msra.mxu0 0.0
          %4622 = vmatprep.subr.mxu0 0.0
          %4623 = vmatpush1.msra.mxu0 0.0
          %4624 = vmatprep.subr.mxu0 0.0
          %4625 = vmatpush1.msra.mxu0 0.0
          %4626 = vmatprep.subr.mxu0 0.0
          %4627 = vmatpush1.msra.mxu0 0.0
          %4628 = vmatprep.subr.mxu0 0.0
          %4629 = vmatpush1.msra.mxu0 0.0
          %4630 = vmatprep.subr.mxu0 0.0
          %4631 = vmatpush1.msra.mxu0 0.0
          %4632 = vmatprep.subr.mxu0 0.0
          %4633 = vmatpush1.msra.mxu0 0.0
          %4634 = vmatprep.subr.mxu0 0.0
          %4635 = vmatpush1.msra.mxu0 0.0
          %4636 = vmatprep.subr.mxu0 0.0
          %4637 = vmatpush1.msra.mxu0 0.0
          %4638 = vmatprep.subr.mxu0 0.0
          %4639 = vmatpush1.msra.mxu0 0.0
          %4640 = vmatprep.subr.mxu0 0.0
          %4641 = vmatpush1.msra.mxu0 0.0
          %4642 = vmatprep.subr.mxu0 0.0
          %4643 = vmatpush1.msra.mxu0 0.0
          %4644 = vmatprep.subr.mxu0 0.0
          %4645 = vmatpush1.msra.mxu0 0.0
          %4646 = vmatprep.subr.mxu0 0.0
          %4647 = vmatpush1.msra.mxu0 0.0
          %4648 = vmatprep.subr.mxu0 0.0
          %4649 = vmatpush1.msra.mxu0 0.0
          %4650 = vmatprep.subr.mxu0 0.0
          %4651 = vmatpush1.msra.mxu0 0.0
          %4652 = vmatprep.subr.mxu0 0.0
          %4653 = vmatpush1.msra.mxu0 0.0
          %4654 = vmatprep.subr.mxu0 0.0
          %4655 = vmatpush1.msra.mxu0 0.0
          %4656 = vmatprep.subr.mxu0 0.0
          %4657 = vmatpush1.msra.mxu0 0.0
          %4658 = vmatprep.mubr.f32.mxu0 0.0
          %4659 = vmatmul.mubr.f32.gmra.mrb[0].mxu0 %v4589
          %v4660 = vpop.f32.mrb[0].mxu0
          %v4661 = vadd.f32 0.0, %v4660
          %v4662 = vpop.f32.mrb[0].mxu0
          %4663 = vdwg.mxu0
          %v4664 = vadd.f32 %v4587, %v4661
          %v4665 = vrot.slane %v4428, 3
          %v4666 = vsel %vm4432, %v4665, 0
          %v4669 = vsel %vm4436, %v3210, 0
          %4671 = vmatprep.subr.mxu0 0.0
          %4672 = vmatpush1.msra.mxu0 %v3209
          %4673 = vmatprep.subr.mxu0 0.0
          %4674 = vmatpush1.msra.mxu0 %v4669
          %4675 = vmatprep.subr.mxu0 0.0
          %4676 = vmatpush1.msra.mxu0 0.0
          %4677 = vmatprep.subr.mxu0 0.0
          %4678 = vmatpush1.msra.mxu0 0.0
          %4679 = vmatprep.subr.mxu0 0.0
          %4680 = vmatpush1.msra.mxu0 0.0
          %4681 = vmatprep.subr.mxu0 0.0
          %4682 = vmatpush1.msra.mxu0 0.0
          %4683 = vmatprep.subr.mxu0 0.0
          %4684 = vmatpush1.msra.mxu0 0.0
          %4685 = vmatprep.subr.mxu0 0.0
          %4686 = vmatpush1.msra.mxu0 0.0
          %4687 = vmatprep.subr.mxu0 0.0
          %4688 = vmatpush1.msra.mxu0 0.0
          %4689 = vmatprep.subr.mxu0 0.0
          %4690 = vmatpush1.msra.mxu0 0.0
          %4691 = vmatprep.subr.mxu0 0.0
          %4692 = vmatpush1.msra.mxu0 0.0
          %4693 = vmatprep.subr.mxu0 0.0
          %4694 = vmatpush1.msra.mxu0 0.0
          %4695 = vmatprep.subr.mxu0 0.0
          %4696 = vmatpush1.msra.mxu0 0.0
          %4697 = vmatprep.subr.mxu0 0.0
          %4698 = vmatpush1.msra.mxu0 0.0
          %4699 = vmatprep.subr.mxu0 0.0
          %4700 = vmatpush1.msra.mxu0 0.0
          %4701 = vmatprep.subr.mxu0 0.0
          %4702 = vmatpush1.msra.mxu0 0.0
          %4703 = vmatprep.subr.mxu0 0.0
          %4704 = vmatpush1.msra.mxu0 0.0
          %4705 = vmatprep.subr.mxu0 0.0
          %4706 = vmatpush1.msra.mxu0 0.0
          %4707 = vmatprep.subr.mxu0 0.0
          %4708 = vmatpush1.msra.mxu0 0.0
          %4709 = vmatprep.subr.mxu0 0.0
          %4710 = vmatpush1.msra.mxu0 0.0
          %4711 = vmatprep.subr.mxu0 0.0
          %4712 = vmatpush1.msra.mxu0 0.0
          %4713 = vmatprep.subr.mxu0 0.0
          %4714 = vmatpush1.msra.mxu0 0.0
          %4715 = vmatprep.subr.mxu0 0.0
          %4716 = vmatpush1.msra.mxu0 0.0
          %4717 = vmatprep.subr.mxu0 0.0
          %4718 = vmatpush1.msra.mxu0 0.0
          %4719 = vmatprep.subr.mxu0 0.0
          %4720 = vmatpush1.msra.mxu0 0.0
          %4721 = vmatprep.subr.mxu0 0.0
          %4722 = vmatpush1.msra.mxu0 0.0
          %4723 = vmatprep.subr.mxu0 0.0
          %4724 = vmatpush1.msra.mxu0 0.0
          %4725 = vmatprep.subr.mxu0 0.0
          %4726 = vmatpush1.msra.mxu0 0.0
          %4727 = vmatprep.subr.mxu0 0.0
          %4728 = vmatpush1.msra.mxu0 0.0
          %4729 = vmatprep.subr.mxu0 0.0
          %4730 = vmatpush1.msra.mxu0 0.0
          %4731 = vmatprep.subr.mxu0 0.0
          %4732 = vmatpush1.msra.mxu0 0.0
          %4733 = vmatprep.subr.mxu0 0.0
          %4734 = vmatpush1.msra.mxu0 0.0
          %4735 = vmatprep.mubr.f32.mxu0 0.0
          %4736 = vmatmul.mubr.f32.gmra.mrb[0].mxu0 %v4666
          %v4737 = vpop.f32.mrb[0].mxu0
          %v4738 = vadd.f32 0.0, %v4737
          %v4739 = vpop.f32.mrb[0].mxu0
          %4740 = vdwg.mxu0
          %v4741 = vadd.f32 %v4664, %v4738
          %v4742 = vrot.slane %v4428, 4
          %v4743 = vsel %vm4432, %v4742, 0
          %v4746 = vsel %vm4436, %v3212, 0
          %4748 = vmatprep.subr.mxu0 0.0
          %4749 = vmatpush1.msra.mxu0 %v3211
          %4750 = vmatprep.subr.mxu0 0.0
          %4751 = vmatpush1.msra.mxu0 %v4746
          %4752 = vmatprep.subr.mxu0 0.0
          %4753 = vmatpush1.msra.mxu0 0.0
          %4754 = vmatprep.subr.mxu0 0.0
          %4755 = vmatpush1.msra.mxu0 0.0
          %4756 = vmatprep.subr.mxu0 0.0
          %4757 = vmatpush1.msra.mxu0 0.0
          %4758 = vmatprep.subr.mxu0 0.0
          %4759 = vmatpush1.msra.mxu0 0.0
          %4760 = vmatprep.subr.mxu0 0.0
          %4761 = vmatpush1.msra.mxu0 0.0
          %4762 = vmatprep.subr.mxu0 0.0
          %4763 = vmatpush1.msra.mxu0 0.0
          %4764 = vmatprep.subr.mxu0 0.0
          %4765 = vmatpush1.msra.mxu0 0.0
          %4766 = vmatprep.subr.mxu0 0.0
          %4767 = vmatpush1.msra.mxu0 0.0
          %4768 = vmatprep.subr.mxu0 0.0
          %4769 = vmatpush1.msra.mxu0 0.0
          %4770 = vmatprep.subr.mxu0 0.0
          %4771 = vmatpush1.msra.mxu0 0.0
          %4772 = vmatprep.subr.mxu0 0.0
          %4773 = vmatpush1.msra.mxu0 0.0
          %4774 = vmatprep.subr.mxu0 0.0
          %4775 = vmatpush1.msra.mxu0 0.0
          %4776 = vmatprep.subr.mxu0 0.0
          %4777 = vmatpush1.msra.mxu0 0.0
          %4778 = vmatprep.subr.mxu0 0.0
          %4779 = vmatpush1.msra.mxu0 0.0
          %4780 = vmatprep.subr.mxu0 0.0
          %4781 = vmatpush1.msra.mxu0 0.0
          %4782 = vmatprep.subr.mxu0 0.0
          %4783 = vmatpush1.msra.mxu0 0.0
          %4784 = vmatprep.subr.mxu0 0.0
          %4785 = vmatpush1.msra.mxu0 0.0
          %4786 = vmatprep.subr.mxu0 0.0
          %4787 = vmatpush1.msra.mxu0 0.0
          %4788 = vmatprep.subr.mxu0 0.0
          %4789 = vmatpush1.msra.mxu0 0.0
          %4790 = vmatprep.subr.mxu0 0.0
          %4791 = vmatpush1.msra.mxu0 0.0
          %4792 = vmatprep.subr.mxu0 0.0
          %4793 = vmatpush1.msra.mxu0 0.0
          %4794 = vmatprep.subr.mxu0 0.0
          %4795 = vmatpush1.msra.mxu0 0.0
          %4796 = vmatprep.subr.mxu0 0.0
          %4797 = vmatpush1.msra.mxu0 0.0
          %4798 = vmatprep.subr.mxu0 0.0
          %4799 = vmatpush1.msra.mxu0 0.0
          %4800 = vmatprep.subr.mxu0 0.0
          %4801 = vmatpush1.msra.mxu0 0.0
          %4802 = vmatprep.subr.mxu0 0.0
          %4803 = vmatpush1.msra.mxu0 0.0
          %4804 = vmatprep.subr.mxu0 0.0
          %4805 = vmatpush1.msra.mxu0 0.0
          %4806 = vmatprep.subr.mxu0 0.0
          %4807 = vmatpush1.msra.mxu0 0.0
          %4808 = vmatprep.subr.mxu0 0.0
          %4809 = vmatpush1.msra.mxu0 0.0
          %4810 = vmatprep.subr.mxu0 0.0
          %4811 = vmatpush1.msra.mxu0 0.0
          %4812 = vmatprep.mubr.f32.mxu0 0.0
          %4813 = vmatmul.mubr.f32.gmra.mrb[0].mxu0 %v4743
          %v4814 = vpop.f32.mrb[0].mxu0
          %v4815 = vadd.f32 0.0, %v4814
          %v4816 = vpop.f32.mrb[0].mxu0
          %4817 = vdwg.mxu0
          %v4818 = vadd.f32 %v4741, %v4815
          %v4819 = vrot.slane %v4428, 5
          %v4820 = vsel %vm4432, %v4819, 0
          %v4823 = vsel %vm4436, %v3214, 0
          %4825 = vmatprep.subr.mxu0 0.0
          %4826 = vmatpush1.msra.mxu0 %v3213
          %4827 = vmatprep.subr.mxu0 0.0
          %4828 = vmatpush1.msra.mxu0 %v4823
          %4829 = vmatprep.subr.mxu0 0.0
          %4830 = vmatpush1.msra.mxu0 0.0
          %4831 = vmatprep.subr.mxu0 0.0
          %4832 = vmatpush1.msra.mxu0 0.0
          %4833 = vmatprep.subr.mxu0 0.0
          %4834 = vmatpush1.msra.mxu0 0.0
          %4835 = vmatprep.subr.mxu0 0.0
          %4836 = vmatpush1.msra.mxu0 0.0
          %4837 = vmatprep.subr.mxu0 0.0
          %4838 = vmatpush1.msra.mxu0 0.0
          %4839 = vmatprep.subr.mxu0 0.0
          %4840 = vmatpush1.msra.mxu0 0.0
          %4841 = vmatprep.subr.mxu0 0.0
          %4842 = vmatpush1.msra.mxu0 0.0
          %4843 = vmatprep.subr.mxu0 0.0
          %4844 = vmatpush1.msra.mxu0 0.0
          %4845 = vmatprep.subr.mxu0 0.0
          %4846 = vmatpush1.msra.mxu0 0.0
          %4847 = vmatprep.subr.mxu0 0.0
          %4848 = vmatpush1.msra.mxu0 0.0
          %4849 = vmatprep.subr.mxu0 0.0
          %4850 = vmatpush1.msra.mxu0 0.0
          %4851 = vmatprep.subr.mxu0 0.0
          %4852 = vmatpush1.msra.mxu0 0.0
          %4853 = vmatprep.subr.mxu0 0.0
          %4854 = vmatpush1.msra.mxu0 0.0
          %4855 = vmatprep.subr.mxu0 0.0
          %4856 = vmatpush1.msra.mxu0 0.0
          %4857 = vmatprep.subr.mxu0 0.0
          %4858 = vmatpush1.msra.mxu0 0.0
          %4859 = vmatprep.subr.mxu0 0.0
          %4860 = vmatpush1.msra.mxu0 0.0
          %4861 = vmatprep.subr.mxu0 0.0
          %4862 = vmatpush1.msra.mxu0 0.0
          %4863 = vmatprep.subr.mxu0 0.0
          %4864 = vmatpush1.msra.mxu0 0.0
          %4865 = vmatprep.subr.mxu0 0.0
          %4866 = vmatpush1.msra.mxu0 0.0
          %4867 = vmatprep.subr.mxu0 0.0
          %4868 = vmatpush1.msra.mxu0 0.0
          %4869 = vmatprep.subr.mxu0 0.0
          %4870 = vmatpush1.msra.mxu0 0.0
          %4871 = vmatprep.subr.mxu0 0.0
          %4872 = vmatpush1.msra.mxu0 0.0
          %4873 = vmatprep.subr.mxu0 0.0
          %4874 = vmatpush1.msra.mxu0 0.0
          %4875 = vmatprep.subr.mxu0 0.0
          %4876 = vmatpush1.msra.mxu0 0.0
          %4877 = vmatprep.subr.mxu0 0.0
          %4878 = vmatpush1.msra.mxu0 0.0
          %4879 = vmatprep.subr.mxu0 0.0
          %4880 = vmatpush1.msra.mxu0 0.0
          %4881 = vmatprep.subr.mxu0 0.0
          %4882 = vmatpush1.msra.mxu0 0.0
          %4883 = vmatprep.subr.mxu0 0.0
          %4884 = vmatpush1.msra.mxu0 0.0
          %4885 = vmatprep.subr.mxu0 0.0
          %4886 = vmatpush1.msra.mxu0 0.0
          %4887 = vmatprep.subr.mxu0 0.0
          %4888 = vmatpush1.msra.mxu0 0.0
          %4889 = vmatprep.mubr.f32.mxu0 0.0
          %4890 = vmatmul.mubr.f32.gmra.mrb[0].mxu0 %v4820
          %v4891 = vpop.f32.mrb[0].mxu0
          %v4892 = vadd.f32 0.0, %v4891
          %v4893 = vpop.f32.mrb[0].mxu0
          %4894 = vdwg.mxu0
          %v4895 = vadd.f32 %v4818, %v4892
          %v4896 = vrot.slane %v4428, 6
          %v4897 = vsel %vm4432, %v4896, 0
          %v4900 = vsel %vm4436, %v3216, 0
          %4902 = vmatprep.subr.mxu0 0.0
          %4903 = vmatpush1.msra.mxu0 %v3215
          %4904 = vmatprep.subr.mxu0 0.0
          %4905 = vmatpush1.msra.mxu0 %v4900
          %4906 = vmatprep.subr.mxu0 0.0
          %4907 = vmatpush1.msra.mxu0 0.0
          %4908 = vmatprep.subr.mxu0 0.0
          %4909 = vmatpush1.msra.mxu0 0.0
          %4910 = vmatprep.subr.mxu0 0.0
          %4911 = vmatpush1.msra.mxu0 0.0
          %4912 = vmatprep.subr.mxu0 0.0
          %4913 = vmatpush1.msra.mxu0 0.0
          %4914 = vmatprep.subr.mxu0 0.0
          %4915 = vmatpush1.msra.mxu0 0.0
          %4916 = vmatprep.subr.mxu0 0.0
          %4917 = vmatpush1.msra.mxu0 0.0
          %4918 = vmatprep.subr.mxu0 0.0
          %4919 = vmatpush1.msra.mxu0 0.0
          %4920 = vmatprep.subr.mxu0 0.0
          %4921 = vmatpush1.msra.mxu0 0.0
          %4922 = vmatprep.subr.mxu0 0.0
          %4923 = vmatpush1.msra.mxu0 0.0
          %4924 = vmatprep.subr.mxu0 0.0
          %4925 = vmatpush1.msra.mxu0 0.0
          %4926 = vmatprep.subr.mxu0 0.0
          %4927 = vmatpush1.msra.mxu0 0.0
          %4928 = vmatprep.subr.mxu0 0.0
          %4929 = vmatpush1.msra.mxu0 0.0
          %4930 = vmatprep.subr.mxu0 0.0
          %4931 = vmatpush1.msra.mxu0 0.0
          %4932 = vmatprep.subr.mxu0 0.0
          %4933 = vmatpush1.msra.mxu0 0.0
          %4934 = vmatprep.subr.mxu0 0.0
          %4935 = vmatpush1.msra.mxu0 0.0
          %4936 = vmatprep.subr.mxu0 0.0
          %4937 = vmatpush1.msra.mxu0 0.0
          %4938 = vmatprep.subr.mxu0 0.0
          %4939 = vmatpush1.msra.mxu0 0.0
          %4940 = vmatprep.subr.mxu0 0.0
          %4941 = vmatpush1.msra.mxu0 0.0
          %4942 = vmatprep.subr.mxu0 0.0
          %4943 = vmatpush1.msra.mxu0 0.0
          %4944 = vmatprep.subr.mxu0 0.0
          %4945 = vmatpush1.msra.mxu0 0.0
          %4946 = vmatprep.subr.mxu0 0.0
          %4947 = vmatpush1.msra.mxu0 0.0
          %4948 = vmatprep.subr.mxu0 0.0
          %4949 = vmatpush1.msra.mxu0 0.0
          %4950 = vmatprep.subr.mxu0 0.0
          %4951 = vmatpush1.msra.mxu0 0.0
          %4952 = vmatprep.subr.mxu0 0.0
          %4953 = vmatpush1.msra.mxu0 0.0
          %4954 = vmatprep.subr.mxu0 0.0
          %4955 = vmatpush1.msra.mxu0 0.0
          %4956 = vmatprep.subr.mxu0 0.0
          %4957 = vmatpush1.msra.mxu0 0.0
          %4958 = vmatprep.subr.mxu0 0.0
          %4959 = vmatpush1.msra.mxu0 0.0
          %4960 = vmatprep.subr.mxu0 0.0
          %4961 = vmatpush1.msra.mxu0 0.0
          %4962 = vmatprep.subr.mxu0 0.0
          %4963 = vmatpush1.msra.mxu0 0.0
          %4964 = vmatprep.subr.mxu0 0.0
          %4965 = vmatpush1.msra.mxu0 0.0
          %4966 = vmatprep.mubr.f32.mxu0 0.0
          %4967 = vmatmul.mubr.f32.gmra.mrb[0].mxu0 %v4897
          %v4968 = vpop.f32.mrb[0].mxu0
          %v4969 = vadd.f32 0.0, %v4968
          %v4970 = vpop.f32.mrb[0].mxu0
          %4971 = vdwg.mxu0
          %v4972 = vadd.f32 %v4895, %v4969
          %v4973 = vrot.slane %v4428, 7
          %v4974 = vsel %vm4432, %v4973, 0
          %v4977 = vsel %vm4436, %v3218, 0
          %4979 = vmatprep.subr.mxu0 0.0
          %4980 = vmatpush1.msra.mxu0 %v3217
          %4981 = vmatprep.subr.mxu0 0.0
          %4982 = vmatpush1.msra.mxu0 %v4977
          %4983 = vmatprep.subr.mxu0 0.0
          %4984 = vmatpush1.msra.mxu0 0.0
          %4985 = vmatprep.subr.mxu0 0.0
          %4986 = vmatpush1.msra.mxu0 0.0
          %4987 = vmatprep.subr.mxu0 0.0
          %4988 = vmatpush1.msra.mxu0 0.0
          %4989 = vmatprep.subr.mxu0 0.0
          %4990 = vmatpush1.msra.mxu0 0.0
          %4991 = vmatprep.subr.mxu0 0.0
          %4992 = vmatpush1.msra.mxu0 0.0
          %4993 = vmatprep.subr.mxu0 0.0
          %4994 = vmatpush1.msra.mxu0 0.0
          %4995 = vmatprep.subr.mxu0 0.0
          %4996 = vmatpush1.msra.mxu0 0.0
          %4997 = vmatprep.subr.mxu0 0.0
          %4998 = vmatpush1.msra.mxu0 0.0
          %4999 = vmatprep.subr.mxu0 0.0
          %5000 = vmatpush1.msra.mxu0 0.0
          %5001 = vmatprep.subr.mxu0 0.0
          %5002 = vmatpush1.msra.mxu0 0.0
          %5003 = vmatprep.subr.mxu0 0.0
          %5004 = vmatpush1.msra.mxu0 0.0
          %5005 = vmatprep.subr.mxu0 0.0
          %5006 = vmatpush1.msra.mxu0 0.0
          %5007 = vmatprep.subr.mxu0 0.0
          %5008 = vmatpush1.msra.mxu0 0.0
          %5009 = vmatprep.subr.mxu0 0.0
          %5010 = vmatpush1.msra.mxu0 0.0
          %5011 = vmatprep.subr.mxu0 0.0
          %5012 = vmatpush1.msra.mxu0 0.0
          %5013 = vmatprep.subr.mxu0 0.0
          %5014 = vmatpush1.msra.mxu0 0.0
          %5015 = vmatprep.subr.mxu0 0.0
          %5016 = vmatpush1.msra.mxu0 0.0
          %5017 = vmatprep.subr.mxu0 0.0
          %5018 = vmatpush1.msra.mxu0 0.0
          %5019 = vmatprep.subr.mxu0 0.0
          %5020 = vmatpush1.msra.mxu0 0.0
          %5021 = vmatprep.subr.mxu0 0.0
          %5022 = vmatpush1.msra.mxu0 0.0
          %5023 = vmatprep.subr.mxu0 0.0
          %5024 = vmatpush1.msra.mxu0 0.0
          %5025 = vmatprep.subr.mxu0 0.0
          %5026 = vmatpush1.msra.mxu0 0.0
          %5027 = vmatprep.subr.mxu0 0.0
          %5028 = vmatpush1.msra.mxu0 0.0
          %5029 = vmatprep.subr.mxu0 0.0
          %5030 = vmatpush1.msra.mxu0 0.0
          %5031 = vmatprep.subr.mxu0 0.0
          %5032 = vmatpush1.msra.mxu0 0.0
          %5033 = vmatprep.subr.mxu0 0.0
          %5034 = vmatpush1.msra.mxu0 0.0
          %5035 = vmatprep.subr.mxu0 0.0
          %5036 = vmatpush1.msra.mxu0 0.0
          %5037 = vmatprep.subr.mxu0 0.0
          %5038 = vmatpush1.msra.mxu0 0.0
          %5039 = vmatprep.subr.mxu0 0.0
          %5040 = vmatpush1.msra.mxu0 0.0
          %5041 = vmatprep.subr.mxu0 0.0
          %5042 = vmatpush1.msra.mxu0 0.0
          %5043 = vmatprep.mubr.f32.mxu0 0.0
          %5044 = vmatmul.mubr.f32.gmra.mrb[0].mxu0 %v4974
          %v5045 = vpop.f32.mrb[0].mxu0
          %v5046 = vadd.f32 0.0, %v5045
          %v5047 = vpop.f32.mrb[0].mxu0
          %5048 = vdwg.mxu0
          %v5049 = vadd.f32 %v4972, %v5046
          %v5050 = vmax.f32 %v5049, 0.0
          %v5051 = vld [vmem:[%s13] sm:$0x1]
          %vm5052 = vcmask 818176
          %v5054 = vsel %vm5052, %v5050, 0
          %v5057 = vsel %vm4357, %v3235, 0
          %5059 = vmatprep.subr.mxu0 0.0
          %5060 = vmatpush1.msra.mxu0 %v3223
          %5061 = vmatprep.subr.mxu0 0.0
          %5062 = vmatpush1.msra.mxu0 %v3224
          %5063 = vmatprep.subr.mxu0 0.0
          %5064 = vmatpush1.msra.mxu0 %v3225
          %5065 = vmatprep.subr.mxu0 0.0
          %5066 = vmatpush1.msra.mxu0 %v3226
          %5067 = vmatprep.subr.mxu0 0.0
          %5068 = vmatpush1.msra.mxu0 %v3227
          %5069 = vmatprep.subr.mxu0 0.0
          %5070 = vmatpush1.msra.mxu0 %v3228
          %5071 = vmatprep.subr.mxu0 0.0
          %5072 = vmatpush1.msra.mxu0 %v3229
          %5073 = vmatprep.subr.mxu0 0.0
          %5074 = vmatpush1.msra.mxu0 %v3230
          %5075 = vmatprep.subr.mxu0 0.0
          %5076 = vmatpush1.msra.mxu0 %v3231
          %5077 = vmatprep.subr.mxu0 0.0
          %5078 = vmatpush1.msra.mxu0 %v3232
          %5079 = vmatprep.subr.mxu0 0.0
          %5080 = vmatpush1.msra.mxu0 %v3233
          %5081 = vmatprep.subr.mxu0 0.0
          %5082 = vmatpush1.msra.mxu0 %v3234
          %5083 = vmatprep.subr.mxu0 0.0
          %5084 = vmatpush1.msra.mxu0 %v5057
          %5085 = vmatprep.subr.mxu0 0.0
          %5086 = vmatpush1.msra.mxu0 0.0
          %5087 = vmatprep.subr.mxu0 0.0
          %5088 = vmatpush1.msra.mxu0 0.0
          %5089 = vmatprep.subr.mxu0 0.0
          %5090 = vmatpush1.msra.mxu0 0.0
          %5091 = vmatprep.subr.mxu0 0.0
          %5092 = vmatpush1.msra.mxu0 0.0
          %5093 = vmatprep.subr.mxu0 0.0
          %5094 = vmatpush1.msra.mxu0 0.0
          %5095 = vmatprep.subr.mxu0 0.0
          %5096 = vmatpush1.msra.mxu0 0.0
          %5097 = vmatprep.subr.mxu0 0.0
          %5098 = vmatpush1.msra.mxu0 0.0
          %5099 = vmatprep.subr.mxu0 0.0
          %5100 = vmatpush1.msra.mxu0 0.0
          %5101 = vmatprep.subr.mxu0 0.0
          %5102 = vmatpush1.msra.mxu0 0.0
          %5103 = vmatprep.subr.mxu0 0.0
          %5104 = vmatpush1.msra.mxu0 0.0
          %5105 = vmatprep.subr.mxu0 0.0
          %5106 = vmatpush1.msra.mxu0 0.0
          %5107 = vmatprep.subr.mxu0 0.0
          %5108 = vmatpush1.msra.mxu0 0.0
          %5109 = vmatprep.subr.mxu0 0.0
          %5110 = vmatpush1.msra.mxu0 0.0
          %5111 = vmatprep.subr.mxu0 0.0
          %5112 = vmatpush1.msra.mxu0 0.0
          %5113 = vmatprep.subr.mxu0 0.0
          %5114 = vmatpush1.msra.mxu0 0.0
          %5115 = vmatprep.subr.mxu0 0.0
          %5116 = vmatpush1.msra.mxu0 0.0
          %5117 = vmatprep.subr.mxu0 0.0
          %5118 = vmatpush1.msra.mxu0 0.0
          %5119 = vmatprep.subr.mxu0 0.0
          %5120 = vmatpush1.msra.mxu0 0.0
          %5121 = vmatprep.subr.mxu0 0.0
          %5122 = vmatpush1.msra.mxu0 0.0
          %5123 = vmatprep.mubr.f32.mxu0 0.0
          %5124 = vmatmul.mubr.f32.gmra.mrb[0].mxu0 %v5054
          %v5125 = vpop.f32.mrb[0].mxu0
          %v5126 = vadd.f32 %v5051, %v5125
          %v5127 = vpop.f32.mrb[0].mxu0
          %5128 = vdwg.mxu0
          %vm5129 = vcmask 49152
          %5130 = vst.msk [vmem:[#allocation5] sm:$0x1] %vm5129, %v5126
          %v5131 = vld [vmem:[%s2394] sm:$0xff]
          %v5132 = vld [vmem:[%s2394 + $0x8] sm:$0xff]
          %v5133 = vld [vmem:[%s2394 + $0x10] sm:$0xff]
          %v5134 = vld [vmem:[%s2394 + $0x18] sm:$0xff]
          %v5135 = vld [vmem:[%s2394 + $0x20] sm:$0xff]
          %v5136 = vld [vmem:[%s2394 + $0x28] sm:$0xff]
          %v5137 = vld [vmem:[%s2394 + $0x30] sm:$0xff]
          %v5138 = vld [vmem:[%s2394 + $0x38] sm:$0xff]
          %v5139 = vld [vmem:[%s2394 + $0x40] sm:$0xff]
          %v5140 = vld [vmem:[%s2394 + $0x48] sm:$0xff]
          %v5141 = vld [vmem:[%s2394 + $0x50] sm:$0xff]
          %v5142 = vld [vmem:[%s2394 + $0x58] sm:$0xff]
          %v5143 = vld [vmem:[%s2394 + $0x60] sm:$0xff]
          %v5144 = vld [vmem:[%s2394 + $0x68] sm:$0xff]
          %v5145 = vld [vmem:[%s2394 + $0x70] sm:$0xff]
          %v5146 = vld [vmem:[%s2394 + $0x78] sm:$0xff]
          %v5147 = vld [vmem:[%s2394 + $0x80] sm:$0xff]
          %v5148 = vld [vmem:[%s2394 + $0x88] sm:$0xff]
          %5151 = vrot.lane.b32.xlu0 %v5131, 19
          %v5152 = vpop.permute.xlu0 %5151
          %5153 = vrot.lane.b32.xlu0 %v5132, 19
          %v5154 = vpop.permute.xlu0 %5153
          %v5155 = vsel %vm3260, %v5152, %v5154
          %v5158 = vsel %vm3260, 0.0, %v5152
          %v5159 = vmul.f32 %v5158, %v3268
          %v5160 = vmul.f32 %v5155, %v3272
          %v5161 = vadd.f32 %v5159, 0.0
          %v5162 = vadd.f32 %v5160, 0.0
          %5165 = vrot.lane.b32.xlu0 %v5133, 18
          %v5166 = vpop.permute.xlu0 %5165
          %5167 = vrot.lane.b32.xlu0 %v5134, 18
          %v5168 = vpop.permute.xlu0 %5167
          %v5169 = vsel %vm3283, %v5166, %v5168
          %v5172 = vsel %vm3283, 0.0, %v5166
          %v5173 = vmul.f32 %v5172, %v3291
          %v5174 = vmul.f32 %v5169, %v3295
          %v5175 = vadd.f32 %v5161, %v5173
          %v5176 = vadd.f32 %v5162, %v5174
          %5179 = vrot.lane.b32.xlu0 %v5135, 17
          %v5180 = vpop.permute.xlu0 %5179
          %5181 = vrot.lane.b32.xlu0 %v5136, 17
          %v5182 = vpop.permute.xlu0 %5181
          %v5183 = vsel %vm3306, %v5180, %v5182
          %v5186 = vsel %vm3306, 0.0, %v5180
          %v5187 = vmul.f32 %v5186, %v3314
          %v5188 = vmul.f32 %v5183, %v3318
          %v5189 = vadd.f32 %v5175, %v5187
          %v5190 = vadd.f32 %v5176, %v5188
          %5193 = vrot.lane.b32.xlu0 %v5137, 1
          %v5194 = vpop.permute.xlu0 %5193
          %5195 = vrot.lane.b32.xlu0 %v5138, 1
          %v5196 = vpop.permute.xlu0 %5195
          %v5197 = vsel %vm3329, %v5194, %v5196
          %v5200 = vsel %vm3329, 0.0, %v5194
          %v5201 = vmul.f32 %v5200, %v3337
          %v5202 = vmul.f32 %v5197, %v3341
          %v5203 = vadd.f32 %v5189, %v5201
          %v5204 = vadd.f32 %v5190, %v5202
          %v5205 = vmul.f32 %v5139, %v3349
          %v5206 = vmul.f32 %v5140, %v3353
          %v5207 = vadd.f32 %v5203, %v5205
          %v5208 = vadd.f32 %v5204, %v5206
          %5211 = vrot.lane.b32.xlu0 %v5141, 127
          %v5212 = vpop.permute.xlu0 %5211
          %5213 = vrot.lane.b32.xlu0 %v5142, 127
          %v5214 = vpop.permute.xlu0 %5213
          %v5215 = vsel %vm3364, %v5212, %v5214
          %v5218 = vsel %vm3368, %v5214, 0.0
          %v5219 = vmul.f32 %v5215, %v3373
          %v5220 = vmul.f32 %v5218, %v3377
          %v5221 = vadd.f32 %v5207, %v5219
          %v5222 = vadd.f32 %v5208, %v5220
          %5225 = vrot.lane.b32.xlu0 %v5143, 111
          %v5226 = vpop.permute.xlu0 %5225
          %5227 = vrot.lane.b32.xlu0 %v5144, 111
          %v5228 = vpop.permute.xlu0 %5227
          %v5229 = vsel %vm3388, %v5226, %v5228
          %v5232 = vsel %vm3392, %v5228, 0.0
          %v5233 = vmul.f32 %v5229, %v3397
          %v5234 = vmul.f32 %v5232, %v3401
          %v5235 = vadd.f32 %v5221, %v5233
          %v5236 = vadd.f32 %v5222, %v5234
          %5239 = vrot.lane.b32.xlu0 %v5145, 110
          %v5240 = vpop.permute.xlu0 %5239
          %5241 = vrot.lane.b32.xlu0 %v5146, 110
          %v5242 = vpop.permute.xlu0 %5241
          %v5243 = vsel %vm3412, %v5240, %v5242
          %v5246 = vsel %vm3416, %v5242, 0.0
          %v5247 = vmul.f32 %v5243, %v3421
          %v5248 = vmul.f32 %v5246, %v3425
          %v5249 = vadd.f32 %v5235, %v5247
          %v5250 = vadd.f32 %v5236, %v5248
          %5253 = vrot.lane.b32.xlu0 %v5147, 109
          %v5254 = vpop.permute.xlu0 %5253
          %5255 = vrot.lane.b32.xlu0 %v5148, 109
          %v5256 = vpop.permute.xlu0 %5255
          %v5257 = vsel %vm3436, %v5254, %v5256
          %v5260 = vsel %vm3440, %v5256, 0.0
          %v5261 = vmul.f32 %v5257, %v3445
          %v5262 = vmul.f32 %v5260, %v3449
          %v5263 = vadd.f32 %v5249, %v5261
          %v5264 = vadd.f32 %v5250, %v5262
          %v5265 = vmul.f32 %v5263, %v3457
          %v5266 = vmul.f32 %v5264, %v3457
          %v5267 = vadd.f32 %v5265, %v3464
          %v5268 = vadd.f32 %v5266, %v3464
          %v5269 = vmax.f32 %v5267, 0.0
          %v5270 = vmax.f32 %v5268, 0.0
          %5271 = vmatprep.subr.mxu0 %v5270
          %5272 = vmatpush1.msra.mxu0 %v5269
          %5273 = vmatprep.subr.mxu0 0.0
          %5274 = vmatpush1.msra.mxu0 0.0
          %5275 = vmatprep.subr.mxu0 0.0
          %5276 = vmatpush1.msra.mxu0 0.0
          %5277 = vmatprep.subr.mxu0 0.0
          %5278 = vmatpush1.msra.mxu0 0.0
          %5279 = vmatprep.subr.mxu0 0.0
          %5280 = vmatpush1.msra.mxu0 0.0
          %5281 = vmatprep.subr.mxu0 0.0
          %5282 = vmatpush1.msra.mxu0 0.0
          %5283 = vmatprep.subr.mxu0 0.0
          %5284 = vmatpush1.msra.mxu0 0.0
          %5285 = vmatprep.subr.mxu0 0.0
          %5286 = vmatpush1.msra.mxu0 0.0
          %5287 = vmatprep.subr.mxu0 0.0
          %5288 = vmatpush1.msra.mxu0 0.0
          %5289 = vmatprep.subr.mxu0 0.0
          %5290 = vmatpush1.msra.mxu0 0.0
          %5291 = vmatprep.subr.mxu0 0.0
          %5292 = vmatpush1.msra.mxu0 0.0
          %5293 = vmatprep.subr.mxu0 0.0
          %5294 = vmatpush1.msra.mxu0 0.0
          %5295 = vmatprep.subr.mxu0 0.0
          %5296 = vmatpush1.msra.mxu0 0.0
          %5297 = vmatprep.subr.mxu0 0.0
          %5298 = vmatpush1.msra.mxu0 0.0
          %5299 = vmatprep.subr.mxu0 0.0
          %5300 = vmatpush1.msra.mxu0 0.0
          %5301 = vmatprep.subr.mxu0 0.0
          %5302 = vmatpush1.msra.mxu0 0.0
          %5303 = vmatprep.subr.mxu0 0.0
          %5304 = vmatpush1.msra.mxu0 0.0
          %5305 = vmatprep.subr.mxu0 0.0
          %5306 = vmatpush1.msra.mxu0 0.0
          %5307 = vmatprep.subr.mxu0 0.0
          %5308 = vmatpush1.msra.mxu0 0.0
          %5309 = vmatprep.subr.mxu0 0.0
          %5310 = vmatpush1.msra.mxu0 0.0
          %5311 = vmatprep.subr.mxu0 0.0
          %5312 = vmatpush1.msra.mxu0 0.0
          %5313 = vmatprep.subr.mxu0 0.0
          %5314 = vmatpush1.msra.mxu0 0.0
          %5315 = vmatprep.subr.mxu0 0.0
          %5316 = vmatpush1.msra.mxu0 0.0
          %5317 = vmatprep.subr.mxu0 0.0
          %5318 = vmatpush1.msra.mxu0 0.0
          %5319 = vmatprep.subr.mxu0 0.0
          %5320 = vmatpush1.msra.mxu0 0.0
          %5321 = vmatprep.subr.mxu0 0.0
          %5322 = vmatpush1.msra.mxu0 0.0
          %5323 = vmatprep.subr.mxu0 0.0
          %5324 = vmatpush1.msra.mxu0 0.0
          %5325 = vmatprep.subr.mxu0 0.0
          %5326 = vmatpush1.msra.mxu0 0.0
          %5327 = vmatprep.subr.mxu0 0.0
          %5328 = vmatpush1.msra.mxu0 0.0
          %5329 = vmatprep.subr.mxu0 0.0
          %5330 = vmatpush1.msra.mxu0 0.0
          %5331 = vmatprep.subr.mxu0 0.0
          %5332 = vmatpush1.msra.mxu0 0.0
          %5333 = vmatprep.subr.mxu0 0.0
          %5334 = vmatpush1.msra.mxu0 0.0
          %5335 = vmatprep.mubr.f32.mxu0 0.0
          %5336 = vmatmul.mubr.f32.gmra.mrb[0].mxu0 %v3472
          %v5337 = vpop.f32.mrb[0].mxu0
          %v5338 = vadd.f32 0.0, %v5337
          %v5339 = vpop.f32.mrb[0].mxu0
          %v5340 = vadd.f32 0.0, %v5339
          %5341 = vdwg.mxu0
          %5344 = vrot.lane.b32.xlu0 %v5338, 2
          %v5345 = vpop.permute.xlu0 %5344
          %5346 = vrot.lane.b32.xlu0 %v5340, 2
          %v5347 = vpop.permute.xlu0 %5346
          %v5348 = vsel %vm3551, %v5345, %v5347
          %v5351 = vsel %vm3551, 0.0, %v5345
          %v5352 = vmul.f32 %v5351, %v3559
          %v5353 = vmul.f32 %v5348, %v3563
          %v5354 = vadd.f32 %v5352, 0.0
          %v5355 = vadd.f32 %v5353, 0.0
          %5356 = vmatprep.subr.mxu0 %v5270
          %5357 = vmatpush1.msra.mxu0 %v5269
          %5358 = vmatprep.subr.mxu0 0.0
          %5359 = vmatpush1.msra.mxu0 0.0
          %5360 = vmatprep.subr.mxu0 0.0
          %5361 = vmatpush1.msra.mxu0 0.0
          %5362 = vmatprep.subr.mxu0 0.0
          %5363 = vmatpush1.msra.mxu0 0.0
          %5364 = vmatprep.subr.mxu0 0.0
          %5365 = vmatpush1.msra.mxu0 0.0
          %5366 = vmatprep.subr.mxu0 0.0
          %5367 = vmatpush1.msra.mxu0 0.0
          %5368 = vmatprep.subr.mxu0 0.0
          %5369 = vmatpush1.msra.mxu0 0.0
          %5370 = vmatprep.subr.mxu0 0.0
          %5371 = vmatpush1.msra.mxu0 0.0
          %5372 = vmatprep.subr.mxu0 0.0
          %5373 = vmatpush1.msra.mxu0 0.0
          %5374 = vmatprep.subr.mxu0 0.0
          %5375 = vmatpush1.msra.mxu0 0.0
          %5376 = vmatprep.subr.mxu0 0.0
          %5377 = vmatpush1.msra.mxu0 0.0
          %5378 = vmatprep.subr.mxu0 0.0
          %5379 = vmatpush1.msra.mxu0 0.0
          %5380 = vmatprep.subr.mxu0 0.0
          %5381 = vmatpush1.msra.mxu0 0.0
          %5382 = vmatprep.subr.mxu0 0.0
          %5383 = vmatpush1.msra.mxu0 0.0
          %5384 = vmatprep.subr.mxu0 0.0
          %5385 = vmatpush1.msra.mxu0 0.0
          %5386 = vmatprep.subr.mxu0 0.0
          %5387 = vmatpush1.msra.mxu0 0.0
          %5388 = vmatprep.subr.mxu0 0.0
          %5389 = vmatpush1.msra.mxu0 0.0
          %5390 = vmatprep.subr.mxu0 0.0
          %5391 = vmatpush1.msra.mxu0 0.0
          %5392 = vmatprep.subr.mxu0 0.0
          %5393 = vmatpush1.msra.mxu0 0.0
          %5394 = vmatprep.subr.mxu0 0.0
          %5395 = vmatpush1.msra.mxu0 0.0
          %5396 = vmatprep.subr.mxu0 0.0
          %5397 = vmatpush1.msra.mxu0 0.0
          %5398 = vmatprep.subr.mxu0 0.0
          %5399 = vmatpush1.msra.mxu0 0.0
          %5400 = vmatprep.subr.mxu0 0.0
          %5401 = vmatpush1.msra.mxu0 0.0
          %5402 = vmatprep.subr.mxu0 0.0
          %5403 = vmatpush1.msra.mxu0 0.0
          %5404 = vmatprep.subr.mxu0 0.0
          %5405 = vmatpush1.msra.mxu0 0.0
          %5406 = vmatprep.subr.mxu0 0.0
          %5407 = vmatpush1.msra.mxu0 0.0
          %5408 = vmatprep.subr.mxu0 0.0
          %5409 = vmatpush1.msra.mxu0 0.0
          %5410 = vmatprep.subr.mxu0 0.0
          %5411 = vmatpush1.msra.mxu0 0.0
          %5412 = vmatprep.subr.mxu0 0.0
          %5413 = vmatpush1.msra.mxu0 0.0
          %5414 = vmatprep.subr.mxu0 0.0
          %5415 = vmatpush1.msra.mxu0 0.0
          %5416 = vmatprep.subr.mxu0 0.0
          %5417 = vmatpush1.msra.mxu0 0.0
          %5418 = vmatprep.subr.mxu0 0.0
          %5419 = vmatpush1.msra.mxu0 0.0
          %5420 = vmatprep.mubr.f32.mxu0 0.0
          %5421 = vmatmul.mubr.f32.gmra.mrb[0].mxu0 %v3569
          %v5422 = vpop.f32.mrb[0].mxu0
          %v5423 = vadd.f32 0.0, %v5422
          %v5424 = vpop.f32.mrb[0].mxu0
          %v5425 = vadd.f32 0.0, %v5424
          %5426 = vdwg.mxu0
          %v5427 = vmul.f32 %v5423, %v3645
          %v5428 = vmul.f32 %v5425, %v3649
          %v5429 = vadd.f32 %v5354, %v5427
          %v5430 = vadd.f32 %v5355, %v5428
          %5431 = vmatprep.subr.mxu0 %v5270
          %5432 = vmatpush1.msra.mxu0 %v5269
          %5433 = vmatprep.subr.mxu0 0.0
          %5434 = vmatpush1.msra.mxu0 0.0
          %5435 = vmatprep.subr.mxu0 0.0
          %5436 = vmatpush1.msra.mxu0 0.0
          %5437 = vmatprep.subr.mxu0 0.0
          %5438 = vmatpush1.msra.mxu0 0.0
          %5439 = vmatprep.subr.mxu0 0.0
          %5440 = vmatpush1.msra.mxu0 0.0
          %5441 = vmatprep.subr.mxu0 0.0
          %5442 = vmatpush1.msra.mxu0 0.0
          %5443 = vmatprep.subr.mxu0 0.0
          %5444 = vmatpush1.msra.mxu0 0.0
          %5445 = vmatprep.subr.mxu0 0.0
          %5446 = vmatpush1.msra.mxu0 0.0
          %5447 = vmatprep.subr.mxu0 0.0
          %5448 = vmatpush1.msra.mxu0 0.0
          %5449 = vmatprep.subr.mxu0 0.0
          %5450 = vmatpush1.msra.mxu0 0.0
          %5451 = vmatprep.subr.mxu0 0.0
          %5452 = vmatpush1.msra.mxu0 0.0
          %5453 = vmatprep.subr.mxu0 0.0
          %5454 = vmatpush1.msra.mxu0 0.0
          %5455 = vmatprep.subr.mxu0 0.0
          %5456 = vmatpush1.msra.mxu0 0.0
          %5457 = vmatprep.subr.mxu0 0.0
          %5458 = vmatpush1.msra.mxu0 0.0
          %5459 = vmatprep.subr.mxu0 0.0
          %5460 = vmatpush1.msra.mxu0 0.0
          %5461 = vmatprep.subr.mxu0 0.0
          %5462 = vmatpush1.msra.mxu0 0.0
          %5463 = vmatprep.subr.mxu0 0.0
          %5464 = vmatpush1.msra.mxu0 0.0
          %5465 = vmatprep.subr.mxu0 0.0
          %5466 = vmatpush1.msra.mxu0 0.0
          %5467 = vmatprep.subr.mxu0 0.0
          %5468 = vmatpush1.msra.mxu0 0.0
          %5469 = vmatprep.subr.mxu0 0.0
          %5470 = vmatpush1.msra.mxu0 0.0
          %5471 = vmatprep.subr.mxu0 0.0
          %5472 = vmatpush1.msra.mxu0 0.0
          %5473 = vmatprep.subr.mxu0 0.0
          %5474 = vmatpush1.msra.mxu0 0.0
          %5475 = vmatprep.subr.mxu0 0.0
          %5476 = vmatpush1.msra.mxu0 0.0
          %5477 = vmatprep.subr.mxu0 0.0
          %5478 = vmatpush1.msra.mxu0 0.0
          %5479 = vmatprep.subr.mxu0 0.0
          %5480 = vmatpush1.msra.mxu0 0.0
          %5481 = vmatprep.subr.mxu0 0.0
          %5482 = vmatpush1.msra.mxu0 0.0
          %5483 = vmatprep.subr.mxu0 0.0
          %5484 = vmatpush1.msra.mxu0 0.0
          %5485 = vmatprep.subr.mxu0 0.0
          %5486 = vmatpush1.msra.mxu0 0.0
          %5487 = vmatprep.subr.mxu0 0.0
          %5488 = vmatpush1.msra.mxu0 0.0
          %5489 = vmatprep.subr.mxu0 0.0
          %5490 = vmatpush1.msra.mxu0 0.0
          %5491 = vmatprep.subr.mxu0 0.0
          %5492 = vmatpush1.msra.mxu0 0.0
          %5493 = vmatprep.subr.mxu0 0.0
          %5494 = vmatpush1.msra.mxu0 0.0
          %5495 = vmatprep.mubr.f32.mxu0 0.0
          %5496 = vmatmul.mubr.f32.gmra.mrb[0].mxu0 %v3655
          %v5497 = vpop.f32.mrb[0].mxu0
          %v5498 = vadd.f32 0.0, %v5497
          %v5499 = vpop.f32.mrb[0].mxu0
          %v5500 = vadd.f32 0.0, %v5499
          %5501 = vdwg.mxu0
          %5504 = vrot.lane.b32.xlu0 %v5498, 126
          %v5505 = vpop.permute.xlu0 %5504
          %5506 = vrot.lane.b32.xlu0 %v5500, 126
          %v5507 = vpop.permute.xlu0 %5506
          %v5508 = vsel %vm3734, %v5505, %v5507
          %v5511 = vsel %vm3738, %v5507, 0.0
          %v5512 = vmul.f32 %v5508, %v3743
          %v5513 = vmul.f32 %v5511, %v3747
          %v5514 = vadd.f32 %v5429, %v5512
          %v5515 = vadd.f32 %v5430, %v5513
          %5516 = vmatprep.subr.mxu0 %v5270
          %5517 = vmatpush1.msra.mxu0 %v5269
          %5518 = vmatprep.subr.mxu0 0.0
          %5519 = vmatpush1.msra.mxu0 0.0
          %5520 = vmatprep.subr.mxu0 0.0
          %5521 = vmatpush1.msra.mxu0 0.0
          %5522 = vmatprep.subr.mxu0 0.0
          %5523 = vmatpush1.msra.mxu0 0.0
          %5524 = vmatprep.subr.mxu0 0.0
          %5525 = vmatpush1.msra.mxu0 0.0
          %5526 = vmatprep.subr.mxu0 0.0
          %5527 = vmatpush1.msra.mxu0 0.0
          %5528 = vmatprep.subr.mxu0 0.0
          %5529 = vmatpush1.msra.mxu0 0.0
          %5530 = vmatprep.subr.mxu0 0.0
          %5531 = vmatpush1.msra.mxu0 0.0
          %5532 = vmatprep.subr.mxu0 0.0
          %5533 = vmatpush1.msra.mxu0 0.0
          %5534 = vmatprep.subr.mxu0 0.0
          %5535 = vmatpush1.msra.mxu0 0.0
          %5536 = vmatprep.subr.mxu0 0.0
          %5537 = vmatpush1.msra.mxu0 0.0
          %5538 = vmatprep.subr.mxu0 0.0
          %5539 = vmatpush1.msra.mxu0 0.0
          %5540 = vmatprep.subr.mxu0 0.0
          %5541 = vmatpush1.msra.mxu0 0.0
          %5542 = vmatprep.subr.mxu0 0.0
          %5543 = vmatpush1.msra.mxu0 0.0
          %5544 = vmatprep.subr.mxu0 0.0
          %5545 = vmatpush1.msra.mxu0 0.0
          %5546 = vmatprep.subr.mxu0 0.0
          %5547 = vmatpush1.msra.mxu0 0.0
          %5548 = vmatprep.subr.mxu0 0.0
          %5549 = vmatpush1.msra.mxu0 0.0
          %5550 = vmatprep.subr.mxu0 0.0
          %5551 = vmatpush1.msra.mxu0 0.0
          %5552 = vmatprep.subr.mxu0 0.0
          %5553 = vmatpush1.msra.mxu0 0.0
          %5554 = vmatprep.subr.mxu0 0.0
          %5555 = vmatpush1.msra.mxu0 0.0
          %5556 = vmatprep.subr.mxu0 0.0
          %5557 = vmatpush1.msra.mxu0 0.0
          %5558 = vmatprep.subr.mxu0 0.0
          %5559 = vmatpush1.msra.mxu0 0.0
          %5560 = vmatprep.subr.mxu0 0.0
          %5561 = vmatpush1.msra.mxu0 0.0
          %5562 = vmatprep.subr.mxu0 0.0
          %5563 = vmatpush1.msra.mxu0 0.0
          %5564 = vmatprep.subr.mxu0 0.0
          %5565 = vmatpush1.msra.mxu0 0.0
          %5566 = vmatprep.subr.mxu0 0.0
          %5567 = vmatpush1.msra.mxu0 0.0
          %5568 = vmatprep.subr.mxu0 0.0
          %5569 = vmatpush1.msra.mxu0 0.0
          %5570 = vmatprep.subr.mxu0 0.0
          %5571 = vmatpush1.msra.mxu0 0.0
          %5572 = vmatprep.subr.mxu0 0.0
          %5573 = vmatpush1.msra.mxu0 0.0
          %5574 = vmatprep.subr.mxu0 0.0
          %5575 = vmatpush1.msra.mxu0 0.0
          %5576 = vmatprep.subr.mxu0 0.0
          %5577 = vmatpush1.msra.mxu0 0.0
          %5578 = vmatprep.subr.mxu0 0.0
          %5579 = vmatpush1.msra.mxu0 0.0
          %5580 = vmatprep.mubr.f32.mxu0 0.0
          %5581 = vmatmul.mubr.f32.gmra.mrb[0].mxu0 %v3753
          %v5582 = vpop.f32.mrb[0].mxu0
          %v5583 = vadd.f32 0.0, %v5582
          %v5584 = vpop.f32.mrb[0].mxu0
          %v5585 = vadd.f32 0.0, %v5584
          %5586 = vdwg.mxu0
          %5589 = vrot.lane.b32.xlu0 %v5583, 94
          %v5590 = vpop.permute.xlu0 %5589
          %5591 = vrot.lane.b32.xlu0 %v5585, 94
          %v5592 = vpop.permute.xlu0 %5591
          %v5593 = vsel %vm3832, %v5590, %v5592
          %v5596 = vsel %vm3836, %v5592, 0.0
          %v5597 = vmul.f32 %v5593, %v3841
          %v5598 = vmul.f32 %v5596, %v3845
          %v5599 = vadd.f32 %v5514, %v5597
          %v5600 = vadd.f32 %v5515, %v5598
          %5601 = vmatprep.subr.mxu0 %v5270
          %5602 = vmatpush1.msra.mxu0 %v5269
          %5603 = vmatprep.subr.mxu0 0.0
          %5604 = vmatpush1.msra.mxu0 0.0
          %5605 = vmatprep.subr.mxu0 0.0
          %5606 = vmatpush1.msra.mxu0 0.0
          %5607 = vmatprep.subr.mxu0 0.0
          %5608 = vmatpush1.msra.mxu0 0.0
          %5609 = vmatprep.subr.mxu0 0.0
          %5610 = vmatpush1.msra.mxu0 0.0
          %5611 = vmatprep.subr.mxu0 0.0
          %5612 = vmatpush1.msra.mxu0 0.0
          %5613 = vmatprep.subr.mxu0 0.0
          %5614 = vmatpush1.msra.mxu0 0.0
          %5615 = vmatprep.subr.mxu0 0.0
          %5616 = vmatpush1.msra.mxu0 0.0
          %5617 = vmatprep.subr.mxu0 0.0
          %5618 = vmatpush1.msra.mxu0 0.0
          %5619 = vmatprep.subr.mxu0 0.0
          %5620 = vmatpush1.msra.mxu0 0.0
          %5621 = vmatprep.subr.mxu0 0.0
          %5622 = vmatpush1.msra.mxu0 0.0
          %5623 = vmatprep.subr.mxu0 0.0
          %5624 = vmatpush1.msra.mxu0 0.0
          %5625 = vmatprep.subr.mxu0 0.0
          %5626 = vmatpush1.msra.mxu0 0.0
          %5627 = vmatprep.subr.mxu0 0.0
          %5628 = vmatpush1.msra.mxu0 0.0
          %5629 = vmatprep.subr.mxu0 0.0
          %5630 = vmatpush1.msra.mxu0 0.0
          %5631 = vmatprep.subr.mxu0 0.0
          %5632 = vmatpush1.msra.mxu0 0.0
          %5633 = vmatprep.subr.mxu0 0.0
          %5634 = vmatpush1.msra.mxu0 0.0
          %5635 = vmatprep.subr.mxu0 0.0
          %5636 = vmatpush1.msra.mxu0 0.0
          %5637 = vmatprep.subr.mxu0 0.0
          %5638 = vmatpush1.msra.mxu0 0.0
          %5639 = vmatprep.subr.mxu0 0.0
          %5640 = vmatpush1.msra.mxu0 0.0
          %5641 = vmatprep.subr.mxu0 0.0
          %5642 = vmatpush1.msra.mxu0 0.0
          %5643 = vmatprep.subr.mxu0 0.0
          %5644 = vmatpush1.msra.mxu0 0.0
          %5645 = vmatprep.subr.mxu0 0.0
          %5646 = vmatpush1.msra.mxu0 0.0
          %5647 = vmatprep.subr.mxu0 0.0
          %5648 = vmatpush1.msra.mxu0 0.0
          %5649 = vmatprep.subr.mxu0 0.0
          %5650 = vmatpush1.msra.mxu0 0.0
          %5651 = vmatprep.subr.mxu0 0.0
          %5652 = vmatpush1.msra.mxu0 0.0
          %5653 = vmatprep.subr.mxu0 0.0
          %5654 = vmatpush1.msra.mxu0 0.0
          %5655 = vmatprep.subr.mxu0 0.0
          %5656 = vmatpush1.msra.mxu0 0.0
          %5657 = vmatprep.subr.mxu0 0.0
          %5658 = vmatpush1.msra.mxu0 0.0
          %5659 = vmatprep.subr.mxu0 0.0
          %5660 = vmatpush1.msra.mxu0 0.0
          %5661 = vmatprep.subr.mxu0 0.0
          %5662 = vmatpush1.msra.mxu0 0.0
          %5663 = vmatprep.subr.mxu0 0.0
          %5664 = vmatpush1.msra.mxu0 0.0
          %5665 = vmatprep.mubr.f32.mxu0 0.0
          %5666 = vmatmul.mubr.f32.gmra.mrb[0].mxu0 %v3851
          %v5667 = vpop.f32.mrb[0].mxu0
          %v5668 = vadd.f32 0.0, %v5667
          %v5669 = vpop.f32.mrb[0].mxu0
          %v5670 = vadd.f32 0.0, %v5669
          %5671 = vdwg.mxu0
          %5674 = vrot.lane.b32.xlu0 %v5668, 92
          %v5675 = vpop.permute.xlu0 %5674
          %5676 = vrot.lane.b32.xlu0 %v5670, 92
          %v5677 = vpop.permute.xlu0 %5676
          %v5678 = vsel %vm3930, %v5675, %v5677
          %v5681 = vsel %vm3934, %v5677, 0.0
          %v5682 = vmul.f32 %v5678, %v3939
          %v5683 = vmul.f32 %v5681, %v3943
          %v5684 = vadd.f32 %v5599, %v5682
          %v5685 = vadd.f32 %v5600, %v5683
          %5686 = vmatprep.subr.mxu0 %v5270
          %5687 = vmatpush1.msra.mxu0 %v5269
          %5688 = vmatprep.subr.mxu0 0.0
          %5689 = vmatpush1.msra.mxu0 0.0
          %5690 = vmatprep.subr.mxu0 0.0
          %5691 = vmatpush1.msra.mxu0 0.0
          %5692 = vmatprep.subr.mxu0 0.0
          %5693 = vmatpush1.msra.mxu0 0.0
          %5694 = vmatprep.subr.mxu0 0.0
          %5695 = vmatpush1.msra.mxu0 0.0
          %5696 = vmatprep.subr.mxu0 0.0
          %5697 = vmatpush1.msra.mxu0 0.0
          %5698 = vmatprep.subr.mxu0 0.0
          %5699 = vmatpush1.msra.mxu0 0.0
          %5700 = vmatprep.subr.mxu0 0.0
          %5701 = vmatpush1.msra.mxu0 0.0
          %5702 = vmatprep.subr.mxu0 0.0
          %5703 = vmatpush1.msra.mxu0 0.0
          %5704 = vmatprep.subr.mxu0 0.0
          %5705 = vmatpush1.msra.mxu0 0.0
          %5706 = vmatprep.subr.mxu0 0.0
          %5707 = vmatpush1.msra.mxu0 0.0
          %5708 = vmatprep.subr.mxu0 0.0
          %5709 = vmatpush1.msra.mxu0 0.0
          %5710 = vmatprep.subr.mxu0 0.0
          %5711 = vmatpush1.msra.mxu0 0.0
          %5712 = vmatprep.subr.mxu0 0.0
          %5713 = vmatpush1.msra.mxu0 0.0
          %5714 = vmatprep.subr.mxu0 0.0
          %5715 = vmatpush1.msra.mxu0 0.0
          %5716 = vmatprep.subr.mxu0 0.0
          %5717 = vmatpush1.msra.mxu0 0.0
          %5718 = vmatprep.subr.mxu0 0.0
          %5719 = vmatpush1.msra.mxu0 0.0
          %5720 = vmatprep.subr.mxu0 0.0
          %5721 = vmatpush1.msra.mxu0 0.0
          %5722 = vmatprep.subr.mxu0 0.0
          %5723 = vmatpush1.msra.mxu0 0.0
          %5724 = vmatprep.subr.mxu0 0.0
          %5725 = vmatpush1.msra.mxu0 0.0
          %5726 = vmatprep.subr.mxu0 0.0
          %5727 = vmatpush1.msra.mxu0 0.0
          %5728 = vmatprep.subr.mxu0 0.0
          %5729 = vmatpush1.msra.mxu0 0.0
          %5730 = vmatprep.subr.mxu0 0.0
          %5731 = vmatpush1.msra.mxu0 0.0
          %5732 = vmatprep.subr.mxu0 0.0
          %5733 = vmatpush1.msra.mxu0 0.0
          %5734 = vmatprep.subr.mxu0 0.0
          %5735 = vmatpush1.msra.mxu0 0.0
          %5736 = vmatprep.subr.mxu0 0.0
          %5737 = vmatpush1.msra.mxu0 0.0
          %5738 = vmatprep.subr.mxu0 0.0
          %5739 = vmatpush1.msra.mxu0 0.0
          %5740 = vmatprep.subr.mxu0 0.0
          %5741 = vmatpush1.msra.mxu0 0.0
          %5742 = vmatprep.subr.mxu0 0.0
          %5743 = vmatpush1.msra.mxu0 0.0
          %5744 = vmatprep.subr.mxu0 0.0
          %5745 = vmatpush1.msra.mxu0 0.0
          %5746 = vmatprep.subr.mxu0 0.0
          %5747 = vmatpush1.msra.mxu0 0.0
          %5748 = vmatprep.subr.mxu0 0.0
          %5749 = vmatpush1.msra.mxu0 0.0
          %5750 = vmatprep.mubr.f32.mxu0 0.0
          %5751 = vmatmul.mubr.f32.gmra.mrb[0].mxu0 %v3949
          %v5752 = vpop.f32.mrb[0].mxu0
          %v5753 = vadd.f32 0.0, %v5752
          %v5754 = vpop.f32.mrb[0].mxu0
          %v5755 = vadd.f32 0.0, %v5754
          %5756 = vdwg.mxu0
          %5759 = vrot.lane.b32.xlu0 %v5753, 90
          %v5760 = vpop.permute.xlu0 %5759
          %5761 = vrot.lane.b32.xlu0 %v5755, 90
          %v5762 = vpop.permute.xlu0 %5761
          %v5763 = vsel %vm3836, %v5760, %v5762
          %v5766 = vsel %vm4031, %v5762, 0.0
          %v5767 = vmul.f32 %v5763, %v4036
          %v5768 = vmul.f32 %v5766, %v4040
          %v5769 = vadd.f32 %v5684, %v5767
          %v5770 = vadd.f32 %v5685, %v5768
          %5771 = vmatprep.subr.mxu0 %v5270
          %5772 = vmatpush1.msra.mxu0 %v5269
          %5773 = vmatprep.subr.mxu0 0.0
          %5774 = vmatpush1.msra.mxu0 0.0
          %5775 = vmatprep.subr.mxu0 0.0
          %5776 = vmatpush1.msra.mxu0 0.0
          %5777 = vmatprep.subr.mxu0 0.0
          %5778 = vmatpush1.msra.mxu0 0.0
          %5779 = vmatprep.subr.mxu0 0.0
          %5780 = vmatpush1.msra.mxu0 0.0
          %5781 = vmatprep.subr.mxu0 0.0
          %5782 = vmatpush1.msra.mxu0 0.0
          %5783 = vmatprep.subr.mxu0 0.0
          %5784 = vmatpush1.msra.mxu0 0.0
          %5785 = vmatprep.subr.mxu0 0.0
          %5786 = vmatpush1.msra.mxu0 0.0
          %5787 = vmatprep.subr.mxu0 0.0
          %5788 = vmatpush1.msra.mxu0 0.0
          %5789 = vmatprep.subr.mxu0 0.0
          %5790 = vmatpush1.msra.mxu0 0.0
          %5791 = vmatprep.subr.mxu0 0.0
          %5792 = vmatpush1.msra.mxu0 0.0
          %5793 = vmatprep.subr.mxu0 0.0
          %5794 = vmatpush1.msra.mxu0 0.0
          %5795 = vmatprep.subr.mxu0 0.0
          %5796 = vmatpush1.msra.mxu0 0.0
          %5797 = vmatprep.subr.mxu0 0.0
          %5798 = vmatpush1.msra.mxu0 0.0
          %5799 = vmatprep.subr.mxu0 0.0
          %5800 = vmatpush1.msra.mxu0 0.0
          %5801 = vmatprep.subr.mxu0 0.0
          %5802 = vmatpush1.msra.mxu0 0.0
          %5803 = vmatprep.subr.mxu0 0.0
          %5804 = vmatpush1.msra.mxu0 0.0
          %5805 = vmatprep.subr.mxu0 0.0
          %5806 = vmatpush1.msra.mxu0 0.0
          %5807 = vmatprep.subr.mxu0 0.0
          %5808 = vmatpush1.msra.mxu0 0.0
          %5809 = vmatprep.subr.mxu0 0.0
          %5810 = vmatpush1.msra.mxu0 0.0
          %5811 = vmatprep.subr.mxu0 0.0
          %5812 = vmatpush1.msra.mxu0 0.0
          %5813 = vmatprep.subr.mxu0 0.0
          %5814 = vmatpush1.msra.mxu0 0.0
          %5815 = vmatprep.subr.mxu0 0.0
          %5816 = vmatpush1.msra.mxu0 0.0
          %5817 = vmatprep.subr.mxu0 0.0
          %5818 = vmatpush1.msra.mxu0 0.0
          %5819 = vmatprep.subr.mxu0 0.0
          %5820 = vmatpush1.msra.mxu0 0.0
          %5821 = vmatprep.subr.mxu0 0.0
          %5822 = vmatpush1.msra.mxu0 0.0
          %5823 = vmatprep.subr.mxu0 0.0
          %5824 = vmatpush1.msra.mxu0 0.0
          %5825 = vmatprep.subr.mxu0 0.0
          %5826 = vmatpush1.msra.mxu0 0.0
          %5827 = vmatprep.subr.mxu0 0.0
          %5828 = vmatpush1.msra.mxu0 0.0
          %5829 = vmatprep.subr.mxu0 0.0
          %5830 = vmatpush1.msra.mxu0 0.0
          %5831 = vmatprep.subr.mxu0 0.0
          %5832 = vmatpush1.msra.mxu0 0.0
          %5833 = vmatprep.subr.mxu0 0.0
          %5834 = vmatpush1.msra.mxu0 0.0
          %5835 = vmatprep.mubr.f32.mxu0 0.0
          %5836 = vmatmul.mubr.f32.gmra.mrb[0].mxu0 %v4046
          %v5837 = vpop.f32.mrb[0].mxu0
          %v5838 = vadd.f32 0.0, %v5837
          %v5839 = vpop.f32.mrb[0].mxu0
          %v5840 = vadd.f32 0.0, %v5839
          %5841 = vdwg.mxu0
          %5844 = vrot.lane.b32.xlu0 %v5838, 58
          %v5845 = vpop.permute.xlu0 %5844
          %5846 = vrot.lane.b32.xlu0 %v5840, 58
          %v5847 = vpop.permute.xlu0 %5846
          %v5848 = vsel %vm4125, %v5845, %v5847
          %v5851 = vsel %vm4129, %v5847, 0.0
          %v5852 = vmul.f32 %v5848, %v4134
          %v5853 = vmul.f32 %v5851, %v4138
          %v5854 = vadd.f32 %v5769, %v5852
          %v5855 = vadd.f32 %v5770, %v5853
          %5856 = vmatprep.subr.mxu0 %v5270
          %5857 = vmatpush1.msra.mxu0 %v5269
          %5858 = vmatprep.subr.mxu0 0.0
          %5859 = vmatpush1.msra.mxu0 0.0
          %5860 = vmatprep.subr.mxu0 0.0
          %5861 = vmatpush1.msra.mxu0 0.0
          %5862 = vmatprep.subr.mxu0 0.0
          %5863 = vmatpush1.msra.mxu0 0.0
          %5864 = vmatprep.subr.mxu0 0.0
          %5865 = vmatpush1.msra.mxu0 0.0
          %5866 = vmatprep.subr.mxu0 0.0
          %5867 = vmatpush1.msra.mxu0 0.0
          %5868 = vmatprep.subr.mxu0 0.0
          %5869 = vmatpush1.msra.mxu0 0.0
          %5870 = vmatprep.subr.mxu0 0.0
          %5871 = vmatpush1.msra.mxu0 0.0
          %5872 = vmatprep.subr.mxu0 0.0
          %5873 = vmatpush1.msra.mxu0 0.0
          %5874 = vmatprep.subr.mxu0 0.0
          %5875 = vmatpush1.msra.mxu0 0.0
          %5876 = vmatprep.subr.mxu0 0.0
          %5877 = vmatpush1.msra.mxu0 0.0
          %5878 = vmatprep.subr.mxu0 0.0
          %5879 = vmatpush1.msra.mxu0 0.0
          %5880 = vmatprep.subr.mxu0 0.0
          %5881 = vmatpush1.msra.mxu0 0.0
          %5882 = vmatprep.subr.mxu0 0.0
          %5883 = vmatpush1.msra.mxu0 0.0
          %5884 = vmatprep.subr.mxu0 0.0
          %5885 = vmatpush1.msra.mxu0 0.0
          %5886 = vmatprep.subr.mxu0 0.0
          %5887 = vmatpush1.msra.mxu0 0.0
          %5888 = vmatprep.subr.mxu0 0.0
          %5889 = vmatpush1.msra.mxu0 0.0
          %5890 = vmatprep.subr.mxu0 0.0
          %5891 = vmatpush1.msra.mxu0 0.0
          %5892 = vmatprep.subr.mxu0 0.0
          %5893 = vmatpush1.msra.mxu0 0.0
          %5894 = vmatprep.subr.mxu0 0.0
          %5895 = vmatpush1.msra.mxu0 0.0
          %5896 = vmatprep.subr.mxu0 0.0
          %5897 = vmatpush1.msra.mxu0 0.0
          %5898 = vmatprep.subr.mxu0 0.0
          %5899 = vmatpush1.msra.mxu0 0.0
          %5900 = vmatprep.subr.mxu0 0.0
          %5901 = vmatpush1.msra.mxu0 0.0
          %5902 = vmatprep.subr.mxu0 0.0
          %5903 = vmatpush1.msra.mxu0 0.0
          %5904 = vmatprep.subr.mxu0 0.0
          %5905 = vmatpush1.msra.mxu0 0.0
          %5906 = vmatprep.subr.mxu0 0.0
          %5907 = vmatpush1.msra.mxu0 0.0
          %5908 = vmatprep.subr.mxu0 0.0
          %5909 = vmatpush1.msra.mxu0 0.0
          %5910 = vmatprep.subr.mxu0 0.0
          %5911 = vmatpush1.msra.mxu0 0.0
          %5912 = vmatprep.subr.mxu0 0.0
          %5913 = vmatpush1.msra.mxu0 0.0
          %5914 = vmatprep.subr.mxu0 0.0
          %5915 = vmatpush1.msra.mxu0 0.0
          %5916 = vmatprep.subr.mxu0 0.0
          %5917 = vmatpush1.msra.mxu0 0.0
          %5918 = vmatprep.subr.mxu0 0.0
          %5919 = vmatpush1.msra.mxu0 0.0
          %5920 = vmatprep.mubr.f32.mxu0 0.0
          %5921 = vmatmul.mubr.f32.gmra.mrb[0].mxu0 %v4144
          %v5922 = vpop.f32.mrb[0].mxu0
          %v5923 = vadd.f32 0.0, %v5922
          %v5924 = vpop.f32.mrb[0].mxu0
          %v5925 = vadd.f32 0.0, %v5924
          %5926 = vdwg.mxu0
          %5929 = vrot.lane.b32.xlu0 %v5923, 56
          %v5930 = vpop.permute.xlu0 %5929
          %5931 = vrot.lane.b32.xlu0 %v5925, 56
          %v5932 = vpop.permute.xlu0 %5931
          %v5933 = vsel %vm4223, %v5930, %v5932
          %v5936 = vsel %vm4227, %v5932, 0.0
          %v5937 = vmul.f32 %v5933, %v4232
          %v5938 = vmul.f32 %v5936, %v4236
          %v5939 = vadd.f32 %v5854, %v5937
          %v5940 = vadd.f32 %v5855, %v5938
          %5941 = vmatprep.subr.mxu0 %v5270
          %5942 = vmatpush1.msra.mxu0 %v5269
          %5943 = vmatprep.subr.mxu0 0.0
          %5944 = vmatpush1.msra.mxu0 0.0
          %5945 = vmatprep.subr.mxu0 0.0
          %5946 = vmatpush1.msra.mxu0 0.0
          %5947 = vmatprep.subr.mxu0 0.0
          %5948 = vmatpush1.msra.mxu0 0.0
          %5949 = vmatprep.subr.mxu0 0.0
          %5950 = vmatpush1.msra.mxu0 0.0
          %5951 = vmatprep.subr.mxu0 0.0
          %5952 = vmatpush1.msra.mxu0 0.0
          %5953 = vmatprep.subr.mxu0 0.0
          %5954 = vmatpush1.msra.mxu0 0.0
          %5955 = vmatprep.subr.mxu0 0.0
          %5956 = vmatpush1.msra.mxu0 0.0
          %5957 = vmatprep.subr.mxu0 0.0
          %5958 = vmatpush1.msra.mxu0 0.0
          %5959 = vmatprep.subr.mxu0 0.0
          %5960 = vmatpush1.msra.mxu0 0.0
          %5961 = vmatprep.subr.mxu0 0.0
          %5962 = vmatpush1.msra.mxu0 0.0
          %5963 = vmatprep.subr.mxu0 0.0
          %5964 = vmatpush1.msra.mxu0 0.0
          %5965 = vmatprep.subr.mxu0 0.0
          %5966 = vmatpush1.msra.mxu0 0.0
          %5967 = vmatprep.subr.mxu0 0.0
          %5968 = vmatpush1.msra.mxu0 0.0
          %5969 = vmatprep.subr.mxu0 0.0
          %5970 = vmatpush1.msra.mxu0 0.0
          %5971 = vmatprep.subr.mxu0 0.0
          %5972 = vmatpush1.msra.mxu0 0.0
          %5973 = vmatprep.subr.mxu0 0.0
          %5974 = vmatpush1.msra.mxu0 0.0
          %5975 = vmatprep.subr.mxu0 0.0
          %5976 = vmatpush1.msra.mxu0 0.0
          %5977 = vmatprep.subr.mxu0 0.0
          %5978 = vmatpush1.msra.mxu0 0.0
          %5979 = vmatprep.subr.mxu0 0.0
          %5980 = vmatpush1.msra.mxu0 0.0
          %5981 = vmatprep.subr.mxu0 0.0
          %5982 = vmatpush1.msra.mxu0 0.0
          %5983 = vmatprep.subr.mxu0 0.0
          %5984 = vmatpush1.msra.mxu0 0.0
          %5985 = vmatprep.subr.mxu0 0.0
          %5986 = vmatpush1.msra.mxu0 0.0
          %5987 = vmatprep.subr.mxu0 0.0
          %5988 = vmatpush1.msra.mxu0 0.0
          %5989 = vmatprep.subr.mxu0 0.0
          %5990 = vmatpush1.msra.mxu0 0.0
          %5991 = vmatprep.subr.mxu0 0.0
          %5992 = vmatpush1.msra.mxu0 0.0
          %5993 = vmatprep.subr.mxu0 0.0
          %5994 = vmatpush1.msra.mxu0 0.0
          %5995 = vmatprep.subr.mxu0 0.0
          %5996 = vmatpush1.msra.mxu0 0.0
          %5997 = vmatprep.subr.mxu0 0.0
          %5998 = vmatpush1.msra.mxu0 0.0
          %5999 = vmatprep.subr.mxu0 0.0
          %6000 = vmatpush1.msra.mxu0 0.0
          %6001 = vmatprep.subr.mxu0 0.0
          %6002 = vmatpush1.msra.mxu0 0.0
          %6003 = vmatprep.subr.mxu0 0.0
          %6004 = vmatpush1.msra.mxu0 0.0
          %6005 = vmatprep.mubr.f32.mxu0 0.0
          %6006 = vmatmul.mubr.f32.gmra.mrb[0].mxu0 %v4242
          %v6007 = vpop.f32.mrb[0].mxu0
          %v6008 = vadd.f32 0.0, %v6007
          %v6009 = vpop.f32.mrb[0].mxu0
          %v6010 = vadd.f32 0.0, %v6009
          %6011 = vdwg.mxu0
          %6014 = vrot.lane.b32.xlu0 %v6008, 54
          %v6015 = vpop.permute.xlu0 %6014
          %6016 = vrot.lane.b32.xlu0 %v6010, 54
          %v6017 = vpop.permute.xlu0 %6016
          %v6018 = vsel %vm4129, %v6015, %v6017
          %v6021 = vsel %vm4324, %v6017, 0.0
          %v6022 = vmul.f32 %v6018, %v4329
          %v6023 = vmul.f32 %v6021, %v4333
          %v6024 = vadd.f32 %v5939, %v6022
          %v6025 = vadd.f32 %v5940, %v6023
          %v6026 = vmul.f32 %v6024, %v4341
          %v6027 = vmul.f32 %v6025, %v4341
          %v6028 = vadd.f32 %v6026, %v4348
          %v6029 = vadd.f32 %v6027, %v4348
          %v6030 = vmax.f32 %v6028, 0.0
          %v6031 = vmax.f32 %v6029, 0.0
          %v6033 = vsel %vm2376, %v6031, 0
          %6035 = vmatprep.subr.mxu0 0.0
          %6036 = vmatpush1.msra.mxu0 %v3171
          %6037 = vmatprep.subr.mxu0 0.0
          %6038 = vmatpush1.msra.mxu0 %v3172
          %6039 = vmatprep.subr.mxu0 0.0
          %6040 = vmatpush1.msra.mxu0 %v3173
          %6041 = vmatprep.subr.mxu0 0.0
          %6042 = vmatpush1.msra.mxu0 %v3174
          %6043 = vmatprep.subr.mxu0 0.0
          %6044 = vmatpush1.msra.mxu0 %v3175
          %6045 = vmatprep.subr.mxu0 0.0
          %6046 = vmatpush1.msra.mxu0 %v3176
          %6047 = vmatprep.subr.mxu0 0.0
          %6048 = vmatpush1.msra.mxu0 %v3177
          %6049 = vmatprep.subr.mxu0 0.0
          %6050 = vmatpush1.msra.mxu0 %v3178
          %6051 = vmatprep.subr.mxu0 0.0
          %6052 = vmatpush1.msra.mxu0 %v3179
          %6053 = vmatprep.subr.mxu0 0.0
          %6054 = vmatpush1.msra.mxu0 %v3180
          %6055 = vmatprep.subr.mxu0 0.0
          %6056 = vmatpush1.msra.mxu0 %v3181
          %6057 = vmatprep.subr.mxu0 0.0
          %6058 = vmatpush1.msra.mxu0 %v3182
          %6059 = vmatprep.subr.mxu0 0.0
          %6060 = vmatpush1.msra.mxu0 %v3183
          %6061 = vmatprep.subr.mxu0 0.0
          %6062 = vmatpush1.msra.mxu0 %v3184
          %6063 = vmatprep.subr.mxu0 0.0
          %6064 = vmatpush1.msra.mxu0 %v3185
          %6065 = vmatprep.subr.mxu0 0.0
          %6066 = vmatpush1.msra.mxu0 %v3186
          %6067 = vmatprep.subr.mxu0 0.0
          %6068 = vmatpush1.msra.mxu0 %v3187
          %6069 = vmatprep.subr.mxu0 0.0
          %6070 = vmatpush1.msra.mxu0 %v3188
          %6071 = vmatprep.subr.mxu0 0.0
          %6072 = vmatpush1.msra.mxu0 %v3189
          %6073 = vmatprep.subr.mxu0 0.0
          %6074 = vmatpush1.msra.mxu0 %v3190
          %6075 = vmatprep.subr.mxu0 0.0
          %6076 = vmatpush1.msra.mxu0 %v3191
          %6077 = vmatprep.subr.mxu0 0.0
          %6078 = vmatpush1.msra.mxu0 %v3192
          %6079 = vmatprep.subr.mxu0 0.0
          %6080 = vmatpush1.msra.mxu0 %v3193
          %6081 = vmatprep.subr.mxu0 0.0
          %6082 = vmatpush1.msra.mxu0 %v3194
          %6083 = vmatprep.subr.mxu0 0.0
          %6084 = vmatpush1.msra.mxu0 %v3195
          %6085 = vmatprep.subr.mxu0 0.0
          %6086 = vmatpush1.msra.mxu0 %v3196
          %6087 = vmatprep.subr.mxu0 0.0
          %6088 = vmatpush1.msra.mxu0 %v3197
          %6089 = vmatprep.subr.mxu0 0.0
          %6090 = vmatpush1.msra.mxu0 %v3198
          %6091 = vmatprep.subr.mxu0 0.0
          %6092 = vmatpush1.msra.mxu0 %v3199
          %6093 = vmatprep.subr.mxu0 0.0
          %6094 = vmatpush1.msra.mxu0 %v3200
          %6095 = vmatprep.subr.mxu0 0.0
          %6096 = vmatpush1.msra.mxu0 %v3201
          %6097 = vmatprep.subr.mxu0 0.0
          %6098 = vmatpush1.msra.mxu0 %v4359
          %6099 = vmatprep.mubr.f32.mxu0 %v6033
          %6100 = vmatmul.mubr.f32.gmra.mrb[0].mxu0 %v6030
          %v6101 = vpop.f32.mrb[0].mxu0
          %v6102 = vadd.f32 0.0, %v6101
          %v6103 = vpop.f32.mrb[0].mxu0
          %6104 = vdwg.mxu0
          %v6105 = vld [vmem:[%s11] sm:$0x1]
          %v6107 = vsel %vm4432, %v6102, 0
          %6109 = vmatprep.subr.mxu0 0.0
          %6110 = vmatpush1.msra.mxu0 %v3203
          %6111 = vmatprep.subr.mxu0 0.0
          %6112 = vmatpush1.msra.mxu0 %v4438
          %6113 = vmatprep.subr.mxu0 0.0
          %6114 = vmatpush1.msra.mxu0 0.0
          %6115 = vmatprep.subr.mxu0 0.0
          %6116 = vmatpush1.msra.mxu0 0.0
          %6117 = vmatprep.subr.mxu0 0.0
          %6118 = vmatpush1.msra.mxu0 0.0
          %6119 = vmatprep.subr.mxu0 0.0
          %6120 = vmatpush1.msra.mxu0 0.0
          %6121 = vmatprep.subr.mxu0 0.0
          %6122 = vmatpush1.msra.mxu0 0.0
          %6123 = vmatprep.subr.mxu0 0.0
          %6124 = vmatpush1.msra.mxu0 0.0
          %6125 = vmatprep.subr.mxu0 0.0
          %6126 = vmatpush1.msra.mxu0 0.0
          %6127 = vmatprep.subr.mxu0 0.0
          %6128 = vmatpush1.msra.mxu0 0.0
          %6129 = vmatprep.subr.mxu0 0.0
          %6130 = vmatpush1.msra.mxu0 0.0
          %6131 = vmatprep.subr.mxu0 0.0
          %6132 = vmatpush1.msra.mxu0 0.0
          %6133 = vmatprep.subr.mxu0 0.0
          %6134 = vmatpush1.msra.mxu0 0.0
          %6135 = vmatprep.subr.mxu0 0.0
          %6136 = vmatpush1.msra.mxu0 0.0
          %6137 = vmatprep.subr.mxu0 0.0
          %6138 = vmatpush1.msra.mxu0 0.0
          %6139 = vmatprep.subr.mxu0 0.0
          %6140 = vmatpush1.msra.mxu0 0.0
          %6141 = vmatprep.subr.mxu0 0.0
          %6142 = vmatpush1.msra.mxu0 0.0
          %6143 = vmatprep.subr.mxu0 0.0
          %6144 = vmatpush1.msra.mxu0 0.0
          %6145 = vmatprep.subr.mxu0 0.0
          %6146 = vmatpush1.msra.mxu0 0.0
          %6147 = vmatprep.subr.mxu0 0.0
          %6148 = vmatpush1.msra.mxu0 0.0
          %6149 = vmatprep.subr.mxu0 0.0
          %6150 = vmatpush1.msra.mxu0 0.0
          %6151 = vmatprep.subr.mxu0 0.0
          %6152 = vmatpush1.msra.mxu0 0.0
          %6153 = vmatprep.subr.mxu0 0.0
          %6154 = vmatpush1.msra.mxu0 0.0
          %6155 = vmatprep.subr.mxu0 0.0
          %6156 = vmatpush1.msra.mxu0 0.0
          %6157 = vmatprep.subr.mxu0 0.0
          %6158 = vmatpush1.msra.mxu0 0.0
          %6159 = vmatprep.subr.mxu0 0.0
          %6160 = vmatpush1.msra.mxu0 0.0
          %6161 = vmatprep.subr.mxu0 0.0
          %6162 = vmatpush1.msra.mxu0 0.0
          %6163 = vmatprep.subr.mxu0 0.0
          %6164 = vmatpush1.msra.mxu0 0.0
          %6165 = vmatprep.subr.mxu0 0.0
          %6166 = vmatpush1.msra.mxu0 0.0
          %6167 = vmatprep.subr.mxu0 0.0
          %6168 = vmatpush1.msra.mxu0 0.0
          %6169 = vmatprep.subr.mxu0 0.0
          %6170 = vmatpush1.msra.mxu0 0.0
          %6171 = vmatprep.subr.mxu0 0.0
          %6172 = vmatpush1.msra.mxu0 0.0
          %6173 = vmatprep.mubr.f32.mxu0 0.0
          %6174 = vmatmul.mubr.f32.gmra.mrb[0].mxu0 %v6107
          %v6175 = vpop.f32.mrb[0].mxu0
          %v6176 = vadd.f32 0.0, %v6175
          %v6177 = vpop.f32.mrb[0].mxu0
          %6178 = vdwg.mxu0
          %v6179 = vadd.f32 %v6105, %v6176
          %v6180 = vrot.slane %v6102, 1
          %v6181 = vsel %vm4432, %v6180, 0
          %6183 = vmatprep.subr.mxu0 0.0
          %6184 = vmatpush1.msra.mxu0 %v3205
          %6185 = vmatprep.subr.mxu0 0.0
          %6186 = vmatpush1.msra.mxu0 %v4515
          %6187 = vmatprep.subr.mxu0 0.0
          %6188 = vmatpush1.msra.mxu0 0.0
          %6189 = vmatprep.subr.mxu0 0.0
          %6190 = vmatpush1.msra.mxu0 0.0
          %6191 = vmatprep.subr.mxu0 0.0
          %6192 = vmatpush1.msra.mxu0 0.0
          %6193 = vmatprep.subr.mxu0 0.0
          %6194 = vmatpush1.msra.mxu0 0.0
          %6195 = vmatprep.subr.mxu0 0.0
          %6196 = vmatpush1.msra.mxu0 0.0
          %6197 = vmatprep.subr.mxu0 0.0
          %6198 = vmatpush1.msra.mxu0 0.0
          %6199 = vmatprep.subr.mxu0 0.0
          %6200 = vmatpush1.msra.mxu0 0.0
          %6201 = vmatprep.subr.mxu0 0.0
          %6202 = vmatpush1.msra.mxu0 0.0
          %6203 = vmatprep.subr.mxu0 0.0
          %6204 = vmatpush1.msra.mxu0 0.0
          %6205 = vmatprep.subr.mxu0 0.0
          %6206 = vmatpush1.msra.mxu0 0.0
          %6207 = vmatprep.subr.mxu0 0.0
          %6208 = vmatpush1.msra.mxu0 0.0
          %6209 = vmatprep.subr.mxu0 0.0
          %6210 = vmatpush1.msra.mxu0 0.0
          %6211 = vmatprep.subr.mxu0 0.0
          %6212 = vmatpush1.msra.mxu0 0.0
          %6213 = vmatprep.subr.mxu0 0.0
          %6214 = vmatpush1.msra.mxu0 0.0
          %6215 = vmatprep.subr.mxu0 0.0
          %6216 = vmatpush1.msra.mxu0 0.0
          %6217 = vmatprep.subr.mxu0 0.0
          %6218 = vmatpush1.msra.mxu0 0.0
          %6219 = vmatprep.subr.mxu0 0.0
          %6220 = vmatpush1.msra.mxu0 0.0
          %6221 = vmatprep.subr.mxu0 0.0
          %6222 = vmatpush1.msra.mxu0 0.0
          %6223 = vmatprep.subr.mxu0 0.0
          %6224 = vmatpush1.msra.mxu0 0.0
          %6225 = vmatprep.subr.mxu0 0.0
          %6226 = vmatpush1.msra.mxu0 0.0
          %6227 = vmatprep.subr.mxu0 0.0
          %6228 = vmatpush1.msra.mxu0 0.0
          %6229 = vmatprep.subr.mxu0 0.0
          %6230 = vmatpush1.msra.mxu0 0.0
          %6231 = vmatprep.subr.mxu0 0.0
          %6232 = vmatpush1.msra.mxu0 0.0
          %6233 = vmatprep.subr.mxu0 0.0
          %6234 = vmatpush1.msra.mxu0 0.0
          %6235 = vmatprep.subr.mxu0 0.0
          %6236 = vmatpush1.msra.mxu0 0.0
          %6237 = vmatprep.subr.mxu0 0.0
          %6238 = vmatpush1.msra.mxu0 0.0
          %6239 = vmatprep.subr.mxu0 0.0
          %6240 = vmatpush1.msra.mxu0 0.0
          %6241 = vmatprep.subr.mxu0 0.0
          %6242 = vmatpush1.msra.mxu0 0.0
          %6243 = vmatprep.subr.mxu0 0.0
          %6244 = vmatpush1.msra.mxu0 0.0
          %6245 = vmatprep.subr.mxu0 0.0
          %6246 = vmatpush1.msra.mxu0 0.0
          %6247 = vmatprep.mubr.f32.mxu0 0.0
          %6248 = vmatmul.mubr.f32.gmra.mrb[0].mxu0 %v6181
          %v6249 = vpop.f32.mrb[0].mxu0
          %v6250 = vadd.f32 0.0, %v6249
          %v6251 = vpop.f32.mrb[0].mxu0
          %6252 = vdwg.mxu0
          %v6253 = vadd.f32 %v6179, %v6250
          %v6254 = vrot.slane %v6102, 2
          %v6255 = vsel %vm4432, %v6254, 0
          %6257 = vmatprep.subr.mxu0 0.0
          %6258 = vmatpush1.msra.mxu0 %v3207
          %6259 = vmatprep.subr.mxu0 0.0
          %6260 = vmatpush1.msra.mxu0 %v4592
          %6261 = vmatprep.subr.mxu0 0.0
          %6262 = vmatpush1.msra.mxu0 0.0
          %6263 = vmatprep.subr.mxu0 0.0
          %6264 = vmatpush1.msra.mxu0 0.0
          %6265 = vmatprep.subr.mxu0 0.0
          %6266 = vmatpush1.msra.mxu0 0.0
          %6267 = vmatprep.subr.mxu0 0.0
          %6268 = vmatpush1.msra.mxu0 0.0
          %6269 = vmatprep.subr.mxu0 0.0
          %6270 = vmatpush1.msra.mxu0 0.0
          %6271 = vmatprep.subr.mxu0 0.0
          %6272 = vmatpush1.msra.mxu0 0.0
          %6273 = vmatprep.subr.mxu0 0.0
          %6274 = vmatpush1.msra.mxu0 0.0
          %6275 = vmatprep.subr.mxu0 0.0
          %6276 = vmatpush1.msra.mxu0 0.0
          %6277 = vmatprep.subr.mxu0 0.0
          %6278 = vmatpush1.msra.mxu0 0.0
          %6279 = vmatprep.subr.mxu0 0.0
          %6280 = vmatpush1.msra.mxu0 0.0
          %6281 = vmatprep.subr.mxu0 0.0
          %6282 = vmatpush1.msra.mxu0 0.0
          %6283 = vmatprep.subr.mxu0 0.0
          %6284 = vmatpush1.msra.mxu0 0.0
          %6285 = vmatprep.subr.mxu0 0.0
          %6286 = vmatpush1.msra.mxu0 0.0
          %6287 = vmatprep.subr.mxu0 0.0
          %6288 = vmatpush1.msra.mxu0 0.0
          %6289 = vmatprep.subr.mxu0 0.0
          %6290 = vmatpush1.msra.mxu0 0.0
          %6291 = vmatprep.subr.mxu0 0.0
          %6292 = vmatpush1.msra.mxu0 0.0
          %6293 = vmatprep.subr.mxu0 0.0
          %6294 = vmatpush1.msra.mxu0 0.0
          %6295 = vmatprep.subr.mxu0 0.0
          %6296 = vmatpush1.msra.mxu0 0.0
          %6297 = vmatprep.subr.mxu0 0.0
          %6298 = vmatpush1.msra.mxu0 0.0
          %6299 = vmatprep.subr.mxu0 0.0
          %6300 = vmatpush1.msra.mxu0 0.0
          %6301 = vmatprep.subr.mxu0 0.0
          %6302 = vmatpush1.msra.mxu0 0.0
          %6303 = vmatprep.subr.mxu0 0.0
          %6304 = vmatpush1.msra.mxu0 0.0
          %6305 = vmatprep.subr.mxu0 0.0
          %6306 = vmatpush1.msra.mxu0 0.0
          %6307 = vmatprep.subr.mxu0 0.0
          %6308 = vmatpush1.msra.mxu0 0.0
          %6309 = vmatprep.subr.mxu0 0.0
          %6310 = vmatpush1.msra.mxu0 0.0
          %6311 = vmatprep.subr.mxu0 0.0
          %6312 = vmatpush1.msra.mxu0 0.0
          %6313 = vmatprep.subr.mxu0 0.0
          %6314 = vmatpush1.msra.mxu0 0.0
          %6315 = vmatprep.subr.mxu0 0.0
          %6316 = vmatpush1.msra.mxu0 0.0
          %6317 = vmatprep.subr.mxu0 0.0
          %6318 = vmatpush1.msra.mxu0 0.0
          %6319 = vmatprep.subr.mxu0 0.0
          %6320 = vmatpush1.msra.mxu0 0.0
          %6321 = vmatprep.mubr.f32.mxu0 0.0
          %6322 = vmatmul.mubr.f32.gmra.mrb[0].mxu0 %v6255
          %v6323 = vpop.f32.mrb[0].mxu0
          %v6324 = vadd.f32 0.0, %v6323
          %v6325 = vpop.f32.mrb[0].mxu0
          %6326 = vdwg.mxu0
          %v6327 = vadd.f32 %v6253, %v6324
          %v6328 = vrot.slane %v6102, 3
          %v6329 = vsel %vm4432, %v6328, 0
          %6331 = vmatprep.subr.mxu0 0.0
          %6332 = vmatpush1.msra.mxu0 %v3209
          %6333 = vmatprep.subr.mxu0 0.0
          %6334 = vmatpush1.msra.mxu0 %v4669
          %6335 = vmatprep.subr.mxu0 0.0
          %6336 = vmatpush1.msra.mxu0 0.0
          %6337 = vmatprep.subr.mxu0 0.0
          %6338 = vmatpush1.msra.mxu0 0.0
          %6339 = vmatprep.subr.mxu0 0.0
          %6340 = vmatpush1.msra.mxu0 0.0
          %6341 = vmatprep.subr.mxu0 0.0
          %6342 = vmatpush1.msra.mxu0 0.0
          %6343 = vmatprep.subr.mxu0 0.0
          %6344 = vmatpush1.msra.mxu0 0.0
          %6345 = vmatprep.subr.mxu0 0.0
          %6346 = vmatpush1.msra.mxu0 0.0
          %6347 = vmatprep.subr.mxu0 0.0
          %6348 = vmatpush1.msra.mxu0 0.0
          %6349 = vmatprep.subr.mxu0 0.0
          %6350 = vmatpush1.msra.mxu0 0.0
          %6351 = vmatprep.subr.mxu0 0.0
          %6352 = vmatpush1.msra.mxu0 0.0
          %6353 = vmatprep.subr.mxu0 0.0
          %6354 = vmatpush1.msra.mxu0 0.0
          %6355 = vmatprep.subr.mxu0 0.0
          %6356 = vmatpush1.msra.mxu0 0.0
          %6357 = vmatprep.subr.mxu0 0.0
          %6358 = vmatpush1.msra.mxu0 0.0
          %6359 = vmatprep.subr.mxu0 0.0
          %6360 = vmatpush1.msra.mxu0 0.0
          %6361 = vmatprep.subr.mxu0 0.0
          %6362 = vmatpush1.msra.mxu0 0.0
          %6363 = vmatprep.subr.mxu0 0.0
          %6364 = vmatpush1.msra.mxu0 0.0
          %6365 = vmatprep.subr.mxu0 0.0
          %6366 = vmatpush1.msra.mxu0 0.0
          %6367 = vmatprep.subr.mxu0 0.0
          %6368 = vmatpush1.msra.mxu0 0.0
          %6369 = vmatprep.subr.mxu0 0.0
          %6370 = vmatpush1.msra.mxu0 0.0
          %6371 = vmatprep.subr.mxu0 0.0
          %6372 = vmatpush1.msra.mxu0 0.0
          %6373 = vmatprep.subr.mxu0 0.0
          %6374 = vmatpush1.msra.mxu0 0.0
          %6375 = vmatprep.subr.mxu0 0.0
          %6376 = vmatpush1.msra.mxu0 0.0
          %6377 = vmatprep.subr.mxu0 0.0
          %6378 = vmatpush1.msra.mxu0 0.0
          %6379 = vmatprep.subr.mxu0 0.0
          %6380 = vmatpush1.msra.mxu0 0.0
          %6381 = vmatprep.subr.mxu0 0.0
          %6382 = vmatpush1.msra.mxu0 0.0
          %6383 = vmatprep.subr.mxu0 0.0
          %6384 = vmatpush1.msra.mxu0 0.0
          %6385 = vmatprep.subr.mxu0 0.0
          %6386 = vmatpush1.msra.mxu0 0.0
          %6387 = vmatprep.subr.mxu0 0.0
          %6388 = vmatpush1.msra.mxu0 0.0
          %6389 = vmatprep.subr.mxu0 0.0
          %6390 = vmatpush1.msra.mxu0 0.0
          %6391 = vmatprep.subr.mxu0 0.0
          %6392 = vmatpush1.msra.mxu0 0.0
          %6393 = vmatprep.subr.mxu0 0.0
          %6394 = vmatpush1.msra.mxu0 0.0
          %6395 = vmatprep.mubr.f32.mxu0 0.0
          %6396 = vmatmul.mubr.f32.gmra.mrb[0].mxu0 %v6329
          %v6397 = vpop.f32.mrb[0].mxu0
          %v6398 = vadd.f32 0.0, %v6397
          %v6399 = vpop.f32.mrb[0].mxu0
          %6400 = vdwg.mxu0
          %v6401 = vadd.f32 %v6327, %v6398
          %v6402 = vrot.slane %v6102, 4
          %v6403 = vsel %vm4432, %v6402, 0
          %6405 = vmatprep.subr.mxu0 0.0
          %6406 = vmatpush1.msra.mxu0 %v3211
          %6407 = vmatprep.subr.mxu0 0.0
          %6408 = vmatpush1.msra.mxu0 %v4746
          %6409 = vmatprep.subr.mxu0 0.0
          %6410 = vmatpush1.msra.mxu0 0.0
          %6411 = vmatprep.subr.mxu0 0.0
          %6412 = vmatpush1.msra.mxu0 0.0
          %6413 = vmatprep.subr.mxu0 0.0
          %6414 = vmatpush1.msra.mxu0 0.0
          %6415 = vmatprep.subr.mxu0 0.0
          %6416 = vmatpush1.msra.mxu0 0.0
          %6417 = vmatprep.subr.mxu0 0.0
          %6418 = vmatpush1.msra.mxu0 0.0
          %6419 = vmatprep.subr.mxu0 0.0
          %6420 = vmatpush1.msra.mxu0 0.0
          %6421 = vmatprep.subr.mxu0 0.0
          %6422 = vmatpush1.msra.mxu0 0.0
          %6423 = vmatprep.subr.mxu0 0.0
          %6424 = vmatpush1.msra.mxu0 0.0
          %6425 = vmatprep.subr.mxu0 0.0
          %6426 = vmatpush1.msra.mxu0 0.0
          %6427 = vmatprep.subr.mxu0 0.0
          %6428 = vmatpush1.msra.mxu0 0.0
          %6429 = vmatprep.subr.mxu0 0.0
          %6430 = vmatpush1.msra.mxu0 0.0
          %6431 = vmatprep.subr.mxu0 0.0
          %6432 = vmatpush1.msra.mxu0 0.0
          %6433 = vmatprep.subr.mxu0 0.0
          %6434 = vmatpush1.msra.mxu0 0.0
          %6435 = vmatprep.subr.mxu0 0.0
          %6436 = vmatpush1.msra.mxu0 0.0
          %6437 = vmatprep.subr.mxu0 0.0
          %6438 = vmatpush1.msra.mxu0 0.0
          %6439 = vmatprep.subr.mxu0 0.0
          %6440 = vmatpush1.msra.mxu0 0.0
          %6441 = vmatprep.subr.mxu0 0.0
          %6442 = vmatpush1.msra.mxu0 0.0
          %6443 = vmatprep.subr.mxu0 0.0
          %6444 = vmatpush1.msra.mxu0 0.0
          %6445 = vmatprep.subr.mxu0 0.0
          %6446 = vmatpush1.msra.mxu0 0.0
          %6447 = vmatprep.subr.mxu0 0.0
          %6448 = vmatpush1.msra.mxu0 0.0
          %6449 = vmatprep.subr.mxu0 0.0
          %6450 = vmatpush1.msra.mxu0 0.0
          %6451 = vmatprep.subr.mxu0 0.0
          %6452 = vmatpush1.msra.mxu0 0.0
          %6453 = vmatprep.subr.mxu0 0.0
          %6454 = vmatpush1.msra.mxu0 0.0
          %6455 = vmatprep.subr.mxu0 0.0
          %6456 = vmatpush1.msra.mxu0 0.0
          %6457 = vmatprep.subr.mxu0 0.0
          %6458 = vmatpush1.msra.mxu0 0.0
          %6459 = vmatprep.subr.mxu0 0.0
          %6460 = vmatpush1.msra.mxu0 0.0
          %6461 = vmatprep.subr.mxu0 0.0
          %6462 = vmatpush1.msra.mxu0 0.0
          %6463 = vmatprep.subr.mxu0 0.0
          %6464 = vmatpush1.msra.mxu0 0.0
          %6465 = vmatprep.subr.mxu0 0.0
          %6466 = vmatpush1.msra.mxu0 0.0
          %6467 = vmatprep.subr.mxu0 0.0
          %6468 = vmatpush1.msra.mxu0 0.0
          %6469 = vmatprep.mubr.f32.mxu0 0.0
          %6470 = vmatmul.mubr.f32.gmra.mrb[0].mxu0 %v6403
          %v6471 = vpop.f32.mrb[0].mxu0
          %v6472 = vadd.f32 0.0, %v6471
          %v6473 = vpop.f32.mrb[0].mxu0
          %6474 = vdwg.mxu0
          %v6475 = vadd.f32 %v6401, %v6472
          %v6476 = vrot.slane %v6102, 5
          %v6477 = vsel %vm4432, %v6476, 0
          %6479 = vmatprep.subr.mxu0 0.0
          %6480 = vmatpush1.msra.mxu0 %v3213
          %6481 = vmatprep.subr.mxu0 0.0
          %6482 = vmatpush1.msra.mxu0 %v4823
          %6483 = vmatprep.subr.mxu0 0.0
          %6484 = vmatpush1.msra.mxu0 0.0
          %6485 = vmatprep.subr.mxu0 0.0
          %6486 = vmatpush1.msra.mxu0 0.0
          %6487 = vmatprep.subr.mxu0 0.0
          %6488 = vmatpush1.msra.mxu0 0.0
          %6489 = vmatprep.subr.mxu0 0.0
          %6490 = vmatpush1.msra.mxu0 0.0
          %6491 = vmatprep.subr.mxu0 0.0
          %6492 = vmatpush1.msra.mxu0 0.0
          %6493 = vmatprep.subr.mxu0 0.0
          %6494 = vmatpush1.msra.mxu0 0.0
          %6495 = vmatprep.subr.mxu0 0.0
          %6496 = vmatpush1.msra.mxu0 0.0
          %6497 = vmatprep.subr.mxu0 0.0
          %6498 = vmatpush1.msra.mxu0 0.0
          %6499 = vmatprep.subr.mxu0 0.0
          %6500 = vmatpush1.msra.mxu0 0.0
          %6501 = vmatprep.subr.mxu0 0.0
          %6502 = vmatpush1.msra.mxu0 0.0
          %6503 = vmatprep.subr.mxu0 0.0
          %6504 = vmatpush1.msra.mxu0 0.0
          %6505 = vmatprep.subr.mxu0 0.0
          %6506 = vmatpush1.msra.mxu0 0.0
          %6507 = vmatprep.subr.mxu0 0.0
          %6508 = vmatpush1.msra.mxu0 0.0
          %6509 = vmatprep.subr.mxu0 0.0
          %6510 = vmatpush1.msra.mxu0 0.0
          %6511 = vmatprep.subr.mxu0 0.0
          %6512 = vmatpush1.msra.mxu0 0.0
          %6513 = vmatprep.subr.mxu0 0.0
          %6514 = vmatpush1.msra.mxu0 0.0
          %6515 = vmatprep.subr.mxu0 0.0
          %6516 = vmatpush1.msra.mxu0 0.0
          %6517 = vmatprep.subr.mxu0 0.0
          %6518 = vmatpush1.msra.mxu0 0.0
          %6519 = vmatprep.subr.mxu0 0.0
          %6520 = vmatpush1.msra.mxu0 0.0
          %6521 = vmatprep.subr.mxu0 0.0
          %6522 = vmatpush1.msra.mxu0 0.0
          %6523 = vmatprep.subr.mxu0 0.0
          %6524 = vmatpush1.msra.mxu0 0.0
          %6525 = vmatprep.subr.mxu0 0.0
          %6526 = vmatpush1.msra.mxu0 0.0
          %6527 = vmatprep.subr.mxu0 0.0
          %6528 = vmatpush1.msra.mxu0 0.0
          %6529 = vmatprep.subr.mxu0 0.0
          %6530 = vmatpush1.msra.mxu0 0.0
          %6531 = vmatprep.subr.mxu0 0.0
          %6532 = vmatpush1.msra.mxu0 0.0
          %6533 = vmatprep.subr.mxu0 0.0
          %6534 = vmatpush1.msra.mxu0 0.0
          %6535 = vmatprep.subr.mxu0 0.0
          %6536 = vmatpush1.msra.mxu0 0.0
          %6537 = vmatprep.subr.mxu0 0.0
          %6538 = vmatpush1.msra.mxu0 0.0
          %6539 = vmatprep.subr.mxu0 0.0
          %6540 = vmatpush1.msra.mxu0 0.0
          %6541 = vmatprep.subr.mxu0 0.0
          %6542 = vmatpush1.msra.mxu0 0.0
          %6543 = vmatprep.mubr.f32.mxu0 0.0
          %6544 = vmatmul.mubr.f32.gmra.mrb[0].mxu0 %v6477
          %v6545 = vpop.f32.mrb[0].mxu0
          %v6546 = vadd.f32 0.0, %v6545
          %v6547 = vpop.f32.mrb[0].mxu0
          %6548 = vdwg.mxu0
          %v6549 = vadd.f32 %v6475, %v6546
          %v6550 = vrot.slane %v6102, 6
          %v6551 = vsel %vm4432, %v6550, 0
          %6553 = vmatprep.subr.mxu0 0.0
          %6554 = vmatpush1.msra.mxu0 %v3215
          %6555 = vmatprep.subr.mxu0 0.0
          %6556 = vmatpush1.msra.mxu0 %v4900
          %6557 = vmatprep.subr.mxu0 0.0
          %6558 = vmatpush1.msra.mxu0 0.0
          %6559 = vmatprep.subr.mxu0 0.0
          %6560 = vmatpush1.msra.mxu0 0.0
          %6561 = vmatprep.subr.mxu0 0.0
          %6562 = vmatpush1.msra.mxu0 0.0
          %6563 = vmatprep.subr.mxu0 0.0
          %6564 = vmatpush1.msra.mxu0 0.0
          %6565 = vmatprep.subr.mxu0 0.0
          %6566 = vmatpush1.msra.mxu0 0.0
          %6567 = vmatprep.subr.mxu0 0.0
          %6568 = vmatpush1.msra.mxu0 0.0
          %6569 = vmatprep.subr.mxu0 0.0
          %6570 = vmatpush1.msra.mxu0 0.0
          %6571 = vmatprep.subr.mxu0 0.0
          %6572 = vmatpush1.msra.mxu0 0.0
          %6573 = vmatprep.subr.mxu0 0.0
          %6574 = vmatpush1.msra.mxu0 0.0
          %6575 = vmatprep.subr.mxu0 0.0
          %6576 = vmatpush1.msra.mxu0 0.0
          %6577 = vmatprep.subr.mxu0 0.0
          %6578 = vmatpush1.msra.mxu0 0.0
          %6579 = vmatprep.subr.mxu0 0.0
          %6580 = vmatpush1.msra.mxu0 0.0
          %6581 = vmatprep.subr.mxu0 0.0
          %6582 = vmatpush1.msra.mxu0 0.0
          %6583 = vmatprep.subr.mxu0 0.0
          %6584 = vmatpush1.msra.mxu0 0.0
          %6585 = vmatprep.subr.mxu0 0.0
          %6586 = vmatpush1.msra.mxu0 0.0
          %6587 = vmatprep.subr.mxu0 0.0
          %6588 = vmatpush1.msra.mxu0 0.0
          %6589 = vmatprep.subr.mxu0 0.0
          %6590 = vmatpush1.msra.mxu0 0.0
          %6591 = vmatprep.subr.mxu0 0.0
          %6592 = vmatpush1.msra.mxu0 0.0
          %6593 = vmatprep.subr.mxu0 0.0
          %6594 = vmatpush1.msra.mxu0 0.0
          %6595 = vmatprep.subr.mxu0 0.0
          %6596 = vmatpush1.msra.mxu0 0.0
          %6597 = vmatprep.subr.mxu0 0.0
          %6598 = vmatpush1.msra.mxu0 0.0
          %6599 = vmatprep.subr.mxu0 0.0
          %6600 = vmatpush1.msra.mxu0 0.0
          %6601 = vmatprep.subr.mxu0 0.0
          %6602 = vmatpush1.msra.mxu0 0.0
          %6603 = vmatprep.subr.mxu0 0.0
          %6604 = vmatpush1.msra.mxu0 0.0
          %6605 = vmatprep.subr.mxu0 0.0
          %6606 = vmatpush1.msra.mxu0 0.0
          %6607 = vmatprep.subr.mxu0 0.0
          %6608 = vmatpush1.msra.mxu0 0.0
          %6609 = vmatprep.subr.mxu0 0.0
          %6610 = vmatpush1.msra.mxu0 0.0
          %6611 = vmatprep.subr.mxu0 0.0
          %6612 = vmatpush1.msra.mxu0 0.0
          %6613 = vmatprep.subr.mxu0 0.0
          %6614 = vmatpush1.msra.mxu0 0.0
          %6615 = vmatprep.subr.mxu0 0.0
          %6616 = vmatpush1.msra.mxu0 0.0
          %6617 = vmatprep.mubr.f32.mxu0 0.0
          %6618 = vmatmul.mubr.f32.gmra.mrb[0].mxu0 %v6551
          %v6619 = vpop.f32.mrb[0].mxu0
          %v6620 = vadd.f32 0.0, %v6619
          %v6621 = vpop.f32.mrb[0].mxu0
          %6622 = vdwg.mxu0
          %v6623 = vadd.f32 %v6549, %v6620
          %v6624 = vrot.slane %v6102, 7
          %v6625 = vsel %vm4432, %v6624, 0
          %6627 = vmatprep.subr.mxu0 0.0
          %6628 = vmatpush1.msra.mxu0 %v3217
          %6629 = vmatprep.subr.mxu0 0.0
          %6630 = vmatpush1.msra.mxu0 %v4977
          %6631 = vmatprep.subr.mxu0 0.0
          %6632 = vmatpush1.msra.mxu0 0.0
          %6633 = vmatprep.subr.mxu0 0.0
          %6634 = vmatpush1.msra.mxu0 0.0
          %6635 = vmatprep.subr.mxu0 0.0
          %6636 = vmatpush1.msra.mxu0 0.0
          %6637 = vmatprep.subr.mxu0 0.0
          %6638 = vmatpush1.msra.mxu0 0.0
          %6639 = vmatprep.subr.mxu0 0.0
          %6640 = vmatpush1.msra.mxu0 0.0
          %6641 = vmatprep.subr.mxu0 0.0
          %6642 = vmatpush1.msra.mxu0 0.0
          %6643 = vmatprep.subr.mxu0 0.0
          %6644 = vmatpush1.msra.mxu0 0.0
          %6645 = vmatprep.subr.mxu0 0.0
          %6646 = vmatpush1.msra.mxu0 0.0
          %6647 = vmatprep.subr.mxu0 0.0
          %6648 = vmatpush1.msra.mxu0 0.0
          %6649 = vmatprep.subr.mxu0 0.0
          %6650 = vmatpush1.msra.mxu0 0.0
          %6651 = vmatprep.subr.mxu0 0.0
          %6652 = vmatpush1.msra.mxu0 0.0
          %6653 = vmatprep.subr.mxu0 0.0
          %6654 = vmatpush1.msra.mxu0 0.0
          %6655 = vmatprep.subr.mxu0 0.0
          %6656 = vmatpush1.msra.mxu0 0.0
          %6657 = vmatprep.subr.mxu0 0.0
          %6658 = vmatpush1.msra.mxu0 0.0
          %6659 = vmatprep.subr.mxu0 0.0
          %6660 = vmatpush1.msra.mxu0 0.0
          %6661 = vmatprep.subr.mxu0 0.0
          %6662 = vmatpush1.msra.mxu0 0.0
          %6663 = vmatprep.subr.mxu0 0.0
          %6664 = vmatpush1.msra.mxu0 0.0
          %6665 = vmatprep.subr.mxu0 0.0
          %6666 = vmatpush1.msra.mxu0 0.0
          %6667 = vmatprep.subr.mxu0 0.0
          %6668 = vmatpush1.msra.mxu0 0.0
          %6669 = vmatprep.subr.mxu0 0.0
          %6670 = vmatpush1.msra.mxu0 0.0
          %6671 = vmatprep.subr.mxu0 0.0
          %6672 = vmatpush1.msra.mxu0 0.0
          %6673 = vmatprep.subr.mxu0 0.0
          %6674 = vmatpush1.msra.mxu0 0.0
          %6675 = vmatprep.subr.mxu0 0.0
          %6676 = vmatpush1.msra.mxu0 0.0
          %6677 = vmatprep.subr.mxu0 0.0
          %6678 = vmatpush1.msra.mxu0 0.0
          %6679 = vmatprep.subr.mxu0 0.0
          %6680 = vmatpush1.msra.mxu0 0.0
          %6681 = vmatprep.subr.mxu0 0.0
          %6682 = vmatpush1.msra.mxu0 0.0
          %6683 = vmatprep.subr.mxu0 0.0
          %6684 = vmatpush1.msra.mxu0 0.0
          %6685 = vmatprep.subr.mxu0 0.0
          %6686 = vmatpush1.msra.mxu0 0.0
          %6687 = vmatprep.subr.mxu0 0.0
          %6688 = vmatpush1.msra.mxu0 0.0
          %6689 = vmatprep.subr.mxu0 0.0
          %6690 = vmatpush1.msra.mxu0 0.0
          %6691 = vmatprep.mubr.f32.mxu0 0.0
          %6692 = vmatmul.mubr.f32.gmra.mrb[0].mxu0 %v6625
          %v6693 = vpop.f32.mrb[0].mxu0
          %v6694 = vadd.f32 0.0, %v6693
          %v6695 = vpop.f32.mrb[0].mxu0
          %6696 = vdwg.mxu0
          %v6697 = vadd.f32 %v6623, %v6694
          %v6698 = vmax.f32 %v6697, 0.0
          %v6699 = vld [vmem:[%s13] sm:$0x1]
          %v6701 = vsel %vm5052, %v6698, 0
          %6703 = vmatprep.subr.mxu0 0.0
          %6704 = vmatpush1.msra.mxu0 %v3223
          %6705 = vmatprep.subr.mxu0 0.0
          %6706 = vmatpush1.msra.mxu0 %v3224
          %6707 = vmatprep.subr.mxu0 0.0
          %6708 = vmatpush1.msra.mxu0 %v3225
          %6709 = vmatprep.subr.mxu0 0.0
          %6710 = vmatpush1.msra.mxu0 %v3226
          %6711 = vmatprep.subr.mxu0 0.0
          %6712 = vmatpush1.msra.mxu0 %v3227
          %6713 = vmatprep.subr.mxu0 0.0
          %6714 = vmatpush1.msra.mxu0 %v3228
          %6715 = vmatprep.subr.mxu0 0.0
          %6716 = vmatpush1.msra.mxu0 %v3229
          %6717 = vmatprep.subr.mxu0 0.0
          %6718 = vmatpush1.msra.mxu0 %v3230
          %6719 = vmatprep.subr.mxu0 0.0
          %6720 = vmatpush1.msra.mxu0 %v3231
          %6721 = vmatprep.subr.mxu0 0.0
          %6722 = vmatpush1.msra.mxu0 %v3232
          %6723 = vmatprep.subr.mxu0 0.0
          %6724 = vmatpush1.msra.mxu0 %v3233
          %6725 = vmatprep.subr.mxu0 0.0
          %6726 = vmatpush1.msra.mxu0 %v3234
          %6727 = vmatprep.subr.mxu0 0.0
          %6728 = vmatpush1.msra.mxu0 %v5057
          %6729 = vmatprep.subr.mxu0 0.0
          %6730 = vmatpush1.msra.mxu0 0.0
          %6731 = vmatprep.subr.mxu0 0.0
          %6732 = vmatpush1.msra.mxu0 0.0
          %6733 = vmatprep.subr.mxu0 0.0
          %6734 = vmatpush1.msra.mxu0 0.0
          %6735 = vmatprep.subr.mxu0 0.0
          %6736 = vmatpush1.msra.mxu0 0.0
          %6737 = vmatprep.subr.mxu0 0.0
          %6738 = vmatpush1.msra.mxu0 0.0
          %6739 = vmatprep.subr.mxu0 0.0
          %6740 = vmatpush1.msra.mxu0 0.0
          %6741 = vmatprep.subr.mxu0 0.0
          %6742 = vmatpush1.msra.mxu0 0.0
          %6743 = vmatprep.subr.mxu0 0.0
          %6744 = vmatpush1.msra.mxu0 0.0
          %6745 = vmatprep.subr.mxu0 0.0
          %6746 = vmatpush1.msra.mxu0 0.0
          %6747 = vmatprep.subr.mxu0 0.0
          %6748 = vmatpush1.msra.mxu0 0.0
          %6749 = vmatprep.subr.mxu0 0.0
          %6750 = vmatpush1.msra.mxu0 0.0
          %6751 = vmatprep.subr.mxu0 0.0
          %6752 = vmatpush1.msra.mxu0 0.0
          %6753 = vmatprep.subr.mxu0 0.0
          %6754 = vmatpush1.msra.mxu0 0.0
          %6755 = vmatprep.subr.mxu0 0.0
          %6756 = vmatpush1.msra.mxu0 0.0
          %6757 = vmatprep.subr.mxu0 0.0
          %6758 = vmatpush1.msra.mxu0 0.0
          %6759 = vmatprep.subr.mxu0 0.0
          %6760 = vmatpush1.msra.mxu0 0.0
          %6761 = vmatprep.subr.mxu0 0.0
          %6762 = vmatpush1.msra.mxu0 0.0
          %6763 = vmatprep.subr.mxu0 0.0
          %6764 = vmatpush1.msra.mxu0 0.0
          %6765 = vmatprep.subr.mxu0 0.0
          %6766 = vmatpush1.msra.mxu0 0.0
          %6767 = vmatprep.mubr.f32.mxu0 0.0
          %6768 = vmatmul.mubr.f32.gmra.mrb[0].mxu0 %v6701
          %v6769 = vpop.f32.mrb[0].mxu0
          %v6770 = vadd.f32 %v6699, %v6769
          %v6771 = vpop.f32.mrb[0].mxu0
          %6772 = vdwg.mxu0
          %6773 = vst.msk [vmem:[#allocation5 + $0x1] sm:$0x1] %vm5129, %v6770
        $region130: #{calanet_forward.1} parent=113 // pred_fallthru
          _
        // Predicated region
        $region131: #{calanet_forward.1} parent=113 // pred_check
          %p6774 = pneg %p343
        $region132: #{calanet_forward.1} parent=113 // pred_check_branch
          %6776 = sbr.rel (%p6774) target = $region134
        $region133: #{calanet_forward.1} parent=113 // pred_region
          %s6778 = ssub.s32 32, 32
          %6779 = vsyncadd [#allocation6], %s6778
          %s6781 = sshll.u32 [#allocation5], 4
          %s6782 = int_to_ptr.vmem [resolvable:$true] %s6781
          %6784 = dma.vmem_to_hbm [thread:$0]  %s6782, 32, %s14, [#allocation6]
        $region134: #{calanet_forward.1} parent=113 // pred_fallthru
          _
        // Predicated region
        $region135: #{calanet_forward.1} parent=113 // pred_check
          %p6785 = pneg %p343
        $region136: #{calanet_forward.1} parent=113 // pred_check_branch
          %6787 = sbr.rel (%p6785) target = $region138
        $region137: #{calanet_forward.1} parent=113 // pred_region
          %6788 = dma.done [#allocation6], 32
        $region138: #{calanet_forward.1} parent=113 // pred_fallthru
          _
      $region114: #{calanet_forward.1} parent=5 // pred_fallthru
        _
      %p6789 = scmp.le.s32.totalorder 2, %s21
      // Predicated region
      $region139: #{calanet_forward.1} parent=5 // pred_check
        %p6790 = pneg %p6789
      $region140: #{calanet_forward.1} parent=5 // pred_check_branch
        %6792 = sbr.rel (%p6790) target = $region142
      $region141: #{calanet_forward.1} parent=5 // pred_region
        %s6793 = ssub.s32 %s21, 2
      $region142: #{calanet_forward.1} parent=5 // pred_fallthru
        _
    $region6: #{calanet_forward.1} parent=1 // loop_footer
      %s25 = sadd.s32 1, %s21
    $region7: #{calanet_forward.1} parent=1 // loop_footer_branch
      %20 = sbr.rel target = $region3
    $region8: #{calanet_forward.1} parent=1 // loop_exit
      _
    %6794 = vsyncpa [#allocation6], 1
    %s6795 = scalar_lea.sflag [#allocation6], 1
    %6796 = vsyncpa %s6795, 1

</llo_original>
